<compile_context>
chip_gen: v7x
topology: tpu7x:2x2x1
jax: 0.10.0
libtpu: 0.0.40
codegen_flags: <defaults>
</compile_context>

<pallas_src>
import functools
import math

import jax
import jax.numpy as jnp
from jax.experimental import pallas as pl
from jax.experimental.pallas import tpu as pltpu


def _round_up(x, m):
    return (x + m - 1) // m * m


# ---------------------------------------------------------------------------
# Wrapper + kernel (kernel is a closure so the chunk/pad constants are static).
# ---------------------------------------------------------------------------
def decoder_with_attention_forward(sentences, encoder_features, params, max_len,
                                   t_chunk=4):
    """sentences: (B, max_len) int32; encoder_features: (B, P, ENC) f32."""
    B, P, ENC = encoder_features.shape
    E = params["embedding"].shape[1]
    A = params["wf"].shape[1]
    D = params["whh"].shape[0]
    V = params["wo"].shape[1]
    T1 = max_len - 1

    Vp = _round_up(V, 128)                 # lane-dense logits width
    Pp = _round_up(P, 128)                 # lane-dense alpha width
    Bp = _round_up(max(B, 8), 8)           # sublane-multiple batch
    TCHUNK = max(1, min(t_chunk, T1))      # decode steps per grid iteration
    T1p = _round_up(T1, TCHUNK)
    n_chunks = T1p // TCHUNK
    bf16, f32 = jnp.bfloat16, jnp.float32

    # ---- step-invariant precomputation (glue, runs once under jit) ----------
    pad_b = Bp - B
    enc_f = jnp.pad(encoder_features, ((0, pad_b), (0, 0), (0, 0)))

    # Hoisted encoder-feature projection, stored bf16 (largest resident buffer).
    mapped_feat = (enc_f @ params["wf"] + params["bf"]).astype(bf16)       # (Bp,P,A)
    feats_bf = enc_f.astype(bf16)                                          # (Bp,P,ENC)

    # Hoisted embedding contribution to the LSTM gates, biases pre-folded.
    # Time-major so the kernel can read emb_gates_ref[step] (one dynamic row).
    # TODO(synk): dropout (drop_prob=0.1) is identity here (eval-mode semantics).
    emb_tm = params["embedding"][sentences[:, :T1].T]                      # (T1,B,E)
    emb_gates = (jnp.einsum("tbe,ef->tbf", emb_tm, params["wih_e"])
                 + params["bih"] + params["bhh"]).astype(f32)              # (T1,B,4D)
    emb_gates = jnp.pad(emb_gates, ((0, T1p - T1), (0, pad_b), (0, 0)))    # (T1p,Bp,4D)

    wh = params["wh"].astype(bf16)                     # (D, A)   attention.hidden_map
    bh = params["bh"].astype(f32)                      # (1, A)
    wa_row = params["wa"].reshape(1, A).astype(f32)    # (1, A)   attention.attention_map
    wc = params["wih_c"].astype(bf16)                  # (ENC, 4D)
    whh = params["whh"].astype(bf16)                   # (D, 4D)

    # Zero-pad the output projection to a lane-dense width (sliced back after).
    wo_p = jnp.zeros((D, Vp), bf16).at[:, :V].set(params["wo"].astype(bf16))
    bo_p = jnp.zeros((1, Vp), f32).at[:, :V].set(params["bo"].astype(f32))

    # ---- kernel: TCHUNK decode steps per grid iteration ---------------------
    def kernel(emb_ref,        # (T1p, Bp, 4D) f32  hoisted emb@W_ih_e + biases
               mfeat_ref,      # (Bp, P, A)    bf16 hoisted feats@Wf + bf
               feats_ref,      # (Bp, P, ENC)  bf16 encoder features
               wh_ref, bh_ref, # (D, A) bf16 / (1, A) f32
               wa_ref,         # (1, A) f32
               wc_ref,         # (ENC, 4D) bf16
               whh_ref,        # (D, 4D) bf16
               wo_ref, bo_ref, # (D, Vp) bf16 / (1, Vp) f32
               out_ref,        # (Bp, TCHUNK*Vp) f32
               alpha_ref,      # (Bp, TCHUNK*Pp) f32
               h_scr, c_scr):  # (Bp, D) f32 recurrent state (persists across chunks)
        c = pl.program_id(0)

        @pl.when(c == 0)
        def _():
            h_scr[...] = jnp.zeros_like(h_scr)
            c_scr[...] = jnp.zeros_like(c_scr)

        hidden = h_scr[...]                              # (Bp, D) f32
        cell = c_scr[...]                                # (Bp, D) f32
        mfeat = mfeat_ref[...].astype(jnp.float32)       # upcast once per chunk
        feats = feats_ref[...]                           # bf16
        wa = wa_ref[...][:, None, :]                     # (1, 1, A)

        for t in range(TCHUNK):                          # short, unrolled chunk
            step = c * TCHUNK + t
            hidden_bf = hidden.astype(jnp.bfloat16)

            # ---- Attention (feature projection hoisted; only hidden_map here) ----
            mapped_hid = (
                jnp.dot(hidden_bf, wh_ref[...], preferred_element_type=jnp.float32)
                + bh_ref[...]
            )                                            # (Bp, A) f32
            # TODO(synk): on v6e/v7x this tanh could run in bf16 (EUP is the likely
            # binding unit at realistic P*A); kept f32 for v5e portability.
            combined = jnp.tanh(mfeat + mapped_hid[:, None, :])      # (Bp, P, A)
            # Degenerate (A, 1) matvec kept off the MXU: VPU multiply + lane reduce.
            # (the "+ b_a" scalar bias is a per-row constant -> no-op under softmax)
            scores = jnp.sum(combined * wa, axis=-1)                  # (Bp, P)
            scores = scores - jnp.max(scores, axis=1, keepdims=True)
            e = jnp.exp(scores)
            inv_den = pl.reciprocal(jnp.sum(e, axis=1, keepdims=True), approx=True)
            alphas = e * inv_den                                      # (Bp, P)

            # Context vector on the MXU: (B,1,P) x (B,P,ENC), f32 accumulate.
            ctx = jnp.einsum(
                "bqp,bpe->bqe",
                alphas[:, None, :].astype(jnp.bfloat16), feats,
                preferred_element_type=jnp.float32,
            )[:, 0, :]                                                # (Bp, ENC)

            # ---- LSTM cell: emb term hoisted, two accumulated dots (no concat) ----
            gates = (
                emb_ref[step]
                + jnp.dot(ctx.astype(jnp.bfloat16), wc_ref[...],
                          preferred_element_type=jnp.float32)
                + jnp.dot(hidden_bf, whh_ref[...],
                          preferred_element_type=jnp.float32)
            )                                                         # (Bp, 4D) f32
            i_g = jax.nn.sigmoid(gates[:, 0 * D:1 * D])
            f_g = jax.nn.sigmoid(gates[:, 1 * D:2 * D])
            g_g = jnp.tanh(gates[:, 2 * D:3 * D])
            o_g = jax.nn.sigmoid(gates[:, 3 * D:4 * D])
            cell = f_g * cell + i_g * g_g
            hidden = o_g * jnp.tanh(cell)

            # ---- Output projection: 128-aligned lane-dense slab store ----
            out_ref[:, t * Vp:(t + 1) * Vp] = (
                jnp.dot(hidden.astype(jnp.bfloat16), wo_ref[...],
                        preferred_element_type=jnp.float32)
                + bo_ref[...]
            ).astype(out_ref.dtype)
            # Alphas: store only the P valid lanes; pad lanes are never read.
            alpha_ref[:, t * Pp:t * Pp + P] = alphas.astype(alpha_ref.dtype)

        h_scr[...] = hidden
        c_scr[...] = cell

    # ---- BlockSpecs ----------------------------------------------------------
    def resident(shape):
        # Constant index_map + single VMEM buffer for step-invariant inputs.
        nd = len(shape)
        return pl.BlockSpec(shape, lambda c: (0,) * nd,
                            pipeline_mode=pl.Buffered(1))

    grid_spec = pltpu.PrefetchScalarGridSpec(
        num_scalar_prefetch=0,
        grid=(n_chunks,),
        in_specs=[
            resident((T1p, Bp, 4 * D)),      # emb_gates (resident, indexed per step)
            resident((Bp, P, A)),            # mapped features (bf16)
            resident((Bp, P, ENC)),          # encoder features (bf16)
            resident((D, A)), resident((1, A)),      # hidden_map
            resident((1, A)),                         # attention_map row
            resident((ENC, 4 * D)),                   # W_ih (ctx part)
            resident((D, 4 * D)),                     # W_hh
            resident((D, Vp)), resident((1, Vp)),     # LinearMap (padded)
        ],
        out_specs=[
            # Batch-major, lane-dense slabs: chunk c owns columns
            # [c*TCHUNK*Vp, (c+1)*TCHUNK*Vp) of a (Bp, T1p*Vp) array (idem for Pp).
            pl.BlockSpec((Bp, TCHUNK * Vp), lambda c: (0, c)),
            pl.BlockSpec((Bp, TCHUNK * Pp), lambda c: (0, c)),
        ],
        scratch_shapes=[
            pltpu.VMEM((Bp, D), jnp.float32),   # hidden
            pltpu.VMEM((Bp, D), jnp.float32),   # cell
        ],
    )

    # vmem_limit sized from the actual resident-buffer sum (+ double-buffered
    # output blocks + headroom), clamped to a sane range.
    resident_bytes = (
        emb_gates.size * 4 + mapped_feat.size * 2 + feats_bf.size * 2
        + wh.size * 2 + bh.size * 4 + wa_row.size * 4
        + wc.size * 2 + whh.size * 2 + wo_p.size * 2 + bo_p.size * 4
        + 2 * Bp * D * 4
    )
    out_block_bytes = 2 * (Bp * TCHUNK * Vp * 4 + Bp * TCHUNK * Pp * 4)
    vmem_limit = int(min(max(2 * (resident_bytes + out_block_bytes) + (4 << 20),
                             32 << 20),
                         100 << 20))

    out_flat, alpha_flat = pl.pallas_call(
        kernel,
        grid_spec=grid_spec,
        out_shape=(
            jax.ShapeDtypeStruct((Bp, T1p * Vp), jnp.float32),
            jax.ShapeDtypeStruct((Bp, T1p * Pp), jnp.float32),
        ),
        compiler_params=pltpu.CompilerParams(
            dimension_semantics=("arbitrary",),   # sequential recurrence over chunks
            vmem_limit_bytes=vmem_limit,
        ),
    )(
        emb_gates, mapped_feat, feats_bf,
        wh, bh, wa_row,
        wc, whh,
        wo_p, bo_p,
    )

    # Free reshapes (row-major views) + cheap un-padding slices; no transposes.
    outputs = out_flat.reshape(Bp, T1p, Vp)[:B, :T1, :V]
    alphas = alpha_flat.reshape(Bp, T1p, Pp)[:B, :T1, :P]
    return outputs, alphas


# ---------------------------------------------------------------------------
# Pure-JAX f32 reference (mirrors the PyTorch forward) for a correctness check.
# ---------------------------------------------------------------------------
def reference_forward(sentences, encoder_features, params, max_len):
    embedded = params["embedding"][sentences]
    B = sentences.shape[0]
    D = params["whh"].shape[0]
    hidden = jnp.zeros((B, D), jnp.float32)
    cell = jnp.zeros((B, D), jnp.float32)
    outs, als = [], []
    for s in range(max_len - 1):
        mf = encoder_features @ params["wf"] + params["bf"]
        mh = hidden @ params["wh"] + params["bh"]
        comb = jnp.tanh(mf + mh[:, None, :])
        sc = (comb @ params["wa"])[..., 0] + params["ba"][0, 0]
        alpha = jax.nn.softmax(sc, axis=1)
        ctx = jnp.sum(encoder_features * alpha[:, :, None], axis=1)
        gates = (embedded[:, s] @ params["wih_e"] + ctx @ params["wih_c"]
                 + params["bih"] + hidden @ params["whh"] + params["bhh"])
        i_g = jax.nn.sigmoid(gates[:, 0 * D:1 * D])
        f_g = jax.nn.sigmoid(gates[:, 1 * D:2 * D])
        g_g = jnp.tanh(gates[:, 2 * D:3 * D])
        o_g = jax.nn.sigmoid(gates[:, 3 * D:4 * D])
        cell = f_g * cell + i_g * g_g
        hidden = o_g * jnp.tanh(cell)
        outs.append(hidden @ params["wo"] + params["bo"])
        als.append(alpha)
    return jnp.stack(outs, axis=1), jnp.stack(als, axis=1)


if __name__ == "__main__":
    # Small, deterministic problem sizes.
    B, P = 2, 16            # batch, number of encoder "pixels"
    ENC = 32                # encoder_dim
    E = 16                  # embedding_dim
    A = 32                  # attention_dim
    D = 32                  # decoder_dim
    V = 64                  # vocab_size
    max_len = 8             # global max_len in the PyTorch code

    key = jax.random.PRNGKey(0)
    ks = jax.random.split(key, 16)
    init = lambda k, shape: (jax.random.normal(k, shape, jnp.float32) * 0.1)

    params = {
        "embedding": init(ks[0], (V, E)),
        "wf": init(ks[1], (ENC, A)), "bf": init(ks[2], (1, A)),
        "wh": init(ks[3], (D, A)),   "bh": init(ks[4], (1, A)),
        "wa": init(ks[5], (A, 1)),   "ba": init(ks[6], (1, 1)),
        "wih_e": init(ks[7], (E, 4 * D)),     # lstm W_ih split, pre-transposed
        "wih_c": init(ks[8], (ENC, 4 * D)),
        "bih": init(ks[9], (1, 4 * D)),
        "whh": init(ks[10], (D, 4 * D)),
        "bhh": init(ks[11], (1, 4 * D)),
        "wo": init(ks[12], (D, V)), "bo": init(ks[13], (1, V)),
    }

    sentences = jax.random.randint(ks[14], (B, max_len), 0, V, jnp.int32)
    encoder_features = jax.random.normal(ks[15], (B, P, ENC), jnp.float32)

    fwd = jax.jit(functools.partial(decoder_with_attention_forward, max_len=max_len))
    outputs, alphas = fwd(sentences, encoder_features, params)
    jax.block_until_ready((outputs, alphas))

    ref_out, ref_al = reference_forward(sentences, encoder_features, params, max_len)
    assert outputs.shape == (B, max_len - 1, V)
    assert alphas.shape == (B, max_len - 1, P)
    # Kernel uses bf16 MXU operands / bf16-stored mapped features (f32 accumulation)
    # -> compare vs f32 reference with a tolerance matching bf16 rounding.
    assert jnp.allclose(outputs, ref_out, atol=2e-2, rtol=2e-2)
    assert jnp.allclose(alphas, ref_al, atol=2e-2, rtol=2e-2)
    print("KERNEL_OK")
</pallas_src>

<mosaic_0001>
module attributes {stable_mosaic.version = 11 : i64} {
  func.func @kernel(%arg0: i32, %arg1: memref<8x8x128xf32, #tpu.memory_space<vmem>>, %arg2: memref<8x16x32xbf16, #tpu.memory_space<vmem>>, %arg3: memref<8x16x32xbf16, #tpu.memory_space<vmem>>, %arg4: memref<32x32xbf16, #tpu.memory_space<vmem>>, %arg5: memref<1x32xf32, #tpu.memory_space<vmem>>, %arg6: memref<1x32xf32, #tpu.memory_space<vmem>>, %arg7: memref<32x128xbf16, #tpu.memory_space<vmem>>, %arg8: memref<32x128xbf16, #tpu.memory_space<vmem>>, %arg9: memref<32x128xbf16, #tpu.memory_space<vmem>>, %arg10: memref<1x128xf32, #tpu.memory_space<vmem>>, %arg11: memref<8x512xf32, #tpu.memory_space<vmem>>, %arg12: memref<8x512xf32, #tpu.memory_space<vmem>>, %arg13: memref<8x32xf32, #tpu.memory_space<vmem>>, %arg14: memref<8x32xf32, #tpu.memory_space<vmem>>) attributes {dimension_semantics = [#tpu.dimension_semantics<arbitrary>], iteration_bounds = array<i64: 2>, scalar_prefetch = 0 : i64, scratch_operands = 2 : i64, tpu.core_type = #tpu.core_type<tc>, window_params = [{pipeline_mode = #tpu.pipeline_mode<synchronous>, transform_indices = @transform_0, window_bounds = array<i64: 8, 8, 128>}, {pipeline_mode = #tpu.pipeline_mode<synchronous>, transform_indices = @transform_1, window_bounds = array<i64: 8, 16, 32>}, {pipeline_mode = #tpu.pipeline_mode<synchronous>, transform_indices = @transform_2, window_bounds = array<i64: 8, 16, 32>}, {pipeline_mode = #tpu.pipeline_mode<synchronous>, transform_indices = @transform_3, window_bounds = array<i64: 32, 32>}, {pipeline_mode = #tpu.pipeline_mode<synchronous>, transform_indices = @transform_4, window_bounds = array<i64: 1, 32>}, {pipeline_mode = #tpu.pipeline_mode<synchronous>, transform_indices = @transform_5, window_bounds = array<i64: 1, 32>}, {pipeline_mode = #tpu.pipeline_mode<synchronous>, transform_indices = @transform_6, window_bounds = array<i64: 32, 128>}, {pipeline_mode = #tpu.pipeline_mode<synchronous>, transform_indices = @transform_7, window_bounds = array<i64: 32, 128>}, {pipeline_mode = #tpu.pipeline_mode<synchronous>, transform_indices = @transform_8, window_bounds = array<i64: 32, 128>}, {pipeline_mode = #tpu.pipeline_mode<synchronous>, transform_indices = @transform_9, window_bounds = array<i64: 1, 128>}, {transform_indices = @transform_10, window_bounds = array<i64: 8, 512>}, {transform_indices = @transform_11, window_bounds = array<i64: 8, 512>}]} {
    %c0_i32 = arith.constant 0 : i32
    %0 = arith.cmpi eq, %arg0, %c0_i32 : i32
    %1 = arith.extui %0 : i1 to i32
    %c0_i32_0 = arith.constant 0 : i32
    %2 = arith.cmpi ne, %1, %c0_i32_0 : i32
    scf.if %2 {
      %cst_132 = arith.constant 0.000000e+00 : f32
      %300 = vector.broadcast %cst_132 : f32 to vector<8x32xf32>
      %c0_133 = arith.constant 0 : index
      %c0_134 = arith.constant 0 : index
      %301 = vector.load %arg13[%c0_133, %c0_134] : memref<8x32xf32, #tpu.memory_space<vmem>>, vector<8x32xf32>
      tpu.vector_store %arg13[%c0_133, %c0_134], %300 {strides = array<i32>} : memref<8x32xf32, #tpu.memory_space<vmem>>, vector<8x32xf32>,
      %cst_135 = arith.constant 0.000000e+00 : f32
      %302 = vector.broadcast %cst_135 : f32 to vector<8x32xf32>
      %c0_136 = arith.constant 0 : index
      %c0_137 = arith.constant 0 : index
      %303 = vector.load %arg14[%c0_136, %c0_137] : memref<8x32xf32, #tpu.memory_space<vmem>>, vector<8x32xf32>
      tpu.vector_store %arg14[%c0_136, %c0_137], %302 {strides = array<i32>} : memref<8x32xf32, #tpu.memory_space<vmem>>, vector<8x32xf32>,
    } else {
    }
    %c0 = arith.constant 0 : index
    %c0_1 = arith.constant 0 : index
    %3 = vector.load %arg13[%c0, %c0_1] : memref<8x32xf32, #tpu.memory_space<vmem>>, vector<8x32xf32>
    %c0_2 = arith.constant 0 : index
    %c0_3 = arith.constant 0 : index
    %4 = vector.load %arg14[%c0_2, %c0_3] : memref<8x32xf32, #tpu.memory_space<vmem>>, vector<8x32xf32>
    %c0_4 = arith.constant 0 : index
    %c0_5 = arith.constant 0 : index
    %c0_6 = arith.constant 0 : index
    %5 = vector.load %arg2[%c0_4, %c0_5, %c0_6] : memref<8x16x32xbf16, #tpu.memory_space<vmem>>, vector<8x16x32xbf16>
    %6 = arith.extf %5 : vector<8x16x32xbf16> to vector<8x16x32xf32>
    %c0_7 = arith.constant 0 : index
    %c0_8 = arith.constant 0 : index
    %c0_9 = arith.constant 0 : index
    %7 = vector.load %arg3[%c0_7, %c0_8, %c0_9] : memref<8x16x32xbf16, #tpu.memory_space<vmem>>, vector<8x16x32xbf16>
    %c0_10 = arith.constant 0 : index
    %c0_11 = arith.constant 0 : index
    %8 = vector.load %arg6[%c0_10, %c0_11] : memref<1x32xf32, #tpu.memory_space<vmem>>, vector<1x32xf32>
    %9 = vector.shape_cast %8 : vector<1x32xf32> to vector<1x1x32xf32>
    %c4_i32 = arith.constant 4 : i32
    %10 = arith.muli %arg0, %c4_i32 : i32
    %c0_i32_12 = arith.constant 0 : i32
    %11 = arith.addi %10, %c0_i32_12 : i32
    %12 = arith.truncf %3 : vector<8x32xf32> to vector<8x32xbf16>
    %c0_13 = arith.constant 0 : index
    %c0_14 = arith.constant 0 : index
    %13 = vector.load %arg4[%c0_13, %c0_14] : memref<32x32xbf16, #tpu.memory_space<vmem>>, vector<32x32xbf16>
    %cst = arith.constant dense<0.000000e+00> : vector<8x32xf32>
    %14 = tpu.matmul %12, %13, %cst {dimension_numbers = #tpu.dot_dimension_numbers<[1], [0], [0], [1], [0, 0, 1, 1], [], []>} : vector<8x32xbf16>, vector<32x32xbf16>, vector<8x32xf32> -> vector<8x32xf32>
    %c0_15 = arith.constant 0 : index
    %c0_16 = arith.constant 0 : index
    %15 = vector.load %arg5[%c0_15, %c0_16] : memref<1x32xf32, #tpu.memory_space<vmem>>, vector<1x32xf32>
    %16 = vector.broadcast %15 : vector<1x32xf32> to vector<8x32xf32>
    %17 = arith.addf %14, %16 : vector<8x32xf32>
    %18 = vector.shape_cast %17 : vector<8x32xf32> to vector<8x1x32xf32>
    %19 = vector.broadcast %18 : vector<8x1x32xf32> to vector<8x16x32xf32>
    %20 = arith.addf %6, %19 : vector<8x16x32xf32>
    %21 = math.tanh %20 : vector<8x16x32xf32>
    %22 = vector.broadcast %9 : vector<1x1x32xf32> to vector<8x16x32xf32>
    %23 = arith.mulf %21, %22 : vector<8x16x32xf32>
    %cst_17 = arith.constant dense<0.000000e+00> : vector<8x16xf32>
    %24 = vector.multi_reduction <add>, %23, %cst_17 [2] : vector<8x16x32xf32> to vector<8x16xf32>
    %cst_18 = arith.constant dense<0xFF800000> : vector<8xf32>
    %25 = vector.multi_reduction <maximumf>, %24, %cst_18 [1] : vector<8x16xf32> to vector<8xf32>
    %26 = vector.shape_cast %25 : vector<8xf32> to vector<8x1xf32>
    %27 = vector.broadcast %26 : vector<8x1xf32> to vector<8x16xf32>
    %28 = arith.subf %24, %27 : vector<8x16xf32>
    %29 = math.exp %28 : vector<8x16xf32>
    %cst_19 = arith.constant dense<0.000000e+00> : vector<8xf32>
    %30 = vector.multi_reduction <add>, %29, %cst_19 [1] : vector<8x16xf32> to vector<8xf32>
    %31 = vector.shape_cast %30 : vector<8xf32> to vector<8x1xf32>
    %32 = tpu.reciprocal %31 {approx = true} : vector<8x1xf32> -> vector<8x1xf32>
    %33 = vector.broadcast %32 : vector<8x1xf32> to vector<8x16xf32>
    %34 = arith.mulf %29, %33 : vector<8x16xf32>
    %35 = vector.shape_cast %34 : vector<8x16xf32> to vector<8x1x16xf32>
    %36 = arith.truncf %35 : vector<8x1x16xf32> to vector<8x1x16xbf16>
    "tpu.trace_start"() <{level = 10 : i32, message = "bqp,bpe->bqe"}> : () -> ()
    %cst_20 = arith.constant dense<0.000000e+00> : vector<8x1x32xf32>
    %37 = tpu.matmul %36, %7, %cst_20 {dimension_numbers = #tpu.dot_dimension_numbers<[2], [1], [1], [2], [0, 0, 0, 1, 1, 2], [0], [0]>} : vector<8x1x16xbf16>, vector<8x16x32xbf16>, vector<8x1x32xf32> -> vector<8x1x32xf32>
    "tpu.trace_stop"() : () -> ()
    %38 = vector.shape_cast %37 : vector<8x1x32xf32> to vector<8x32xf32>
    %39 = arith.index_cast %11 : i32 to index
    %c0_21 = arith.constant 0 : index
    %c0_22 = arith.constant 0 : index
    %40 = vector.load %arg1[%39, %c0_21, %c0_22] : memref<8x8x128xf32, #tpu.memory_space<vmem>>, vector<1x8x128xf32>
    %41 = vector.shape_cast %40 : vector<1x8x128xf32> to vector<8x128xf32>
    %42 = arith.truncf %38 : vector<8x32xf32> to vector<8x32xbf16>
    %c0_23 = arith.constant 0 : index
    %c0_24 = arith.constant 0 : index
    %43 = vector.load %arg7[%c0_23, %c0_24] : memref<32x128xbf16, #tpu.memory_space<vmem>>, vector<32x128xbf16>
    %cst_25 = arith.constant dense<0.000000e+00> : vector<8x128xf32>
    %44 = tpu.matmul %42, %43, %cst_25 {dimension_numbers = #tpu.dot_dimension_numbers<[1], [0], [0], [1], [0, 0, 1, 1], [], []>} : vector<8x32xbf16>, vector<32x128xbf16>, vector<8x128xf32> -> vector<8x128xf32>
    %45 = arith.addf %41, %44 : vector<8x128xf32>
    %c0_26 = arith.constant 0 : index
    %c0_27 = arith.constant 0 : index
    %46 = vector.load %arg8[%c0_26, %c0_27] : memref<32x128xbf16, #tpu.memory_space<vmem>>, vector<32x128xbf16>
    %cst_28 = arith.constant dense<0.000000e+00> : vector<8x128xf32>
    %47 = tpu.matmul %12, %46, %cst_28 {dimension_numbers = #tpu.dot_dimension_numbers<[1], [0], [0], [1], [0, 0, 1, 1], [], []>} : vector<8x32xbf16>, vector<32x128xbf16>, vector<8x128xf32> -> vector<8x128xf32>
    %48 = arith.addf %45, %47 : vector<8x128xf32>
    %49 = vector.extract_strided_slice %48 {offsets = [0, 0], sizes = [8, 32], strides = [1, 1]} : vector<8x128xf32> to vector<8x32xf32>
    %50 = arith.negf %49 : vector<8x32xf32>
    %51 = math.exp %50 : vector<8x32xf32>
    %cst_29 = arith.constant 1.000000e+00 : f32
    %52 = vector.broadcast %cst_29 : f32 to vector<8x32xf32>
    %53 = arith.addf %52, %51 : vector<8x32xf32>
    %54 = arith.divf %52, %53 : vector<8x32xf32>
    %55 = vector.extract_strided_slice %48 {offsets = [0, 32], sizes = [8, 32], strides = [1, 1]} : vector<8x128xf32> to vector<8x32xf32>
    %56 = arith.negf %55 : vector<8x32xf32>
    %57 = math.exp %56 : vector<8x32xf32>
    %cst_30 = arith.constant 1.000000e+00 : f32
    %58 = vector.broadcast %cst_30 : f32 to vector<8x32xf32>
    %59 = arith.addf %58, %57 : vector<8x32xf32>
    %60 = arith.divf %58, %59 : vector<8x32xf32>
    %61 = vector.extract_strided_slice %48 {offsets = [0, 64], sizes = [8, 32], strides = [1, 1]} : vector<8x128xf32> to vector<8x32xf32>
    %62 = math.tanh %61 : vector<8x32xf32>
    %63 = vector.extract_strided_slice %48 {offsets = [0, 96], sizes = [8, 32], strides = [1, 1]} : vector<8x128xf32> to vector<8x32xf32>
    %64 = arith.negf %63 : vector<8x32xf32>
    %65 = math.exp %64 : vector<8x32xf32>
    %cst_31 = arith.constant 1.000000e+00 : f32
    %66 = vector.broadcast %cst_31 : f32 to vector<8x32xf32>
    %67 = arith.addf %66, %65 : vector<8x32xf32>
    %68 = arith.divf %66, %67 : vector<8x32xf32>
    %69 = arith.mulf %60, %4 : vector<8x32xf32>
    %70 = arith.mulf %54, %62 : vector<8x32xf32>
    %71 = arith.addf %69, %70 : vector<8x32xf32>
    %72 = math.tanh %71 : vector<8x32xf32>
    %73 = arith.mulf %68, %72 : vector<8x32xf32>
    %74 = arith.truncf %73 : vector<8x32xf32> to vector<8x32xbf16>
    %c0_32 = arith.constant 0 : index
    %c0_33 = arith.constant 0 : index
    %75 = vector.load %arg9[%c0_32, %c0_33] : memref<32x128xbf16, #tpu.memory_space<vmem>>, vector<32x128xbf16>
    %cst_34 = arith.constant dense<0.000000e+00> : vector<8x128xf32>
    %76 = tpu.matmul %74, %75, %cst_34 {dimension_numbers = #tpu.dot_dimension_numbers<[1], [0], [0], [1], [0, 0, 1, 1], [], []>} : vector<8x32xbf16>, vector<32x128xbf16>, vector<8x128xf32> -> vector<8x128xf32>
    %c0_35 = arith.constant 0 : index
    %c0_36 = arith.constant 0 : index
    %77 = vector.load %arg10[%c0_35, %c0_36] : memref<1x128xf32, #tpu.memory_space<vmem>>, vector<1x128xf32>
    %78 = vector.broadcast %77 : vector<1x128xf32> to vector<8x128xf32>
    %79 = arith.addf %76, %78 : vector<8x128xf32>
    %c0_37 = arith.constant 0 : index
    %c0_38 = arith.constant 0 : index
    %80 = vector.load %arg11[%c0_37, %c0_38] : memref<8x512xf32, #tpu.memory_space<vmem>>, vector<8x128xf32>
    tpu.vector_store %arg11[%c0_37, %c0_38], %79 {strides = array<i32>} : memref<8x512xf32, #tpu.memory_space<vmem>>, vector<8x128xf32>,
    %c0_39 = arith.constant 0 : index
    %c0_40 = arith.constant 0 : index
    %81 = vector.load %arg12[%c0_39, %c0_40] : memref<8x512xf32, #tpu.memory_space<vmem>>, vector<8x16xf32>
    tpu.vector_store %arg12[%c0_39, %c0_40], %34 {strides = array<i32>} : memref<8x512xf32, #tpu.memory_space<vmem>>, vector<8x16xf32>,
    %c4_i32_41 = arith.constant 4 : i32
    %82 = arith.muli %arg0, %c4_i32_41 : i32
    %c1_i32 = arith.constant 1 : i32
    %83 = arith.addi %82, %c1_i32 : i32
    %84 = arith.truncf %73 : vector<8x32xf32> to vector<8x32xbf16>
    %c0_42 = arith.constant 0 : index
    %c0_43 = arith.constant 0 : index
    %85 = vector.load %arg4[%c0_42, %c0_43] : memref<32x32xbf16, #tpu.memory_space<vmem>>, vector<32x32xbf16>
    %cst_44 = arith.constant dense<0.000000e+00> : vector<8x32xf32>
    %86 = tpu.matmul %84, %85, %cst_44 {dimension_numbers = #tpu.dot_dimension_numbers<[1], [0], [0], [1], [0, 0, 1, 1], [], []>} : vector<8x32xbf16>, vector<32x32xbf16>, vector<8x32xf32> -> vector<8x32xf32>
    %c0_45 = arith.constant 0 : index
    %c0_46 = arith.constant 0 : index
    %87 = vector.load %arg5[%c0_45, %c0_46] : memref<1x32xf32, #tpu.memory_space<vmem>>, vector<1x32xf32>
    %88 = vector.broadcast %87 : vector<1x32xf32> to vector<8x32xf32>
    %89 = arith.addf %86, %88 : vector<8x32xf32>
    %90 = vector.shape_cast %89 : vector<8x32xf32> to vector<8x1x32xf32>
    %91 = vector.broadcast %90 : vector<8x1x32xf32> to vector<8x16x32xf32>
    %92 = arith.addf %6, %91 : vector<8x16x32xf32>
    %93 = math.tanh %92 : vector<8x16x32xf32>
    %94 = vector.broadcast %9 : vector<1x1x32xf32> to vector<8x16x32xf32>
    %95 = arith.mulf %93, %94 : vector<8x16x32xf32>
    %cst_47 = arith.constant dense<0.000000e+00> : vector<8x16xf32>
    %96 = vector.multi_reduction <add>, %95, %cst_47 [2] : vector<8x16x32xf32> to vector<8x16xf32>
    %cst_48 = arith.constant dense<0xFF800000> : vector<8xf32>
    %97 = vector.multi_reduction <maximumf>, %96, %cst_48 [1] : vector<8x16xf32> to vector<8xf32>
    %98 = vector.shape_cast %97 : vector<8xf32> to vector<8x1xf32>
    %99 = vector.broadcast %98 : vector<8x1xf32> to vector<8x16xf32>
    %100 = arith.subf %96, %99 : vector<8x16xf32>
    %101 = math.exp %100 : vector<8x16xf32>
    %cst_49 = arith.constant dense<0.000000e+00> : vector<8xf32>
    %102 = vector.multi_reduction <add>, %101, %cst_49 [1] : vector<8x16xf32> to vector<8xf32>
    %103 = vector.shape_cast %102 : vector<8xf32> to vector<8x1xf32>
    %104 = tpu.reciprocal %103 {approx = true} : vector<8x1xf32> -> vector<8x1xf32>
    %105 = vector.broadcast %104 : vector<8x1xf32> to vector<8x16xf32>
    %106 = arith.mulf %101, %105 : vector<8x16xf32>
    %107 = vector.shape_cast %106 : vector<8x16xf32> to vector<8x1x16xf32>
    %108 = arith.truncf %107 : vector<8x1x16xf32> to vector<8x1x16xbf16>
    "tpu.trace_start"() <{level = 10 : i32, message = "bqp,bpe->bqe"}> : () -> ()
    %cst_50 = arith.constant dense<0.000000e+00> : vector<8x1x32xf32>
    %109 = tpu.matmul %108, %7, %cst_50 {dimension_numbers = #tpu.dot_dimension_numbers<[2], [1], [1], [2], [0, 0, 0, 1, 1, 2], [0], [0]>} : vector<8x1x16xbf16>, vector<8x16x32xbf16>, vector<8x1x32xf32> -> vector<8x1x32xf32>
    "tpu.trace_stop"() : () -> ()
    %110 = vector.shape_cast %109 : vector<8x1x32xf32> to vector<8x32xf32>
    %111 = arith.index_cast %83 : i32 to index
    %c0_51 = arith.constant 0 : index
    %c0_52 = arith.constant 0 : index
    %112 = vector.load %arg1[%111, %c0_51, %c0_52] : memref<8x8x128xf32, #tpu.memory_space<vmem>>, vector<1x8x128xf32>
    %113 = vector.shape_cast %112 : vector<1x8x128xf32> to vector<8x128xf32>
    %114 = arith.truncf %110 : vector<8x32xf32> to vector<8x32xbf16>
    %c0_53 = arith.constant 0 : index
    %c0_54 = arith.constant 0 : index
    %115 = vector.load %arg7[%c0_53, %c0_54] : memref<32x128xbf16, #tpu.memory_space<vmem>>, vector<32x128xbf16>
    %cst_55 = arith.constant dense<0.000000e+00> : vector<8x128xf32>
    %116 = tpu.matmul %114, %115, %cst_55 {dimension_numbers = #tpu.dot_dimension_numbers<[1], [0], [0], [1], [0, 0, 1, 1], [], []>} : vector<8x32xbf16>, vector<32x128xbf16>, vector<8x128xf32> -> vector<8x128xf32>
    %117 = arith.addf %113, %116 : vector<8x128xf32>
    %c0_56 = arith.constant 0 : index
    %c0_57 = arith.constant 0 : index
    %118 = vector.load %arg8[%c0_56, %c0_57] : memref<32x128xbf16, #tpu.memory_space<vmem>>, vector<32x128xbf16>
    %cst_58 = arith.constant dense<0.000000e+00> : vector<8x128xf32>
    %119 = tpu.matmul %84, %118, %cst_58 {dimension_numbers = #tpu.dot_dimension_numbers<[1], [0], [0], [1], [0, 0, 1, 1], [], []>} : vector<8x32xbf16>, vector<32x128xbf16>, vector<8x128xf32> -> vector<8x128xf32>
    %120 = arith.addf %117, %119 : vector<8x128xf32>
    %121 = vector.extract_strided_slice %120 {offsets = [0, 0], sizes = [8, 32], strides = [1, 1]} : vector<8x128xf32> to vector<8x32xf32>
    %122 = arith.negf %121 : vector<8x32xf32>
    %123 = math.exp %122 : vector<8x32xf32>
    %cst_59 = arith.constant 1.000000e+00 : f32
    %124 = vector.broadcast %cst_59 : f32 to vector<8x32xf32>
    %125 = arith.addf %124, %123 : vector<8x32xf32>
    %126 = arith.divf %124, %125 : vector<8x32xf32>
    %127 = vector.extract_strided_slice %120 {offsets = [0, 32], sizes = [8, 32], strides = [1, 1]} : vector<8x128xf32> to vector<8x32xf32>
    %128 = arith.negf %127 : vector<8x32xf32>
    %129 = math.exp %128 : vector<8x32xf32>
    %cst_60 = arith.constant 1.000000e+00 : f32
    %130 = vector.broadcast %cst_60 : f32 to vector<8x32xf32>
    %131 = arith.addf %130, %129 : vector<8x32xf32>
    %132 = arith.divf %130, %131 : vector<8x32xf32>
    %133 = vector.extract_strided_slice %120 {offsets = [0, 64], sizes = [8, 32], strides = [1, 1]} : vector<8x128xf32> to vector<8x32xf32>
    %134 = math.tanh %133 : vector<8x32xf32>
    %135 = vector.extract_strided_slice %120 {offsets = [0, 96], sizes = [8, 32], strides = [1, 1]} : vector<8x128xf32> to vector<8x32xf32>
    %136 = arith.negf %135 : vector<8x32xf32>
    %137 = math.exp %136 : vector<8x32xf32>
    %cst_61 = arith.constant 1.000000e+00 : f32
    %138 = vector.broadcast %cst_61 : f32 to vector<8x32xf32>
    %139 = arith.addf %138, %137 : vector<8x32xf32>
    %140 = arith.divf %138, %139 : vector<8x32xf32>
    %141 = arith.mulf %132, %71 : vector<8x32xf32>
    %142 = arith.mulf %126, %134 : vector<8x32xf32>
    %143 = arith.addf %141, %142 : vector<8x32xf32>
    %144 = math.tanh %143 : vector<8x32xf32>
    %145 = arith.mulf %140, %144 : vector<8x32xf32>
    %146 = arith.truncf %145 : vector<8x32xf32> to vector<8x32xbf16>
    %c0_62 = arith.constant 0 : index
    %c0_63 = arith.constant 0 : index
    %147 = vector.load %arg9[%c0_62, %c0_63] : memref<32x128xbf16, #tpu.memory_space<vmem>>, vector<32x128xbf16>
    %cst_64 = arith.constant dense<0.000000e+00> : vector<8x128xf32>
    %148 = tpu.matmul %146, %147, %cst_64 {dimension_numbers = #tpu.dot_dimension_numbers<[1], [0], [0], [1], [0, 0, 1, 1], [], []>} : vector<8x32xbf16>, vector<32x128xbf16>, vector<8x128xf32> -> vector<8x128xf32>
    %c0_65 = arith.constant 0 : index
    %c0_66 = arith.constant 0 : index
    %149 = vector.load %arg10[%c0_65, %c0_66] : memref<1x128xf32, #tpu.memory_space<vmem>>, vector<1x128xf32>
    %150 = vector.broadcast %149 : vector<1x128xf32> to vector<8x128xf32>
    %151 = arith.addf %148, %150 : vector<8x128xf32>
    %c0_67 = arith.constant 0 : index
    %c128 = arith.constant 128 : index
    %152 = vector.load %arg11[%c0_67, %c128] : memref<8x512xf32, #tpu.memory_space<vmem>>, vector<8x128xf32>
    tpu.vector_store %arg11[%c0_67, %c128], %151 {strides = array<i32>} : memref<8x512xf32, #tpu.memory_space<vmem>>, vector<8x128xf32>,
    %c0_68 = arith.constant 0 : index
    %c128_69 = arith.constant 128 : index
    %153 = vector.load %arg12[%c0_68, %c128_69] : memref<8x512xf32, #tpu.memory_space<vmem>>, vector<8x16xf32>
    tpu.vector_store %arg12[%c0_68, %c128_69], %106 {strides = array<i32>} : memref<8x512xf32, #tpu.memory_space<vmem>>, vector<8x16xf32>,
    %c4_i32_70 = arith.constant 4 : i32
    %154 = arith.muli %arg0, %c4_i32_70 : i32
    %c2_i32 = arith.constant 2 : i32
    %155 = arith.addi %154, %c2_i32 : i32
    %156 = arith.truncf %145 : vector<8x32xf32> to vector<8x32xbf16>
    %c0_71 = arith.constant 0 : index
    %c0_72 = arith.constant 0 : index
    %157 = vector.load %arg4[%c0_71, %c0_72] : memref<32x32xbf16, #tpu.memory_space<vmem>>, vector<32x32xbf16>
    %cst_73 = arith.constant dense<0.000000e+00> : vector<8x32xf32>
    %158 = tpu.matmul %156, %157, %cst_73 {dimension_numbers = #tpu.dot_dimension_numbers<[1], [0], [0], [1], [0, 0, 1, 1], [], []>} : vector<8x32xbf16>, vector<32x32xbf16>, vector<8x32xf32> -> vector<8x32xf32>
    %c0_74 = arith.constant 0 : index
    %c0_75 = arith.constant 0 : index
    %159 = vector.load %arg5[%c0_74, %c0_75] : memref<1x32xf32, #tpu.memory_space<vmem>>, vector<1x32xf32>
    %160 = vector.broadcast %159 : vector<1x32xf32> to vector<8x32xf32>
    %161 = arith.addf %158, %160 : vector<8x32xf32>
    %162 = vector.shape_cast %161 : vector<8x32xf32> to vector<8x1x32xf32>
    %163 = vector.broadcast %162 : vector<8x1x32xf32> to vector<8x16x32xf32>
    %164 = arith.addf %6, %163 : vector<8x16x32xf32>
    %165 = math.tanh %164 : vector<8x16x32xf32>
    %166 = vector.broadcast %9 : vector<1x1x32xf32> to vector<8x16x32xf32>
    %167 = arith.mulf %165, %166 : vector<8x16x32xf32>
    %cst_76 = arith.constant dense<0.000000e+00> : vector<8x16xf32>
    %168 = vector.multi_reduction <add>, %167, %cst_76 [2] : vector<8x16x32xf32> to vector<8x16xf32>
    %cst_77 = arith.constant dense<0xFF800000> : vector<8xf32>
    %169 = vector.multi_reduction <maximumf>, %168, %cst_77 [1] : vector<8x16xf32> to vector<8xf32>
    %170 = vector.shape_cast %169 : vector<8xf32> to vector<8x1xf32>
    %171 = vector.broadcast %170 : vector<8x1xf32> to vector<8x16xf32>
    %172 = arith.subf %168, %171 : vector<8x16xf32>
    %173 = math.exp %172 : vector<8x16xf32>
    %cst_78 = arith.constant dense<0.000000e+00> : vector<8xf32>
    %174 = vector.multi_reduction <add>, %173, %cst_78 [1] : vector<8x16xf32> to vector<8xf32>
    %175 = vector.shape_cast %174 : vector<8xf32> to vector<8x1xf32>
    %176 = tpu.reciprocal %175 {approx = true} : vector<8x1xf32> -> vector<8x1xf32>
    %177 = vector.broadcast %176 : vector<8x1xf32> to vector<8x16xf32>
    %178 = arith.mulf %173, %177 : vector<8x16xf32>
    %179 = vector.shape_cast %178 : vector<8x16xf32> to vector<8x1x16xf32>
    %180 = arith.truncf %179 : vector<8x1x16xf32> to vector<8x1x16xbf16>
    "tpu.trace_start"() <{level = 10 : i32, message = "bqp,bpe->bqe"}> : () -> ()
    %cst_79 = arith.constant dense<0.000000e+00> : vector<8x1x32xf32>
    %181 = tpu.matmul %180, %7, %cst_79 {dimension_numbers = #tpu.dot_dimension_numbers<[2], [1], [1], [2], [0, 0, 0, 1, 1, 2], [0], [0]>} : vector<8x1x16xbf16>, vector<8x16x32xbf16>, vector<8x1x32xf32> -> vector<8x1x32xf32>
    "tpu.trace_stop"() : () -> ()
    %182 = vector.shape_cast %181 : vector<8x1x32xf32> to vector<8x32xf32>
    %183 = arith.index_cast %155 : i32 to index
    %c0_80 = arith.constant 0 : index
    %c0_81 = arith.constant 0 : index
    %184 = vector.load %arg1[%183, %c0_80, %c0_81] : memref<8x8x128xf32, #tpu.memory_space<vmem>>, vector<1x8x128xf32>
    %185 = vector.shape_cast %184 : vector<1x8x128xf32> to vector<8x128xf32>
    %186 = arith.truncf %182 : vector<8x32xf32> to vector<8x32xbf16>
    %c0_82 = arith.constant 0 : index
    %c0_83 = arith.constant 0 : index
    %187 = vector.load %arg7[%c0_82, %c0_83] : memref<32x128xbf16, #tpu.memory_space<vmem>>, vector<32x128xbf16>
    %cst_84 = arith.constant dense<0.000000e+00> : vector<8x128xf32>
    %188 = tpu.matmul %186, %187, %cst_84 {dimension_numbers = #tpu.dot_dimension_numbers<[1], [0], [0], [1], [0, 0, 1, 1], [], []>} : vector<8x32xbf16>, vector<32x128xbf16>, vector<8x128xf32> -> vector<8x128xf32>
    %189 = arith.addf %185, %188 : vector<8x128xf32>
    %c0_85 = arith.constant 0 : index
    %c0_86 = arith.constant 0 : index
    %190 = vector.load %arg8[%c0_85, %c0_86] : memref<32x128xbf16, #tpu.memory_space<vmem>>, vector<32x128xbf16>
    %cst_87 = arith.constant dense<0.000000e+00> : vector<8x128xf32>
    %191 = tpu.matmul %156, %190, %cst_87 {dimension_numbers = #tpu.dot_dimension_numbers<[1], [0], [0], [1], [0, 0, 1, 1], [], []>} : vector<8x32xbf16>, vector<32x128xbf16>, vector<8x128xf32> -> vector<8x128xf32>
    %192 = arith.addf %189, %191 : vector<8x128xf32>
    %193 = vector.extract_strided_slice %192 {offsets = [0, 0], sizes = [8, 32], strides = [1, 1]} : vector<8x128xf32> to vector<8x32xf32>
    %194 = arith.negf %193 : vector<8x32xf32>
    %195 = math.exp %194 : vector<8x32xf32>
    %cst_88 = arith.constant 1.000000e+00 : f32
    %196 = vector.broadcast %cst_88 : f32 to vector<8x32xf32>
    %197 = arith.addf %196, %195 : vector<8x32xf32>
    %198 = arith.divf %196, %197 : vector<8x32xf32>
    %199 = vector.extract_strided_slice %192 {offsets = [0, 32], sizes = [8, 32], strides = [1, 1]} : vector<8x128xf32> to vector<8x32xf32>
    %200 = arith.negf %199 : vector<8x32xf32>
    %201 = math.exp %200 : vector<8x32xf32>
    %cst_89 = arith.constant 1.000000e+00 : f32
    %202 = vector.broadcast %cst_89 : f32 to vector<8x32xf32>
    %203 = arith.addf %202, %201 : vector<8x32xf32>
    %204 = arith.divf %202, %203 : vector<8x32xf32>
    %205 = vector.extract_strided_slice %192 {offsets = [0, 64], sizes = [8, 32], strides = [1, 1]} : vector<8x128xf32> to vector<8x32xf32>
    %206 = math.tanh %205 : vector<8x32xf32>
    %207 = vector.extract_strided_slice %192 {offsets = [0, 96], sizes = [8, 32], strides = [1, 1]} : vector<8x128xf32> to vector<8x32xf32>
    %208 = arith.negf %207 : vector<8x32xf32>
    %209 = math.exp %208 : vector<8x32xf32>
    %cst_90 = arith.constant 1.000000e+00 : f32
    %210 = vector.broadcast %cst_90 : f32 to vector<8x32xf32>
    %211 = arith.addf %210, %209 : vector<8x32xf32>
    %212 = arith.divf %210, %211 : vector<8x32xf32>
    %213 = arith.mulf %204, %143 : vector<8x32xf32>
    %214 = arith.mulf %198, %206 : vector<8x32xf32>
    %215 = arith.addf %213, %214 : vector<8x32xf32>
    %216 = math.tanh %215 : vector<8x32xf32>
    %217 = arith.mulf %212, %216 : vector<8x32xf32>
    %218 = arith.truncf %217 : vector<8x32xf32> to vector<8x32xbf16>
    %c0_91 = arith.constant 0 : index
    %c0_92 = arith.constant 0 : index
    %219 = vector.load %arg9[%c0_91, %c0_92] : memref<32x128xbf16, #tpu.memory_space<vmem>>, vector<32x128xbf16>
    %cst_93 = arith.constant dense<0.000000e+00> : vector<8x128xf32>
    %220 = tpu.matmul %218, %219, %cst_93 {dimension_numbers = #tpu.dot_dimension_numbers<[1], [0], [0], [1], [0, 0, 1, 1], [], []>} : vector<8x32xbf16>, vector<32x128xbf16>, vector<8x128xf32> -> vector<8x128xf32>
    %c0_94 = arith.constant 0 : index
    %c0_95 = arith.constant 0 : index
    %221 = vector.load %arg10[%c0_94, %c0_95] : memref<1x128xf32, #tpu.memory_space<vmem>>, vector<1x128xf32>
    %222 = vector.broadcast %221 : vector<1x128xf32> to vector<8x128xf32>
    %223 = arith.addf %220, %222 : vector<8x128xf32>
    %c0_96 = arith.constant 0 : index
    %c256 = arith.constant 256 : index
    %224 = vector.load %arg11[%c0_96, %c256] : memref<8x512xf32, #tpu.memory_space<vmem>>, vector<8x128xf32>
    tpu.vector_store %arg11[%c0_96, %c256], %223 {strides = array<i32>} : memref<8x512xf32, #tpu.memory_space<vmem>>, vector<8x128xf32>,
    %c0_97 = arith.constant 0 : index
    %c256_98 = arith.constant 256 : index
    %225 = vector.load %arg12[%c0_97, %c256_98] : memref<8x512xf32, #tpu.memory_space<vmem>>, vector<8x16xf32>
    tpu.vector_store %arg12[%c0_97, %c256_98], %178 {strides = array<i32>} : memref<8x512xf32, #tpu.memory_space<vmem>>, vector<8x16xf32>,
    %c4_i32_99 = arith.constant 4 : i32
    %226 = arith.muli %arg0, %c4_i32_99 : i32
    %c3_i32 = arith.constant 3 : i32
    %227 = arith.addi %226, %c3_i32 : i32
    %228 = arith.truncf %217 : vector<8x32xf32> to vector<8x32xbf16>
    %c0_100 = arith.constant 0 : index
    %c0_101 = arith.constant 0 : index
    %229 = vector.load %arg4[%c0_100, %c0_101] : memref<32x32xbf16, #tpu.memory_space<vmem>>, vector<32x32xbf16>
    %cst_102 = arith.constant dense<0.000000e+00> : vector<8x32xf32>
    %230 = tpu.matmul %228, %229, %cst_102 {dimension_numbers = #tpu.dot_dimension_numbers<[1], [0], [0], [1], [0, 0, 1, 1], [], []>} : vector<8x32xbf16>, vector<32x32xbf16>, vector<8x32xf32> -> vector<8x32xf32>
    %c0_103 = arith.constant 0 : index
    %c0_104 = arith.constant 0 : index
    %231 = vector.load %arg5[%c0_103, %c0_104] : memref<1x32xf32, #tpu.memory_space<vmem>>, vector<1x32xf32>
    %232 = vector.broadcast %231 : vector<1x32xf32> to vector<8x32xf32>
    %233 = arith.addf %230, %232 : vector<8x32xf32>
    %234 = vector.shape_cast %233 : vector<8x32xf32> to vector<8x1x32xf32>
    %235 = vector.broadcast %234 : vector<8x1x32xf32> to vector<8x16x32xf32>
    %236 = arith.addf %6, %235 : vector<8x16x32xf32>
    %237 = math.tanh %236 : vector<8x16x32xf32>
    %238 = vector.broadcast %9 : vector<1x1x32xf32> to vector<8x16x32xf32>
    %239 = arith.mulf %237, %238 : vector<8x16x32xf32>
    %cst_105 = arith.constant dense<0.000000e+00> : vector<8x16xf32>
    %240 = vector.multi_reduction <add>, %239, %cst_105 [2] : vector<8x16x32xf32> to vector<8x16xf32>
    %cst_106 = arith.constant dense<0xFF800000> : vector<8xf32>
    %241 = vector.multi_reduction <maximumf>, %240, %cst_106 [1] : vector<8x16xf32> to vector<8xf32>
    %242 = vector.shape_cast %241 : vector<8xf32> to vector<8x1xf32>
    %243 = vector.broadcast %242 : vector<8x1xf32> to vector<8x16xf32>
    %244 = arith.subf %240, %243 : vector<8x16xf32>
    %245 = math.exp %244 : vector<8x16xf32>
    %cst_107 = arith.constant dense<0.000000e+00> : vector<8xf32>
    %246 = vector.multi_reduction <add>, %245, %cst_107 [1] : vector<8x16xf32> to vector<8xf32>
    %247 = vector.shape_cast %246 : vector<8xf32> to vector<8x1xf32>
    %248 = tpu.reciprocal %247 {approx = true} : vector<8x1xf32> -> vector<8x1xf32>
    %249 = vector.broadcast %248 : vector<8x1xf32> to vector<8x16xf32>
    %250 = arith.mulf %245, %249 : vector<8x16xf32>
    %251 = vector.shape_cast %250 : vector<8x16xf32> to vector<8x1x16xf32>
    %252 = arith.truncf %251 : vector<8x1x16xf32> to vector<8x1x16xbf16>
    "tpu.trace_start"() <{level = 10 : i32, message = "bqp,bpe->bqe"}> : () -> ()
    %cst_108 = arith.constant dense<0.000000e+00> : vector<8x1x32xf32>
    %253 = tpu.matmul %252, %7, %cst_108 {dimension_numbers = #tpu.dot_dimension_numbers<[2], [1], [1], [2], [0, 0, 0, 1, 1, 2], [0], [0]>} : vector<8x1x16xbf16>, vector<8x16x32xbf16>, vector<8x1x32xf32> -> vector<8x1x32xf32>
    "tpu.trace_stop"() : () -> ()
    %254 = vector.shape_cast %253 : vector<8x1x32xf32> to vector<8x32xf32>
    %255 = arith.index_cast %227 : i32 to index
    %c0_109 = arith.constant 0 : index
    %c0_110 = arith.constant 0 : index
    %256 = vector.load %arg1[%255, %c0_109, %c0_110] : memref<8x8x128xf32, #tpu.memory_space<vmem>>, vector<1x8x128xf32>
    %257 = vector.shape_cast %256 : vector<1x8x128xf32> to vector<8x128xf32>
    %258 = arith.truncf %254 : vector<8x32xf32> to vector<8x32xbf16>
    %c0_111 = arith.constant 0 : index
    %c0_112 = arith.constant 0 : index
    %259 = vector.load %arg7[%c0_111, %c0_112] : memref<32x128xbf16, #tpu.memory_space<vmem>>, vector<32x128xbf16>
    %cst_113 = arith.constant dense<0.000000e+00> : vector<8x128xf32>
    %260 = tpu.matmul %258, %259, %cst_113 {dimension_numbers = #tpu.dot_dimension_numbers<[1], [0], [0], [1], [0, 0, 1, 1], [], []>} : vector<8x32xbf16>, vector<32x128xbf16>, vector<8x128xf32> -> vector<8x128xf32>
    %261 = arith.addf %257, %260 : vector<8x128xf32>
    %c0_114 = arith.constant 0 : index
    %c0_115 = arith.constant 0 : index
    %262 = vector.load %arg8[%c0_114, %c0_115] : memref<32x128xbf16, #tpu.memory_space<vmem>>, vector<32x128xbf16>
    %cst_116 = arith.constant dense<0.000000e+00> : vector<8x128xf32>
    %263 = tpu.matmul %228, %262, %cst_116 {dimension_numbers = #tpu.dot_dimension_numbers<[1], [0], [0], [1], [0, 0, 1, 1], [], []>} : vector<8x32xbf16>, vector<32x128xbf16>, vector<8x128xf32> -> vector<8x128xf32>
    %264 = arith.addf %261, %263 : vector<8x128xf32>
    %265 = vector.extract_strided_slice %264 {offsets = [0, 0], sizes = [8, 32], strides = [1, 1]} : vector<8x128xf32> to vector<8x32xf32>
    %266 = arith.negf %265 : vector<8x32xf32>
    %267 = math.exp %266 : vector<8x32xf32>
    %cst_117 = arith.constant 1.000000e+00 : f32
    %268 = vector.broadcast %cst_117 : f32 to vector<8x32xf32>
    %269 = arith.addf %268, %267 : vector<8x32xf32>
    %270 = arith.divf %268, %269 : vector<8x32xf32>
    %271 = vector.extract_strided_slice %264 {offsets = [0, 32], sizes = [8, 32], strides = [1, 1]} : vector<8x128xf32> to vector<8x32xf32>
    %272 = arith.negf %271 : vector<8x32xf32>
    %273 = math.exp %272 : vector<8x32xf32>
    %cst_118 = arith.constant 1.000000e+00 : f32
    %274 = vector.broadcast %cst_118 : f32 to vector<8x32xf32>
    %275 = arith.addf %274, %273 : vector<8x32xf32>
    %276 = arith.divf %274, %275 : vector<8x32xf32>
    %277 = vector.extract_strided_slice %264 {offsets = [0, 64], sizes = [8, 32], strides = [1, 1]} : vector<8x128xf32> to vector<8x32xf32>
    %278 = math.tanh %277 : vector<8x32xf32>
    %279 = vector.extract_strided_slice %264 {offsets = [0, 96], sizes = [8, 32], strides = [1, 1]} : vector<8x128xf32> to vector<8x32xf32>
    %280 = arith.negf %279 : vector<8x32xf32>
    %281 = math.exp %280 : vector<8x32xf32>
    %cst_119 = arith.constant 1.000000e+00 : f32
    %282 = vector.broadcast %cst_119 : f32 to vector<8x32xf32>
    %283 = arith.addf %282, %281 : vector<8x32xf32>
    %284 = arith.divf %282, %283 : vector<8x32xf32>
    %285 = arith.mulf %276, %215 : vector<8x32xf32>
    %286 = arith.mulf %270, %278 : vector<8x32xf32>
    %287 = arith.addf %285, %286 : vector<8x32xf32>
    %288 = math.tanh %287 : vector<8x32xf32>
    %289 = arith.mulf %284, %288 : vector<8x32xf32>
    %290 = arith.truncf %289 : vector<8x32xf32> to vector<8x32xbf16>
    %c0_120 = arith.constant 0 : index
    %c0_121 = arith.constant 0 : index
    %291 = vector.load %arg9[%c0_120, %c0_121] : memref<32x128xbf16, #tpu.memory_space<vmem>>, vector<32x128xbf16>
    %cst_122 = arith.constant dense<0.000000e+00> : vector<8x128xf32>
    %292 = tpu.matmul %290, %291, %cst_122 {dimension_numbers = #tpu.dot_dimension_numbers<[1], [0], [0], [1], [0, 0, 1, 1], [], []>} : vector<8x32xbf16>, vector<32x128xbf16>, vector<8x128xf32> -> vector<8x128xf32>
    %c0_123 = arith.constant 0 : index
    %c0_124 = arith.constant 0 : index
    %293 = vector.load %arg10[%c0_123, %c0_124] : memref<1x128xf32, #tpu.memory_space<vmem>>, vector<1x128xf32>
    %294 = vector.broadcast %293 : vector<1x128xf32> to vector<8x128xf32>
    %295 = arith.addf %292, %294 : vector<8x128xf32>
    %c0_125 = arith.constant 0 : index
    %c384 = arith.constant 384 : index
    %296 = vector.load %arg11[%c0_125, %c384] : memref<8x512xf32, #tpu.memory_space<vmem>>, vector<8x128xf32>
    tpu.vector_store %arg11[%c0_125, %c384], %295 {strides = array<i32>} : memref<8x512xf32, #tpu.memory_space<vmem>>, vector<8x128xf32>,
    %c0_126 = arith.constant 0 : index
    %c384_127 = arith.constant 384 : index
    %297 = vector.load %arg12[%c0_126, %c384_127] : memref<8x512xf32, #tpu.memory_space<vmem>>, vector<8x16xf32>
    tpu.vector_store %arg12[%c0_126, %c384_127], %250 {strides = array<i32>} : memref<8x512xf32, #tpu.memory_space<vmem>>, vector<8x16xf32>,
    %c0_128 = arith.constant 0 : index
    %c0_129 = arith.constant 0 : index
    %298 = vector.load %arg13[%c0_128, %c0_129] : memref<8x32xf32, #tpu.memory_space<vmem>>, vector<8x32xf32>
    tpu.vector_store %arg13[%c0_128, %c0_129], %289 {strides = array<i32>} : memref<8x32xf32, #tpu.memory_space<vmem>>, vector<8x32xf32>,
    %c0_130 = arith.constant 0 : index
    %c0_131 = arith.constant 0 : index
    %299 = vector.load %arg14[%c0_130, %c0_131] : memref<8x32xf32, #tpu.memory_space<vmem>>, vector<8x32xf32>
    tpu.vector_store %arg14[%c0_130, %c0_131], %287 {strides = array<i32>} : memref<8x32xf32, #tpu.memory_space<vmem>>, vector<8x32xf32>,
    return
  }
  func.func @transform_0(%arg0: i32) -> (i32, i32, i32) {
    %c0_i32 = arith.constant 0 : i32
    %c0_i32_0 = arith.constant 0 : i32
    %c0_i32_1 = arith.constant 0 : i32
    %c0_i32_2 = arith.constant 0 : i32
    return %c0_i32, %c0_i32_0, %c0_i32_1 : i32, i32, i32
  }
  func.func @transform_1(%arg0: i32) -> (i32, i32, i32) {
    %c0_i32 = arith.constant 0 : i32
    %c0_i32_0 = arith.constant 0 : i32
    %c0_i32_1 = arith.constant 0 : i32
    %c0_i32_2 = arith.constant 0 : i32
    return %c0_i32, %c0_i32_0, %c0_i32_1 : i32, i32, i32
  }
  func.func @transform_2(%arg0: i32) -> (i32, i32, i32) {
    %c0_i32 = arith.constant 0 : i32
    %c0_i32_0 = arith.constant 0 : i32
    %c0_i32_1 = arith.constant 0 : i32
    %c0_i32_2 = arith.constant 0 : i32
    return %c0_i32, %c0_i32_0, %c0_i32_1 : i32, i32, i32
  }
  func.func @transform_3(%arg0: i32) -> (i32, i32) {
    %c0_i32 = arith.constant 0 : i32
    %c0_i32_0 = arith.constant 0 : i32
    %c0_i32_1 = arith.constant 0 : i32
    return %c0_i32, %c0_i32_0 : i32, i32
  }
  func.func @transform_4(%arg0: i32) -> (i32, i32) {
    %c0_i32 = arith.constant 0 : i32
    %c0_i32_0 = arith.constant 0 : i32
    %c0_i32_1 = arith.constant 0 : i32
    return %c0_i32, %c0_i32_0 : i32, i32
  }
  func.func @transform_5(%arg0: i32) -> (i32, i32) {
    %c0_i32 = arith.constant 0 : i32
    %c0_i32_0 = arith.constant 0 : i32
    %c0_i32_1 = arith.constant 0 : i32
    return %c0_i32, %c0_i32_0 : i32, i32
  }
  func.func @transform_6(%arg0: i32) -> (i32, i32) {
    %c0_i32 = arith.constant 0 : i32
    %c0_i32_0 = arith.constant 0 : i32
    %c0_i32_1 = arith.constant 0 : i32
    return %c0_i32, %c0_i32_0 : i32, i32
  }
  func.func @transform_7(%arg0: i32) -> (i32, i32) {
    %c0_i32 = arith.constant 0 : i32
    %c0_i32_0 = arith.constant 0 : i32
    %c0_i32_1 = arith.constant 0 : i32
    return %c0_i32, %c0_i32_0 : i32, i32
  }
  func.func @transform_8(%arg0: i32) -> (i32, i32) {
    %c0_i32 = arith.constant 0 : i32
    %c0_i32_0 = arith.constant 0 : i32
    %c0_i32_1 = arith.constant 0 : i32
    return %c0_i32, %c0_i32_0 : i32, i32
  }
  func.func @transform_9(%arg0: i32) -> (i32, i32) {
    %c0_i32 = arith.constant 0 : i32
    %c0_i32_0 = arith.constant 0 : i32
    %c0_i32_1 = arith.constant 0 : i32
    return %c0_i32, %c0_i32_0 : i32, i32
  }
  func.func @transform_10(%arg0: i32) -> (i32, i32) {
    %c0_i32 = arith.constant 0 : i32
    %c0_i32_0 = arith.constant 0 : i32
    return %c0_i32, %arg0 : i32, i32
  }
  func.func @transform_11(%arg0: i32) -> (i32, i32) {
    %c0_i32 = arith.constant 0 : i32
    %c0_i32_0 = arith.constant 0 : i32
    return %c0_i32, %arg0 : i32, i32
  }
}

</mosaic_0001>

<llo_original>
// kernel: decoder_with_attention_forward.1
$region0: #{decoder_with_attention_forward.1}
  #allocation0 [shape = 'u32[]', space=smem, size = 0x4, offset = 0x4, fixed_abs, tag = 'smem constant byte address 0x4 - core index']
  #allocation1 [shape = 'u32[144,128]{1,0:T(1,128)}', space=vmem, size = 0x12000, scoped, tag = 'internal scratch']
  #allocation2 [shape = 'f32[8,32]{1,0:T(8,128)}', space=vmem, size = 0x1000, scoped, tag = 'scratch operand']
  #allocation3 [shape = 'f32[8,32]{1,0:T(8,128)}', space=vmem, size = 0x1000, scoped, tag = 'scratch operand']
  %s0 = inlined_call_operand.vmem [shape: f32[8,8,128], index: 0, kind: input, shape index: {}]
  %s1 = inlined_call_operand.vmem [shape: bf16[8,16,32], index: 1, kind: input, shape index: {}]
  %s2 = inlined_call_operand.vmem [shape: bf16[8,16,32], index: 2, kind: input, shape index: {}]
  %s3 = inlined_call_operand.vmem [shape: bf16[32,32], index: 3, kind: input, shape index: {}]
  %s4 = inlined_call_operand.vmem [shape: f32[1,32], index: 4, kind: input, shape index: {}]
  %s5 = inlined_call_operand.vmem [shape: f32[1,32], index: 5, kind: input, shape index: {}]
  %s6 = inlined_call_operand.vmem [shape: bf16[32,128], index: 6, kind: input, shape index: {}]
  %s7 = inlined_call_operand.vmem [shape: bf16[32,128], index: 7, kind: input, shape index: {}]
  %s8 = inlined_call_operand.vmem [shape: bf16[32,128], index: 8, kind: input, shape index: {}]
  %s9 = inlined_call_operand.vmem [shape: f32[1,128], index: 9, kind: input, shape index: {}]
  %s10 = inlined_call_operand.vmem [shape: f32[8,1024], index: 10, kind: output, shape index: {0}]
  %s11 = inlined_call_operand.vmem [shape: f32[8,1024], index: 11, kind: output, shape index: {1}]
  %12 = xla_tuple %s10, %s11
  %s13 = sld [smem:[#allocation0]]
  $region85: #{decoder_with_attention_forward.1} parent=0
    _
  %s15 = ssub.s32 1, %s13
  %s16 = scalar_select 0, %s15, %s13
  loop: start=0, step=1, limit=4
  $region2: #{decoder_with_attention_forward.1} parent=0 // loop_pre_header
    _
  $region3: #{decoder_with_attention_forward.1} parent=0 // loop_header
    %s18 = sphi 0, %s22
    %p19 = scmp.ge.s32.totalorder %s18, 4
    %s26 = sphi 0, %s26
    %s28 = sphi 0, %s26
    %s29 = sphi 0, %s28
    %s43 = sphi 0, %s29
    %s47 = sphi 0, %s47
    %s49 = sphi 0, %s47
    %s50 = sphi 0, %s49
    %s64 = sphi 0, %s50
    %s68 = sphi 0, %s68
    %s70 = sphi 0, %s68
    %s71 = sphi 0, %s70
    %s85 = sphi 0, %s71
    %s89 = sphi 0, %s89
    %s91 = sphi 0, %s89
    %s92 = sphi 0, %s91
    %s106 = sphi 0, %s92
    %s110 = sphi 0, %s110
    %s112 = sphi 0, %s110
    %s113 = sphi 0, %s112
    %s127 = sphi 0, %s113
    %s131 = sphi 0, %s131
    %s133 = sphi 0, %s131
    %s134 = sphi 0, %s133
    %s148 = sphi 0, %s134
    %s152 = sphi 0, %s152
    %s154 = sphi 0, %s152
    %s155 = sphi 0, %s154
    %s169 = sphi 0, %s155
    %s173 = sphi 0, %s173
    %s175 = sphi 0, %s173
    %s176 = sphi 0, %s175
    %s190 = sphi 0, %s176
    %s194 = sphi 0, %s194
    %s196 = sphi 0, %s194
    %s197 = sphi 0, %s196
    %s211 = sphi 0, %s197
    %s215 = sphi 0, %s215
    %s217 = sphi 0, %s215
    %s218 = sphi 0, %s217
    %s232 = sphi 0, %s218
    %s238 = sphi 0, %s240
    %s241 = sphi 0, %s238
    %s242 = sphi 0, %s241
    %s258 = sphi 0, %s242
    %s264 = sphi 0, %s266
    %s267 = sphi 0, %s264
    %s268 = sphi 0, %s267
    %s284 = sphi 0, %s268
  $region4: #{decoder_with_attention_forward.1} parent=0 // loop_header_branch
    %21 = sbr.rel (%p19) target = $region8
  $region5: #{decoder_with_attention_forward.1} parent=0 // loop_body
    %s23 = ssub.s32 %s18, 1
    %s24 = ssub.s32 %s18, 2
    %s25 = sadd.s32 %s18, 1
    %s27 = sadd.s32 %s26, 1
    %p30 = scmp.eq.s32.totalorder %s18, 1
    %p31 = scmp.ne.s32.totalorder %s26, %s28
    %p32 = scmp.eq.s32.totalorder %s18, 0
    %p33 = por %p31, %p32
    %p34 = scmp.ne.s32.totalorder %s26, %s28
    %p35 = scmp.eq.s32.totalorder %s23, 1
    %p36 = por %p34, %p35
    %p37 = scmp.ne.s32.totalorder %s28, %s29
    %p38 = scmp.eq.s32.totalorder %s23, 0
    %p39 = por %p37, %p38
    %p40 = scmp.ne.s32.totalorder %s28, %s29
    %p41 = scmp.eq.s32.totalorder %s24, 1
    %p42 = por %p40, %p41
    %p44 = scmp.ne.s32.totalorder %s29, %s43
    %p45 = scmp.eq.s32.totalorder %s24, 0
    %p46 = por %p44, %p45
    %s48 = sadd.s32 %s47, 1
    %p51 = scmp.eq.s32.totalorder %s18, 1
    %p52 = scmp.ne.s32.totalorder %s47, %s49
    %p53 = scmp.eq.s32.totalorder %s18, 0
    %p54 = por %p52, %p53
    %p55 = scmp.ne.s32.totalorder %s47, %s49
    %p56 = scmp.eq.s32.totalorder %s23, 1
    %p57 = por %p55, %p56
    %p58 = scmp.ne.s32.totalorder %s49, %s50
    %p59 = scmp.eq.s32.totalorder %s23, 0
    %p60 = por %p58, %p59
    %p61 = scmp.ne.s32.totalorder %s49, %s50
    %p62 = scmp.eq.s32.totalorder %s24, 1
    %p63 = por %p61, %p62
    %p65 = scmp.ne.s32.totalorder %s50, %s64
    %p66 = scmp.eq.s32.totalorder %s24, 0
    %p67 = por %p65, %p66
    %s69 = sadd.s32 %s68, 1
    %p72 = scmp.eq.s32.totalorder %s18, 1
    %p73 = scmp.ne.s32.totalorder %s68, %s70
    %p74 = scmp.eq.s32.totalorder %s18, 0
    %p75 = por %p73, %p74
    %p76 = scmp.ne.s32.totalorder %s68, %s70
    %p77 = scmp.eq.s32.totalorder %s23, 1
    %p78 = por %p76, %p77
    %p79 = scmp.ne.s32.totalorder %s70, %s71
    %p80 = scmp.eq.s32.totalorder %s23, 0
    %p81 = por %p79, %p80
    %p82 = scmp.ne.s32.totalorder %s70, %s71
    %p83 = scmp.eq.s32.totalorder %s24, 1
    %p84 = por %p82, %p83
    %p86 = scmp.ne.s32.totalorder %s71, %s85
    %p87 = scmp.eq.s32.totalorder %s24, 0
    %p88 = por %p86, %p87
    %s90 = sadd.s32 %s89, 1
    %p93 = scmp.eq.s32.totalorder %s18, 1
    %p94 = scmp.ne.s32.totalorder %s89, %s91
    %p95 = scmp.eq.s32.totalorder %s18, 0
    %p96 = por %p94, %p95
    %p97 = scmp.ne.s32.totalorder %s89, %s91
    %p98 = scmp.eq.s32.totalorder %s23, 1
    %p99 = por %p97, %p98
    %p100 = scmp.ne.s32.totalorder %s91, %s92
    %p101 = scmp.eq.s32.totalorder %s23, 0
    %p102 = por %p100, %p101
    %p103 = scmp.ne.s32.totalorder %s91, %s92
    %p104 = scmp.eq.s32.totalorder %s24, 1
    %p105 = por %p103, %p104
    %p107 = scmp.ne.s32.totalorder %s92, %s106
    %p108 = scmp.eq.s32.totalorder %s24, 0
    %p109 = por %p107, %p108
    %s111 = sadd.s32 %s110, 1
    %p114 = scmp.eq.s32.totalorder %s18, 1
    %p115 = scmp.ne.s32.totalorder %s110, %s112
    %p116 = scmp.eq.s32.totalorder %s18, 0
    %p117 = por %p115, %p116
    %p118 = scmp.ne.s32.totalorder %s110, %s112
    %p119 = scmp.eq.s32.totalorder %s23, 1
    %p120 = por %p118, %p119
    %p121 = scmp.ne.s32.totalorder %s112, %s113
    %p122 = scmp.eq.s32.totalorder %s23, 0
    %p123 = por %p121, %p122
    %p124 = scmp.ne.s32.totalorder %s112, %s113
    %p125 = scmp.eq.s32.totalorder %s24, 1
    %p126 = por %p124, %p125
    %p128 = scmp.ne.s32.totalorder %s113, %s127
    %p129 = scmp.eq.s32.totalorder %s24, 0
    %p130 = por %p128, %p129
    %s132 = sadd.s32 %s131, 1
    %p135 = scmp.eq.s32.totalorder %s18, 1
    %p136 = scmp.ne.s32.totalorder %s131, %s133
    %p137 = scmp.eq.s32.totalorder %s18, 0
    %p138 = por %p136, %p137
    %p139 = scmp.ne.s32.totalorder %s131, %s133
    %p140 = scmp.eq.s32.totalorder %s23, 1
    %p141 = por %p139, %p140
    %p142 = scmp.ne.s32.totalorder %s133, %s134
    %p143 = scmp.eq.s32.totalorder %s23, 0
    %p144 = por %p142, %p143
    %p145 = scmp.ne.s32.totalorder %s133, %s134
    %p146 = scmp.eq.s32.totalorder %s24, 1
    %p147 = por %p145, %p146
    %p149 = scmp.ne.s32.totalorder %s134, %s148
    %p150 = scmp.eq.s32.totalorder %s24, 0
    %p151 = por %p149, %p150
    %s153 = sadd.s32 %s152, 1
    %p156 = scmp.eq.s32.totalorder %s18, 1
    %p157 = scmp.ne.s32.totalorder %s152, %s154
    %p158 = scmp.eq.s32.totalorder %s18, 0
    %p159 = por %p157, %p158
    %p160 = scmp.ne.s32.totalorder %s152, %s154
    %p161 = scmp.eq.s32.totalorder %s23, 1
    %p162 = por %p160, %p161
    %p163 = scmp.ne.s32.totalorder %s154, %s155
    %p164 = scmp.eq.s32.totalorder %s23, 0
    %p165 = por %p163, %p164
    %p166 = scmp.ne.s32.totalorder %s154, %s155
    %p167 = scmp.eq.s32.totalorder %s24, 1
    %p168 = por %p166, %p167
    %p170 = scmp.ne.s32.totalorder %s155, %s169
    %p171 = scmp.eq.s32.totalorder %s24, 0
    %p172 = por %p170, %p171
    %s174 = sadd.s32 %s173, 1
    %p177 = scmp.eq.s32.totalorder %s18, 1
    %p178 = scmp.ne.s32.totalorder %s173, %s175
    %p179 = scmp.eq.s32.totalorder %s18, 0
    %p180 = por %p178, %p179
    %p181 = scmp.ne.s32.totalorder %s173, %s175
    %p182 = scmp.eq.s32.totalorder %s23, 1
    %p183 = por %p181, %p182
    %p184 = scmp.ne.s32.totalorder %s175, %s176
    %p185 = scmp.eq.s32.totalorder %s23, 0
    %p186 = por %p184, %p185
    %p187 = scmp.ne.s32.totalorder %s175, %s176
    %p188 = scmp.eq.s32.totalorder %s24, 1
    %p189 = por %p187, %p188
    %p191 = scmp.ne.s32.totalorder %s176, %s190
    %p192 = scmp.eq.s32.totalorder %s24, 0
    %p193 = por %p191, %p192
    %s195 = sadd.s32 %s194, 1
    %p198 = scmp.eq.s32.totalorder %s18, 1
    %p199 = scmp.ne.s32.totalorder %s194, %s196
    %p200 = scmp.eq.s32.totalorder %s18, 0
    %p201 = por %p199, %p200
    %p202 = scmp.ne.s32.totalorder %s194, %s196
    %p203 = scmp.eq.s32.totalorder %s23, 1
    %p204 = por %p202, %p203
    %p205 = scmp.ne.s32.totalorder %s196, %s197
    %p206 = scmp.eq.s32.totalorder %s23, 0
    %p207 = por %p205, %p206
    %p208 = scmp.ne.s32.totalorder %s196, %s197
    %p209 = scmp.eq.s32.totalorder %s24, 1
    %p210 = por %p208, %p209
    %p212 = scmp.ne.s32.totalorder %s197, %s211
    %p213 = scmp.eq.s32.totalorder %s24, 0
    %p214 = por %p212, %p213
    %s216 = sadd.s32 %s215, 1
    %p219 = scmp.eq.s32.totalorder %s18, 1
    %p220 = scmp.ne.s32.totalorder %s215, %s217
    %p221 = scmp.eq.s32.totalorder %s18, 0
    %p222 = por %p220, %p221
    %p223 = scmp.ne.s32.totalorder %s215, %s217
    %p224 = scmp.eq.s32.totalorder %s23, 1
    %p225 = por %p223, %p224
    %p226 = scmp.ne.s32.totalorder %s217, %s218
    %p227 = scmp.eq.s32.totalorder %s23, 0
    %p228 = por %p226, %p227
    %p229 = scmp.ne.s32.totalorder %s217, %s218
    %p230 = scmp.eq.s32.totalorder %s24, 1
    %p231 = por %p229, %p230
    %p233 = scmp.ne.s32.totalorder %s218, %s232
    %p234 = scmp.eq.s32.totalorder %s24, 0
    %p235 = por %p233, %p234
    %s236 = ssub.s32 %s18, %s25
    %p237 = scmp.eq.s32.totalorder %s236, 0
    %s239 = sadd.s32 %s238, 1
    %s240 = scalar_select %p237, %s238, %s239
    %p243 = pneg %p237
    %p244 = scmp.eq.s32.totalorder %s18, 1
    %p245 = por %p243, %p244
    %p246 = scmp.ne.s32.totalorder %s238, %s241
    %p247 = scmp.eq.s32.totalorder %s18, 0
    %p248 = por %p246, %p247
    %p249 = scmp.ne.s32.totalorder %s238, %s241
    %p250 = scmp.eq.s32.totalorder %s23, 1
    %p251 = por %p249, %p250
    %p252 = scmp.ne.s32.totalorder %s241, %s242
    %p253 = scmp.eq.s32.totalorder %s23, 0
    %p254 = por %p252, %p253
    %p255 = scmp.ne.s32.totalorder %s241, %s242
    %p256 = scmp.eq.s32.totalorder %s24, 1
    %p257 = por %p255, %p256
    %p259 = scmp.ne.s32.totalorder %s242, %s258
    %p260 = scmp.eq.s32.totalorder %s24, 0
    %p261 = por %p259, %p260
    %s262 = ssub.s32 %s18, %s25
    %p263 = scmp.eq.s32.totalorder %s262, 0
    %s265 = sadd.s32 %s264, 1
    %s266 = scalar_select %p263, %s264, %s265
    %p269 = pneg %p263
    %p270 = scmp.eq.s32.totalorder %s18, 1
    %p271 = por %p269, %p270
    %p272 = scmp.ne.s32.totalorder %s264, %s267
    %p273 = scmp.eq.s32.totalorder %s18, 0
    %p274 = por %p272, %p273
    %p275 = scmp.ne.s32.totalorder %s264, %s267
    %p276 = scmp.eq.s32.totalorder %s23, 1
    %p277 = por %p275, %p276
    %p278 = scmp.ne.s32.totalorder %s267, %s268
    %p279 = scmp.eq.s32.totalorder %s23, 0
    %p280 = por %p278, %p279
    %p281 = scmp.ne.s32.totalorder %s267, %s268
    %p282 = scmp.eq.s32.totalorder %s24, 1
    %p283 = por %p281, %p282
    %p285 = scmp.ne.s32.totalorder %s268, %s284
    %p286 = scmp.eq.s32.totalorder %s24, 0
    %p287 = por %p285, %p286
    %p288 = scmp.le.s32.totalorder 1, %s18
    %p289 = scmp.lt.s32.totalorder %s18, 3
    %p290 = pnand %p288, %p289
    %p291 = pneg %p290
    // Predicated region
    $region9: #{decoder_with_attention_forward.1} parent=5 // pred_check
      _
    $region10: #{decoder_with_attention_forward.1} parent=5 // pred_check_branch
      %293 = sbr.rel (%p290) target = $region12
    $region11: #{decoder_with_attention_forward.1} parent=5 // pred_region
      %s294 = ssub.s32 %s18, 1
      // Predicated region
      $region13: #{decoder_with_attention_forward.1} parent=11 // pred_check
        %p295 = pneg %p39
      $region14: #{decoder_with_attention_forward.1} parent=11 // pred_check_branch
        %297 = sbr.rel (%p295) target = $region16
      $region15: #{decoder_with_attention_forward.1} parent=11 // pred_region
        _
      $region16: #{decoder_with_attention_forward.1} parent=11 // pred_fallthru
        _
      // Predicated region
      $region17: #{decoder_with_attention_forward.1} parent=11 // pred_check
        %p298 = pneg %p60
      $region18: #{decoder_with_attention_forward.1} parent=11 // pred_check_branch
        %300 = sbr.rel (%p298) target = $region20
      $region19: #{decoder_with_attention_forward.1} parent=11 // pred_region
        _
      $region20: #{decoder_with_attention_forward.1} parent=11 // pred_fallthru
        _
      // Predicated region
      $region21: #{decoder_with_attention_forward.1} parent=11 // pred_check
        %p301 = pneg %p81
      $region22: #{decoder_with_attention_forward.1} parent=11 // pred_check_branch
        %303 = sbr.rel (%p301) target = $region24
      $region23: #{decoder_with_attention_forward.1} parent=11 // pred_region
        _
      $region24: #{decoder_with_attention_forward.1} parent=11 // pred_fallthru
        _
      // Predicated region
      $region25: #{decoder_with_attention_forward.1} parent=11 // pred_check
        %p304 = pneg %p102
      $region26: #{decoder_with_attention_forward.1} parent=11 // pred_check_branch
        %306 = sbr.rel (%p304) target = $region28
      $region27: #{decoder_with_attention_forward.1} parent=11 // pred_region
        _
      $region28: #{decoder_with_attention_forward.1} parent=11 // pred_fallthru
        _
      // Predicated region
      $region29: #{decoder_with_attention_forward.1} parent=11 // pred_check
        %p307 = pneg %p123
      $region30: #{decoder_with_attention_forward.1} parent=11 // pred_check_branch
        %309 = sbr.rel (%p307) target = $region32
      $region31: #{decoder_with_attention_forward.1} parent=11 // pred_region
        _
      $region32: #{decoder_with_attention_forward.1} parent=11 // pred_fallthru
        _
      // Predicated region
      $region33: #{decoder_with_attention_forward.1} parent=11 // pred_check
        %p310 = pneg %p144
      $region34: #{decoder_with_attention_forward.1} parent=11 // pred_check_branch
        %312 = sbr.rel (%p310) target = $region36
      $region35: #{decoder_with_attention_forward.1} parent=11 // pred_region
        _
      $region36: #{decoder_with_attention_forward.1} parent=11 // pred_fallthru
        _
      // Predicated region
      $region37: #{decoder_with_attention_forward.1} parent=11 // pred_check
        %p313 = pneg %p165
      $region38: #{decoder_with_attention_forward.1} parent=11 // pred_check_branch
        %315 = sbr.rel (%p313) target = $region40
      $region39: #{decoder_with_attention_forward.1} parent=11 // pred_region
        _
      $region40: #{decoder_with_attention_forward.1} parent=11 // pred_fallthru
        _
      // Predicated region
      $region41: #{decoder_with_attention_forward.1} parent=11 // pred_check
        %p316 = pneg %p186
      $region42: #{decoder_with_attention_forward.1} parent=11 // pred_check_branch
        %318 = sbr.rel (%p316) target = $region44
      $region43: #{decoder_with_attention_forward.1} parent=11 // pred_region
        _
      $region44: #{decoder_with_attention_forward.1} parent=11 // pred_fallthru
        _
      // Predicated region
      $region45: #{decoder_with_attention_forward.1} parent=11 // pred_check
        %p319 = pneg %p207
      $region46: #{decoder_with_attention_forward.1} parent=11 // pred_check_branch
        %321 = sbr.rel (%p319) target = $region48
      $region47: #{decoder_with_attention_forward.1} parent=11 // pred_region
        _
      $region48: #{decoder_with_attention_forward.1} parent=11 // pred_fallthru
        _
      // Predicated region
      $region49: #{decoder_with_attention_forward.1} parent=11 // pred_check
        %p322 = pneg %p228
      $region50: #{decoder_with_attention_forward.1} parent=11 // pred_check_branch
        %324 = sbr.rel (%p322) target = $region52
      $region51: #{decoder_with_attention_forward.1} parent=11 // pred_region
        _
      $region52: #{decoder_with_attention_forward.1} parent=11 // pred_fallthru
        _
    $region12: #{decoder_with_attention_forward.1} parent=5 // pred_fallthru
      _
    %p325 = scmp.lt.s32.totalorder %s18, 2
    // Predicated region
    $region53: #{decoder_with_attention_forward.1} parent=5 // pred_check
      %p326 = pneg %p325
    $region54: #{decoder_with_attention_forward.1} parent=5 // pred_check_branch
      %328 = sbr.rel (%p326) target = $region56
    $region55: #{decoder_with_attention_forward.1} parent=5 // pred_region
      _
    $region56: #{decoder_with_attention_forward.1} parent=5 // pred_fallthru
      _
    %p329 = scmp.le.s32.totalorder 1, %s18
    %p330 = scmp.lt.s32.totalorder %s18, 3
    %p331 = pnand %p329, %p330
    %p332 = pneg %p331
    // Predicated region
    $region57: #{decoder_with_attention_forward.1} parent=5 // pred_check
      _
    $region58: #{decoder_with_attention_forward.1} parent=5 // pred_check_branch
      %334 = sbr.rel (%p331) target = $region60
    $region59: #{decoder_with_attention_forward.1} parent=5 // pred_region
      %s335 = ssub.s32 %s18, 1
      %p336 = pneg %p39
      %p337 = pneg %p36
      %p338 = pneg %p60
      %p339 = pneg %p57
      %p340 = pneg %p81
      %p341 = pneg %p78
      %p342 = pneg %p102
      %p343 = pneg %p99
      %p344 = pneg %p123
      %p345 = pneg %p120
      %p346 = pneg %p144
      %p347 = pneg %p141
      %p348 = pneg %p165
      %p349 = pneg %p162
      %p350 = pneg %p186
      %p351 = pneg %p183
      %p352 = pneg %p207
      %p353 = pneg %p204
      %p354 = pneg %p228
      %p355 = pneg %p225
      %p356 = pneg %p254
      %p357 = pneg %p251
      %s358 = smul.u32 4, %s23
      %p359 = scmp.lt.s32.totalorder %s358, 7
      %s360 = scalar_select %p359, %s358, 7
      %s361 = smul.addr %s360, 8
      %s362 = scalar_lea.vmem %s10, %s361
      %p363 = pneg %p280
      %p364 = pneg %p277
      %s365 = smul.u32 4, %s23
      %p366 = scmp.lt.s32.totalorder %s365, 7
      %s367 = scalar_select %p366, %s365, 7
      %s368 = smul.addr %s367, 8
      %s369 = scalar_lea.vmem %s11, %s368
      %s370 = smul.u32 4, %s23
      %p371 = scmp.lt.s32.totalorder %s370, 7
      %s372 = scalar_select %p371, %s370, 7
      %s373 = smul.addr %s372, 8
      %s374 = scalar_lea.vmem %s10, %s373
      %s375 = smul.u32 4, %s23
      %s376 = smul.u32 4, %s23
      %p377 = scmp.lt.s32.totalorder %s376, 7
      %s378 = scalar_select %p377, %s376, 7
      %s379 = smul.addr %s378, 8
      %s380 = scalar_lea.vmem %s11, %s379
      %s381 = smul.u32 4, %s23
      %p383 = scmp.eq.s32.totalorder %s23, 0
      // Predicated region
      $region61: #{decoder_with_attention_forward.1} parent=59 // pred_check
        %p384 = pneg %p383
      $region62: #{decoder_with_attention_forward.1} parent=59 // pred_check_branch
        %386 = sbr.rel (%p384) target = $region64
      $region63: #{decoder_with_attention_forward.1} parent=59 // pred_region
        %vm387 = vcmask 261120
        %388 = vst.msk [vmem:[#allocation2] sm:$0xff] %vm387, 0.0
        %389 = vst.msk [vmem:[#allocation3] sm:$0xff] %vm387, 0.0
      $region64: #{decoder_with_attention_forward.1} parent=59 // pred_fallthru
        _
      %v390 = vld [vmem:[#allocation2] sm:$0xff]
      %v391 = vld [vmem:[#allocation3] sm:$0xff]
      %v392 = vld [vmem:[%s1] sm:$0xf]
      %v393 = vld [vmem:[%s1 + $0x4] sm:$0xf]
      %v394 = vld [vmem:[%s1 + $0x8] sm:$0xf]
      %v395 = vld [vmem:[%s1 + $0xc] sm:$0xf]
      %v396 = vld [vmem:[%s1 + $0x10] sm:$0xf]
      %v397 = vld [vmem:[%s1 + $0x14] sm:$0xf]
      %v398 = vld [vmem:[%s1 + $0x18] sm:$0xf]
      %v399 = vld [vmem:[%s1 + $0x1c] sm:$0xf]
      %v400 = vld [vmem:[%s1 + $0x20] sm:$0xf]
      %v401 = vld [vmem:[%s1 + $0x24] sm:$0xf]
      %v402 = vld [vmem:[%s1 + $0x28] sm:$0xf]
      %v403 = vld [vmem:[%s1 + $0x2c] sm:$0xf]
      %v404 = vld [vmem:[%s1 + $0x30] sm:$0xf]
      %v405 = vld [vmem:[%s1 + $0x34] sm:$0xf]
      %v406 = vld [vmem:[%s1 + $0x38] sm:$0xf]
      %v407 = vld [vmem:[%s1 + $0x3c] sm:$0xf]
      %v408 = vunpack.c.l.bf16 %v392
      %v409 = vunpack.c.l.bf16 %v393
      %v410 = vunpack.c.l.bf16 %v394
      %v411 = vunpack.c.l.bf16 %v395
      %v412 = vunpack.c.l.bf16 %v396
      %v413 = vunpack.c.l.bf16 %v397
      %v414 = vunpack.c.l.bf16 %v398
      %v415 = vunpack.c.l.bf16 %v399
      %v416 = vunpack.c.l.bf16 %v400
      %v417 = vunpack.c.l.bf16 %v401
      %v418 = vunpack.c.l.bf16 %v402
      %v419 = vunpack.c.l.bf16 %v403
      %v420 = vunpack.c.l.bf16 %v404
      %v421 = vunpack.c.l.bf16 %v405
      %v422 = vunpack.c.l.bf16 %v406
      %v423 = vunpack.c.l.bf16 %v407
      %v424 = vld [vmem:[%s2] sm:$0xf]
      %v425 = vld [vmem:[%s2 + $0x4] sm:$0xf]
      %v426 = vld [vmem:[%s2 + $0x8] sm:$0xf]
      %v427 = vld [vmem:[%s2 + $0xc] sm:$0xf]
      %v428 = vld [vmem:[%s2 + $0x10] sm:$0xf]
      %v429 = vld [vmem:[%s2 + $0x14] sm:$0xf]
      %v430 = vld [vmem:[%s2 + $0x18] sm:$0xf]
      %v431 = vld [vmem:[%s2 + $0x1c] sm:$0xf]
      %v432 = vld [vmem:[%s2 + $0x20] sm:$0xf]
      %v433 = vld [vmem:[%s2 + $0x24] sm:$0xf]
      %v434 = vld [vmem:[%s2 + $0x28] sm:$0xf]
      %v435 = vld [vmem:[%s2 + $0x2c] sm:$0xf]
      %v436 = vld [vmem:[%s2 + $0x30] sm:$0xf]
      %v437 = vld [vmem:[%s2 + $0x34] sm:$0xf]
      %v438 = vld [vmem:[%s2 + $0x38] sm:$0xf]
      %v439 = vld [vmem:[%s2 + $0x3c] sm:$0xf]
      %v440 = vld [vmem:[%s5] sm:$0x1]
      %s441 = smul.u32 %s23, 4
      %v442 = vpack.c.bf16 %v390, %v390
      %v443 = vld [vmem:[%s3] sm:$0xf]
      %v444 = vld [vmem:[%s3 + $0x4] sm:$0xf]
      %v445 = vld [vmem:[%s3 + $0x8] sm:$0xf]
      %v446 = vld [vmem:[%s3 + $0xc] sm:$0xf]
      %v447 = vld [vmem:[%s4] sm:$0x1]
      %v449 = vlaneseq
      %v450 = vshrl.u32 %v449, 7
      %v451 = vsub.s32 0, %v450
      %v452 = vrot.slane %v447, %v451
      %v458 = vunpack.c.l.b16 %v443
      %v459 = vunpack.c.l.b16 %v444
      %v460 = vunpack.c.l.b16 %v445
      %v461 = vunpack.c.l.b16 %v446
      %v462 = vpack.c.b16 %v459, %v458
      %v463 = vpack.c.b16 %v461, %v460
      %vm466 = vcmask 261120
      %v468 = vsel %vm466, %v442, 0
      %470 = vmatprep.subr.bf16.mxu0 0
      %471 = vmatpush1.bf16.msra.mxu0 %v462
      %472 = vmatprep.subr.bf16.mxu0 0
      %473 = vmatpush1.bf16.msra.mxu0 %v463
      %474 = vmatprep.subr.bf16.mxu0 0
      %475 = vmatpush1.bf16.msra.mxu0 0
      %476 = vmatprep.subr.bf16.mxu0 0
      %477 = vmatpush1.bf16.msra.mxu0 0
      %478 = vmatprep.subr.bf16.mxu0 0
      %479 = vmatpush1.bf16.msra.mxu0 0
      %480 = vmatprep.subr.bf16.mxu0 0
      %481 = vmatpush1.bf16.msra.mxu0 0
      %482 = vmatprep.subr.bf16.mxu0 0
      %483 = vmatpush1.bf16.msra.mxu0 0
      %484 = vmatprep.subr.bf16.mxu0 0
      %485 = vmatpush1.bf16.msra.mxu0 0
      %486 = vmatprep.subr.bf16.mxu0 0
      %487 = vmatpush1.bf16.msra.mxu0 0
      %488 = vmatprep.subr.bf16.mxu0 0
      %489 = vmatpush1.bf16.msra.mxu0 0
      %490 = vmatprep.subr.bf16.mxu0 0
      %491 = vmatpush1.bf16.msra.mxu0 0
      %492 = vmatprep.subr.bf16.mxu0 0
      %493 = vmatpush1.bf16.msra.mxu0 0
      %494 = vmatprep.subr.bf16.mxu0 0
      %495 = vmatpush1.bf16.msra.mxu0 0
      %496 = vmatprep.subr.bf16.mxu0 0
      %497 = vmatpush1.bf16.msra.mxu0 0
      %498 = vmatprep.subr.bf16.mxu0 0
      %499 = vmatpush1.bf16.msra.mxu0 0
      %500 = vmatprep.subr.bf16.mxu0 0
      %501 = vmatpush1.bf16.msra.mxu0 0
      %502 = vmatprep.mubr.bf16.mxu0 0
      %503 = vmatmul.mubr.bf16.gmra.mrb[0].mxu0 %v468
      %v504 = vpop.f32.mrb[0].mxu0
      %v505 = vadd.f32 %v452, %v504
      %v506 = vpop.f32.mrb[0].mxu0
      %v507 = vpop.f32.mrb[0].mxu0
      %v508 = vpop.f32.mrb[0].mxu0
      %509 = vdwg.mxu0
      %v511 = vcombine.high %v505, %v505
      %v513 = vunpack.c.l.s4 1966171168
      %v514 = vunpack.c.0.s8 %v513
      %v515 = vlaneseq
      %v516 = vshrl.u32 %v515, 7
      %v517 = vsub.s32 %v514, %v516
      %v518 = vrot.slane %v505, %v517
      %v520 = vunpack.c.l.s4 1966171168
      %v521 = vunpack.c.0.s8 %v520
      %v522 = vlaneseq
      %v523 = vshrl.u32 %v522, 7
      %v524 = vsub.s32 %v521, %v523
      %v525 = vrot.slane %v511, %v524
      %v526 = vcombine.high %v518, %v518
      %v527 = vcombine.high %v525, %v525
      %v529 = vunpack.c.l.s4 1966171168
      %v530 = vunpack.c.0.s8 %v529
      %v531 = vlaneseq
      %v532 = vshrl.u32 %v531, 7
      %v533 = vsub.s32 %v530, %v532
      %v534 = vrot.slane %v518, %v533
      %v536 = vunpack.c.l.s4 1966171168
      %v537 = vunpack.c.0.s8 %v536
      %v538 = vlaneseq
      %v539 = vshrl.u32 %v538, 7
      %v540 = vsub.s32 %v537, %v539
      %v541 = vrot.slane %v525, %v540
      %v543 = vunpack.c.l.s4 1966171168
      %v544 = vunpack.c.0.s8 %v543
      %v545 = vlaneseq
      %v546 = vshrl.u32 %v545, 7
      %v547 = vsub.s32 %v544, %v546
      %v548 = vrot.slane %v526, %v547
      %v550 = vunpack.c.l.s4 1966171168
      %v551 = vunpack.c.0.s8 %v550
      %v552 = vlaneseq
      %v553 = vshrl.u32 %v552, 7
      %v554 = vsub.s32 %v551, %v553
      %v555 = vrot.slane %v527, %v554
      %v556 = vcombine.high %v534, %v534
      %v557 = vcombine.high %v541, %v541
      %v558 = vcombine.high %v548, %v548
      %v559 = vcombine.high %v555, %v555
      %v560 = vlaneseq
      %v561 = vshrl.u32 %v560, 7
      %v562 = vsub.s32 0, %v561
      %v563 = vrot.slane %v534, %v562
      %v564 = vlaneseq
      %v565 = vshrl.u32 %v564, 7
      %v566 = vsub.s32 0, %v565
      %v567 = vrot.slane %v548, %v566
      %v568 = vlaneseq
      %v569 = vshrl.u32 %v568, 7
      %v570 = vsub.s32 0, %v569
      %v571 = vrot.slane %v556, %v570
      %v572 = vlaneseq
      %v573 = vshrl.u32 %v572, 7
      %v574 = vsub.s32 0, %v573
      %v575 = vrot.slane %v558, %v574
      %v576 = vlaneseq
      %v577 = vshrl.u32 %v576, 7
      %v578 = vsub.s32 0, %v577
      %v579 = vrot.slane %v541, %v578
      %v580 = vlaneseq
      %v581 = vshrl.u32 %v580, 7
      %v582 = vsub.s32 0, %v581
      %v583 = vrot.slane %v555, %v582
      %v584 = vlaneseq
      %v585 = vshrl.u32 %v584, 7
      %v586 = vsub.s32 0, %v585
      %v587 = vrot.slane %v557, %v586
      %v588 = vlaneseq
      %v589 = vshrl.u32 %v588, 7
      %v590 = vsub.s32 0, %v589
      %v591 = vrot.slane %v559, %v590
      %v600 = vadd.f32 %v408, %v563
      %v601 = vadd.f32 %v409, %v563
      %v602 = vadd.f32 %v410, %v567
      %v603 = vadd.f32 %v411, %v567
      %v604 = vadd.f32 %v412, %v571
      %v605 = vadd.f32 %v413, %v571
      %v606 = vadd.f32 %v414, %v575
      %v607 = vadd.f32 %v415, %v575
      %v608 = vadd.f32 %v416, %v579
      %v609 = vadd.f32 %v417, %v579
      %v610 = vadd.f32 %v418, %v583
      %v611 = vadd.f32 %v419, %v583
      %v612 = vadd.f32 %v420, %v587
      %v613 = vadd.f32 %v421, %v587
      %v614 = vadd.f32 %v422, %v591
      %v615 = vadd.f32 %v423, %v591
      %v616 = vtanh.pop %v600
      %v617 = vtanh.pop %v601
      %v618 = vtanh.pop %v602
      %v619 = vtanh.pop %v603
      %v620 = vtanh.pop %v604
      %v621 = vtanh.pop %v605
      %v622 = vtanh.pop %v606
      %v623 = vtanh.pop %v607
      %v624 = vtanh.pop %v608
      %v625 = vtanh.pop %v609
      %v626 = vtanh.pop %v610
      %v627 = vtanh.pop %v611
      %v628 = vtanh.pop %v612
      %v629 = vtanh.pop %v613
      %v630 = vtanh.pop %v614
      %v631 = vtanh.pop %v615
      %v633 = vlaneseq
      %v634 = vshrl.u32 %v633, 7
      %v635 = vsub.s32 0, %v634
      %v636 = vrot.slane %v440, %v635
      %v638 = vmul.f32 %v616, %v636
      %v639 = vmul.f32 %v617, %v636
      %v640 = vmul.f32 %v618, %v636
      %v641 = vmul.f32 %v619, %v636
      %v642 = vmul.f32 %v620, %v636
      %v643 = vmul.f32 %v621, %v636
      %v644 = vmul.f32 %v622, %v636
      %v645 = vmul.f32 %v623, %v636
      %v646 = vmul.f32 %v624, %v636
      %v647 = vmul.f32 %v625, %v636
      %v648 = vmul.f32 %v626, %v636
      %v649 = vmul.f32 %v627, %v636
      %v650 = vmul.f32 %v628, %v636
      %v651 = vmul.f32 %v629, %v636
      %v652 = vmul.f32 %v630, %v636
      %v653 = vmul.f32 %v631, %v636
      %v654 = vsel %vm466, %v638, 0.0
      %655 = vadd.xlane.f32.xlu0 %v654
      %v656 = vpop.xlane.xlu0 %655
      %v657 = vsel %vm466, %v639, 0.0
      %658 = vadd.xlane.f32.xlu0 %v657
      %v659 = vpop.xlane.xlu0 %658
      %v660 = vsel %vm466, %v640, 0.0
      %661 = vadd.xlane.f32.xlu0 %v660
      %v662 = vpop.xlane.xlu0 %661
      %v663 = vsel %vm466, %v641, 0.0
      %664 = vadd.xlane.f32.xlu0 %v663
      %v665 = vpop.xlane.xlu0 %664
      %v666 = vsel %vm466, %v642, 0.0
      %667 = vadd.xlane.f32.xlu0 %v666
      %v668 = vpop.xlane.xlu0 %667
      %v669 = vsel %vm466, %v643, 0.0
      %670 = vadd.xlane.f32.xlu0 %v669
      %v671 = vpop.xlane.xlu0 %670
      %v672 = vsel %vm466, %v644, 0.0
      %673 = vadd.xlane.f32.xlu0 %v672
      %v674 = vpop.xlane.xlu0 %673
      %v675 = vsel %vm466, %v645, 0.0
      %676 = vadd.xlane.f32.xlu0 %v675
      %v677 = vpop.xlane.xlu0 %676
      %v678 = vsel %vm466, %v646, 0.0
      %679 = vadd.xlane.f32.xlu0 %v678
      %v680 = vpop.xlane.xlu0 %679
      %v681 = vsel %vm466, %v647, 0.0
      %682 = vadd.xlane.f32.xlu0 %v681
      %v683 = vpop.xlane.xlu0 %682
      %v684 = vsel %vm466, %v648, 0.0
      %685 = vadd.xlane.f32.xlu0 %v684
      %v686 = vpop.xlane.xlu0 %685
      %v687 = vsel %vm466, %v649, 0.0
      %688 = vadd.xlane.f32.xlu0 %v687
      %v689 = vpop.xlane.xlu0 %688
      %v690 = vsel %vm466, %v650, 0.0
      %691 = vadd.xlane.f32.xlu0 %v690
      %v692 = vpop.xlane.xlu0 %691
      %v693 = vsel %vm466, %v651, 0.0
      %694 = vadd.xlane.f32.xlu0 %v693
      %v695 = vpop.xlane.xlu0 %694
      %v696 = vsel %vm466, %v652, 0.0
      %697 = vadd.xlane.f32.xlu0 %v696
      %v698 = vpop.xlane.xlu0 %697
      %v699 = vsel %vm466, %v653, 0.0
      %700 = vadd.xlane.f32.xlu0 %v699
      %v701 = vpop.xlane.xlu0 %700
      %v718 = vlaneseq
      %v719 = vand.u32 %v718, 127
      %v720 = vlaneseq
      %v721 = vshrl.u32 %v720, 7
      %v722 = vsub.s32 %v719, %v721
      %v723 = vrot.slane %v656, %v722
      %v724 = vadd.s32 %v719, 4294967288
      %v725 = vlaneseq
      %v726 = vshrl.u32 %v725, 7
      %v727 = vsub.s32 %v724, %v726
      %v728 = vrot.slane %v659, %v727
      %vm729 = vcmask 130112
      %v730 = vsel %vm729, %v728, %v723
      %v731 = vlaneseq
      %v732 = vshrl.u32 %v731, 7
      %v733 = vsub.s32 %v719, %v732
      %v734 = vrot.slane %v662, %v733
      %v735 = vlaneseq
      %v736 = vshrl.u32 %v735, 7
      %v737 = vsub.s32 %v724, %v736
      %v738 = vrot.slane %v665, %v737
      %v739 = vsel %vm729, %v738, %v734
      %v740 = vlaneseq
      %v741 = vshrl.u32 %v740, 7
      %v742 = vsub.s32 %v719, %v741
      %v743 = vrot.slane %v668, %v742
      %v744 = vlaneseq
      %v745 = vshrl.u32 %v744, 7
      %v746 = vsub.s32 %v724, %v745
      %v747 = vrot.slane %v671, %v746
      %v748 = vsel %vm729, %v747, %v743
      %v749 = vlaneseq
      %v750 = vshrl.u32 %v749, 7
      %v751 = vsub.s32 %v719, %v750
      %v752 = vrot.slane %v674, %v751
      %v753 = vlaneseq
      %v754 = vshrl.u32 %v753, 7
      %v755 = vsub.s32 %v724, %v754
      %v756 = vrot.slane %v677, %v755
      %v757 = vsel %vm729, %v756, %v752
      %v758 = vlaneseq
      %v759 = vshrl.u32 %v758, 7
      %v760 = vsub.s32 %v719, %v759
      %v761 = vrot.slane %v680, %v760
      %v762 = vlaneseq
      %v763 = vshrl.u32 %v762, 7
      %v764 = vsub.s32 %v724, %v763
      %v765 = vrot.slane %v683, %v764
      %v766 = vsel %vm729, %v765, %v761
      %v767 = vlaneseq
      %v768 = vshrl.u32 %v767, 7
      %v769 = vsub.s32 %v719, %v768
      %v770 = vrot.slane %v686, %v769
      %v771 = vlaneseq
      %v772 = vshrl.u32 %v771, 7
      %v773 = vsub.s32 %v724, %v772
      %v774 = vrot.slane %v689, %v773
      %v775 = vsel %vm729, %v774, %v770
      %v776 = vlaneseq
      %v777 = vshrl.u32 %v776, 7
      %v778 = vsub.s32 %v719, %v777
      %v779 = vrot.slane %v692, %v778
      %v780 = vlaneseq
      %v781 = vshrl.u32 %v780, 7
      %v782 = vsub.s32 %v724, %v781
      %v783 = vrot.slane %v695, %v782
      %v784 = vsel %vm729, %v783, %v779
      %v785 = vlaneseq
      %v786 = vshrl.u32 %v785, 7
      %v787 = vsub.s32 %v719, %v786
      %v788 = vrot.slane %v698, %v787
      %v789 = vlaneseq
      %v790 = vshrl.u32 %v789, 7
      %v791 = vsub.s32 %v724, %v790
      %v792 = vrot.slane %v701, %v791
      %v793 = vsel %vm729, %v792, %v788
      %vm794 = vcmask 1041409
      %v795 = vsel %vm794, %v739, %v730
      %vm796 = vcmask 1042434
      %v797 = vsel %vm796, %v748, %v795
      %vm798 = vcmask 1043459
      %v799 = vsel %vm798, %v757, %v797
      %vm800 = vcmask 1044484
      %v801 = vsel %vm800, %v766, %v799
      %vm802 = vcmask 1045509
      %v803 = vsel %vm802, %v775, %v801
      %vm804 = vcmask 1046534
      %v805 = vsel %vm804, %v784, %v803
      %vm806 = vcmask 1047559
      %v807 = vsel %vm806, %v793, %v805
      %vm809 = vcmask 130048
      %v810 = vsel %vm809, %v807, -inf
      %811 = vmax.xlane.f32.xlu0 %v810
      %v812 = vpop.xlane.xlu0 %811
      %v814 = vlaneseq
      %v815 = vshrl.u32 %v814, 7
      %v816 = vsub.s32 0, %v815
      %v817 = vrot.slane %v812, %v816
      %v818 = vlaneseq
      %v819 = vshrl.u32 %v818, 7
      %v820 = vsub.s32 1, %v819
      %v821 = vrot.slane %v812, %v820
      %v822 = vlaneseq
      %v823 = vshrl.u32 %v822, 7
      %v824 = vsub.s32 2, %v823
      %v825 = vrot.slane %v812, %v824
      %v826 = vlaneseq
      %v827 = vshrl.u32 %v826, 7
      %v828 = vsub.s32 3, %v827
      %v829 = vrot.slane %v812, %v828
      %v830 = vlaneseq
      %v831 = vshrl.u32 %v830, 7
      %v832 = vsub.s32 4, %v831
      %v833 = vrot.slane %v812, %v832
      %v834 = vlaneseq
      %v835 = vshrl.u32 %v834, 7
      %v836 = vsub.s32 5, %v835
      %v837 = vrot.slane %v812, %v836
      %v838 = vlaneseq
      %v839 = vshrl.u32 %v838, 7
      %v840 = vsub.s32 6, %v839
      %v841 = vrot.slane %v812, %v840
      %v842 = vlaneseq
      %v843 = vshrl.u32 %v842, 7
      %v844 = vsub.s32 7, %v843
      %v845 = vrot.slane %v812, %v844
      %v854 = vsub.f32 %v656, %v817
      %v855 = vsub.f32 %v659, %v817
      %v856 = vsub.f32 %v662, %v821
      %v857 = vsub.f32 %v665, %v821
      %v858 = vsub.f32 %v668, %v825
      %v859 = vsub.f32 %v671, %v825
      %v860 = vsub.f32 %v674, %v829
      %v861 = vsub.f32 %v677, %v829
      %v862 = vsub.f32 %v680, %v833
      %v863 = vsub.f32 %v683, %v833
      %v864 = vsub.f32 %v686, %v837
      %v865 = vsub.f32 %v689, %v837
      %v866 = vsub.f32 %v692, %v841
      %v867 = vsub.f32 %v695, %v841
      %v868 = vsub.f32 %v698, %v845
      %v869 = vsub.f32 %v701, %v845
      %v870 = vmul.f32 %v854, 1.442695
      %v871 = vpow.pop %v870
      %v872 = vmul.f32 %v855, 1.442695
      %v873 = vpow.pop %v872
      %v874 = vmul.f32 %v856, 1.442695
      %v875 = vpow.pop %v874
      %v876 = vmul.f32 %v857, 1.442695
      %v877 = vpow.pop %v876
      %v878 = vmul.f32 %v858, 1.442695
      %v879 = vpow.pop %v878
      %v880 = vmul.f32 %v859, 1.442695
      %v881 = vpow.pop %v880
      %v882 = vmul.f32 %v860, 1.442695
      %v883 = vpow.pop %v882
      %v884 = vmul.f32 %v861, 1.442695
      %v885 = vpow.pop %v884
      %v886 = vmul.f32 %v862, 1.442695
      %v887 = vpow.pop %v886
      %v888 = vmul.f32 %v863, 1.442695
      %v889 = vpow.pop %v888
      %v890 = vmul.f32 %v864, 1.442695
      %v891 = vpow.pop %v890
      %v892 = vmul.f32 %v865, 1.442695
      %v893 = vpow.pop %v892
      %v894 = vmul.f32 %v866, 1.442695
      %v895 = vpow.pop %v894
      %v896 = vmul.f32 %v867, 1.442695
      %v897 = vpow.pop %v896
      %v898 = vmul.f32 %v868, 1.442695
      %v899 = vpow.pop %v898
      %v900 = vmul.f32 %v869, 1.442695
      %v901 = vpow.pop %v900
      %918 = vset.pattern.permute.xlu0 0
      %919 = vperm.xlu0 %918, %v871
      %v920 = vpop.permute.xlu0 %919
      %921 = vset.pattern.permute.xlu0 0
      %922 = vperm.xlu0 %921, %v873
      %v923 = vpop.permute.xlu0 %922
      %924 = vset.pattern.permute.xlu0 0
      %925 = vperm.xlu0 %924, %v875
      %v926 = vpop.permute.xlu0 %925
      %927 = vset.pattern.permute.xlu0 0
      %928 = vperm.xlu0 %927, %v877
      %v929 = vpop.permute.xlu0 %928
      %930 = vset.pattern.permute.xlu0 0
      %931 = vperm.xlu0 %930, %v879
      %v932 = vpop.permute.xlu0 %931
      %933 = vset.pattern.permute.xlu0 0
      %934 = vperm.xlu0 %933, %v881
      %v935 = vpop.permute.xlu0 %934
      %936 = vset.pattern.permute.xlu0 0
      %937 = vperm.xlu0 %936, %v883
      %v938 = vpop.permute.xlu0 %937
      %939 = vset.pattern.permute.xlu0 0
      %940 = vperm.xlu0 %939, %v885
      %v941 = vpop.permute.xlu0 %940
      %942 = vset.pattern.permute.xlu0 0
      %943 = vperm.xlu0 %942, %v887
      %v944 = vpop.permute.xlu0 %943
      %945 = vset.pattern.permute.xlu0 0
      %946 = vperm.xlu0 %945, %v889
      %v947 = vpop.permute.xlu0 %946
      %948 = vset.pattern.permute.xlu0 0
      %949 = vperm.xlu0 %948, %v891
      %v950 = vpop.permute.xlu0 %949
      %951 = vset.pattern.permute.xlu0 0
      %952 = vperm.xlu0 %951, %v893
      %v953 = vpop.permute.xlu0 %952
      %954 = vset.pattern.permute.xlu0 0
      %955 = vperm.xlu0 %954, %v895
      %v956 = vpop.permute.xlu0 %955
      %957 = vset.pattern.permute.xlu0 0
      %958 = vperm.xlu0 %957, %v897
      %v959 = vpop.permute.xlu0 %958
      %960 = vset.pattern.permute.xlu0 0
      %961 = vperm.xlu0 %960, %v899
      %v962 = vpop.permute.xlu0 %961
      %963 = vset.pattern.permute.xlu0 0
      %964 = vperm.xlu0 %963, %v901
      %v965 = vpop.permute.xlu0 %964
      %v966 = vlaneseq
      %v967 = vshrl.u32 %v966, 7
      %v968 = vsub.s32 %v719, %v967
      %v969 = vrot.slane %v920, %v968
      %v970 = vlaneseq
      %v971 = vshrl.u32 %v970, 7
      %v972 = vsub.s32 %v724, %v971
      %v973 = vrot.slane %v923, %v972
      %v974 = vsel %vm729, %v973, %v969
      %v975 = vlaneseq
      %v976 = vshrl.u32 %v975, 7
      %v977 = vsub.s32 %v719, %v976
      %v978 = vrot.slane %v926, %v977
      %v979 = vlaneseq
      %v980 = vshrl.u32 %v979, 7
      %v981 = vsub.s32 %v724, %v980
      %v982 = vrot.slane %v929, %v981
      %v983 = vsel %vm729, %v982, %v978
      %v984 = vlaneseq
      %v985 = vshrl.u32 %v984, 7
      %v986 = vsub.s32 %v719, %v985
      %v987 = vrot.slane %v932, %v986
      %v988 = vlaneseq
      %v989 = vshrl.u32 %v988, 7
      %v990 = vsub.s32 %v724, %v989
      %v991 = vrot.slane %v935, %v990
      %v992 = vsel %vm729, %v991, %v987
      %v993 = vlaneseq
      %v994 = vshrl.u32 %v993, 7
      %v995 = vsub.s32 %v719, %v994
      %v996 = vrot.slane %v938, %v995
      %v997 = vlaneseq
      %v998 = vshrl.u32 %v997, 7
      %v999 = vsub.s32 %v724, %v998
      %v1000 = vrot.slane %v941, %v999
      %v1001 = vsel %vm729, %v1000, %v996
      %v1002 = vlaneseq
      %v1003 = vshrl.u32 %v1002, 7
      %v1004 = vsub.s32 %v719, %v1003
      %v1005 = vrot.slane %v944, %v1004
      %v1006 = vlaneseq
      %v1007 = vshrl.u32 %v1006, 7
      %v1008 = vsub.s32 %v724, %v1007
      %v1009 = vrot.slane %v947, %v1008
      %v1010 = vsel %vm729, %v1009, %v1005
      %v1011 = vlaneseq
      %v1012 = vshrl.u32 %v1011, 7
      %v1013 = vsub.s32 %v719, %v1012
      %v1014 = vrot.slane %v950, %v1013
      %v1015 = vlaneseq
      %v1016 = vshrl.u32 %v1015, 7
      %v1017 = vsub.s32 %v724, %v1016
      %v1018 = vrot.slane %v953, %v1017
      %v1019 = vsel %vm729, %v1018, %v1014
      %v1020 = vlaneseq
      %v1021 = vshrl.u32 %v1020, 7
      %v1022 = vsub.s32 %v719, %v1021
      %v1023 = vrot.slane %v956, %v1022
      %v1024 = vlaneseq
      %v1025 = vshrl.u32 %v1024, 7
      %v1026 = vsub.s32 %v724, %v1025
      %v1027 = vrot.slane %v959, %v1026
      %v1028 = vsel %vm729, %v1027, %v1023
      %v1029 = vlaneseq
      %v1030 = vshrl.u32 %v1029, 7
      %v1031 = vsub.s32 %v719, %v1030
      %v1032 = vrot.slane %v962, %v1031
      %v1033 = vlaneseq
      %v1034 = vshrl.u32 %v1033, 7
      %v1035 = vsub.s32 %v724, %v1034
      %v1036 = vrot.slane %v965, %v1035
      %v1037 = vsel %vm729, %v1036, %v1032
      %v1038 = vsel %vm794, %v983, %v974
      %v1039 = vsel %vm796, %v992, %v1038
      %v1040 = vsel %vm798, %v1001, %v1039
      %v1041 = vsel %vm800, %v1010, %v1040
      %v1042 = vsel %vm802, %v1019, %v1041
      %v1043 = vsel %vm804, %v1028, %v1042
      %v1044 = vsel %vm806, %v1037, %v1043
      %v1046 = vsel %vm809, %v1044, 0.0
      %1047 = vadd.xlane.f32.xlu0 %v1046
      %v1048 = vpop.xlane.xlu0 %1047
      %v1049 = vrcp.pop %v1048
      %v1051 = vlaneseq
      %v1052 = vshrl.u32 %v1051, 7
      %v1053 = vsub.s32 0, %v1052
      %v1054 = vrot.slane %v1049, %v1053
      %v1055 = vlaneseq
      %v1056 = vshrl.u32 %v1055, 7
      %v1057 = vsub.s32 1, %v1056
      %v1058 = vrot.slane %v1049, %v1057
      %v1059 = vlaneseq
      %v1060 = vshrl.u32 %v1059, 7
      %v1061 = vsub.s32 2, %v1060
      %v1062 = vrot.slane %v1049, %v1061
      %v1063 = vlaneseq
      %v1064 = vshrl.u32 %v1063, 7
      %v1065 = vsub.s32 3, %v1064
      %v1066 = vrot.slane %v1049, %v1065
      %v1067 = vlaneseq
      %v1068 = vshrl.u32 %v1067, 7
      %v1069 = vsub.s32 4, %v1068
      %v1070 = vrot.slane %v1049, %v1069
      %v1071 = vlaneseq
      %v1072 = vshrl.u32 %v1071, 7
      %v1073 = vsub.s32 5, %v1072
      %v1074 = vrot.slane %v1049, %v1073
      %v1075 = vlaneseq
      %v1076 = vshrl.u32 %v1075, 7
      %v1077 = vsub.s32 6, %v1076
      %v1078 = vrot.slane %v1049, %v1077
      %v1079 = vlaneseq
      %v1080 = vshrl.u32 %v1079, 7
      %v1081 = vsub.s32 7, %v1080
      %v1082 = vrot.slane %v1049, %v1081
      %v1091 = vmul.f32 %v871, %v1054
      %v1092 = vmul.f32 %v873, %v1054
      %v1093 = vmul.f32 %v875, %v1058
      %v1094 = vmul.f32 %v877, %v1058
      %v1095 = vmul.f32 %v879, %v1062
      %v1096 = vmul.f32 %v881, %v1062
      %v1097 = vmul.f32 %v883, %v1066
      %v1098 = vmul.f32 %v885, %v1066
      %v1099 = vmul.f32 %v887, %v1070
      %v1100 = vmul.f32 %v889, %v1070
      %v1101 = vmul.f32 %v891, %v1074
      %v1102 = vmul.f32 %v893, %v1074
      %v1103 = vmul.f32 %v895, %v1078
      %v1104 = vmul.f32 %v897, %v1078
      %v1105 = vmul.f32 %v899, %v1082
      %v1106 = vmul.f32 %v901, %v1082
      %v1107 = vpack.c.bf16 %v1092, %v1091
      %v1108 = vpack.c.bf16 %v1094, %v1093
      %v1109 = vpack.c.bf16 %v1096, %v1095
      %v1110 = vpack.c.bf16 %v1098, %v1097
      %v1111 = vpack.c.bf16 %v1100, %v1099
      %v1112 = vpack.c.bf16 %v1102, %v1101
      %v1113 = vpack.c.bf16 %v1104, %v1103
      %v1114 = vpack.c.bf16 %v1106, %v1105
      %v1116 = vunpack.c.l.b16 %v1107
      %v1117 = vunpack.c.h.b16 %v1107
      %1118 = vset.pattern.permute.xlu0 0
      %1119 = vperm.xlu0 %1118, %v1116
      %v1120 = vpop.permute.xlu0 %1119
      %1121 = vset.pattern.permute.xlu0 0
      %1122 = vperm.xlu0 %1121, %v1117
      %v1123 = vpop.permute.xlu0 %1122
      %v1124 = vlaneseq
      %v1125 = vshrl.u32 %v1124, 7
      %v1126 = vsub.s32 %v719, %v1125
      %v1127 = vrot.slane %v1120, %v1126
      %v1128 = vlaneseq
      %v1129 = vshrl.u32 %v1128, 7
      %v1130 = vsub.s32 %v724, %v1129
      %v1131 = vrot.slane %v1123, %v1130
      %v1132 = vsel %vm729, %v1131, %v1127
      %v1133 = vpack.c.b16 %v1132, %v1132
      %v1136 = vunpack.c.l.b16 %v424
      %v1137 = vunpack.c.l.b16 %v425
      %v1138 = vpack.c.b16 %v1137, %v1136
      %v1141 = vsel %vm809, %v1133, 0
      %1143 = vmatprep.subr.bf16.mxu0 0
      %1144 = vmatpush1.bf16.msra.mxu0 %v1138
      %1145 = vmatprep.subr.bf16.mxu0 0
      %1146 = vmatpush1.bf16.msra.mxu0 0
      %1147 = vmatprep.subr.bf16.mxu0 0
      %1148 = vmatpush1.bf16.msra.mxu0 0
      %1149 = vmatprep.subr.bf16.mxu0 0
      %1150 = vmatpush1.bf16.msra.mxu0 0
      %1151 = vmatprep.subr.bf16.mxu0 0
      %1152 = vmatpush1.bf16.msra.mxu0 0
      %1153 = vmatprep.subr.bf16.mxu0 0
      %1154 = vmatpush1.bf16.msra.mxu0 0
      %1155 = vmatprep.subr.bf16.mxu0 0
      %1156 = vmatpush1.bf16.msra.mxu0 0
      %1157 = vmatprep.subr.bf16.mxu0 0
      %1158 = vmatpush1.bf16.msra.mxu0 0
      %1159 = vmatprep.subr.bf16.mxu0 0
      %1160 = vmatpush1.bf16.msra.mxu0 0
      %1161 = vmatprep.subr.bf16.mxu0 0
      %1162 = vmatpush1.bf16.msra.mxu0 0
      %1163 = vmatprep.subr.bf16.mxu0 0
      %1164 = vmatpush1.bf16.msra.mxu0 0
      %1165 = vmatprep.subr.bf16.mxu0 0
      %1166 = vmatpush1.bf16.msra.mxu0 0
      %1167 = vmatprep.subr.bf16.mxu0 0
      %1168 = vmatpush1.bf16.msra.mxu0 0
      %1169 = vmatprep.subr.bf16.mxu0 0
      %1170 = vmatpush1.bf16.msra.mxu0 0
      %1171 = vmatprep.subr.bf16.mxu0 0
      %1172 = vmatpush1.bf16.msra.mxu0 0
      %1173 = vmatprep.subr.bf16.mxu0 0
      %1174 = vmatpush1.bf16.msra.mxu0 0
      %1175 = vmatprep.mubr.bf16.mxu0 0
      %1176 = vmatmul.mubr.bf16.gmra.mrb[0].mxu0 %v1141
      %v1177 = vpop.f32.mrb[0].mxu0
      %v1178 = vadd.f32 0.0, %v1177
      %v1179 = vpop.f32.mrb[0].mxu0
      %v1180 = vpop.f32.mrb[0].mxu0
      %v1181 = vpop.f32.mrb[0].mxu0
      %1182 = vdwg.mxu0
      %v1184 = vunpack.c.l.b16 %v1108
      %v1185 = vunpack.c.h.b16 %v1108
      %1186 = vset.pattern.permute.xlu0 0
      %1187 = vperm.xlu0 %1186, %v1184
      %v1188 = vpop.permute.xlu0 %1187
      %1189 = vset.pattern.permute.xlu0 0
      %1190 = vperm.xlu0 %1189, %v1185
      %v1191 = vpop.permute.xlu0 %1190
      %v1192 = vlaneseq
      %v1193 = vshrl.u32 %v1192, 7
      %v1194 = vsub.s32 %v719, %v1193
      %v1195 = vrot.slane %v1188, %v1194
      %v1196 = vlaneseq
      %v1197 = vshrl.u32 %v1196, 7
      %v1198 = vsub.s32 %v724, %v1197
      %v1199 = vrot.slane %v1191, %v1198
      %v1200 = vsel %vm729, %v1199, %v1195
      %v1201 = vpack.c.b16 %v1200, %v1200
      %v1204 = vunpack.c.l.b16 %v426
      %v1205 = vunpack.c.l.b16 %v427
      %v1206 = vpack.c.b16 %v1205, %v1204
      %v1209 = vsel %vm809, %v1201, 0
      %1211 = vmatprep.subr.bf16.mxu0 0
      %1212 = vmatpush1.bf16.msra.mxu0 %v1206
      %1213 = vmatprep.subr.bf16.mxu0 0
      %1214 = vmatpush1.bf16.msra.mxu0 0
      %1215 = vmatprep.subr.bf16.mxu0 0
      %1216 = vmatpush1.bf16.msra.mxu0 0
      %1217 = vmatprep.subr.bf16.mxu0 0
      %1218 = vmatpush1.bf16.msra.mxu0 0
      %1219 = vmatprep.subr.bf16.mxu0 0
      %1220 = vmatpush1.bf16.msra.mxu0 0
      %1221 = vmatprep.subr.bf16.mxu0 0
      %1222 = vmatpush1.bf16.msra.mxu0 0
      %1223 = vmatprep.subr.bf16.mxu0 0
      %1224 = vmatpush1.bf16.msra.mxu0 0
      %1225 = vmatprep.subr.bf16.mxu0 0
      %1226 = vmatpush1.bf16.msra.mxu0 0
      %1227 = vmatprep.subr.bf16.mxu0 0
      %1228 = vmatpush1.bf16.msra.mxu0 0
      %1229 = vmatprep.subr.bf16.mxu0 0
      %1230 = vmatpush1.bf16.msra.mxu0 0
      %1231 = vmatprep.subr.bf16.mxu0 0
      %1232 = vmatpush1.bf16.msra.mxu0 0
      %1233 = vmatprep.subr.bf16.mxu0 0
      %1234 = vmatpush1.bf16.msra.mxu0 0
      %1235 = vmatprep.subr.bf16.mxu0 0
      %1236 = vmatpush1.bf16.msra.mxu0 0
      %1237 = vmatprep.subr.bf16.mxu0 0
      %1238 = vmatpush1.bf16.msra.mxu0 0
      %1239 = vmatprep.subr.bf16.mxu0 0
      %1240 = vmatpush1.bf16.msra.mxu0 0
      %1241 = vmatprep.subr.bf16.mxu0 0
      %1242 = vmatpush1.bf16.msra.mxu0 0
      %1243 = vmatprep.mubr.bf16.mxu0 0
      %1244 = vmatmul.mubr.bf16.gmra.mrb[0].mxu0 %v1209
      %v1245 = vpop.f32.mrb[0].mxu0
      %v1246 = vadd.f32 0.0, %v1245
      %v1247 = vpop.f32.mrb[0].mxu0
      %v1248 = vpop.f32.mrb[0].mxu0
      %v1249 = vpop.f32.mrb[0].mxu0
      %1250 = vdwg.mxu0
      %v1252 = vunpack.c.l.b16 %v1109
      %v1253 = vunpack.c.h.b16 %v1109
      %1254 = vset.pattern.permute.xlu0 0
      %1255 = vperm.xlu0 %1254, %v1252
      %v1256 = vpop.permute.xlu0 %1255
      %1257 = vset.pattern.permute.xlu0 0
      %1258 = vperm.xlu0 %1257, %v1253
      %v1259 = vpop.permute.xlu0 %1258
      %v1260 = vlaneseq
      %v1261 = vshrl.u32 %v1260, 7
      %v1262 = vsub.s32 %v719, %v1261
      %v1263 = vrot.slane %v1256, %v1262
      %v1264 = vlaneseq
      %v1265 = vshrl.u32 %v1264, 7
      %v1266 = vsub.s32 %v724, %v1265
      %v1267 = vrot.slane %v1259, %v1266
      %v1268 = vsel %vm729, %v1267, %v1263
      %v1269 = vpack.c.b16 %v1268, %v1268
      %v1272 = vunpack.c.l.b16 %v428
      %v1273 = vunpack.c.l.b16 %v429
      %v1274 = vpack.c.b16 %v1273, %v1272
      %v1277 = vsel %vm809, %v1269, 0
      %1279 = vmatprep.subr.bf16.mxu0 0
      %1280 = vmatpush1.bf16.msra.mxu0 %v1274
      %1281 = vmatprep.subr.bf16.mxu0 0
      %1282 = vmatpush1.bf16.msra.mxu0 0
      %1283 = vmatprep.subr.bf16.mxu0 0
      %1284 = vmatpush1.bf16.msra.mxu0 0
      %1285 = vmatprep.subr.bf16.mxu0 0
      %1286 = vmatpush1.bf16.msra.mxu0 0
      %1287 = vmatprep.subr.bf16.mxu0 0
      %1288 = vmatpush1.bf16.msra.mxu0 0
      %1289 = vmatprep.subr.bf16.mxu0 0
      %1290 = vmatpush1.bf16.msra.mxu0 0
      %1291 = vmatprep.subr.bf16.mxu0 0
      %1292 = vmatpush1.bf16.msra.mxu0 0
      %1293 = vmatprep.subr.bf16.mxu0 0
      %1294 = vmatpush1.bf16.msra.mxu0 0
      %1295 = vmatprep.subr.bf16.mxu0 0
      %1296 = vmatpush1.bf16.msra.mxu0 0
      %1297 = vmatprep.subr.bf16.mxu0 0
      %1298 = vmatpush1.bf16.msra.mxu0 0
      %1299 = vmatprep.subr.bf16.mxu0 0
      %1300 = vmatpush1.bf16.msra.mxu0 0
      %1301 = vmatprep.subr.bf16.mxu0 0
      %1302 = vmatpush1.bf16.msra.mxu0 0
      %1303 = vmatprep.subr.bf16.mxu0 0
      %1304 = vmatpush1.bf16.msra.mxu0 0
      %1305 = vmatprep.subr.bf16.mxu0 0
      %1306 = vmatpush1.bf16.msra.mxu0 0
      %1307 = vmatprep.subr.bf16.mxu0 0
      %1308 = vmatpush1.bf16.msra.mxu0 0
      %1309 = vmatprep.subr.bf16.mxu0 0
      %1310 = vmatpush1.bf16.msra.mxu0 0
      %1311 = vmatprep.mubr.bf16.mxu0 0
      %1312 = vmatmul.mubr.bf16.gmra.mrb[0].mxu0 %v1277
      %v1313 = vpop.f32.mrb[0].mxu0
      %v1314 = vadd.f32 0.0, %v1313
      %v1315 = vpop.f32.mrb[0].mxu0
      %v1316 = vpop.f32.mrb[0].mxu0
      %v1317 = vpop.f32.mrb[0].mxu0
      %1318 = vdwg.mxu0
      %v1320 = vunpack.c.l.b16 %v1110
      %v1321 = vunpack.c.h.b16 %v1110
      %1322 = vset.pattern.permute.xlu0 0
      %1323 = vperm.xlu0 %1322, %v1320
      %v1324 = vpop.permute.xlu0 %1323
      %1325 = vset.pattern.permute.xlu0 0
      %1326 = vperm.xlu0 %1325, %v1321
      %v1327 = vpop.permute.xlu0 %1326
      %v1328 = vlaneseq
      %v1329 = vshrl.u32 %v1328, 7
      %v1330 = vsub.s32 %v719, %v1329
      %v1331 = vrot.slane %v1324, %v1330
      %v1332 = vlaneseq
      %v1333 = vshrl.u32 %v1332, 7
      %v1334 = vsub.s32 %v724, %v1333
      %v1335 = vrot.slane %v1327, %v1334
      %v1336 = vsel %vm729, %v1335, %v1331
      %v1337 = vpack.c.b16 %v1336, %v1336
      %v1340 = vunpack.c.l.b16 %v430
      %v1341 = vunpack.c.l.b16 %v431
      %v1342 = vpack.c.b16 %v1341, %v1340
      %v1345 = vsel %vm809, %v1337, 0
      %1347 = vmatprep.subr.bf16.mxu0 0
      %1348 = vmatpush1.bf16.msra.mxu0 %v1342
      %1349 = vmatprep.subr.bf16.mxu0 0
      %1350 = vmatpush1.bf16.msra.mxu0 0
      %1351 = vmatprep.subr.bf16.mxu0 0
      %1352 = vmatpush1.bf16.msra.mxu0 0
      %1353 = vmatprep.subr.bf16.mxu0 0
      %1354 = vmatpush1.bf16.msra.mxu0 0
      %1355 = vmatprep.subr.bf16.mxu0 0
      %1356 = vmatpush1.bf16.msra.mxu0 0
      %1357 = vmatprep.subr.bf16.mxu0 0
      %1358 = vmatpush1.bf16.msra.mxu0 0
      %1359 = vmatprep.subr.bf16.mxu0 0
      %1360 = vmatpush1.bf16.msra.mxu0 0
      %1361 = vmatprep.subr.bf16.mxu0 0
      %1362 = vmatpush1.bf16.msra.mxu0 0
      %1363 = vmatprep.subr.bf16.mxu0 0
      %1364 = vmatpush1.bf16.msra.mxu0 0
      %1365 = vmatprep.subr.bf16.mxu0 0
      %1366 = vmatpush1.bf16.msra.mxu0 0
      %1367 = vmatprep.subr.bf16.mxu0 0
      %1368 = vmatpush1.bf16.msra.mxu0 0
      %1369 = vmatprep.subr.bf16.mxu0 0
      %1370 = vmatpush1.bf16.msra.mxu0 0
      %1371 = vmatprep.subr.bf16.mxu0 0
      %1372 = vmatpush1.bf16.msra.mxu0 0
      %1373 = vmatprep.subr.bf16.mxu0 0
      %1374 = vmatpush1.bf16.msra.mxu0 0
      %1375 = vmatprep.subr.bf16.mxu0 0
      %1376 = vmatpush1.bf16.msra.mxu0 0
      %1377 = vmatprep.subr.bf16.mxu0 0
      %1378 = vmatpush1.bf16.msra.mxu0 0
      %1379 = vmatprep.mubr.bf16.mxu0 0
      %1380 = vmatmul.mubr.bf16.gmra.mrb[0].mxu0 %v1345
      %v1381 = vpop.f32.mrb[0].mxu0
      %v1382 = vadd.f32 0.0, %v1381
      %v1383 = vpop.f32.mrb[0].mxu0
      %v1384 = vpop.f32.mrb[0].mxu0
      %v1385 = vpop.f32.mrb[0].mxu0
      %1386 = vdwg.mxu0
      %v1388 = vunpack.c.l.b16 %v1111
      %v1389 = vunpack.c.h.b16 %v1111
      %1390 = vset.pattern.permute.xlu0 0
      %1391 = vperm.xlu0 %1390, %v1388
      %v1392 = vpop.permute.xlu0 %1391
      %1393 = vset.pattern.permute.xlu0 0
      %1394 = vperm.xlu0 %1393, %v1389
      %v1395 = vpop.permute.xlu0 %1394
      %v1396 = vlaneseq
      %v1397 = vshrl.u32 %v1396, 7
      %v1398 = vsub.s32 %v719, %v1397
      %v1399 = vrot.slane %v1392, %v1398
      %v1400 = vlaneseq
      %v1401 = vshrl.u32 %v1400, 7
      %v1402 = vsub.s32 %v724, %v1401
      %v1403 = vrot.slane %v1395, %v1402
      %v1404 = vsel %vm729, %v1403, %v1399
      %v1405 = vpack.c.b16 %v1404, %v1404
      %v1408 = vunpack.c.l.b16 %v432
      %v1409 = vunpack.c.l.b16 %v433
      %v1410 = vpack.c.b16 %v1409, %v1408
      %v1413 = vsel %vm809, %v1405, 0
      %1415 = vmatprep.subr.bf16.mxu0 0
      %1416 = vmatpush1.bf16.msra.mxu0 %v1410
      %1417 = vmatprep.subr.bf16.mxu0 0
      %1418 = vmatpush1.bf16.msra.mxu0 0
      %1419 = vmatprep.subr.bf16.mxu0 0
      %1420 = vmatpush1.bf16.msra.mxu0 0
      %1421 = vmatprep.subr.bf16.mxu0 0
      %1422 = vmatpush1.bf16.msra.mxu0 0
      %1423 = vmatprep.subr.bf16.mxu0 0
      %1424 = vmatpush1.bf16.msra.mxu0 0
      %1425 = vmatprep.subr.bf16.mxu0 0
      %1426 = vmatpush1.bf16.msra.mxu0 0
      %1427 = vmatprep.subr.bf16.mxu0 0
      %1428 = vmatpush1.bf16.msra.mxu0 0
      %1429 = vmatprep.subr.bf16.mxu0 0
      %1430 = vmatpush1.bf16.msra.mxu0 0
      %1431 = vmatprep.subr.bf16.mxu0 0
      %1432 = vmatpush1.bf16.msra.mxu0 0
      %1433 = vmatprep.subr.bf16.mxu0 0
      %1434 = vmatpush1.bf16.msra.mxu0 0
      %1435 = vmatprep.subr.bf16.mxu0 0
      %1436 = vmatpush1.bf16.msra.mxu0 0
      %1437 = vmatprep.subr.bf16.mxu0 0
      %1438 = vmatpush1.bf16.msra.mxu0 0
      %1439 = vmatprep.subr.bf16.mxu0 0
      %1440 = vmatpush1.bf16.msra.mxu0 0
      %1441 = vmatprep.subr.bf16.mxu0 0
      %1442 = vmatpush1.bf16.msra.mxu0 0
      %1443 = vmatprep.subr.bf16.mxu0 0
      %1444 = vmatpush1.bf16.msra.mxu0 0
      %1445 = vmatprep.subr.bf16.mxu0 0
      %1446 = vmatpush1.bf16.msra.mxu0 0
      %1447 = vmatprep.mubr.bf16.mxu0 0
      %1448 = vmatmul.mubr.bf16.gmra.mrb[0].mxu0 %v1413
      %v1449 = vpop.f32.mrb[0].mxu0
      %v1450 = vadd.f32 0.0, %v1449
      %v1451 = vpop.f32.mrb[0].mxu0
      %v1452 = vpop.f32.mrb[0].mxu0
      %v1453 = vpop.f32.mrb[0].mxu0
      %1454 = vdwg.mxu0
      %v1456 = vunpack.c.l.b16 %v1112
      %v1457 = vunpack.c.h.b16 %v1112
      %1458 = vset.pattern.permute.xlu0 0
      %1459 = vperm.xlu0 %1458, %v1456
      %v1460 = vpop.permute.xlu0 %1459
      %1461 = vset.pattern.permute.xlu0 0
      %1462 = vperm.xlu0 %1461, %v1457
      %v1463 = vpop.permute.xlu0 %1462
      %v1464 = vlaneseq
      %v1465 = vshrl.u32 %v1464, 7
      %v1466 = vsub.s32 %v719, %v1465
      %v1467 = vrot.slane %v1460, %v1466
      %v1468 = vlaneseq
      %v1469 = vshrl.u32 %v1468, 7
      %v1470 = vsub.s32 %v724, %v1469
      %v1471 = vrot.slane %v1463, %v1470
      %v1472 = vsel %vm729, %v1471, %v1467
      %v1473 = vpack.c.b16 %v1472, %v1472
      %v1476 = vunpack.c.l.b16 %v434
      %v1477 = vunpack.c.l.b16 %v435
      %v1478 = vpack.c.b16 %v1477, %v1476
      %v1481 = vsel %vm809, %v1473, 0
      %1483 = vmatprep.subr.bf16.mxu0 0
      %1484 = vmatpush1.bf16.msra.mxu0 %v1478
      %1485 = vmatprep.subr.bf16.mxu0 0
      %1486 = vmatpush1.bf16.msra.mxu0 0
      %1487 = vmatprep.subr.bf16.mxu0 0
      %1488 = vmatpush1.bf16.msra.mxu0 0
      %1489 = vmatprep.subr.bf16.mxu0 0
      %1490 = vmatpush1.bf16.msra.mxu0 0
      %1491 = vmatprep.subr.bf16.mxu0 0
      %1492 = vmatpush1.bf16.msra.mxu0 0
      %1493 = vmatprep.subr.bf16.mxu0 0
      %1494 = vmatpush1.bf16.msra.mxu0 0
      %1495 = vmatprep.subr.bf16.mxu0 0
      %1496 = vmatpush1.bf16.msra.mxu0 0
      %1497 = vmatprep.subr.bf16.mxu0 0
      %1498 = vmatpush1.bf16.msra.mxu0 0
      %1499 = vmatprep.subr.bf16.mxu0 0
      %1500 = vmatpush1.bf16.msra.mxu0 0
      %1501 = vmatprep.subr.bf16.mxu0 0
      %1502 = vmatpush1.bf16.msra.mxu0 0
      %1503 = vmatprep.subr.bf16.mxu0 0
      %1504 = vmatpush1.bf16.msra.mxu0 0
      %1505 = vmatprep.subr.bf16.mxu0 0
      %1506 = vmatpush1.bf16.msra.mxu0 0
      %1507 = vmatprep.subr.bf16.mxu0 0
      %1508 = vmatpush1.bf16.msra.mxu0 0
      %1509 = vmatprep.subr.bf16.mxu0 0
      %1510 = vmatpush1.bf16.msra.mxu0 0
      %1511 = vmatprep.subr.bf16.mxu0 0
      %1512 = vmatpush1.bf16.msra.mxu0 0
      %1513 = vmatprep.subr.bf16.mxu0 0
      %1514 = vmatpush1.bf16.msra.mxu0 0
      %1515 = vmatprep.mubr.bf16.mxu0 0
      %1516 = vmatmul.mubr.bf16.gmra.mrb[0].mxu0 %v1481
      %v1517 = vpop.f32.mrb[0].mxu0
      %v1518 = vadd.f32 0.0, %v1517
      %v1519 = vpop.f32.mrb[0].mxu0
      %v1520 = vpop.f32.mrb[0].mxu0
      %v1521 = vpop.f32.mrb[0].mxu0
      %1522 = vdwg.mxu0
      %v1524 = vunpack.c.l.b16 %v1113
      %v1525 = vunpack.c.h.b16 %v1113
      %1526 = vset.pattern.permute.xlu0 0
      %1527 = vperm.xlu0 %1526, %v1524
      %v1528 = vpop.permute.xlu0 %1527
      %1529 = vset.pattern.permute.xlu0 0
      %1530 = vperm.xlu0 %1529, %v1525
      %v1531 = vpop.permute.xlu0 %1530
      %v1532 = vlaneseq
      %v1533 = vshrl.u32 %v1532, 7
      %v1534 = vsub.s32 %v719, %v1533
      %v1535 = vrot.slane %v1528, %v1534
      %v1536 = vlaneseq
      %v1537 = vshrl.u32 %v1536, 7
      %v1538 = vsub.s32 %v724, %v1537
      %v1539 = vrot.slane %v1531, %v1538
      %v1540 = vsel %vm729, %v1539, %v1535
      %v1541 = vpack.c.b16 %v1540, %v1540
      %v1544 = vunpack.c.l.b16 %v436
      %v1545 = vunpack.c.l.b16 %v437
      %v1546 = vpack.c.b16 %v1545, %v1544
      %v1549 = vsel %vm809, %v1541, 0
      %1551 = vmatprep.subr.bf16.mxu0 0
      %1552 = vmatpush1.bf16.msra.mxu0 %v1546
      %1553 = vmatprep.subr.bf16.mxu0 0
      %1554 = vmatpush1.bf16.msra.mxu0 0
      %1555 = vmatprep.subr.bf16.mxu0 0
      %1556 = vmatpush1.bf16.msra.mxu0 0
      %1557 = vmatprep.subr.bf16.mxu0 0
      %1558 = vmatpush1.bf16.msra.mxu0 0
      %1559 = vmatprep.subr.bf16.mxu0 0
      %1560 = vmatpush1.bf16.msra.mxu0 0
      %1561 = vmatprep.subr.bf16.mxu0 0
      %1562 = vmatpush1.bf16.msra.mxu0 0
      %1563 = vmatprep.subr.bf16.mxu0 0
      %1564 = vmatpush1.bf16.msra.mxu0 0
      %1565 = vmatprep.subr.bf16.mxu0 0
      %1566 = vmatpush1.bf16.msra.mxu0 0
      %1567 = vmatprep.subr.bf16.mxu0 0
      %1568 = vmatpush1.bf16.msra.mxu0 0
      %1569 = vmatprep.subr.bf16.mxu0 0
      %1570 = vmatpush1.bf16.msra.mxu0 0
      %1571 = vmatprep.subr.bf16.mxu0 0
      %1572 = vmatpush1.bf16.msra.mxu0 0
      %1573 = vmatprep.subr.bf16.mxu0 0
      %1574 = vmatpush1.bf16.msra.mxu0 0
      %1575 = vmatprep.subr.bf16.mxu0 0
      %1576 = vmatpush1.bf16.msra.mxu0 0
      %1577 = vmatprep.subr.bf16.mxu0 0
      %1578 = vmatpush1.bf16.msra.mxu0 0
      %1579 = vmatprep.subr.bf16.mxu0 0
      %1580 = vmatpush1.bf16.msra.mxu0 0
      %1581 = vmatprep.subr.bf16.mxu0 0
      %1582 = vmatpush1.bf16.msra.mxu0 0
      %1583 = vmatprep.mubr.bf16.mxu0 0
      %1584 = vmatmul.mubr.bf16.gmra.mrb[0].mxu0 %v1549
      %v1585 = vpop.f32.mrb[0].mxu0
      %v1586 = vadd.f32 0.0, %v1585
      %v1587 = vpop.f32.mrb[0].mxu0
      %v1588 = vpop.f32.mrb[0].mxu0
      %v1589 = vpop.f32.mrb[0].mxu0
      %1590 = vdwg.mxu0
      %v1592 = vunpack.c.l.b16 %v1114
      %v1593 = vunpack.c.h.b16 %v1114
      %1594 = vset.pattern.permute.xlu0 0
      %1595 = vperm.xlu0 %1594, %v1592
      %v1596 = vpop.permute.xlu0 %1595
      %1597 = vset.pattern.permute.xlu0 0
      %1598 = vperm.xlu0 %1597, %v1593
      %v1599 = vpop.permute.xlu0 %1598
      %v1600 = vlaneseq
      %v1601 = vshrl.u32 %v1600, 7
      %v1602 = vsub.s32 %v719, %v1601
      %v1603 = vrot.slane %v1596, %v1602
      %v1604 = vlaneseq
      %v1605 = vshrl.u32 %v1604, 7
      %v1606 = vsub.s32 %v724, %v1605
      %v1607 = vrot.slane %v1599, %v1606
      %v1608 = vsel %vm729, %v1607, %v1603
      %v1609 = vpack.c.b16 %v1608, %v1608
      %v1612 = vunpack.c.l.b16 %v438
      %v1613 = vunpack.c.l.b16 %v439
      %v1614 = vpack.c.b16 %v1613, %v1612
      %v1617 = vsel %vm809, %v1609, 0
      %1619 = vmatprep.subr.bf16.mxu0 0
      %1620 = vmatpush1.bf16.msra.mxu0 %v1614
      %1621 = vmatprep.subr.bf16.mxu0 0
      %1622 = vmatpush1.bf16.msra.mxu0 0
      %1623 = vmatprep.subr.bf16.mxu0 0
      %1624 = vmatpush1.bf16.msra.mxu0 0
      %1625 = vmatprep.subr.bf16.mxu0 0
      %1626 = vmatpush1.bf16.msra.mxu0 0
      %1627 = vmatprep.subr.bf16.mxu0 0
      %1628 = vmatpush1.bf16.msra.mxu0 0
      %1629 = vmatprep.subr.bf16.mxu0 0
      %1630 = vmatpush1.bf16.msra.mxu0 0
      %1631 = vmatprep.subr.bf16.mxu0 0
      %1632 = vmatpush1.bf16.msra.mxu0 0
      %1633 = vmatprep.subr.bf16.mxu0 0
      %1634 = vmatpush1.bf16.msra.mxu0 0
      %1635 = vmatprep.subr.bf16.mxu0 0
      %1636 = vmatpush1.bf16.msra.mxu0 0
      %1637 = vmatprep.subr.bf16.mxu0 0
      %1638 = vmatpush1.bf16.msra.mxu0 0
      %1639 = vmatprep.subr.bf16.mxu0 0
      %1640 = vmatpush1.bf16.msra.mxu0 0
      %1641 = vmatprep.subr.bf16.mxu0 0
      %1642 = vmatpush1.bf16.msra.mxu0 0
      %1643 = vmatprep.subr.bf16.mxu0 0
      %1644 = vmatpush1.bf16.msra.mxu0 0
      %1645 = vmatprep.subr.bf16.mxu0 0
      %1646 = vmatpush1.bf16.msra.mxu0 0
      %1647 = vmatprep.subr.bf16.mxu0 0
      %1648 = vmatpush1.bf16.msra.mxu0 0
      %1649 = vmatprep.subr.bf16.mxu0 0
      %1650 = vmatpush1.bf16.msra.mxu0 0
      %1651 = vmatprep.mubr.bf16.mxu0 0
      %1652 = vmatmul.mubr.bf16.gmra.mrb[0].mxu0 %v1617
      %v1653 = vpop.f32.mrb[0].mxu0
      %v1654 = vadd.f32 0.0, %v1653
      %v1655 = vpop.f32.mrb[0].mxu0
      %v1656 = vpop.f32.mrb[0].mxu0
      %v1657 = vpop.f32.mrb[0].mxu0
      %1658 = vdwg.mxu0
      %s1659 = smul.u32 %s441, 8
      %s1660 = scalar_lea.vmem %s0, %s1659
      %v1661 = vld [vmem:[%s1660] sm:$0xff]
      %v1662 = vpack.c.bf16 %v1178, %v1178
      %v1663 = vpack.c.bf16 %v1246, %v1246
      %v1664 = vpack.c.bf16 %v1314, %v1314
      %v1665 = vpack.c.bf16 %v1382, %v1382
      %v1666 = vpack.c.bf16 %v1450, %v1450
      %v1667 = vpack.c.bf16 %v1518, %v1518
      %v1668 = vpack.c.bf16 %v1586, %v1586
      %v1669 = vpack.c.bf16 %v1654, %v1654
      %v1670 = vld [vmem:[%s6] sm:$0xf]
      %v1671 = vld [vmem:[%s6 + $0x4] sm:$0xf]
      %v1672 = vld [vmem:[%s6 + $0x8] sm:$0xf]
      %v1673 = vld [vmem:[%s6 + $0xc] sm:$0xf]
      %v1682 = vunpack.c.l.b16 %v1662
      %v1683 = vunpack.c.l.b16 %v1663
      %v1684 = vunpack.c.l.b16 %v1664
      %v1685 = vunpack.c.l.b16 %v1665
      %v1686 = vunpack.c.l.b16 %v1666
      %v1687 = vunpack.c.l.b16 %v1667
      %v1688 = vunpack.c.l.b16 %v1668
      %v1689 = vunpack.c.l.b16 %v1669
      %v1690 = vrot.slane %v1683, 7
      %v1691 = vsel %vm794, %v1690, %v1682
      %v1692 = vrot.slane %v1684, 6
      %v1693 = vsel %vm796, %v1692, %v1691
      %v1694 = vrot.slane %v1685, 5
      %v1695 = vsel %vm798, %v1694, %v1693
      %v1696 = vrot.slane %v1686, 4
      %v1697 = vsel %vm800, %v1696, %v1695
      %v1698 = vrot.slane %v1687, 3
      %v1699 = vsel %vm802, %v1698, %v1697
      %v1700 = vrot.slane %v1688, 2
      %v1701 = vsel %vm804, %v1700, %v1699
      %v1702 = vrot.slane %v1689, 1
      %v1703 = vsel %vm806, %v1702, %v1701
      %v1704 = vpack.c.b16 %v1703, %v1703
      %v1709 = vunpack.c.l.b16 %v1670
      %v1710 = vunpack.c.l.b16 %v1671
      %v1711 = vunpack.c.l.b16 %v1672
      %v1712 = vunpack.c.l.b16 %v1673
      %v1713 = vpack.c.b16 %v1710, %v1709
      %v1714 = vpack.c.b16 %v1712, %v1711
      %v1718 = vsel %vm466, %v1704, 0
      %1720 = vmatprep.subr.bf16.mxu0 0
      %1721 = vmatpush1.bf16.msra.mxu0 %v1713
      %1722 = vmatprep.subr.bf16.mxu0 0
      %1723 = vmatpush1.bf16.msra.mxu0 %v1714
      %1724 = vmatprep.subr.bf16.mxu0 0
      %1725 = vmatpush1.bf16.msra.mxu0 0
      %1726 = vmatprep.subr.bf16.mxu0 0
      %1727 = vmatpush1.bf16.msra.mxu0 0
      %1728 = vmatprep.subr.bf16.mxu0 0
      %1729 = vmatpush1.bf16.msra.mxu0 0
      %1730 = vmatprep.subr.bf16.mxu0 0
      %1731 = vmatpush1.bf16.msra.mxu0 0
      %1732 = vmatprep.subr.bf16.mxu0 0
      %1733 = vmatpush1.bf16.msra.mxu0 0
      %1734 = vmatprep.subr.bf16.mxu0 0
      %1735 = vmatpush1.bf16.msra.mxu0 0
      %1736 = vmatprep.subr.bf16.mxu0 0
      %1737 = vmatpush1.bf16.msra.mxu0 0
      %1738 = vmatprep.subr.bf16.mxu0 0
      %1739 = vmatpush1.bf16.msra.mxu0 0
      %1740 = vmatprep.subr.bf16.mxu0 0
      %1741 = vmatpush1.bf16.msra.mxu0 0
      %1742 = vmatprep.subr.bf16.mxu0 0
      %1743 = vmatpush1.bf16.msra.mxu0 0
      %1744 = vmatprep.subr.bf16.mxu0 0
      %1745 = vmatpush1.bf16.msra.mxu0 0
      %1746 = vmatprep.subr.bf16.mxu0 0
      %1747 = vmatpush1.bf16.msra.mxu0 0
      %1748 = vmatprep.subr.bf16.mxu0 0
      %1749 = vmatpush1.bf16.msra.mxu0 0
      %1750 = vmatprep.subr.bf16.mxu0 0
      %1751 = vmatpush1.bf16.msra.mxu0 0
      %1752 = vmatprep.mubr.bf16.mxu0 0
      %1753 = vmatmul.mubr.bf16.gmra.mrb[0].mxu0 %v1718
      %v1754 = vpop.f32.mrb[0].mxu0
      %v1755 = vadd.f32 0.0, %v1754
      %v1756 = vpop.f32.mrb[0].mxu0
      %v1757 = vpop.f32.mrb[0].mxu0
      %v1758 = vpop.f32.mrb[0].mxu0
      %1759 = vdwg.mxu0
      %v1760 = vadd.f32 %v1661, %v1755
      %v1761 = vld [vmem:[%s7] sm:$0xf]
      %v1762 = vld [vmem:[%s7 + $0x4] sm:$0xf]
      %v1763 = vld [vmem:[%s7 + $0x8] sm:$0xf]
      %v1764 = vld [vmem:[%s7 + $0xc] sm:$0xf]
      %v1769 = vunpack.c.l.b16 %v1761
      %v1770 = vunpack.c.l.b16 %v1762
      %v1771 = vunpack.c.l.b16 %v1763
      %v1772 = vunpack.c.l.b16 %v1764
      %v1773 = vpack.c.b16 %v1770, %v1769
      %v1774 = vpack.c.b16 %v1772, %v1771
      %1777 = vmatprep.subr.bf16.mxu0 0
      %1778 = vmatpush1.bf16.msra.mxu0 %v1773
      %1779 = vmatprep.subr.bf16.mxu0 0
      %1780 = vmatpush1.bf16.msra.mxu0 %v1774
      %1781 = vmatprep.subr.bf16.mxu0 0
      %1782 = vmatpush1.bf16.msra.mxu0 0
      %1783 = vmatprep.subr.bf16.mxu0 0
      %1784 = vmatpush1.bf16.msra.mxu0 0
      %1785 = vmatprep.subr.bf16.mxu0 0
      %1786 = vmatpush1.bf16.msra.mxu0 0
      %1787 = vmatprep.subr.bf16.mxu0 0
      %1788 = vmatpush1.bf16.msra.mxu0 0
      %1789 = vmatprep.subr.bf16.mxu0 0
      %1790 = vmatpush1.bf16.msra.mxu0 0
      %1791 = vmatprep.subr.bf16.mxu0 0
      %1792 = vmatpush1.bf16.msra.mxu0 0
      %1793 = vmatprep.subr.bf16.mxu0 0
      %1794 = vmatpush1.bf16.msra.mxu0 0
      %1795 = vmatprep.subr.bf16.mxu0 0
      %1796 = vmatpush1.bf16.msra.mxu0 0
      %1797 = vmatprep.subr.bf16.mxu0 0
      %1798 = vmatpush1.bf16.msra.mxu0 0
      %1799 = vmatprep.subr.bf16.mxu0 0
      %1800 = vmatpush1.bf16.msra.mxu0 0
      %1801 = vmatprep.subr.bf16.mxu0 0
      %1802 = vmatpush1.bf16.msra.mxu0 0
      %1803 = vmatprep.subr.bf16.mxu0 0
      %1804 = vmatpush1.bf16.msra.mxu0 0
      %1805 = vmatprep.subr.bf16.mxu0 0
      %1806 = vmatpush1.bf16.msra.mxu0 0
      %1807 = vmatprep.subr.bf16.mxu0 0
      %1808 = vmatpush1.bf16.msra.mxu0 0
      %1809 = vmatprep.mubr.bf16.mxu0 0
      %1810 = vmatmul.mubr.bf16.gmra.mrb[0].mxu0 %v468
      %v1811 = vpop.f32.mrb[0].mxu0
      %v1812 = vadd.f32 0.0, %v1811
      %v1813 = vpop.f32.mrb[0].mxu0
      %v1814 = vpop.f32.mrb[0].mxu0
      %v1815 = vpop.f32.mrb[0].mxu0
      %1816 = vdwg.mxu0
      %v1817 = vadd.f32 %v1760, %v1812
      %v1818 = vxor.u32 %v1817, 2147483648
      %v1819 = vmul.f32 %v1818, 1.442695
      %v1820 = vpow.pop %v1819
      %v1821 = vadd.f32 %v1820, 1.0
      %v1822 = vrcp.pop %v1821
      %v1823 = vmul.f32 1.0, %v1822
      %v1824 = vtanh.pop %v1817
      %1826 = vrot.lane.b32.xlu0 %v391, 32
      %v1827 = vpop.permute.xlu0 %1826
      %v1829 = vmul.f32 %v1823, %v1827
      %1831 = vrot.lane.b32.xlu0 %v1824, 64
      %v1832 = vpop.permute.xlu0 %1831
      %v1834 = vmul.f32 %v1823, %v1832
      %1836 = vrot.lane.b32.xlu0 %v1834, 32
      %v1837 = vpop.permute.xlu0 %1836
      %v1839 = vadd.f32 %v1829, %v1837
      %v1840 = vtanh.pop %v1839
      %1842 = vrot.lane.b32.xlu0 %v1840, 64
      %v1843 = vpop.permute.xlu0 %1842
      %v1845 = vmul.f32 %v1823, %v1843
      %v1846 = vpack.c.bf16 %v1845, %v1845
      %v1847 = vld [vmem:[%s8] sm:$0xf]
      %v1848 = vld [vmem:[%s8 + $0x4] sm:$0xf]
      %v1849 = vld [vmem:[%s8 + $0x8] sm:$0xf]
      %v1850 = vld [vmem:[%s8 + $0xc] sm:$0xf]
      %v1851 = vld [vmem:[%s9] sm:$0x1]
      %v1853 = vlaneseq
      %v1854 = vshrl.u32 %v1853, 7
      %v1855 = vsub.s32 0, %v1854
      %v1856 = vrot.slane %v1851, %v1855
      %1859 = vrot.lane.b32.xlu0 %v1846, 32
      %v1860 = vpop.permute.xlu0 %1859
      %v1865 = vunpack.c.l.b16 %v1847
      %v1866 = vunpack.c.l.b16 %v1848
      %v1867 = vunpack.c.l.b16 %v1849
      %v1868 = vunpack.c.l.b16 %v1850
      %v1869 = vpack.c.b16 %v1866, %v1865
      %v1870 = vpack.c.b16 %v1868, %v1867
      %v1874 = vsel %vm466, %v1860, 0
      %1876 = vmatprep.subr.bf16.mxu0 0
      %1877 = vmatpush1.bf16.msra.mxu0 %v1869
      %1878 = vmatprep.subr.bf16.mxu0 0
      %1879 = vmatpush1.bf16.msra.mxu0 %v1870
      %1880 = vmatprep.subr.bf16.mxu0 0
      %1881 = vmatpush1.bf16.msra.mxu0 0
      %1882 = vmatprep.subr.bf16.mxu0 0
      %1883 = vmatpush1.bf16.msra.mxu0 0
      %1884 = vmatprep.subr.bf16.mxu0 0
      %1885 = vmatpush1.bf16.msra.mxu0 0
      %1886 = vmatprep.subr.bf16.mxu0 0
      %1887 = vmatpush1.bf16.msra.mxu0 0
      %1888 = vmatprep.subr.bf16.mxu0 0
      %1889 = vmatpush1.bf16.msra.mxu0 0
      %1890 = vmatprep.subr.bf16.mxu0 0
      %1891 = vmatpush1.bf16.msra.mxu0 0
      %1892 = vmatprep.subr.bf16.mxu0 0
      %1893 = vmatpush1.bf16.msra.mxu0 0
      %1894 = vmatprep.subr.bf16.mxu0 0
      %1895 = vmatpush1.bf16.msra.mxu0 0
      %1896 = vmatprep.subr.bf16.mxu0 0
      %1897 = vmatpush1.bf16.msra.mxu0 0
      %1898 = vmatprep.subr.bf16.mxu0 0
      %1899 = vmatpush1.bf16.msra.mxu0 0
      %1900 = vmatprep.subr.bf16.mxu0 0
      %1901 = vmatpush1.bf16.msra.mxu0 0
      %1902 = vmatprep.subr.bf16.mxu0 0
      %1903 = vmatpush1.bf16.msra.mxu0 0
      %1904 = vmatprep.subr.bf16.mxu0 0
      %1905 = vmatpush1.bf16.msra.mxu0 0
      %1906 = vmatprep.subr.bf16.mxu0 0
      %1907 = vmatpush1.bf16.msra.mxu0 0
      %1908 = vmatprep.mubr.bf16.mxu0 0
      %1909 = vmatmul.mubr.bf16.gmra.mrb[0].mxu0 %v1874
      %v1910 = vpop.f32.mrb[0].mxu0
      %v1911 = vadd.f32 %v1856, %v1910
      %v1912 = vpop.f32.mrb[0].mxu0
      %v1913 = vpop.f32.mrb[0].mxu0
      %v1914 = vpop.f32.mrb[0].mxu0
      %1915 = vdwg.mxu0
      %1916 = vst [vmem:[%s374] sm:$0xff] %v1911
      %1933 = vset.pattern.permute.xlu0 0
      %1934 = vperm.xlu0 %1933, %v1091
      %v1935 = vpop.permute.xlu0 %1934
      %1936 = vset.pattern.permute.xlu0 0
      %1937 = vperm.xlu0 %1936, %v1092
      %v1938 = vpop.permute.xlu0 %1937
      %1939 = vset.pattern.permute.xlu0 0
      %1940 = vperm.xlu0 %1939, %v1093
      %v1941 = vpop.permute.xlu0 %1940
      %1942 = vset.pattern.permute.xlu0 0
      %1943 = vperm.xlu0 %1942, %v1094
      %v1944 = vpop.permute.xlu0 %1943
      %1945 = vset.pattern.permute.xlu0 0
      %1946 = vperm.xlu0 %1945, %v1095
      %v1947 = vpop.permute.xlu0 %1946
      %1948 = vset.pattern.permute.xlu0 0
      %1949 = vperm.xlu0 %1948, %v1096
      %v1950 = vpop.permute.xlu0 %1949
      %1951 = vset.pattern.permute.xlu0 0
      %1952 = vperm.xlu0 %1951, %v1097
      %v1953 = vpop.permute.xlu0 %1952
      %1954 = vset.pattern.permute.xlu0 0
      %1955 = vperm.xlu0 %1954, %v1098
      %v1956 = vpop.permute.xlu0 %1955
      %1957 = vset.pattern.permute.xlu0 0
      %1958 = vperm.xlu0 %1957, %v1099
      %v1959 = vpop.permute.xlu0 %1958
      %1960 = vset.pattern.permute.xlu0 0
      %1961 = vperm.xlu0 %1960, %v1100
      %v1962 = vpop.permute.xlu0 %1961
      %1963 = vset.pattern.permute.xlu0 0
      %1964 = vperm.xlu0 %1963, %v1101
      %v1965 = vpop.permute.xlu0 %1964
      %1966 = vset.pattern.permute.xlu0 0
      %1967 = vperm.xlu0 %1966, %v1102
      %v1968 = vpop.permute.xlu0 %1967
      %1969 = vset.pattern.permute.xlu0 0
      %1970 = vperm.xlu0 %1969, %v1103
      %v1971 = vpop.permute.xlu0 %1970
      %1972 = vset.pattern.permute.xlu0 0
      %1973 = vperm.xlu0 %1972, %v1104
      %v1974 = vpop.permute.xlu0 %1973
      %1975 = vset.pattern.permute.xlu0 0
      %1976 = vperm.xlu0 %1975, %v1105
      %v1977 = vpop.permute.xlu0 %1976
      %1978 = vset.pattern.permute.xlu0 0
      %1979 = vperm.xlu0 %1978, %v1106
      %v1980 = vpop.permute.xlu0 %1979
      %v1981 = vlaneseq
      %v1982 = vshrl.u32 %v1981, 7
      %v1983 = vsub.s32 %v719, %v1982
      %v1984 = vrot.slane %v1935, %v1983
      %v1985 = vlaneseq
      %v1986 = vshrl.u32 %v1985, 7
      %v1987 = vsub.s32 %v724, %v1986
      %v1988 = vrot.slane %v1938, %v1987
      %v1989 = vsel %vm729, %v1988, %v1984
      %v1990 = vlaneseq
      %v1991 = vshrl.u32 %v1990, 7
      %v1992 = vsub.s32 %v719, %v1991
      %v1993 = vrot.slane %v1941, %v1992
      %v1994 = vlaneseq
      %v1995 = vshrl.u32 %v1994, 7
      %v1996 = vsub.s32 %v724, %v1995
      %v1997 = vrot.slane %v1944, %v1996
      %v1998 = vsel %vm729, %v1997, %v1993
      %v1999 = vlaneseq
      %v2000 = vshrl.u32 %v1999, 7
      %v2001 = vsub.s32 %v719, %v2000
      %v2002 = vrot.slane %v1947, %v2001
      %v2003 = vlaneseq
      %v2004 = vshrl.u32 %v2003, 7
      %v2005 = vsub.s32 %v724, %v2004
      %v2006 = vrot.slane %v1950, %v2005
      %v2007 = vsel %vm729, %v2006, %v2002
      %v2008 = vlaneseq
      %v2009 = vshrl.u32 %v2008, 7
      %v2010 = vsub.s32 %v719, %v2009
      %v2011 = vrot.slane %v1953, %v2010
      %v2012 = vlaneseq
      %v2013 = vshrl.u32 %v2012, 7
      %v2014 = vsub.s32 %v724, %v2013
      %v2015 = vrot.slane %v1956, %v2014
      %v2016 = vsel %vm729, %v2015, %v2011
      %v2017 = vlaneseq
      %v2018 = vshrl.u32 %v2017, 7
      %v2019 = vsub.s32 %v719, %v2018
      %v2020 = vrot.slane %v1959, %v2019
      %v2021 = vlaneseq
      %v2022 = vshrl.u32 %v2021, 7
      %v2023 = vsub.s32 %v724, %v2022
      %v2024 = vrot.slane %v1962, %v2023
      %v2025 = vsel %vm729, %v2024, %v2020
      %v2026 = vlaneseq
      %v2027 = vshrl.u32 %v2026, 7
      %v2028 = vsub.s32 %v719, %v2027
      %v2029 = vrot.slane %v1965, %v2028
      %v2030 = vlaneseq
      %v2031 = vshrl.u32 %v2030, 7
      %v2032 = vsub.s32 %v724, %v2031
      %v2033 = vrot.slane %v1968, %v2032
      %v2034 = vsel %vm729, %v2033, %v2029
      %v2035 = vlaneseq
      %v2036 = vshrl.u32 %v2035, 7
      %v2037 = vsub.s32 %v719, %v2036
      %v2038 = vrot.slane %v1971, %v2037
      %v2039 = vlaneseq
      %v2040 = vshrl.u32 %v2039, 7
      %v2041 = vsub.s32 %v724, %v2040
      %v2042 = vrot.slane %v1974, %v2041
      %v2043 = vsel %vm729, %v2042, %v2038
      %v2044 = vlaneseq
      %v2045 = vshrl.u32 %v2044, 7
      %v2046 = vsub.s32 %v719, %v2045
      %v2047 = vrot.slane %v1977, %v2046
      %v2048 = vlaneseq
      %v2049 = vshrl.u32 %v2048, 7
      %v2050 = vsub.s32 %v724, %v2049
      %v2051 = vrot.slane %v1980, %v2050
      %v2052 = vsel %vm729, %v2051, %v2047
      %v2053 = vsel %vm794, %v1998, %v1989
      %v2054 = vsel %vm796, %v2007, %v2053
      %v2055 = vsel %vm798, %v2016, %v2054
      %v2056 = vsel %vm800, %v2025, %v2055
      %v2057 = vsel %vm802, %v2034, %v2056
      %v2058 = vsel %vm804, %v2043, %v2057
      %v2059 = vsel %vm806, %v2052, %v2058
      %2061 = vst.msk [vmem:[%s380] sm:$0xff] %vm809, %v2059
      %s2062 = sadd.s32 %s441, 1
      %v2063 = vld [vmem:[%s3] sm:$0xf]
      %v2064 = vld [vmem:[%s3 + $0x4] sm:$0xf]
      %v2065 = vld [vmem:[%s3 + $0x8] sm:$0xf]
      %v2066 = vld [vmem:[%s3 + $0xc] sm:$0xf]
      %v2067 = vld [vmem:[%s4] sm:$0x1]
      %v2069 = vlaneseq
      %v2070 = vshrl.u32 %v2069, 7
      %v2071 = vsub.s32 0, %v2070
      %v2072 = vrot.slane %v2067, %v2071
      %v2078 = vunpack.c.l.b16 %v2063
      %v2079 = vunpack.c.l.b16 %v2064
      %v2080 = vunpack.c.l.b16 %v2065
      %v2081 = vunpack.c.l.b16 %v2066
      %v2082 = vpack.c.b16 %v2079, %v2078
      %v2083 = vpack.c.b16 %v2081, %v2080
      %2086 = vmatprep.subr.bf16.mxu0 0
      %2087 = vmatpush1.bf16.msra.mxu0 %v2082
      %2088 = vmatprep.subr.bf16.mxu0 0
      %2089 = vmatpush1.bf16.msra.mxu0 %v2083
      %2090 = vmatprep.subr.bf16.mxu0 0
      %2091 = vmatpush1.bf16.msra.mxu0 0
      %2092 = vmatprep.subr.bf16.mxu0 0
      %2093 = vmatpush1.bf16.msra.mxu0 0
      %2094 = vmatprep.subr.bf16.mxu0 0
      %2095 = vmatpush1.bf16.msra.mxu0 0
      %2096 = vmatprep.subr.bf16.mxu0 0
      %2097 = vmatpush1.bf16.msra.mxu0 0
      %2098 = vmatprep.subr.bf16.mxu0 0
      %2099 = vmatpush1.bf16.msra.mxu0 0
      %2100 = vmatprep.subr.bf16.mxu0 0
      %2101 = vmatpush1.bf16.msra.mxu0 0
      %2102 = vmatprep.subr.bf16.mxu0 0
      %2103 = vmatpush1.bf16.msra.mxu0 0
      %2104 = vmatprep.subr.bf16.mxu0 0
      %2105 = vmatpush1.bf16.msra.mxu0 0
      %2106 = vmatprep.subr.bf16.mxu0 0
      %2107 = vmatpush1.bf16.msra.mxu0 0
      %2108 = vmatprep.subr.bf16.mxu0 0
      %2109 = vmatpush1.bf16.msra.mxu0 0
      %2110 = vmatprep.subr.bf16.mxu0 0
      %2111 = vmatpush1.bf16.msra.mxu0 0
      %2112 = vmatprep.subr.bf16.mxu0 0
      %2113 = vmatpush1.bf16.msra.mxu0 0
      %2114 = vmatprep.subr.bf16.mxu0 0
      %2115 = vmatpush1.bf16.msra.mxu0 0
      %2116 = vmatprep.subr.bf16.mxu0 0
      %2117 = vmatpush1.bf16.msra.mxu0 0
      %2118 = vmatprep.mubr.bf16.mxu0 0
      %2119 = vmatmul.mubr.bf16.gmra.mrb[0].mxu0 %v1874
      %v2120 = vpop.f32.mrb[0].mxu0
      %v2121 = vadd.f32 %v2072, %v2120
      %v2122 = vpop.f32.mrb[0].mxu0
      %v2123 = vpop.f32.mrb[0].mxu0
      %v2124 = vpop.f32.mrb[0].mxu0
      %2125 = vdwg.mxu0
      %v2127 = vcombine.high %v2121, %v2121
      %v2129 = vunpack.c.l.s4 1966171168
      %v2130 = vunpack.c.0.s8 %v2129
      %v2131 = vlaneseq
      %v2132 = vshrl.u32 %v2131, 7
      %v2133 = vsub.s32 %v2130, %v2132
      %v2134 = vrot.slane %v2121, %v2133
      %v2136 = vunpack.c.l.s4 1966171168
      %v2137 = vunpack.c.0.s8 %v2136
      %v2138 = vlaneseq
      %v2139 = vshrl.u32 %v2138, 7
      %v2140 = vsub.s32 %v2137, %v2139
      %v2141 = vrot.slane %v2127, %v2140
      %v2142 = vcombine.high %v2134, %v2134
      %v2143 = vcombine.high %v2141, %v2141
      %v2145 = vunpack.c.l.s4 1966171168
      %v2146 = vunpack.c.0.s8 %v2145
      %v2147 = vlaneseq
      %v2148 = vshrl.u32 %v2147, 7
      %v2149 = vsub.s32 %v2146, %v2148
      %v2150 = vrot.slane %v2134, %v2149
      %v2152 = vunpack.c.l.s4 1966171168
      %v2153 = vunpack.c.0.s8 %v2152
      %v2154 = vlaneseq
      %v2155 = vshrl.u32 %v2154, 7
      %v2156 = vsub.s32 %v2153, %v2155
      %v2157 = vrot.slane %v2141, %v2156
      %v2159 = vunpack.c.l.s4 1966171168
      %v2160 = vunpack.c.0.s8 %v2159
      %v2161 = vlaneseq
      %v2162 = vshrl.u32 %v2161, 7
      %v2163 = vsub.s32 %v2160, %v2162
      %v2164 = vrot.slane %v2142, %v2163
      %v2166 = vunpack.c.l.s4 1966171168
      %v2167 = vunpack.c.0.s8 %v2166
      %v2168 = vlaneseq
      %v2169 = vshrl.u32 %v2168, 7
      %v2170 = vsub.s32 %v2167, %v2169
      %v2171 = vrot.slane %v2143, %v2170
      %v2172 = vcombine.high %v2150, %v2150
      %v2173 = vcombine.high %v2157, %v2157
      %v2174 = vcombine.high %v2164, %v2164
      %v2175 = vcombine.high %v2171, %v2171
      %v2176 = vlaneseq
      %v2177 = vshrl.u32 %v2176, 7
      %v2178 = vsub.s32 0, %v2177
      %v2179 = vrot.slane %v2150, %v2178
      %v2180 = vlaneseq
      %v2181 = vshrl.u32 %v2180, 7
      %v2182 = vsub.s32 0, %v2181
      %v2183 = vrot.slane %v2164, %v2182
      %v2184 = vlaneseq
      %v2185 = vshrl.u32 %v2184, 7
      %v2186 = vsub.s32 0, %v2185
      %v2187 = vrot.slane %v2172, %v2186
      %v2188 = vlaneseq
      %v2189 = vshrl.u32 %v2188, 7
      %v2190 = vsub.s32 0, %v2189
      %v2191 = vrot.slane %v2174, %v2190
      %v2192 = vlaneseq
      %v2193 = vshrl.u32 %v2192, 7
      %v2194 = vsub.s32 0, %v2193
      %v2195 = vrot.slane %v2157, %v2194
      %v2196 = vlaneseq
      %v2197 = vshrl.u32 %v2196, 7
      %v2198 = vsub.s32 0, %v2197
      %v2199 = vrot.slane %v2171, %v2198
      %v2200 = vlaneseq
      %v2201 = vshrl.u32 %v2200, 7
      %v2202 = vsub.s32 0, %v2201
      %v2203 = vrot.slane %v2173, %v2202
      %v2204 = vlaneseq
      %v2205 = vshrl.u32 %v2204, 7
      %v2206 = vsub.s32 0, %v2205
      %v2207 = vrot.slane %v2175, %v2206
      %v2216 = vadd.f32 %v408, %v2179
      %v2217 = vadd.f32 %v409, %v2179
      %v2218 = vadd.f32 %v410, %v2183
      %v2219 = vadd.f32 %v411, %v2183
      %v2220 = vadd.f32 %v412, %v2187
      %v2221 = vadd.f32 %v413, %v2187
      %v2222 = vadd.f32 %v414, %v2191
      %v2223 = vadd.f32 %v415, %v2191
      %v2224 = vadd.f32 %v416, %v2195
      %v2225 = vadd.f32 %v417, %v2195
      %v2226 = vadd.f32 %v418, %v2199
      %v2227 = vadd.f32 %v419, %v2199
      %v2228 = vadd.f32 %v420, %v2203
      %v2229 = vadd.f32 %v421, %v2203
      %v2230 = vadd.f32 %v422, %v2207
      %v2231 = vadd.f32 %v423, %v2207
      %v2232 = vtanh.pop %v2216
      %v2233 = vtanh.pop %v2217
      %v2234 = vtanh.pop %v2218
      %v2235 = vtanh.pop %v2219
      %v2236 = vtanh.pop %v2220
      %v2237 = vtanh.pop %v2221
      %v2238 = vtanh.pop %v2222
      %v2239 = vtanh.pop %v2223
      %v2240 = vtanh.pop %v2224
      %v2241 = vtanh.pop %v2225
      %v2242 = vtanh.pop %v2226
      %v2243 = vtanh.pop %v2227
      %v2244 = vtanh.pop %v2228
      %v2245 = vtanh.pop %v2229
      %v2246 = vtanh.pop %v2230
      %v2247 = vtanh.pop %v2231
      %v2248 = vmul.f32 %v2232, %v636
      %v2249 = vmul.f32 %v2233, %v636
      %v2250 = vmul.f32 %v2234, %v636
      %v2251 = vmul.f32 %v2235, %v636
      %v2252 = vmul.f32 %v2236, %v636
      %v2253 = vmul.f32 %v2237, %v636
      %v2254 = vmul.f32 %v2238, %v636
      %v2255 = vmul.f32 %v2239, %v636
      %v2256 = vmul.f32 %v2240, %v636
      %v2257 = vmul.f32 %v2241, %v636
      %v2258 = vmul.f32 %v2242, %v636
      %v2259 = vmul.f32 %v2243, %v636
      %v2260 = vmul.f32 %v2244, %v636
      %v2261 = vmul.f32 %v2245, %v636
      %v2262 = vmul.f32 %v2246, %v636
      %v2263 = vmul.f32 %v2247, %v636
      %v2264 = vsel %vm466, %v2248, 0.0
      %2265 = vadd.xlane.f32.xlu0 %v2264
      %v2266 = vpop.xlane.xlu0 %2265
      %v2267 = vsel %vm466, %v2249, 0.0
      %2268 = vadd.xlane.f32.xlu0 %v2267
      %v2269 = vpop.xlane.xlu0 %2268
      %v2270 = vsel %vm466, %v2250, 0.0
      %2271 = vadd.xlane.f32.xlu0 %v2270
      %v2272 = vpop.xlane.xlu0 %2271
      %v2273 = vsel %vm466, %v2251, 0.0
      %2274 = vadd.xlane.f32.xlu0 %v2273
      %v2275 = vpop.xlane.xlu0 %2274
      %v2276 = vsel %vm466, %v2252, 0.0
      %2277 = vadd.xlane.f32.xlu0 %v2276
      %v2278 = vpop.xlane.xlu0 %2277
      %v2279 = vsel %vm466, %v2253, 0.0
      %2280 = vadd.xlane.f32.xlu0 %v2279
      %v2281 = vpop.xlane.xlu0 %2280
      %v2282 = vsel %vm466, %v2254, 0.0
      %2283 = vadd.xlane.f32.xlu0 %v2282
      %v2284 = vpop.xlane.xlu0 %2283
      %v2285 = vsel %vm466, %v2255, 0.0
      %2286 = vadd.xlane.f32.xlu0 %v2285
      %v2287 = vpop.xlane.xlu0 %2286
      %v2288 = vsel %vm466, %v2256, 0.0
      %2289 = vadd.xlane.f32.xlu0 %v2288
      %v2290 = vpop.xlane.xlu0 %2289
      %v2291 = vsel %vm466, %v2257, 0.0
      %2292 = vadd.xlane.f32.xlu0 %v2291
      %v2293 = vpop.xlane.xlu0 %2292
      %v2294 = vsel %vm466, %v2258, 0.0
      %2295 = vadd.xlane.f32.xlu0 %v2294
      %v2296 = vpop.xlane.xlu0 %2295
      %v2297 = vsel %vm466, %v2259, 0.0
      %2298 = vadd.xlane.f32.xlu0 %v2297
      %v2299 = vpop.xlane.xlu0 %2298
      %v2300 = vsel %vm466, %v2260, 0.0
      %2301 = vadd.xlane.f32.xlu0 %v2300
      %v2302 = vpop.xlane.xlu0 %2301
      %v2303 = vsel %vm466, %v2261, 0.0
      %2304 = vadd.xlane.f32.xlu0 %v2303
      %v2305 = vpop.xlane.xlu0 %2304
      %v2306 = vsel %vm466, %v2262, 0.0
      %2307 = vadd.xlane.f32.xlu0 %v2306
      %v2308 = vpop.xlane.xlu0 %2307
      %v2309 = vsel %vm466, %v2263, 0.0
      %2310 = vadd.xlane.f32.xlu0 %v2309
      %v2311 = vpop.xlane.xlu0 %2310
      %v2328 = vlaneseq
      %v2329 = vshrl.u32 %v2328, 7
      %v2330 = vsub.s32 %v719, %v2329
      %v2331 = vrot.slane %v2266, %v2330
      %v2332 = vlaneseq
      %v2333 = vshrl.u32 %v2332, 7
      %v2334 = vsub.s32 %v724, %v2333
      %v2335 = vrot.slane %v2269, %v2334
      %v2336 = vsel %vm729, %v2335, %v2331
      %v2337 = vlaneseq
      %v2338 = vshrl.u32 %v2337, 7
      %v2339 = vsub.s32 %v719, %v2338
      %v2340 = vrot.slane %v2272, %v2339
      %v2341 = vlaneseq
      %v2342 = vshrl.u32 %v2341, 7
      %v2343 = vsub.s32 %v724, %v2342
      %v2344 = vrot.slane %v2275, %v2343
      %v2345 = vsel %vm729, %v2344, %v2340
      %v2346 = vlaneseq
      %v2347 = vshrl.u32 %v2346, 7
      %v2348 = vsub.s32 %v719, %v2347
      %v2349 = vrot.slane %v2278, %v2348
      %v2350 = vlaneseq
      %v2351 = vshrl.u32 %v2350, 7
      %v2352 = vsub.s32 %v724, %v2351
      %v2353 = vrot.slane %v2281, %v2352
      %v2354 = vsel %vm729, %v2353, %v2349
      %v2355 = vlaneseq
      %v2356 = vshrl.u32 %v2355, 7
      %v2357 = vsub.s32 %v719, %v2356
      %v2358 = vrot.slane %v2284, %v2357
      %v2359 = vlaneseq
      %v2360 = vshrl.u32 %v2359, 7
      %v2361 = vsub.s32 %v724, %v2360
      %v2362 = vrot.slane %v2287, %v2361
      %v2363 = vsel %vm729, %v2362, %v2358
      %v2364 = vlaneseq
      %v2365 = vshrl.u32 %v2364, 7
      %v2366 = vsub.s32 %v719, %v2365
      %v2367 = vrot.slane %v2290, %v2366
      %v2368 = vlaneseq
      %v2369 = vshrl.u32 %v2368, 7
      %v2370 = vsub.s32 %v724, %v2369
      %v2371 = vrot.slane %v2293, %v2370
      %v2372 = vsel %vm729, %v2371, %v2367
      %v2373 = vlaneseq
      %v2374 = vshrl.u32 %v2373, 7
      %v2375 = vsub.s32 %v719, %v2374
      %v2376 = vrot.slane %v2296, %v2375
      %v2377 = vlaneseq
      %v2378 = vshrl.u32 %v2377, 7
      %v2379 = vsub.s32 %v724, %v2378
      %v2380 = vrot.slane %v2299, %v2379
      %v2381 = vsel %vm729, %v2380, %v2376
      %v2382 = vlaneseq
      %v2383 = vshrl.u32 %v2382, 7
      %v2384 = vsub.s32 %v719, %v2383
      %v2385 = vrot.slane %v2302, %v2384
      %v2386 = vlaneseq
      %v2387 = vshrl.u32 %v2386, 7
      %v2388 = vsub.s32 %v724, %v2387
      %v2389 = vrot.slane %v2305, %v2388
      %v2390 = vsel %vm729, %v2389, %v2385
      %v2391 = vlaneseq
      %v2392 = vshrl.u32 %v2391, 7
      %v2393 = vsub.s32 %v719, %v2392
      %v2394 = vrot.slane %v2308, %v2393
      %v2395 = vlaneseq
      %v2396 = vshrl.u32 %v2395, 7
      %v2397 = vsub.s32 %v724, %v2396
      %v2398 = vrot.slane %v2311, %v2397
      %v2399 = vsel %vm729, %v2398, %v2394
      %v2400 = vsel %vm794, %v2345, %v2336
      %v2401 = vsel %vm796, %v2354, %v2400
      %v2402 = vsel %vm798, %v2363, %v2401
      %v2403 = vsel %vm800, %v2372, %v2402
      %v2404 = vsel %vm802, %v2381, %v2403
      %v2405 = vsel %vm804, %v2390, %v2404
      %v2406 = vsel %vm806, %v2399, %v2405
      %v2408 = vsel %vm809, %v2406, -inf
      %2409 = vmax.xlane.f32.xlu0 %v2408
      %v2410 = vpop.xlane.xlu0 %2409
      %v2412 = vlaneseq
      %v2413 = vshrl.u32 %v2412, 7
      %v2414 = vsub.s32 0, %v2413
      %v2415 = vrot.slane %v2410, %v2414
      %v2416 = vlaneseq
      %v2417 = vshrl.u32 %v2416, 7
      %v2418 = vsub.s32 1, %v2417
      %v2419 = vrot.slane %v2410, %v2418
      %v2420 = vlaneseq
      %v2421 = vshrl.u32 %v2420, 7
      %v2422 = vsub.s32 2, %v2421
      %v2423 = vrot.slane %v2410, %v2422
      %v2424 = vlaneseq
      %v2425 = vshrl.u32 %v2424, 7
      %v2426 = vsub.s32 3, %v2425
      %v2427 = vrot.slane %v2410, %v2426
      %v2428 = vlaneseq
      %v2429 = vshrl.u32 %v2428, 7
      %v2430 = vsub.s32 4, %v2429
      %v2431 = vrot.slane %v2410, %v2430
      %v2432 = vlaneseq
      %v2433 = vshrl.u32 %v2432, 7
      %v2434 = vsub.s32 5, %v2433
      %v2435 = vrot.slane %v2410, %v2434
      %v2436 = vlaneseq
      %v2437 = vshrl.u32 %v2436, 7
      %v2438 = vsub.s32 6, %v2437
      %v2439 = vrot.slane %v2410, %v2438
      %v2440 = vlaneseq
      %v2441 = vshrl.u32 %v2440, 7
      %v2442 = vsub.s32 7, %v2441
      %v2443 = vrot.slane %v2410, %v2442
      %v2452 = vsub.f32 %v2266, %v2415
      %v2453 = vsub.f32 %v2269, %v2415
      %v2454 = vsub.f32 %v2272, %v2419
      %v2455 = vsub.f32 %v2275, %v2419
      %v2456 = vsub.f32 %v2278, %v2423
      %v2457 = vsub.f32 %v2281, %v2423
      %v2458 = vsub.f32 %v2284, %v2427
      %v2459 = vsub.f32 %v2287, %v2427
      %v2460 = vsub.f32 %v2290, %v2431
      %v2461 = vsub.f32 %v2293, %v2431
      %v2462 = vsub.f32 %v2296, %v2435
      %v2463 = vsub.f32 %v2299, %v2435
      %v2464 = vsub.f32 %v2302, %v2439
      %v2465 = vsub.f32 %v2305, %v2439
      %v2466 = vsub.f32 %v2308, %v2443
      %v2467 = vsub.f32 %v2311, %v2443
      %v2468 = vmul.f32 %v2452, 1.442695
      %v2469 = vpow.pop %v2468
      %v2470 = vmul.f32 %v2453, 1.442695
      %v2471 = vpow.pop %v2470
      %v2472 = vmul.f32 %v2454, 1.442695
      %v2473 = vpow.pop %v2472
      %v2474 = vmul.f32 %v2455, 1.442695
      %v2475 = vpow.pop %v2474
      %v2476 = vmul.f32 %v2456, 1.442695
      %v2477 = vpow.pop %v2476
      %v2478 = vmul.f32 %v2457, 1.442695
      %v2479 = vpow.pop %v2478
      %v2480 = vmul.f32 %v2458, 1.442695
      %v2481 = vpow.pop %v2480
      %v2482 = vmul.f32 %v2459, 1.442695
      %v2483 = vpow.pop %v2482
      %v2484 = vmul.f32 %v2460, 1.442695
      %v2485 = vpow.pop %v2484
      %v2486 = vmul.f32 %v2461, 1.442695
      %v2487 = vpow.pop %v2486
      %v2488 = vmul.f32 %v2462, 1.442695
      %v2489 = vpow.pop %v2488
      %v2490 = vmul.f32 %v2463, 1.442695
      %v2491 = vpow.pop %v2490
      %v2492 = vmul.f32 %v2464, 1.442695
      %v2493 = vpow.pop %v2492
      %v2494 = vmul.f32 %v2465, 1.442695
      %v2495 = vpow.pop %v2494
      %v2496 = vmul.f32 %v2466, 1.442695
      %v2497 = vpow.pop %v2496
      %v2498 = vmul.f32 %v2467, 1.442695
      %v2499 = vpow.pop %v2498
      %2516 = vset.pattern.permute.xlu0 0
      %2517 = vperm.xlu0 %2516, %v2469
      %v2518 = vpop.permute.xlu0 %2517
      %2519 = vset.pattern.permute.xlu0 0
      %2520 = vperm.xlu0 %2519, %v2471
      %v2521 = vpop.permute.xlu0 %2520
      %2522 = vset.pattern.permute.xlu0 0
      %2523 = vperm.xlu0 %2522, %v2473
      %v2524 = vpop.permute.xlu0 %2523
      %2525 = vset.pattern.permute.xlu0 0
      %2526 = vperm.xlu0 %2525, %v2475
      %v2527 = vpop.permute.xlu0 %2526
      %2528 = vset.pattern.permute.xlu0 0
      %2529 = vperm.xlu0 %2528, %v2477
      %v2530 = vpop.permute.xlu0 %2529
      %2531 = vset.pattern.permute.xlu0 0
      %2532 = vperm.xlu0 %2531, %v2479
      %v2533 = vpop.permute.xlu0 %2532
      %2534 = vset.pattern.permute.xlu0 0
      %2535 = vperm.xlu0 %2534, %v2481
      %v2536 = vpop.permute.xlu0 %2535
      %2537 = vset.pattern.permute.xlu0 0
      %2538 = vperm.xlu0 %2537, %v2483
      %v2539 = vpop.permute.xlu0 %2538
      %2540 = vset.pattern.permute.xlu0 0
      %2541 = vperm.xlu0 %2540, %v2485
      %v2542 = vpop.permute.xlu0 %2541
      %2543 = vset.pattern.permute.xlu0 0
      %2544 = vperm.xlu0 %2543, %v2487
      %v2545 = vpop.permute.xlu0 %2544
      %2546 = vset.pattern.permute.xlu0 0
      %2547 = vperm.xlu0 %2546, %v2489
      %v2548 = vpop.permute.xlu0 %2547
      %2549 = vset.pattern.permute.xlu0 0
      %2550 = vperm.xlu0 %2549, %v2491
      %v2551 = vpop.permute.xlu0 %2550
      %2552 = vset.pattern.permute.xlu0 0
      %2553 = vperm.xlu0 %2552, %v2493
      %v2554 = vpop.permute.xlu0 %2553
      %2555 = vset.pattern.permute.xlu0 0
      %2556 = vperm.xlu0 %2555, %v2495
      %v2557 = vpop.permute.xlu0 %2556
      %2558 = vset.pattern.permute.xlu0 0
      %2559 = vperm.xlu0 %2558, %v2497
      %v2560 = vpop.permute.xlu0 %2559
      %2561 = vset.pattern.permute.xlu0 0
      %2562 = vperm.xlu0 %2561, %v2499
      %v2563 = vpop.permute.xlu0 %2562
      %v2564 = vlaneseq
      %v2565 = vshrl.u32 %v2564, 7
      %v2566 = vsub.s32 %v719, %v2565
      %v2567 = vrot.slane %v2518, %v2566
      %v2568 = vlaneseq
      %v2569 = vshrl.u32 %v2568, 7
      %v2570 = vsub.s32 %v724, %v2569
      %v2571 = vrot.slane %v2521, %v2570
      %v2572 = vsel %vm729, %v2571, %v2567
      %v2573 = vlaneseq
      %v2574 = vshrl.u32 %v2573, 7
      %v2575 = vsub.s32 %v719, %v2574
      %v2576 = vrot.slane %v2524, %v2575
      %v2577 = vlaneseq
      %v2578 = vshrl.u32 %v2577, 7
      %v2579 = vsub.s32 %v724, %v2578
      %v2580 = vrot.slane %v2527, %v2579
      %v2581 = vsel %vm729, %v2580, %v2576
      %v2582 = vlaneseq
      %v2583 = vshrl.u32 %v2582, 7
      %v2584 = vsub.s32 %v719, %v2583
      %v2585 = vrot.slane %v2530, %v2584
      %v2586 = vlaneseq
      %v2587 = vshrl.u32 %v2586, 7
      %v2588 = vsub.s32 %v724, %v2587
      %v2589 = vrot.slane %v2533, %v2588
      %v2590 = vsel %vm729, %v2589, %v2585
      %v2591 = vlaneseq
      %v2592 = vshrl.u32 %v2591, 7
      %v2593 = vsub.s32 %v719, %v2592
      %v2594 = vrot.slane %v2536, %v2593
      %v2595 = vlaneseq
      %v2596 = vshrl.u32 %v2595, 7
      %v2597 = vsub.s32 %v724, %v2596
      %v2598 = vrot.slane %v2539, %v2597
      %v2599 = vsel %vm729, %v2598, %v2594
      %v2600 = vlaneseq
      %v2601 = vshrl.u32 %v2600, 7
      %v2602 = vsub.s32 %v719, %v2601
      %v2603 = vrot.slane %v2542, %v2602
      %v2604 = vlaneseq
      %v2605 = vshrl.u32 %v2604, 7
      %v2606 = vsub.s32 %v724, %v2605
      %v2607 = vrot.slane %v2545, %v2606
      %v2608 = vsel %vm729, %v2607, %v2603
      %v2609 = vlaneseq
      %v2610 = vshrl.u32 %v2609, 7
      %v2611 = vsub.s32 %v719, %v2610
      %v2612 = vrot.slane %v2548, %v2611
      %v2613 = vlaneseq
      %v2614 = vshrl.u32 %v2613, 7
      %v2615 = vsub.s32 %v724, %v2614
      %v2616 = vrot.slane %v2551, %v2615
      %v2617 = vsel %vm729, %v2616, %v2612
      %v2618 = vlaneseq
      %v2619 = vshrl.u32 %v2618, 7
      %v2620 = vsub.s32 %v719, %v2619
      %v2621 = vrot.slane %v2554, %v2620
      %v2622 = vlaneseq
      %v2623 = vshrl.u32 %v2622, 7
      %v2624 = vsub.s32 %v724, %v2623
      %v2625 = vrot.slane %v2557, %v2624
      %v2626 = vsel %vm729, %v2625, %v2621
      %v2627 = vlaneseq
      %v2628 = vshrl.u32 %v2627, 7
      %v2629 = vsub.s32 %v719, %v2628
      %v2630 = vrot.slane %v2560, %v2629
      %v2631 = vlaneseq
      %v2632 = vshrl.u32 %v2631, 7
      %v2633 = vsub.s32 %v724, %v2632
      %v2634 = vrot.slane %v2563, %v2633
      %v2635 = vsel %vm729, %v2634, %v2630
      %v2636 = vsel %vm794, %v2581, %v2572
      %v2637 = vsel %vm796, %v2590, %v2636
      %v2638 = vsel %vm798, %v2599, %v2637
      %v2639 = vsel %vm800, %v2608, %v2638
      %v2640 = vsel %vm802, %v2617, %v2639
      %v2641 = vsel %vm804, %v2626, %v2640
      %v2642 = vsel %vm806, %v2635, %v2641
      %v2644 = vsel %vm809, %v2642, 0.0
      %2645 = vadd.xlane.f32.xlu0 %v2644
      %v2646 = vpop.xlane.xlu0 %2645
      %v2647 = vrcp.pop %v2646
      %v2649 = vlaneseq
      %v2650 = vshrl.u32 %v2649, 7
      %v2651 = vsub.s32 0, %v2650
      %v2652 = vrot.slane %v2647, %v2651
      %v2653 = vlaneseq
      %v2654 = vshrl.u32 %v2653, 7
      %v2655 = vsub.s32 1, %v2654
      %v2656 = vrot.slane %v2647, %v2655
      %v2657 = vlaneseq
      %v2658 = vshrl.u32 %v2657, 7
      %v2659 = vsub.s32 2, %v2658
      %v2660 = vrot.slane %v2647, %v2659
      %v2661 = vlaneseq
      %v2662 = vshrl.u32 %v2661, 7
      %v2663 = vsub.s32 3, %v2662
      %v2664 = vrot.slane %v2647, %v2663
      %v2665 = vlaneseq
      %v2666 = vshrl.u32 %v2665, 7
      %v2667 = vsub.s32 4, %v2666
      %v2668 = vrot.slane %v2647, %v2667
      %v2669 = vlaneseq
      %v2670 = vshrl.u32 %v2669, 7
      %v2671 = vsub.s32 5, %v2670
      %v2672 = vrot.slane %v2647, %v2671
      %v2673 = vlaneseq
      %v2674 = vshrl.u32 %v2673, 7
      %v2675 = vsub.s32 6, %v2674
      %v2676 = vrot.slane %v2647, %v2675
      %v2677 = vlaneseq
      %v2678 = vshrl.u32 %v2677, 7
      %v2679 = vsub.s32 7, %v2678
      %v2680 = vrot.slane %v2647, %v2679
      %v2689 = vmul.f32 %v2469, %v2652
      %v2690 = vmul.f32 %v2471, %v2652
      %v2691 = vmul.f32 %v2473, %v2656
      %v2692 = vmul.f32 %v2475, %v2656
      %v2693 = vmul.f32 %v2477, %v2660
      %v2694 = vmul.f32 %v2479, %v2660
      %v2695 = vmul.f32 %v2481, %v2664
      %v2696 = vmul.f32 %v2483, %v2664
      %v2697 = vmul.f32 %v2485, %v2668
      %v2698 = vmul.f32 %v2487, %v2668
      %v2699 = vmul.f32 %v2489, %v2672
      %v2700 = vmul.f32 %v2491, %v2672
      %v2701 = vmul.f32 %v2493, %v2676
      %v2702 = vmul.f32 %v2495, %v2676
      %v2703 = vmul.f32 %v2497, %v2680
      %v2704 = vmul.f32 %v2499, %v2680
      %v2705 = vpack.c.bf16 %v2690, %v2689
      %v2706 = vpack.c.bf16 %v2692, %v2691
      %v2707 = vpack.c.bf16 %v2694, %v2693
      %v2708 = vpack.c.bf16 %v2696, %v2695
      %v2709 = vpack.c.bf16 %v2698, %v2697
      %v2710 = vpack.c.bf16 %v2700, %v2699
      %v2711 = vpack.c.bf16 %v2702, %v2701
      %v2712 = vpack.c.bf16 %v2704, %v2703
      %v2714 = vunpack.c.l.b16 %v2705
      %v2715 = vunpack.c.h.b16 %v2705
      %2716 = vset.pattern.permute.xlu0 0
      %2717 = vperm.xlu0 %2716, %v2714
      %v2718 = vpop.permute.xlu0 %2717
      %2719 = vset.pattern.permute.xlu0 0
      %2720 = vperm.xlu0 %2719, %v2715
      %v2721 = vpop.permute.xlu0 %2720
      %v2722 = vlaneseq
      %v2723 = vshrl.u32 %v2722, 7
      %v2724 = vsub.s32 %v719, %v2723
      %v2725 = vrot.slane %v2718, %v2724
      %v2726 = vlaneseq
      %v2727 = vshrl.u32 %v2726, 7
      %v2728 = vsub.s32 %v724, %v2727
      %v2729 = vrot.slane %v2721, %v2728
      %v2730 = vsel %vm729, %v2729, %v2725
      %v2731 = vpack.c.b16 %v2730, %v2730
      %v2733 = vsel %vm809, %v2731, 0
      %2735 = vmatprep.subr.bf16.mxu0 0
      %2736 = vmatpush1.bf16.msra.mxu0 %v1138
      %2737 = vmatprep.subr.bf16.mxu0 0
      %2738 = vmatpush1.bf16.msra.mxu0 0
      %2739 = vmatprep.subr.bf16.mxu0 0
      %2740 = vmatpush1.bf16.msra.mxu0 0
      %2741 = vmatprep.subr.bf16.mxu0 0
      %2742 = vmatpush1.bf16.msra.mxu0 0
      %2743 = vmatprep.subr.bf16.mxu0 0
      %2744 = vmatpush1.bf16.msra.mxu0 0
      %2745 = vmatprep.subr.bf16.mxu0 0
      %2746 = vmatpush1.bf16.msra.mxu0 0
      %2747 = vmatprep.subr.bf16.mxu0 0
      %2748 = vmatpush1.bf16.msra.mxu0 0
      %2749 = vmatprep.subr.bf16.mxu0 0
      %2750 = vmatpush1.bf16.msra.mxu0 0
      %2751 = vmatprep.subr.bf16.mxu0 0
      %2752 = vmatpush1.bf16.msra.mxu0 0
      %2753 = vmatprep.subr.bf16.mxu0 0
      %2754 = vmatpush1.bf16.msra.mxu0 0
      %2755 = vmatprep.subr.bf16.mxu0 0
      %2756 = vmatpush1.bf16.msra.mxu0 0
      %2757 = vmatprep.subr.bf16.mxu0 0
      %2758 = vmatpush1.bf16.msra.mxu0 0
      %2759 = vmatprep.subr.bf16.mxu0 0
      %2760 = vmatpush1.bf16.msra.mxu0 0
      %2761 = vmatprep.subr.bf16.mxu0 0
      %2762 = vmatpush1.bf16.msra.mxu0 0
      %2763 = vmatprep.subr.bf16.mxu0 0
      %2764 = vmatpush1.bf16.msra.mxu0 0
      %2765 = vmatprep.subr.bf16.mxu0 0
      %2766 = vmatpush1.bf16.msra.mxu0 0
      %2767 = vmatprep.mubr.bf16.mxu0 0
      %2768 = vmatmul.mubr.bf16.gmra.mrb[0].mxu0 %v2733
      %v2769 = vpop.f32.mrb[0].mxu0
      %v2770 = vadd.f32 0.0, %v2769
      %v2771 = vpop.f32.mrb[0].mxu0
      %v2772 = vpop.f32.mrb[0].mxu0
      %v2773 = vpop.f32.mrb[0].mxu0
      %2774 = vdwg.mxu0
      %v2776 = vunpack.c.l.b16 %v2706
      %v2777 = vunpack.c.h.b16 %v2706
      %2778 = vset.pattern.permute.xlu0 0
      %2779 = vperm.xlu0 %2778, %v2776
      %v2780 = vpop.permute.xlu0 %2779
      %2781 = vset.pattern.permute.xlu0 0
      %2782 = vperm.xlu0 %2781, %v2777
      %v2783 = vpop.permute.xlu0 %2782
      %v2784 = vlaneseq
      %v2785 = vshrl.u32 %v2784, 7
      %v2786 = vsub.s32 %v719, %v2785
      %v2787 = vrot.slane %v2780, %v2786
      %v2788 = vlaneseq
      %v2789 = vshrl.u32 %v2788, 7
      %v2790 = vsub.s32 %v724, %v2789
      %v2791 = vrot.slane %v2783, %v2790
      %v2792 = vsel %vm729, %v2791, %v2787
      %v2793 = vpack.c.b16 %v2792, %v2792
      %v2795 = vsel %vm809, %v2793, 0
      %2797 = vmatprep.subr.bf16.mxu0 0
      %2798 = vmatpush1.bf16.msra.mxu0 %v1206
      %2799 = vmatprep.subr.bf16.mxu0 0
      %2800 = vmatpush1.bf16.msra.mxu0 0
      %2801 = vmatprep.subr.bf16.mxu0 0
      %2802 = vmatpush1.bf16.msra.mxu0 0
      %2803 = vmatprep.subr.bf16.mxu0 0
      %2804 = vmatpush1.bf16.msra.mxu0 0
      %2805 = vmatprep.subr.bf16.mxu0 0
      %2806 = vmatpush1.bf16.msra.mxu0 0
      %2807 = vmatprep.subr.bf16.mxu0 0
      %2808 = vmatpush1.bf16.msra.mxu0 0
      %2809 = vmatprep.subr.bf16.mxu0 0
      %2810 = vmatpush1.bf16.msra.mxu0 0
      %2811 = vmatprep.subr.bf16.mxu0 0
      %2812 = vmatpush1.bf16.msra.mxu0 0
      %2813 = vmatprep.subr.bf16.mxu0 0
      %2814 = vmatpush1.bf16.msra.mxu0 0
      %2815 = vmatprep.subr.bf16.mxu0 0
      %2816 = vmatpush1.bf16.msra.mxu0 0
      %2817 = vmatprep.subr.bf16.mxu0 0
      %2818 = vmatpush1.bf16.msra.mxu0 0
      %2819 = vmatprep.subr.bf16.mxu0 0
      %2820 = vmatpush1.bf16.msra.mxu0 0
      %2821 = vmatprep.subr.bf16.mxu0 0
      %2822 = vmatpush1.bf16.msra.mxu0 0
      %2823 = vmatprep.subr.bf16.mxu0 0
      %2824 = vmatpush1.bf16.msra.mxu0 0
      %2825 = vmatprep.subr.bf16.mxu0 0
      %2826 = vmatpush1.bf16.msra.mxu0 0
      %2827 = vmatprep.subr.bf16.mxu0 0
      %2828 = vmatpush1.bf16.msra.mxu0 0
      %2829 = vmatprep.mubr.bf16.mxu0 0
      %2830 = vmatmul.mubr.bf16.gmra.mrb[0].mxu0 %v2795
      %v2831 = vpop.f32.mrb[0].mxu0
      %v2832 = vadd.f32 0.0, %v2831
      %v2833 = vpop.f32.mrb[0].mxu0
      %v2834 = vpop.f32.mrb[0].mxu0
      %v2835 = vpop.f32.mrb[0].mxu0
      %2836 = vdwg.mxu0
      %v2838 = vunpack.c.l.b16 %v2707
      %v2839 = vunpack.c.h.b16 %v2707
      %2840 = vset.pattern.permute.xlu0 0
      %2841 = vperm.xlu0 %2840, %v2838
      %v2842 = vpop.permute.xlu0 %2841
      %2843 = vset.pattern.permute.xlu0 0
      %2844 = vperm.xlu0 %2843, %v2839
      %v2845 = vpop.permute.xlu0 %2844
      %v2846 = vlaneseq
      %v2847 = vshrl.u32 %v2846, 7
      %v2848 = vsub.s32 %v719, %v2847
      %v2849 = vrot.slane %v2842, %v2848
      %v2850 = vlaneseq
      %v2851 = vshrl.u32 %v2850, 7
      %v2852 = vsub.s32 %v724, %v2851
      %v2853 = vrot.slane %v2845, %v2852
      %v2854 = vsel %vm729, %v2853, %v2849
      %v2855 = vpack.c.b16 %v2854, %v2854
      %v2857 = vsel %vm809, %v2855, 0
      %2859 = vmatprep.subr.bf16.mxu0 0
      %2860 = vmatpush1.bf16.msra.mxu0 %v1274
      %2861 = vmatprep.subr.bf16.mxu0 0
      %2862 = vmatpush1.bf16.msra.mxu0 0
      %2863 = vmatprep.subr.bf16.mxu0 0
      %2864 = vmatpush1.bf16.msra.mxu0 0
      %2865 = vmatprep.subr.bf16.mxu0 0
      %2866 = vmatpush1.bf16.msra.mxu0 0
      %2867 = vmatprep.subr.bf16.mxu0 0
      %2868 = vmatpush1.bf16.msra.mxu0 0
      %2869 = vmatprep.subr.bf16.mxu0 0
      %2870 = vmatpush1.bf16.msra.mxu0 0
      %2871 = vmatprep.subr.bf16.mxu0 0
      %2872 = vmatpush1.bf16.msra.mxu0 0
      %2873 = vmatprep.subr.bf16.mxu0 0
      %2874 = vmatpush1.bf16.msra.mxu0 0
      %2875 = vmatprep.subr.bf16.mxu0 0
      %2876 = vmatpush1.bf16.msra.mxu0 0
      %2877 = vmatprep.subr.bf16.mxu0 0
      %2878 = vmatpush1.bf16.msra.mxu0 0
      %2879 = vmatprep.subr.bf16.mxu0 0
      %2880 = vmatpush1.bf16.msra.mxu0 0
      %2881 = vmatprep.subr.bf16.mxu0 0
      %2882 = vmatpush1.bf16.msra.mxu0 0
      %2883 = vmatprep.subr.bf16.mxu0 0
      %2884 = vmatpush1.bf16.msra.mxu0 0
      %2885 = vmatprep.subr.bf16.mxu0 0
      %2886 = vmatpush1.bf16.msra.mxu0 0
      %2887 = vmatprep.subr.bf16.mxu0 0
      %2888 = vmatpush1.bf16.msra.mxu0 0
      %2889 = vmatprep.subr.bf16.mxu0 0
      %2890 = vmatpush1.bf16.msra.mxu0 0
      %2891 = vmatprep.mubr.bf16.mxu0 0
      %2892 = vmatmul.mubr.bf16.gmra.mrb[0].mxu0 %v2857
      %v2893 = vpop.f32.mrb[0].mxu0
      %v2894 = vadd.f32 0.0, %v2893
      %v2895 = vpop.f32.mrb[0].mxu0
      %v2896 = vpop.f32.mrb[0].mxu0
      %v2897 = vpop.f32.mrb[0].mxu0
      %2898 = vdwg.mxu0
      %v2900 = vunpack.c.l.b16 %v2708
      %v2901 = vunpack.c.h.b16 %v2708
      %2902 = vset.pattern.permute.xlu0 0
      %2903 = vperm.xlu0 %2902, %v2900
      %v2904 = vpop.permute.xlu0 %2903
      %2905 = vset.pattern.permute.xlu0 0
      %2906 = vperm.xlu0 %2905, %v2901
      %v2907 = vpop.permute.xlu0 %2906
      %v2908 = vlaneseq
      %v2909 = vshrl.u32 %v2908, 7
      %v2910 = vsub.s32 %v719, %v2909
      %v2911 = vrot.slane %v2904, %v2910
      %v2912 = vlaneseq
      %v2913 = vshrl.u32 %v2912, 7
      %v2914 = vsub.s32 %v724, %v2913
      %v2915 = vrot.slane %v2907, %v2914
      %v2916 = vsel %vm729, %v2915, %v2911
      %v2917 = vpack.c.b16 %v2916, %v2916
      %v2919 = vsel %vm809, %v2917, 0
      %2921 = vmatprep.subr.bf16.mxu0 0
      %2922 = vmatpush1.bf16.msra.mxu0 %v1342
      %2923 = vmatprep.subr.bf16.mxu0 0
      %2924 = vmatpush1.bf16.msra.mxu0 0
      %2925 = vmatprep.subr.bf16.mxu0 0
      %2926 = vmatpush1.bf16.msra.mxu0 0
      %2927 = vmatprep.subr.bf16.mxu0 0
      %2928 = vmatpush1.bf16.msra.mxu0 0
      %2929 = vmatprep.subr.bf16.mxu0 0
      %2930 = vmatpush1.bf16.msra.mxu0 0
      %2931 = vmatprep.subr.bf16.mxu0 0
      %2932 = vmatpush1.bf16.msra.mxu0 0
      %2933 = vmatprep.subr.bf16.mxu0 0
      %2934 = vmatpush1.bf16.msra.mxu0 0
      %2935 = vmatprep.subr.bf16.mxu0 0
      %2936 = vmatpush1.bf16.msra.mxu0 0
      %2937 = vmatprep.subr.bf16.mxu0 0
      %2938 = vmatpush1.bf16.msra.mxu0 0
      %2939 = vmatprep.subr.bf16.mxu0 0
      %2940 = vmatpush1.bf16.msra.mxu0 0
      %2941 = vmatprep.subr.bf16.mxu0 0
      %2942 = vmatpush1.bf16.msra.mxu0 0
      %2943 = vmatprep.subr.bf16.mxu0 0
      %2944 = vmatpush1.bf16.msra.mxu0 0
      %2945 = vmatprep.subr.bf16.mxu0 0
      %2946 = vmatpush1.bf16.msra.mxu0 0
      %2947 = vmatprep.subr.bf16.mxu0 0
      %2948 = vmatpush1.bf16.msra.mxu0 0
      %2949 = vmatprep.subr.bf16.mxu0 0
      %2950 = vmatpush1.bf16.msra.mxu0 0
      %2951 = vmatprep.subr.bf16.mxu0 0
      %2952 = vmatpush1.bf16.msra.mxu0 0
      %2953 = vmatprep.mubr.bf16.mxu0 0
      %2954 = vmatmul.mubr.bf16.gmra.mrb[0].mxu0 %v2919
      %v2955 = vpop.f32.mrb[0].mxu0
      %v2956 = vadd.f32 0.0, %v2955
      %v2957 = vpop.f32.mrb[0].mxu0
      %v2958 = vpop.f32.mrb[0].mxu0
      %v2959 = vpop.f32.mrb[0].mxu0
      %2960 = vdwg.mxu0
      %v2962 = vunpack.c.l.b16 %v2709
      %v2963 = vunpack.c.h.b16 %v2709
      %2964 = vset.pattern.permute.xlu0 0
      %2965 = vperm.xlu0 %2964, %v2962
      %v2966 = vpop.permute.xlu0 %2965
      %2967 = vset.pattern.permute.xlu0 0
      %2968 = vperm.xlu0 %2967, %v2963
      %v2969 = vpop.permute.xlu0 %2968
      %v2970 = vlaneseq
      %v2971 = vshrl.u32 %v2970, 7
      %v2972 = vsub.s32 %v719, %v2971
      %v2973 = vrot.slane %v2966, %v2972
      %v2974 = vlaneseq
      %v2975 = vshrl.u32 %v2974, 7
      %v2976 = vsub.s32 %v724, %v2975
      %v2977 = vrot.slane %v2969, %v2976
      %v2978 = vsel %vm729, %v2977, %v2973
      %v2979 = vpack.c.b16 %v2978, %v2978
      %v2981 = vsel %vm809, %v2979, 0
      %2983 = vmatprep.subr.bf16.mxu0 0
      %2984 = vmatpush1.bf16.msra.mxu0 %v1410
      %2985 = vmatprep.subr.bf16.mxu0 0
      %2986 = vmatpush1.bf16.msra.mxu0 0
      %2987 = vmatprep.subr.bf16.mxu0 0
      %2988 = vmatpush1.bf16.msra.mxu0 0
      %2989 = vmatprep.subr.bf16.mxu0 0
      %2990 = vmatpush1.bf16.msra.mxu0 0
      %2991 = vmatprep.subr.bf16.mxu0 0
      %2992 = vmatpush1.bf16.msra.mxu0 0
      %2993 = vmatprep.subr.bf16.mxu0 0
      %2994 = vmatpush1.bf16.msra.mxu0 0
      %2995 = vmatprep.subr.bf16.mxu0 0
      %2996 = vmatpush1.bf16.msra.mxu0 0
      %2997 = vmatprep.subr.bf16.mxu0 0
      %2998 = vmatpush1.bf16.msra.mxu0 0
      %2999 = vmatprep.subr.bf16.mxu0 0
      %3000 = vmatpush1.bf16.msra.mxu0 0
      %3001 = vmatprep.subr.bf16.mxu0 0
      %3002 = vmatpush1.bf16.msra.mxu0 0
      %3003 = vmatprep.subr.bf16.mxu0 0
      %3004 = vmatpush1.bf16.msra.mxu0 0
      %3005 = vmatprep.subr.bf16.mxu0 0
      %3006 = vmatpush1.bf16.msra.mxu0 0
      %3007 = vmatprep.subr.bf16.mxu0 0
      %3008 = vmatpush1.bf16.msra.mxu0 0
      %3009 = vmatprep.subr.bf16.mxu0 0
      %3010 = vmatpush1.bf16.msra.mxu0 0
      %3011 = vmatprep.subr.bf16.mxu0 0
      %3012 = vmatpush1.bf16.msra.mxu0 0
      %3013 = vmatprep.subr.bf16.mxu0 0
      %3014 = vmatpush1.bf16.msra.mxu0 0
      %3015 = vmatprep.mubr.bf16.mxu0 0
      %3016 = vmatmul.mubr.bf16.gmra.mrb[0].mxu0 %v2981
      %v3017 = vpop.f32.mrb[0].mxu0
      %v3018 = vadd.f32 0.0, %v3017
      %v3019 = vpop.f32.mrb[0].mxu0
      %v3020 = vpop.f32.mrb[0].mxu0
      %v3021 = vpop.f32.mrb[0].mxu0
      %3022 = vdwg.mxu0
      %v3024 = vunpack.c.l.b16 %v2710
      %v3025 = vunpack.c.h.b16 %v2710
      %3026 = vset.pattern.permute.xlu0 0
      %3027 = vperm.xlu0 %3026, %v3024
      %v3028 = vpop.permute.xlu0 %3027
      %3029 = vset.pattern.permute.xlu0 0
      %3030 = vperm.xlu0 %3029, %v3025
      %v3031 = vpop.permute.xlu0 %3030
      %v3032 = vlaneseq
      %v3033 = vshrl.u32 %v3032, 7
      %v3034 = vsub.s32 %v719, %v3033
      %v3035 = vrot.slane %v3028, %v3034
      %v3036 = vlaneseq
      %v3037 = vshrl.u32 %v3036, 7
      %v3038 = vsub.s32 %v724, %v3037
      %v3039 = vrot.slane %v3031, %v3038
      %v3040 = vsel %vm729, %v3039, %v3035
      %v3041 = vpack.c.b16 %v3040, %v3040
      %v3043 = vsel %vm809, %v3041, 0
      %3045 = vmatprep.subr.bf16.mxu0 0
      %3046 = vmatpush1.bf16.msra.mxu0 %v1478
      %3047 = vmatprep.subr.bf16.mxu0 0
      %3048 = vmatpush1.bf16.msra.mxu0 0
      %3049 = vmatprep.subr.bf16.mxu0 0
      %3050 = vmatpush1.bf16.msra.mxu0 0
      %3051 = vmatprep.subr.bf16.mxu0 0
      %3052 = vmatpush1.bf16.msra.mxu0 0
      %3053 = vmatprep.subr.bf16.mxu0 0
      %3054 = vmatpush1.bf16.msra.mxu0 0
      %3055 = vmatprep.subr.bf16.mxu0 0
      %3056 = vmatpush1.bf16.msra.mxu0 0
      %3057 = vmatprep.subr.bf16.mxu0 0
      %3058 = vmatpush1.bf16.msra.mxu0 0
      %3059 = vmatprep.subr.bf16.mxu0 0
      %3060 = vmatpush1.bf16.msra.mxu0 0
      %3061 = vmatprep.subr.bf16.mxu0 0
      %3062 = vmatpush1.bf16.msra.mxu0 0
      %3063 = vmatprep.subr.bf16.mxu0 0
      %3064 = vmatpush1.bf16.msra.mxu0 0
      %3065 = vmatprep.subr.bf16.mxu0 0
      %3066 = vmatpush1.bf16.msra.mxu0 0
      %3067 = vmatprep.subr.bf16.mxu0 0
      %3068 = vmatpush1.bf16.msra.mxu0 0
      %3069 = vmatprep.subr.bf16.mxu0 0
      %3070 = vmatpush1.bf16.msra.mxu0 0
      %3071 = vmatprep.subr.bf16.mxu0 0
      %3072 = vmatpush1.bf16.msra.mxu0 0
      %3073 = vmatprep.subr.bf16.mxu0 0
      %3074 = vmatpush1.bf16.msra.mxu0 0
      %3075 = vmatprep.subr.bf16.mxu0 0
      %3076 = vmatpush1.bf16.msra.mxu0 0
      %3077 = vmatprep.mubr.bf16.mxu0 0
      %3078 = vmatmul.mubr.bf16.gmra.mrb[0].mxu0 %v3043
      %v3079 = vpop.f32.mrb[0].mxu0
      %v3080 = vadd.f32 0.0, %v3079
      %v3081 = vpop.f32.mrb[0].mxu0
      %v3082 = vpop.f32.mrb[0].mxu0
      %v3083 = vpop.f32.mrb[0].mxu0
      %3084 = vdwg.mxu0
      %v3086 = vunpack.c.l.b16 %v2711
      %v3087 = vunpack.c.h.b16 %v2711
      %3088 = vset.pattern.permute.xlu0 0
      %3089 = vperm.xlu0 %3088, %v3086
      %v3090 = vpop.permute.xlu0 %3089
      %3091 = vset.pattern.permute.xlu0 0
      %3092 = vperm.xlu0 %3091, %v3087
      %v3093 = vpop.permute.xlu0 %3092
      %v3094 = vlaneseq
      %v3095 = vshrl.u32 %v3094, 7
      %v3096 = vsub.s32 %v719, %v3095
      %v3097 = vrot.slane %v3090, %v3096
      %v3098 = vlaneseq
      %v3099 = vshrl.u32 %v3098, 7
      %v3100 = vsub.s32 %v724, %v3099
      %v3101 = vrot.slane %v3093, %v3100
      %v3102 = vsel %vm729, %v3101, %v3097
      %v3103 = vpack.c.b16 %v3102, %v3102
      %v3105 = vsel %vm809, %v3103, 0
      %3107 = vmatprep.subr.bf16.mxu0 0
      %3108 = vmatpush1.bf16.msra.mxu0 %v1546
      %3109 = vmatprep.subr.bf16.mxu0 0
      %3110 = vmatpush1.bf16.msra.mxu0 0
      %3111 = vmatprep.subr.bf16.mxu0 0
      %3112 = vmatpush1.bf16.msra.mxu0 0
      %3113 = vmatprep.subr.bf16.mxu0 0
      %3114 = vmatpush1.bf16.msra.mxu0 0
      %3115 = vmatprep.subr.bf16.mxu0 0
      %3116 = vmatpush1.bf16.msra.mxu0 0
      %3117 = vmatprep.subr.bf16.mxu0 0
      %3118 = vmatpush1.bf16.msra.mxu0 0
      %3119 = vmatprep.subr.bf16.mxu0 0
      %3120 = vmatpush1.bf16.msra.mxu0 0
      %3121 = vmatprep.subr.bf16.mxu0 0
      %3122 = vmatpush1.bf16.msra.mxu0 0
      %3123 = vmatprep.subr.bf16.mxu0 0
      %3124 = vmatpush1.bf16.msra.mxu0 0
      %3125 = vmatprep.subr.bf16.mxu0 0
      %3126 = vmatpush1.bf16.msra.mxu0 0
      %3127 = vmatprep.subr.bf16.mxu0 0
      %3128 = vmatpush1.bf16.msra.mxu0 0
      %3129 = vmatprep.subr.bf16.mxu0 0
      %3130 = vmatpush1.bf16.msra.mxu0 0
      %3131 = vmatprep.subr.bf16.mxu0 0
      %3132 = vmatpush1.bf16.msra.mxu0 0
      %3133 = vmatprep.subr.bf16.mxu0 0
      %3134 = vmatpush1.bf16.msra.mxu0 0
      %3135 = vmatprep.subr.bf16.mxu0 0
      %3136 = vmatpush1.bf16.msra.mxu0 0
      %3137 = vmatprep.subr.bf16.mxu0 0
      %3138 = vmatpush1.bf16.msra.mxu0 0
      %3139 = vmatprep.mubr.bf16.mxu0 0
      %3140 = vmatmul.mubr.bf16.gmra.mrb[0].mxu0 %v3105
      %v3141 = vpop.f32.mrb[0].mxu0
      %v3142 = vadd.f32 0.0, %v3141
      %v3143 = vpop.f32.mrb[0].mxu0
      %v3144 = vpop.f32.mrb[0].mxu0
      %v3145 = vpop.f32.mrb[0].mxu0
      %3146 = vdwg.mxu0
      %v3148 = vunpack.c.l.b16 %v2712
      %v3149 = vunpack.c.h.b16 %v2712
      %3150 = vset.pattern.permute.xlu0 0
      %3151 = vperm.xlu0 %3150, %v3148
      %v3152 = vpop.permute.xlu0 %3151
      %3153 = vset.pattern.permute.xlu0 0
      %3154 = vperm.xlu0 %3153, %v3149
      %v3155 = vpop.permute.xlu0 %3154
      %v3156 = vlaneseq
      %v3157 = vshrl.u32 %v3156, 7
      %v3158 = vsub.s32 %v719, %v3157
      %v3159 = vrot.slane %v3152, %v3158
      %v3160 = vlaneseq
      %v3161 = vshrl.u32 %v3160, 7
      %v3162 = vsub.s32 %v724, %v3161
      %v3163 = vrot.slane %v3155, %v3162
      %v3164 = vsel %vm729, %v3163, %v3159
      %v3165 = vpack.c.b16 %v3164, %v3164
      %v3167 = vsel %vm809, %v3165, 0
      %3169 = vmatprep.subr.bf16.mxu0 0
      %3170 = vmatpush1.bf16.msra.mxu0 %v1614
      %3171 = vmatprep.subr.bf16.mxu0 0
      %3172 = vmatpush1.bf16.msra.mxu0 0
      %3173 = vmatprep.subr.bf16.mxu0 0
      %3174 = vmatpush1.bf16.msra.mxu0 0
      %3175 = vmatprep.subr.bf16.mxu0 0
      %3176 = vmatpush1.bf16.msra.mxu0 0
      %3177 = vmatprep.subr.bf16.mxu0 0
      %3178 = vmatpush1.bf16.msra.mxu0 0
      %3179 = vmatprep.subr.bf16.mxu0 0
      %3180 = vmatpush1.bf16.msra.mxu0 0
      %3181 = vmatprep.subr.bf16.mxu0 0
      %3182 = vmatpush1.bf16.msra.mxu0 0
      %3183 = vmatprep.subr.bf16.mxu0 0
      %3184 = vmatpush1.bf16.msra.mxu0 0
      %3185 = vmatprep.subr.bf16.mxu0 0
      %3186 = vmatpush1.bf16.msra.mxu0 0
      %3187 = vmatprep.subr.bf16.mxu0 0
      %3188 = vmatpush1.bf16.msra.mxu0 0
      %3189 = vmatprep.subr.bf16.mxu0 0
      %3190 = vmatpush1.bf16.msra.mxu0 0
      %3191 = vmatprep.subr.bf16.mxu0 0
      %3192 = vmatpush1.bf16.msra.mxu0 0
      %3193 = vmatprep.subr.bf16.mxu0 0
      %3194 = vmatpush1.bf16.msra.mxu0 0
      %3195 = vmatprep.subr.bf16.mxu0 0
      %3196 = vmatpush1.bf16.msra.mxu0 0
      %3197 = vmatprep.subr.bf16.mxu0 0
      %3198 = vmatpush1.bf16.msra.mxu0 0
      %3199 = vmatprep.subr.bf16.mxu0 0
      %3200 = vmatpush1.bf16.msra.mxu0 0
      %3201 = vmatprep.mubr.bf16.mxu0 0
      %3202 = vmatmul.mubr.bf16.gmra.mrb[0].mxu0 %v3167
      %v3203 = vpop.f32.mrb[0].mxu0
      %v3204 = vadd.f32 0.0, %v3203
      %v3205 = vpop.f32.mrb[0].mxu0
      %v3206 = vpop.f32.mrb[0].mxu0
      %v3207 = vpop.f32.mrb[0].mxu0
      %3208 = vdwg.mxu0
      %s3209 = smul.u32 %s2062, 8
      %s3210 = scalar_lea.vmem %s0, %s3209
      %v3211 = vld [vmem:[%s3210] sm:$0xff]
      %v3212 = vpack.c.bf16 %v2770, %v2770
      %v3213 = vpack.c.bf16 %v2832, %v2832
      %v3214 = vpack.c.bf16 %v2894, %v2894
      %v3215 = vpack.c.bf16 %v2956, %v2956
      %v3216 = vpack.c.bf16 %v3018, %v3018
      %v3217 = vpack.c.bf16 %v3080, %v3080
      %v3218 = vpack.c.bf16 %v3142, %v3142
      %v3219 = vpack.c.bf16 %v3204, %v3204
      %v3220 = vld [vmem:[%s6] sm:$0xf]
      %v3221 = vld [vmem:[%s6 + $0x4] sm:$0xf]
      %v3222 = vld [vmem:[%s6 + $0x8] sm:$0xf]
      %v3223 = vld [vmem:[%s6 + $0xc] sm:$0xf]
      %v3232 = vunpack.c.l.b16 %v3212
      %v3233 = vunpack.c.l.b16 %v3213
      %v3234 = vunpack.c.l.b16 %v3214
      %v3235 = vunpack.c.l.b16 %v3215
      %v3236 = vunpack.c.l.b16 %v3216
      %v3237 = vunpack.c.l.b16 %v3217
      %v3238 = vunpack.c.l.b16 %v3218
      %v3239 = vunpack.c.l.b16 %v3219
      %v3240 = vrot.slane %v3233, 7
      %v3241 = vsel %vm794, %v3240, %v3232
      %v3242 = vrot.slane %v3234, 6
      %v3243 = vsel %vm796, %v3242, %v3241
      %v3244 = vrot.slane %v3235, 5
      %v3245 = vsel %vm798, %v3244, %v3243
      %v3246 = vrot.slane %v3236, 4
      %v3247 = vsel %vm800, %v3246, %v3245
      %v3248 = vrot.slane %v3237, 3
      %v3249 = vsel %vm802, %v3248, %v3247
      %v3250 = vrot.slane %v3238, 2
      %v3251 = vsel %vm804, %v3250, %v3249
      %v3252 = vrot.slane %v3239, 1
      %v3253 = vsel %vm806, %v3252, %v3251
      %v3254 = vpack.c.b16 %v3253, %v3253
      %v3259 = vunpack.c.l.b16 %v3220
      %v3260 = vunpack.c.l.b16 %v3221
      %v3261 = vunpack.c.l.b16 %v3222
      %v3262 = vunpack.c.l.b16 %v3223
      %v3263 = vpack.c.b16 %v3260, %v3259
      %v3264 = vpack.c.b16 %v3262, %v3261
      %v3268 = vsel %vm466, %v3254, 0
      %3270 = vmatprep.subr.bf16.mxu0 0
      %3271 = vmatpush1.bf16.msra.mxu0 %v3263
      %3272 = vmatprep.subr.bf16.mxu0 0
      %3273 = vmatpush1.bf16.msra.mxu0 %v3264
      %3274 = vmatprep.subr.bf16.mxu0 0
      %3275 = vmatpush1.bf16.msra.mxu0 0
      %3276 = vmatprep.subr.bf16.mxu0 0
      %3277 = vmatpush1.bf16.msra.mxu0 0
      %3278 = vmatprep.subr.bf16.mxu0 0
      %3279 = vmatpush1.bf16.msra.mxu0 0
      %3280 = vmatprep.subr.bf16.mxu0 0
      %3281 = vmatpush1.bf16.msra.mxu0 0
      %3282 = vmatprep.subr.bf16.mxu0 0
      %3283 = vmatpush1.bf16.msra.mxu0 0
      %3284 = vmatprep.subr.bf16.mxu0 0
      %3285 = vmatpush1.bf16.msra.mxu0 0
      %3286 = vmatprep.subr.bf16.mxu0 0
      %3287 = vmatpush1.bf16.msra.mxu0 0
      %3288 = vmatprep.subr.bf16.mxu0 0
      %3289 = vmatpush1.bf16.msra.mxu0 0
      %3290 = vmatprep.subr.bf16.mxu0 0
      %3291 = vmatpush1.bf16.msra.mxu0 0
      %3292 = vmatprep.subr.bf16.mxu0 0
      %3293 = vmatpush1.bf16.msra.mxu0 0
      %3294 = vmatprep.subr.bf16.mxu0 0
      %3295 = vmatpush1.bf16.msra.mxu0 0
      %3296 = vmatprep.subr.bf16.mxu0 0
      %3297 = vmatpush1.bf16.msra.mxu0 0
      %3298 = vmatprep.subr.bf16.mxu0 0
      %3299 = vmatpush1.bf16.msra.mxu0 0
      %3300 = vmatprep.subr.bf16.mxu0 0
      %3301 = vmatpush1.bf16.msra.mxu0 0
      %3302 = vmatprep.mubr.bf16.mxu0 0
      %3303 = vmatmul.mubr.bf16.gmra.mrb[0].mxu0 %v3268
      %v3304 = vpop.f32.mrb[0].mxu0
      %v3305 = vadd.f32 0.0, %v3304
      %v3306 = vpop.f32.mrb[0].mxu0
      %v3307 = vpop.f32.mrb[0].mxu0
      %v3308 = vpop.f32.mrb[0].mxu0
      %3309 = vdwg.mxu0
      %v3310 = vadd.f32 %v3211, %v3305
      %v3311 = vld [vmem:[%s7] sm:$0xf]
      %v3312 = vld [vmem:[%s7 + $0x4] sm:$0xf]
      %v3313 = vld [vmem:[%s7 + $0x8] sm:$0xf]
      %v3314 = vld [vmem:[%s7 + $0xc] sm:$0xf]
      %v3319 = vunpack.c.l.b16 %v3311
      %v3320 = vunpack.c.l.b16 %v3312
      %v3321 = vunpack.c.l.b16 %v3313
      %v3322 = vunpack.c.l.b16 %v3314
      %v3323 = vpack.c.b16 %v3320, %v3319
      %v3324 = vpack.c.b16 %v3322, %v3321
      %3327 = vmatprep.subr.bf16.mxu0 0
      %3328 = vmatpush1.bf16.msra.mxu0 %v3323
      %3329 = vmatprep.subr.bf16.mxu0 0
      %3330 = vmatpush1.bf16.msra.mxu0 %v3324
      %3331 = vmatprep.subr.bf16.mxu0 0
      %3332 = vmatpush1.bf16.msra.mxu0 0
      %3333 = vmatprep.subr.bf16.mxu0 0
      %3334 = vmatpush1.bf16.msra.mxu0 0
      %3335 = vmatprep.subr.bf16.mxu0 0
      %3336 = vmatpush1.bf16.msra.mxu0 0
      %3337 = vmatprep.subr.bf16.mxu0 0
      %3338 = vmatpush1.bf16.msra.mxu0 0
      %3339 = vmatprep.subr.bf16.mxu0 0
      %3340 = vmatpush1.bf16.msra.mxu0 0
      %3341 = vmatprep.subr.bf16.mxu0 0
      %3342 = vmatpush1.bf16.msra.mxu0 0
      %3343 = vmatprep.subr.bf16.mxu0 0
      %3344 = vmatpush1.bf16.msra.mxu0 0
      %3345 = vmatprep.subr.bf16.mxu0 0
      %3346 = vmatpush1.bf16.msra.mxu0 0
      %3347 = vmatprep.subr.bf16.mxu0 0
      %3348 = vmatpush1.bf16.msra.mxu0 0
      %3349 = vmatprep.subr.bf16.mxu0 0
      %3350 = vmatpush1.bf16.msra.mxu0 0
      %3351 = vmatprep.subr.bf16.mxu0 0
      %3352 = vmatpush1.bf16.msra.mxu0 0
      %3353 = vmatprep.subr.bf16.mxu0 0
      %3354 = vmatpush1.bf16.msra.mxu0 0
      %3355 = vmatprep.subr.bf16.mxu0 0
      %3356 = vmatpush1.bf16.msra.mxu0 0
      %3357 = vmatprep.subr.bf16.mxu0 0
      %3358 = vmatpush1.bf16.msra.mxu0 0
      %3359 = vmatprep.mubr.bf16.mxu0 0
      %3360 = vmatmul.mubr.bf16.gmra.mrb[0].mxu0 %v1874
      %v3361 = vpop.f32.mrb[0].mxu0
      %v3362 = vadd.f32 0.0, %v3361
      %v3363 = vpop.f32.mrb[0].mxu0
      %v3364 = vpop.f32.mrb[0].mxu0
      %v3365 = vpop.f32.mrb[0].mxu0
      %3366 = vdwg.mxu0
      %v3367 = vadd.f32 %v3310, %v3362
      %v3368 = vxor.u32 %v3367, 2147483648
      %v3369 = vmul.f32 %v3368, 1.442695
      %v3370 = vpow.pop %v3369
      %v3371 = vadd.f32 %v3370, 1.0
      %v3372 = vrcp.pop %v3371
      %v3373 = vmul.f32 1.0, %v3372
      %v3374 = vtanh.pop %v3367
      %v3375 = vmul.f32 %v3373, %v1839
      %3377 = vrot.lane.b32.xlu0 %v3374, 64
      %v3378 = vpop.permute.xlu0 %3377
      %v3380 = vmul.f32 %v3373, %v3378
      %3382 = vrot.lane.b32.xlu0 %v3380, 32
      %v3383 = vpop.permute.xlu0 %3382
      %v3385 = vadd.f32 %v3375, %v3383
      %v3386 = vtanh.pop %v3385
      %3388 = vrot.lane.b32.xlu0 %v3386, 64
      %v3389 = vpop.permute.xlu0 %3388
      %v3391 = vmul.f32 %v3373, %v3389
      %v3392 = vpack.c.bf16 %v3391, %v3391
      %v3393 = vld [vmem:[%s8] sm:$0xf]
      %v3394 = vld [vmem:[%s8 + $0x4] sm:$0xf]
      %v3395 = vld [vmem:[%s8 + $0x8] sm:$0xf]
      %v3396 = vld [vmem:[%s8 + $0xc] sm:$0xf]
      %v3397 = vld [vmem:[%s9] sm:$0x1]
      %v3399 = vlaneseq
      %v3400 = vshrl.u32 %v3399, 7
      %v3401 = vsub.s32 0, %v3400
      %v3402 = vrot.slane %v3397, %v3401
      %3405 = vrot.lane.b32.xlu0 %v3392, 32
      %v3406 = vpop.permute.xlu0 %3405
      %v3411 = vunpack.c.l.b16 %v3393
      %v3412 = vunpack.c.l.b16 %v3394
      %v3413 = vunpack.c.l.b16 %v3395
      %v3414 = vunpack.c.l.b16 %v3396
      %v3415 = vpack.c.b16 %v3412, %v3411
      %v3416 = vpack.c.b16 %v3414, %v3413
      %v3420 = vsel %vm466, %v3406, 0
      %3422 = vmatprep.subr.bf16.mxu0 0
      %3423 = vmatpush1.bf16.msra.mxu0 %v3415
      %3424 = vmatprep.subr.bf16.mxu0 0
      %3425 = vmatpush1.bf16.msra.mxu0 %v3416
      %3426 = vmatprep.subr.bf16.mxu0 0
      %3427 = vmatpush1.bf16.msra.mxu0 0
      %3428 = vmatprep.subr.bf16.mxu0 0
      %3429 = vmatpush1.bf16.msra.mxu0 0
      %3430 = vmatprep.subr.bf16.mxu0 0
      %3431 = vmatpush1.bf16.msra.mxu0 0
      %3432 = vmatprep.subr.bf16.mxu0 0
      %3433 = vmatpush1.bf16.msra.mxu0 0
      %3434 = vmatprep.subr.bf16.mxu0 0
      %3435 = vmatpush1.bf16.msra.mxu0 0
      %3436 = vmatprep.subr.bf16.mxu0 0
      %3437 = vmatpush1.bf16.msra.mxu0 0
      %3438 = vmatprep.subr.bf16.mxu0 0
      %3439 = vmatpush1.bf16.msra.mxu0 0
      %3440 = vmatprep.subr.bf16.mxu0 0
      %3441 = vmatpush1.bf16.msra.mxu0 0
      %3442 = vmatprep.subr.bf16.mxu0 0
      %3443 = vmatpush1.bf16.msra.mxu0 0
      %3444 = vmatprep.subr.bf16.mxu0 0
      %3445 = vmatpush1.bf16.msra.mxu0 0
      %3446 = vmatprep.subr.bf16.mxu0 0
      %3447 = vmatpush1.bf16.msra.mxu0 0
      %3448 = vmatprep.subr.bf16.mxu0 0
      %3449 = vmatpush1.bf16.msra.mxu0 0
      %3450 = vmatprep.subr.bf16.mxu0 0
      %3451 = vmatpush1.bf16.msra.mxu0 0
      %3452 = vmatprep.subr.bf16.mxu0 0
      %3453 = vmatpush1.bf16.msra.mxu0 0
      %3454 = vmatprep.mubr.bf16.mxu0 0
      %3455 = vmatmul.mubr.bf16.gmra.mrb[0].mxu0 %v3420
      %v3456 = vpop.f32.mrb[0].mxu0
      %v3457 = vadd.f32 %v3402, %v3456
      %v3458 = vpop.f32.mrb[0].mxu0
      %v3459 = vpop.f32.mrb[0].mxu0
      %v3460 = vpop.f32.mrb[0].mxu0
      %3461 = vdwg.mxu0
      %3462 = vst [vmem:[%s374 + $0x8] sm:$0xff] %v3457
      %3479 = vset.pattern.permute.xlu0 0
      %3480 = vperm.xlu0 %3479, %v2689
      %v3481 = vpop.permute.xlu0 %3480
      %3482 = vset.pattern.permute.xlu0 0
      %3483 = vperm.xlu0 %3482, %v2690
      %v3484 = vpop.permute.xlu0 %3483
      %3485 = vset.pattern.permute.xlu0 0
      %3486 = vperm.xlu0 %3485, %v2691
      %v3487 = vpop.permute.xlu0 %3486
      %3488 = vset.pattern.permute.xlu0 0
      %3489 = vperm.xlu0 %3488, %v2692
      %v3490 = vpop.permute.xlu0 %3489
      %3491 = vset.pattern.permute.xlu0 0
      %3492 = vperm.xlu0 %3491, %v2693
      %v3493 = vpop.permute.xlu0 %3492
      %3494 = vset.pattern.permute.xlu0 0
      %3495 = vperm.xlu0 %3494, %v2694
      %v3496 = vpop.permute.xlu0 %3495
      %3497 = vset.pattern.permute.xlu0 0
      %3498 = vperm.xlu0 %3497, %v2695
      %v3499 = vpop.permute.xlu0 %3498
      %3500 = vset.pattern.permute.xlu0 0
      %3501 = vperm.xlu0 %3500, %v2696
      %v3502 = vpop.permute.xlu0 %3501
      %3503 = vset.pattern.permute.xlu0 0
      %3504 = vperm.xlu0 %3503, %v2697
      %v3505 = vpop.permute.xlu0 %3504
      %3506 = vset.pattern.permute.xlu0 0
      %3507 = vperm.xlu0 %3506, %v2698
      %v3508 = vpop.permute.xlu0 %3507
      %3509 = vset.pattern.permute.xlu0 0
      %3510 = vperm.xlu0 %3509, %v2699
      %v3511 = vpop.permute.xlu0 %3510
      %3512 = vset.pattern.permute.xlu0 0
      %3513 = vperm.xlu0 %3512, %v2700
      %v3514 = vpop.permute.xlu0 %3513
      %3515 = vset.pattern.permute.xlu0 0
      %3516 = vperm.xlu0 %3515, %v2701
      %v3517 = vpop.permute.xlu0 %3516
      %3518 = vset.pattern.permute.xlu0 0
      %3519 = vperm.xlu0 %3518, %v2702
      %v3520 = vpop.permute.xlu0 %3519
      %3521 = vset.pattern.permute.xlu0 0
      %3522 = vperm.xlu0 %3521, %v2703
      %v3523 = vpop.permute.xlu0 %3522
      %3524 = vset.pattern.permute.xlu0 0
      %3525 = vperm.xlu0 %3524, %v2704
      %v3526 = vpop.permute.xlu0 %3525
      %v3527 = vlaneseq
      %v3528 = vshrl.u32 %v3527, 7
      %v3529 = vsub.s32 %v719, %v3528
      %v3530 = vrot.slane %v3481, %v3529
      %v3531 = vlaneseq
      %v3532 = vshrl.u32 %v3531, 7
      %v3533 = vsub.s32 %v724, %v3532
      %v3534 = vrot.slane %v3484, %v3533
      %v3535 = vsel %vm729, %v3534, %v3530
      %v3536 = vlaneseq
      %v3537 = vshrl.u32 %v3536, 7
      %v3538 = vsub.s32 %v719, %v3537
      %v3539 = vrot.slane %v3487, %v3538
      %v3540 = vlaneseq
      %v3541 = vshrl.u32 %v3540, 7
      %v3542 = vsub.s32 %v724, %v3541
      %v3543 = vrot.slane %v3490, %v3542
      %v3544 = vsel %vm729, %v3543, %v3539
      %v3545 = vlaneseq
      %v3546 = vshrl.u32 %v3545, 7
      %v3547 = vsub.s32 %v719, %v3546
      %v3548 = vrot.slane %v3493, %v3547
      %v3549 = vlaneseq
      %v3550 = vshrl.u32 %v3549, 7
      %v3551 = vsub.s32 %v724, %v3550
      %v3552 = vrot.slane %v3496, %v3551
      %v3553 = vsel %vm729, %v3552, %v3548
      %v3554 = vlaneseq
      %v3555 = vshrl.u32 %v3554, 7
      %v3556 = vsub.s32 %v719, %v3555
      %v3557 = vrot.slane %v3499, %v3556
      %v3558 = vlaneseq
      %v3559 = vshrl.u32 %v3558, 7
      %v3560 = vsub.s32 %v724, %v3559
      %v3561 = vrot.slane %v3502, %v3560
      %v3562 = vsel %vm729, %v3561, %v3557
      %v3563 = vlaneseq
      %v3564 = vshrl.u32 %v3563, 7
      %v3565 = vsub.s32 %v719, %v3564
      %v3566 = vrot.slane %v3505, %v3565
      %v3567 = vlaneseq
      %v3568 = vshrl.u32 %v3567, 7
      %v3569 = vsub.s32 %v724, %v3568
      %v3570 = vrot.slane %v3508, %v3569
      %v3571 = vsel %vm729, %v3570, %v3566
      %v3572 = vlaneseq
      %v3573 = vshrl.u32 %v3572, 7
      %v3574 = vsub.s32 %v719, %v3573
      %v3575 = vrot.slane %v3511, %v3574
      %v3576 = vlaneseq
      %v3577 = vshrl.u32 %v3576, 7
      %v3578 = vsub.s32 %v724, %v3577
      %v3579 = vrot.slane %v3514, %v3578
      %v3580 = vsel %vm729, %v3579, %v3575
      %v3581 = vlaneseq
      %v3582 = vshrl.u32 %v3581, 7
      %v3583 = vsub.s32 %v719, %v3582
      %v3584 = vrot.slane %v3517, %v3583
      %v3585 = vlaneseq
      %v3586 = vshrl.u32 %v3585, 7
      %v3587 = vsub.s32 %v724, %v3586
      %v3588 = vrot.slane %v3520, %v3587
      %v3589 = vsel %vm729, %v3588, %v3584
      %v3590 = vlaneseq
      %v3591 = vshrl.u32 %v3590, 7
      %v3592 = vsub.s32 %v719, %v3591
      %v3593 = vrot.slane %v3523, %v3592
      %v3594 = vlaneseq
      %v3595 = vshrl.u32 %v3594, 7
      %v3596 = vsub.s32 %v724, %v3595
      %v3597 = vrot.slane %v3526, %v3596
      %v3598 = vsel %vm729, %v3597, %v3593
      %v3599 = vsel %vm794, %v3544, %v3535
      %v3600 = vsel %vm796, %v3553, %v3599
      %v3601 = vsel %vm798, %v3562, %v3600
      %v3602 = vsel %vm800, %v3571, %v3601
      %v3603 = vsel %vm802, %v3580, %v3602
      %v3604 = vsel %vm804, %v3589, %v3603
      %v3605 = vsel %vm806, %v3598, %v3604
      %3607 = vst.msk [vmem:[%s380 + $0x8] sm:$0xff] %vm809, %v3605
      %s3608 = sadd.s32 %s441, 2
      %v3609 = vld [vmem:[%s3] sm:$0xf]
      %v3610 = vld [vmem:[%s3 + $0x4] sm:$0xf]
      %v3611 = vld [vmem:[%s3 + $0x8] sm:$0xf]
      %v3612 = vld [vmem:[%s3 + $0xc] sm:$0xf]
      %v3613 = vld [vmem:[%s4] sm:$0x1]
      %v3615 = vlaneseq
      %v3616 = vshrl.u32 %v3615, 7
      %v3617 = vsub.s32 0, %v3616
      %v3618 = vrot.slane %v3613, %v3617
      %v3624 = vunpack.c.l.b16 %v3609
      %v3625 = vunpack.c.l.b16 %v3610
      %v3626 = vunpack.c.l.b16 %v3611
      %v3627 = vunpack.c.l.b16 %v3612
      %v3628 = vpack.c.b16 %v3625, %v3624
      %v3629 = vpack.c.b16 %v3627, %v3626
      %3632 = vmatprep.subr.bf16.mxu0 0
      %3633 = vmatpush1.bf16.msra.mxu0 %v3628
      %3634 = vmatprep.subr.bf16.mxu0 0
      %3635 = vmatpush1.bf16.msra.mxu0 %v3629
      %3636 = vmatprep.subr.bf16.mxu0 0
      %3637 = vmatpush1.bf16.msra.mxu0 0
      %3638 = vmatprep.subr.bf16.mxu0 0
      %3639 = vmatpush1.bf16.msra.mxu0 0
      %3640 = vmatprep.subr.bf16.mxu0 0
      %3641 = vmatpush1.bf16.msra.mxu0 0
      %3642 = vmatprep.subr.bf16.mxu0 0
      %3643 = vmatpush1.bf16.msra.mxu0 0
      %3644 = vmatprep.subr.bf16.mxu0 0
      %3645 = vmatpush1.bf16.msra.mxu0 0
      %3646 = vmatprep.subr.bf16.mxu0 0
      %3647 = vmatpush1.bf16.msra.mxu0 0
      %3648 = vmatprep.subr.bf16.mxu0 0
      %3649 = vmatpush1.bf16.msra.mxu0 0
      %3650 = vmatprep.subr.bf16.mxu0 0
      %3651 = vmatpush1.bf16.msra.mxu0 0
      %3652 = vmatprep.subr.bf16.mxu0 0
      %3653 = vmatpush1.bf16.msra.mxu0 0
      %3654 = vmatprep.subr.bf16.mxu0 0
      %3655 = vmatpush1.bf16.msra.mxu0 0
      %3656 = vmatprep.subr.bf16.mxu0 0
      %3657 = vmatpush1.bf16.msra.mxu0 0
      %3658 = vmatprep.subr.bf16.mxu0 0
      %3659 = vmatpush1.bf16.msra.mxu0 0
      %3660 = vmatprep.subr.bf16.mxu0 0
      %3661 = vmatpush1.bf16.msra.mxu0 0
      %3662 = vmatprep.subr.bf16.mxu0 0
      %3663 = vmatpush1.bf16.msra.mxu0 0
      %3664 = vmatprep.mubr.bf16.mxu0 0
      %3665 = vmatmul.mubr.bf16.gmra.mrb[0].mxu0 %v3420
      %v3666 = vpop.f32.mrb[0].mxu0
      %v3667 = vadd.f32 %v3618, %v3666
      %v3668 = vpop.f32.mrb[0].mxu0
      %v3669 = vpop.f32.mrb[0].mxu0
      %v3670 = vpop.f32.mrb[0].mxu0
      %3671 = vdwg.mxu0
      %v3673 = vcombine.high %v3667, %v3667
      %v3675 = vunpack.c.l.s4 1966171168
      %v3676 = vunpack.c.0.s8 %v3675
      %v3677 = vlaneseq
      %v3678 = vshrl.u32 %v3677, 7
      %v3679 = vsub.s32 %v3676, %v3678
      %v3680 = vrot.slane %v3667, %v3679
      %v3682 = vunpack.c.l.s4 1966171168
      %v3683 = vunpack.c.0.s8 %v3682
      %v3684 = vlaneseq
      %v3685 = vshrl.u32 %v3684, 7
      %v3686 = vsub.s32 %v3683, %v3685
      %v3687 = vrot.slane %v3673, %v3686
      %v3688 = vcombine.high %v3680, %v3680
      %v3689 = vcombine.high %v3687, %v3687
      %v3691 = vunpack.c.l.s4 1966171168
      %v3692 = vunpack.c.0.s8 %v3691
      %v3693 = vlaneseq
      %v3694 = vshrl.u32 %v3693, 7
      %v3695 = vsub.s32 %v3692, %v3694
      %v3696 = vrot.slane %v3680, %v3695
      %v3698 = vunpack.c.l.s4 1966171168
      %v3699 = vunpack.c.0.s8 %v3698
      %v3700 = vlaneseq
      %v3701 = vshrl.u32 %v3700, 7
      %v3702 = vsub.s32 %v3699, %v3701
      %v3703 = vrot.slane %v3687, %v3702
      %v3705 = vunpack.c.l.s4 1966171168
      %v3706 = vunpack.c.0.s8 %v3705
      %v3707 = vlaneseq
      %v3708 = vshrl.u32 %v3707, 7
      %v3709 = vsub.s32 %v3706, %v3708
      %v3710 = vrot.slane %v3688, %v3709
      %v3712 = vunpack.c.l.s4 1966171168
      %v3713 = vunpack.c.0.s8 %v3712
      %v3714 = vlaneseq
      %v3715 = vshrl.u32 %v3714, 7
      %v3716 = vsub.s32 %v3713, %v3715
      %v3717 = vrot.slane %v3689, %v3716
      %v3718 = vcombine.high %v3696, %v3696
      %v3719 = vcombine.high %v3703, %v3703
      %v3720 = vcombine.high %v3710, %v3710
      %v3721 = vcombine.high %v3717, %v3717
      %v3722 = vlaneseq
      %v3723 = vshrl.u32 %v3722, 7
      %v3724 = vsub.s32 0, %v3723
      %v3725 = vrot.slane %v3696, %v3724
      %v3726 = vlaneseq
      %v3727 = vshrl.u32 %v3726, 7
      %v3728 = vsub.s32 0, %v3727
      %v3729 = vrot.slane %v3710, %v3728
      %v3730 = vlaneseq
      %v3731 = vshrl.u32 %v3730, 7
      %v3732 = vsub.s32 0, %v3731
      %v3733 = vrot.slane %v3718, %v3732
      %v3734 = vlaneseq
      %v3735 = vshrl.u32 %v3734, 7
      %v3736 = vsub.s32 0, %v3735
      %v3737 = vrot.slane %v3720, %v3736
      %v3738 = vlaneseq
      %v3739 = vshrl.u32 %v3738, 7
      %v3740 = vsub.s32 0, %v3739
      %v3741 = vrot.slane %v3703, %v3740
      %v3742 = vlaneseq
      %v3743 = vshrl.u32 %v3742, 7
      %v3744 = vsub.s32 0, %v3743
      %v3745 = vrot.slane %v3717, %v3744
      %v3746 = vlaneseq
      %v3747 = vshrl.u32 %v3746, 7
      %v3748 = vsub.s32 0, %v3747
      %v3749 = vrot.slane %v3719, %v3748
      %v3750 = vlaneseq
      %v3751 = vshrl.u32 %v3750, 7
      %v3752 = vsub.s32 0, %v3751
      %v3753 = vrot.slane %v3721, %v3752
      %v3762 = vadd.f32 %v408, %v3725
      %v3763 = vadd.f32 %v409, %v3725
      %v3764 = vadd.f32 %v410, %v3729
      %v3765 = vadd.f32 %v411, %v3729
      %v3766 = vadd.f32 %v412, %v3733
      %v3767 = vadd.f32 %v413, %v3733
      %v3768 = vadd.f32 %v414, %v3737
      %v3769 = vadd.f32 %v415, %v3737
      %v3770 = vadd.f32 %v416, %v3741
      %v3771 = vadd.f32 %v417, %v3741
      %v3772 = vadd.f32 %v418, %v3745
      %v3773 = vadd.f32 %v419, %v3745
      %v3774 = vadd.f32 %v420, %v3749
      %v3775 = vadd.f32 %v421, %v3749
      %v3776 = vadd.f32 %v422, %v3753
      %v3777 = vadd.f32 %v423, %v3753
      %v3778 = vtanh.pop %v3762
      %v3779 = vtanh.pop %v3763
      %v3780 = vtanh.pop %v3764
      %v3781 = vtanh.pop %v3765
      %v3782 = vtanh.pop %v3766
      %v3783 = vtanh.pop %v3767
      %v3784 = vtanh.pop %v3768
      %v3785 = vtanh.pop %v3769
      %v3786 = vtanh.pop %v3770
      %v3787 = vtanh.pop %v3771
      %v3788 = vtanh.pop %v3772
      %v3789 = vtanh.pop %v3773
      %v3790 = vtanh.pop %v3774
      %v3791 = vtanh.pop %v3775
      %v3792 = vtanh.pop %v3776
      %v3793 = vtanh.pop %v3777
      %v3794 = vmul.f32 %v3778, %v636
      %v3795 = vmul.f32 %v3779, %v636
      %v3796 = vmul.f32 %v3780, %v636
      %v3797 = vmul.f32 %v3781, %v636
      %v3798 = vmul.f32 %v3782, %v636
      %v3799 = vmul.f32 %v3783, %v636
      %v3800 = vmul.f32 %v3784, %v636
      %v3801 = vmul.f32 %v3785, %v636
      %v3802 = vmul.f32 %v3786, %v636
      %v3803 = vmul.f32 %v3787, %v636
      %v3804 = vmul.f32 %v3788, %v636
      %v3805 = vmul.f32 %v3789, %v636
      %v3806 = vmul.f32 %v3790, %v636
      %v3807 = vmul.f32 %v3791, %v636
      %v3808 = vmul.f32 %v3792, %v636
      %v3809 = vmul.f32 %v3793, %v636
      %v3810 = vsel %vm466, %v3794, 0.0
      %3811 = vadd.xlane.f32.xlu0 %v3810
      %v3812 = vpop.xlane.xlu0 %3811
      %v3813 = vsel %vm466, %v3795, 0.0
      %3814 = vadd.xlane.f32.xlu0 %v3813
      %v3815 = vpop.xlane.xlu0 %3814
      %v3816 = vsel %vm466, %v3796, 0.0
      %3817 = vadd.xlane.f32.xlu0 %v3816
      %v3818 = vpop.xlane.xlu0 %3817
      %v3819 = vsel %vm466, %v3797, 0.0
      %3820 = vadd.xlane.f32.xlu0 %v3819
      %v3821 = vpop.xlane.xlu0 %3820
      %v3822 = vsel %vm466, %v3798, 0.0
      %3823 = vadd.xlane.f32.xlu0 %v3822
      %v3824 = vpop.xlane.xlu0 %3823
      %v3825 = vsel %vm466, %v3799, 0.0
      %3826 = vadd.xlane.f32.xlu0 %v3825
      %v3827 = vpop.xlane.xlu0 %3826
      %v3828 = vsel %vm466, %v3800, 0.0
      %3829 = vadd.xlane.f32.xlu0 %v3828
      %v3830 = vpop.xlane.xlu0 %3829
      %v3831 = vsel %vm466, %v3801, 0.0
      %3832 = vadd.xlane.f32.xlu0 %v3831
      %v3833 = vpop.xlane.xlu0 %3832
      %v3834 = vsel %vm466, %v3802, 0.0
      %3835 = vadd.xlane.f32.xlu0 %v3834
      %v3836 = vpop.xlane.xlu0 %3835
      %v3837 = vsel %vm466, %v3803, 0.0
      %3838 = vadd.xlane.f32.xlu0 %v3837
      %v3839 = vpop.xlane.xlu0 %3838
      %v3840 = vsel %vm466, %v3804, 0.0
      %3841 = vadd.xlane.f32.xlu0 %v3840
      %v3842 = vpop.xlane.xlu0 %3841
      %v3843 = vsel %vm466, %v3805, 0.0
      %3844 = vadd.xlane.f32.xlu0 %v3843
      %v3845 = vpop.xlane.xlu0 %3844
      %v3846 = vsel %vm466, %v3806, 0.0
      %3847 = vadd.xlane.f32.xlu0 %v3846
      %v3848 = vpop.xlane.xlu0 %3847
      %v3849 = vsel %vm466, %v3807, 0.0
      %3850 = vadd.xlane.f32.xlu0 %v3849
      %v3851 = vpop.xlane.xlu0 %3850
      %v3852 = vsel %vm466, %v3808, 0.0
      %3853 = vadd.xlane.f32.xlu0 %v3852
      %v3854 = vpop.xlane.xlu0 %3853
      %v3855 = vsel %vm466, %v3809, 0.0
      %3856 = vadd.xlane.f32.xlu0 %v3855
      %v3857 = vpop.xlane.xlu0 %3856
      %v3874 = vlaneseq
      %v3875 = vshrl.u32 %v3874, 7
      %v3876 = vsub.s32 %v719, %v3875
      %v3877 = vrot.slane %v3812, %v3876
      %v3878 = vlaneseq
      %v3879 = vshrl.u32 %v3878, 7
      %v3880 = vsub.s32 %v724, %v3879
      %v3881 = vrot.slane %v3815, %v3880
      %v3882 = vsel %vm729, %v3881, %v3877
      %v3883 = vlaneseq
      %v3884 = vshrl.u32 %v3883, 7
      %v3885 = vsub.s32 %v719, %v3884
      %v3886 = vrot.slane %v3818, %v3885
      %v3887 = vlaneseq
      %v3888 = vshrl.u32 %v3887, 7
      %v3889 = vsub.s32 %v724, %v3888
      %v3890 = vrot.slane %v3821, %v3889
      %v3891 = vsel %vm729, %v3890, %v3886
      %v3892 = vlaneseq
      %v3893 = vshrl.u32 %v3892, 7
      %v3894 = vsub.s32 %v719, %v3893
      %v3895 = vrot.slane %v3824, %v3894
      %v3896 = vlaneseq
      %v3897 = vshrl.u32 %v3896, 7
      %v3898 = vsub.s32 %v724, %v3897
      %v3899 = vrot.slane %v3827, %v3898
      %v3900 = vsel %vm729, %v3899, %v3895
      %v3901 = vlaneseq
      %v3902 = vshrl.u32 %v3901, 7
      %v3903 = vsub.s32 %v719, %v3902
      %v3904 = vrot.slane %v3830, %v3903
      %v3905 = vlaneseq
      %v3906 = vshrl.u32 %v3905, 7
      %v3907 = vsub.s32 %v724, %v3906
      %v3908 = vrot.slane %v3833, %v3907
      %v3909 = vsel %vm729, %v3908, %v3904
      %v3910 = vlaneseq
      %v3911 = vshrl.u32 %v3910, 7
      %v3912 = vsub.s32 %v719, %v3911
      %v3913 = vrot.slane %v3836, %v3912
      %v3914 = vlaneseq
      %v3915 = vshrl.u32 %v3914, 7
      %v3916 = vsub.s32 %v724, %v3915
      %v3917 = vrot.slane %v3839, %v3916
      %v3918 = vsel %vm729, %v3917, %v3913
      %v3919 = vlaneseq
      %v3920 = vshrl.u32 %v3919, 7
      %v3921 = vsub.s32 %v719, %v3920
      %v3922 = vrot.slane %v3842, %v3921
      %v3923 = vlaneseq
      %v3924 = vshrl.u32 %v3923, 7
      %v3925 = vsub.s32 %v724, %v3924
      %v3926 = vrot.slane %v3845, %v3925
      %v3927 = vsel %vm729, %v3926, %v3922
      %v3928 = vlaneseq
      %v3929 = vshrl.u32 %v3928, 7
      %v3930 = vsub.s32 %v719, %v3929
      %v3931 = vrot.slane %v3848, %v3930
      %v3932 = vlaneseq
      %v3933 = vshrl.u32 %v3932, 7
      %v3934 = vsub.s32 %v724, %v3933
      %v3935 = vrot.slane %v3851, %v3934
      %v3936 = vsel %vm729, %v3935, %v3931
      %v3937 = vlaneseq
      %v3938 = vshrl.u32 %v3937, 7
      %v3939 = vsub.s32 %v719, %v3938
      %v3940 = vrot.slane %v3854, %v3939
      %v3941 = vlaneseq
      %v3942 = vshrl.u32 %v3941, 7
      %v3943 = vsub.s32 %v724, %v3942
      %v3944 = vrot.slane %v3857, %v3943
      %v3945 = vsel %vm729, %v3944, %v3940
      %v3946 = vsel %vm794, %v3891, %v3882
      %v3947 = vsel %vm796, %v3900, %v3946
      %v3948 = vsel %vm798, %v3909, %v3947
      %v3949 = vsel %vm800, %v3918, %v3948
      %v3950 = vsel %vm802, %v3927, %v3949
      %v3951 = vsel %vm804, %v3936, %v3950
      %v3952 = vsel %vm806, %v3945, %v3951
      %v3954 = vsel %vm809, %v3952, -inf
      %3955 = vmax.xlane.f32.xlu0 %v3954
      %v3956 = vpop.xlane.xlu0 %3955
      %v3958 = vlaneseq
      %v3959 = vshrl.u32 %v3958, 7
      %v3960 = vsub.s32 0, %v3959
      %v3961 = vrot.slane %v3956, %v3960
      %v3962 = vlaneseq
      %v3963 = vshrl.u32 %v3962, 7
      %v3964 = vsub.s32 1, %v3963
      %v3965 = vrot.slane %v3956, %v3964
      %v3966 = vlaneseq
      %v3967 = vshrl.u32 %v3966, 7
      %v3968 = vsub.s32 2, %v3967
      %v3969 = vrot.slane %v3956, %v3968
      %v3970 = vlaneseq
      %v3971 = vshrl.u32 %v3970, 7
      %v3972 = vsub.s32 3, %v3971
      %v3973 = vrot.slane %v3956, %v3972
      %v3974 = vlaneseq
      %v3975 = vshrl.u32 %v3974, 7
      %v3976 = vsub.s32 4, %v3975
      %v3977 = vrot.slane %v3956, %v3976
      %v3978 = vlaneseq
      %v3979 = vshrl.u32 %v3978, 7
      %v3980 = vsub.s32 5, %v3979
      %v3981 = vrot.slane %v3956, %v3980
      %v3982 = vlaneseq
      %v3983 = vshrl.u32 %v3982, 7
      %v3984 = vsub.s32 6, %v3983
      %v3985 = vrot.slane %v3956, %v3984
      %v3986 = vlaneseq
      %v3987 = vshrl.u32 %v3986, 7
      %v3988 = vsub.s32 7, %v3987
      %v3989 = vrot.slane %v3956, %v3988
      %v3998 = vsub.f32 %v3812, %v3961
      %v3999 = vsub.f32 %v3815, %v3961
      %v4000 = vsub.f32 %v3818, %v3965
      %v4001 = vsub.f32 %v3821, %v3965
      %v4002 = vsub.f32 %v3824, %v3969
      %v4003 = vsub.f32 %v3827, %v3969
      %v4004 = vsub.f32 %v3830, %v3973
      %v4005 = vsub.f32 %v3833, %v3973
      %v4006 = vsub.f32 %v3836, %v3977
      %v4007 = vsub.f32 %v3839, %v3977
      %v4008 = vsub.f32 %v3842, %v3981
      %v4009 = vsub.f32 %v3845, %v3981
      %v4010 = vsub.f32 %v3848, %v3985
      %v4011 = vsub.f32 %v3851, %v3985
      %v4012 = vsub.f32 %v3854, %v3989
      %v4013 = vsub.f32 %v3857, %v3989
      %v4014 = vmul.f32 %v3998, 1.442695
      %v4015 = vpow.pop %v4014
      %v4016 = vmul.f32 %v3999, 1.442695
      %v4017 = vpow.pop %v4016
      %v4018 = vmul.f32 %v4000, 1.442695
      %v4019 = vpow.pop %v4018
      %v4020 = vmul.f32 %v4001, 1.442695
      %v4021 = vpow.pop %v4020
      %v4022 = vmul.f32 %v4002, 1.442695
      %v4023 = vpow.pop %v4022
      %v4024 = vmul.f32 %v4003, 1.442695
      %v4025 = vpow.pop %v4024
      %v4026 = vmul.f32 %v4004, 1.442695
      %v4027 = vpow.pop %v4026
      %v4028 = vmul.f32 %v4005, 1.442695
      %v4029 = vpow.pop %v4028
      %v4030 = vmul.f32 %v4006, 1.442695
      %v4031 = vpow.pop %v4030
      %v4032 = vmul.f32 %v4007, 1.442695
      %v4033 = vpow.pop %v4032
      %v4034 = vmul.f32 %v4008, 1.442695
      %v4035 = vpow.pop %v4034
      %v4036 = vmul.f32 %v4009, 1.442695
      %v4037 = vpow.pop %v4036
      %v4038 = vmul.f32 %v4010, 1.442695
      %v4039 = vpow.pop %v4038
      %v4040 = vmul.f32 %v4011, 1.442695
      %v4041 = vpow.pop %v4040
      %v4042 = vmul.f32 %v4012, 1.442695
      %v4043 = vpow.pop %v4042
      %v4044 = vmul.f32 %v4013, 1.442695
      %v4045 = vpow.pop %v4044
      %4062 = vset.pattern.permute.xlu0 0
      %4063 = vperm.xlu0 %4062, %v4015
      %v4064 = vpop.permute.xlu0 %4063
      %4065 = vset.pattern.permute.xlu0 0
      %4066 = vperm.xlu0 %4065, %v4017
      %v4067 = vpop.permute.xlu0 %4066
      %4068 = vset.pattern.permute.xlu0 0
      %4069 = vperm.xlu0 %4068, %v4019
      %v4070 = vpop.permute.xlu0 %4069
      %4071 = vset.pattern.permute.xlu0 0
      %4072 = vperm.xlu0 %4071, %v4021
      %v4073 = vpop.permute.xlu0 %4072
      %4074 = vset.pattern.permute.xlu0 0
      %4075 = vperm.xlu0 %4074, %v4023
      %v4076 = vpop.permute.xlu0 %4075
      %4077 = vset.pattern.permute.xlu0 0
      %4078 = vperm.xlu0 %4077, %v4025
      %v4079 = vpop.permute.xlu0 %4078
      %4080 = vset.pattern.permute.xlu0 0
      %4081 = vperm.xlu0 %4080, %v4027
      %v4082 = vpop.permute.xlu0 %4081
      %4083 = vset.pattern.permute.xlu0 0
      %4084 = vperm.xlu0 %4083, %v4029
      %v4085 = vpop.permute.xlu0 %4084
      %4086 = vset.pattern.permute.xlu0 0
      %4087 = vperm.xlu0 %4086, %v4031
      %v4088 = vpop.permute.xlu0 %4087
      %4089 = vset.pattern.permute.xlu0 0
      %4090 = vperm.xlu0 %4089, %v4033
      %v4091 = vpop.permute.xlu0 %4090
      %4092 = vset.pattern.permute.xlu0 0
      %4093 = vperm.xlu0 %4092, %v4035
      %v4094 = vpop.permute.xlu0 %4093
      %4095 = vset.pattern.permute.xlu0 0
      %4096 = vperm.xlu0 %4095, %v4037
      %v4097 = vpop.permute.xlu0 %4096
      %4098 = vset.pattern.permute.xlu0 0
      %4099 = vperm.xlu0 %4098, %v4039
      %v4100 = vpop.permute.xlu0 %4099
      %4101 = vset.pattern.permute.xlu0 0
      %4102 = vperm.xlu0 %4101, %v4041
      %v4103 = vpop.permute.xlu0 %4102
      %4104 = vset.pattern.permute.xlu0 0
      %4105 = vperm.xlu0 %4104, %v4043
      %v4106 = vpop.permute.xlu0 %4105
      %4107 = vset.pattern.permute.xlu0 0
      %4108 = vperm.xlu0 %4107, %v4045
      %v4109 = vpop.permute.xlu0 %4108
      %v4110 = vlaneseq
      %v4111 = vshrl.u32 %v4110, 7
      %v4112 = vsub.s32 %v719, %v4111
      %v4113 = vrot.slane %v4064, %v4112
      %v4114 = vlaneseq
      %v4115 = vshrl.u32 %v4114, 7
      %v4116 = vsub.s32 %v724, %v4115
      %v4117 = vrot.slane %v4067, %v4116
      %v4118 = vsel %vm729, %v4117, %v4113
      %v4119 = vlaneseq
      %v4120 = vshrl.u32 %v4119, 7
      %v4121 = vsub.s32 %v719, %v4120
      %v4122 = vrot.slane %v4070, %v4121
      %v4123 = vlaneseq
      %v4124 = vshrl.u32 %v4123, 7
      %v4125 = vsub.s32 %v724, %v4124
      %v4126 = vrot.slane %v4073, %v4125
      %v4127 = vsel %vm729, %v4126, %v4122
      %v4128 = vlaneseq
      %v4129 = vshrl.u32 %v4128, 7
      %v4130 = vsub.s32 %v719, %v4129
      %v4131 = vrot.slane %v4076, %v4130
      %v4132 = vlaneseq
      %v4133 = vshrl.u32 %v4132, 7
      %v4134 = vsub.s32 %v724, %v4133
      %v4135 = vrot.slane %v4079, %v4134
      %v4136 = vsel %vm729, %v4135, %v4131
      %v4137 = vlaneseq
      %v4138 = vshrl.u32 %v4137, 7
      %v4139 = vsub.s32 %v719, %v4138
      %v4140 = vrot.slane %v4082, %v4139
      %v4141 = vlaneseq
      %v4142 = vshrl.u32 %v4141, 7
      %v4143 = vsub.s32 %v724, %v4142
      %v4144 = vrot.slane %v4085, %v4143
      %v4145 = vsel %vm729, %v4144, %v4140
      %v4146 = vlaneseq
      %v4147 = vshrl.u32 %v4146, 7
      %v4148 = vsub.s32 %v719, %v4147
      %v4149 = vrot.slane %v4088, %v4148
      %v4150 = vlaneseq
      %v4151 = vshrl.u32 %v4150, 7
      %v4152 = vsub.s32 %v724, %v4151
      %v4153 = vrot.slane %v4091, %v4152
      %v4154 = vsel %vm729, %v4153, %v4149
      %v4155 = vlaneseq
      %v4156 = vshrl.u32 %v4155, 7
      %v4157 = vsub.s32 %v719, %v4156
      %v4158 = vrot.slane %v4094, %v4157
      %v4159 = vlaneseq
      %v4160 = vshrl.u32 %v4159, 7
      %v4161 = vsub.s32 %v724, %v4160
      %v4162 = vrot.slane %v4097, %v4161
      %v4163 = vsel %vm729, %v4162, %v4158
      %v4164 = vlaneseq
      %v4165 = vshrl.u32 %v4164, 7
      %v4166 = vsub.s32 %v719, %v4165
      %v4167 = vrot.slane %v4100, %v4166
      %v4168 = vlaneseq
      %v4169 = vshrl.u32 %v4168, 7
      %v4170 = vsub.s32 %v724, %v4169
      %v4171 = vrot.slane %v4103, %v4170
      %v4172 = vsel %vm729, %v4171, %v4167
      %v4173 = vlaneseq
      %v4174 = vshrl.u32 %v4173, 7
      %v4175 = vsub.s32 %v719, %v4174
      %v4176 = vrot.slane %v4106, %v4175
      %v4177 = vlaneseq
      %v4178 = vshrl.u32 %v4177, 7
      %v4179 = vsub.s32 %v724, %v4178
      %v4180 = vrot.slane %v4109, %v4179
      %v4181 = vsel %vm729, %v4180, %v4176
      %v4182 = vsel %vm794, %v4127, %v4118
      %v4183 = vsel %vm796, %v4136, %v4182
      %v4184 = vsel %vm798, %v4145, %v4183
      %v4185 = vsel %vm800, %v4154, %v4184
      %v4186 = vsel %vm802, %v4163, %v4185
      %v4187 = vsel %vm804, %v4172, %v4186
      %v4188 = vsel %vm806, %v4181, %v4187
      %v4190 = vsel %vm809, %v4188, 0.0
      %4191 = vadd.xlane.f32.xlu0 %v4190
      %v4192 = vpop.xlane.xlu0 %4191
      %v4193 = vrcp.pop %v4192
      %v4195 = vlaneseq
      %v4196 = vshrl.u32 %v4195, 7
      %v4197 = vsub.s32 0, %v4196
      %v4198 = vrot.slane %v4193, %v4197
      %v4199 = vlaneseq
      %v4200 = vshrl.u32 %v4199, 7
      %v4201 = vsub.s32 1, %v4200
      %v4202 = vrot.slane %v4193, %v4201
      %v4203 = vlaneseq
      %v4204 = vshrl.u32 %v4203, 7
      %v4205 = vsub.s32 2, %v4204
      %v4206 = vrot.slane %v4193, %v4205
      %v4207 = vlaneseq
      %v4208 = vshrl.u32 %v4207, 7
      %v4209 = vsub.s32 3, %v4208
      %v4210 = vrot.slane %v4193, %v4209
      %v4211 = vlaneseq
      %v4212 = vshrl.u32 %v4211, 7
      %v4213 = vsub.s32 4, %v4212
      %v4214 = vrot.slane %v4193, %v4213
      %v4215 = vlaneseq
      %v4216 = vshrl.u32 %v4215, 7
      %v4217 = vsub.s32 5, %v4216
      %v4218 = vrot.slane %v4193, %v4217
      %v4219 = vlaneseq
      %v4220 = vshrl.u32 %v4219, 7
      %v4221 = vsub.s32 6, %v4220
      %v4222 = vrot.slane %v4193, %v4221
      %v4223 = vlaneseq
      %v4224 = vshrl.u32 %v4223, 7
      %v4225 = vsub.s32 7, %v4224
      %v4226 = vrot.slane %v4193, %v4225
      %v4235 = vmul.f32 %v4015, %v4198
      %v4236 = vmul.f32 %v4017, %v4198
      %v4237 = vmul.f32 %v4019, %v4202
      %v4238 = vmul.f32 %v4021, %v4202
      %v4239 = vmul.f32 %v4023, %v4206
      %v4240 = vmul.f32 %v4025, %v4206
      %v4241 = vmul.f32 %v4027, %v4210
      %v4242 = vmul.f32 %v4029, %v4210
      %v4243 = vmul.f32 %v4031, %v4214
      %v4244 = vmul.f32 %v4033, %v4214
      %v4245 = vmul.f32 %v4035, %v4218
      %v4246 = vmul.f32 %v4037, %v4218
      %v4247 = vmul.f32 %v4039, %v4222
      %v4248 = vmul.f32 %v4041, %v4222
      %v4249 = vmul.f32 %v4043, %v4226
      %v4250 = vmul.f32 %v4045, %v4226
      %v4251 = vpack.c.bf16 %v4236, %v4235
      %v4252 = vpack.c.bf16 %v4238, %v4237
      %v4253 = vpack.c.bf16 %v4240, %v4239
      %v4254 = vpack.c.bf16 %v4242, %v4241
      %v4255 = vpack.c.bf16 %v4244, %v4243
      %v4256 = vpack.c.bf16 %v4246, %v4245
      %v4257 = vpack.c.bf16 %v4248, %v4247
      %v4258 = vpack.c.bf16 %v4250, %v4249
      %v4260 = vunpack.c.l.b16 %v4251
      %v4261 = vunpack.c.h.b16 %v4251
      %4262 = vset.pattern.permute.xlu0 0
      %4263 = vperm.xlu0 %4262, %v4260
      %v4264 = vpop.permute.xlu0 %4263
      %4265 = vset.pattern.permute.xlu0 0
      %4266 = vperm.xlu0 %4265, %v4261
      %v4267 = vpop.permute.xlu0 %4266
      %v4268 = vlaneseq
      %v4269 = vshrl.u32 %v4268, 7
      %v4270 = vsub.s32 %v719, %v4269
      %v4271 = vrot.slane %v4264, %v4270
      %v4272 = vlaneseq
      %v4273 = vshrl.u32 %v4272, 7
      %v4274 = vsub.s32 %v724, %v4273
      %v4275 = vrot.slane %v4267, %v4274
      %v4276 = vsel %vm729, %v4275, %v4271
      %v4277 = vpack.c.b16 %v4276, %v4276
      %v4279 = vsel %vm809, %v4277, 0
      %4281 = vmatprep.subr.bf16.mxu0 0
      %4282 = vmatpush1.bf16.msra.mxu0 %v1138
      %4283 = vmatprep.subr.bf16.mxu0 0
      %4284 = vmatpush1.bf16.msra.mxu0 0
      %4285 = vmatprep.subr.bf16.mxu0 0
      %4286 = vmatpush1.bf16.msra.mxu0 0
      %4287 = vmatprep.subr.bf16.mxu0 0
      %4288 = vmatpush1.bf16.msra.mxu0 0
      %4289 = vmatprep.subr.bf16.mxu0 0
      %4290 = vmatpush1.bf16.msra.mxu0 0
      %4291 = vmatprep.subr.bf16.mxu0 0
      %4292 = vmatpush1.bf16.msra.mxu0 0
      %4293 = vmatprep.subr.bf16.mxu0 0
      %4294 = vmatpush1.bf16.msra.mxu0 0
      %4295 = vmatprep.subr.bf16.mxu0 0
      %4296 = vmatpush1.bf16.msra.mxu0 0
      %4297 = vmatprep.subr.bf16.mxu0 0
      %4298 = vmatpush1.bf16.msra.mxu0 0
      %4299 = vmatprep.subr.bf16.mxu0 0
      %4300 = vmatpush1.bf16.msra.mxu0 0
      %4301 = vmatprep.subr.bf16.mxu0 0
      %4302 = vmatpush1.bf16.msra.mxu0 0
      %4303 = vmatprep.subr.bf16.mxu0 0
      %4304 = vmatpush1.bf16.msra.mxu0 0
      %4305 = vmatprep.subr.bf16.mxu0 0
      %4306 = vmatpush1.bf16.msra.mxu0 0
      %4307 = vmatprep.subr.bf16.mxu0 0
      %4308 = vmatpush1.bf16.msra.mxu0 0
      %4309 = vmatprep.subr.bf16.mxu0 0
      %4310 = vmatpush1.bf16.msra.mxu0 0
      %4311 = vmatprep.subr.bf16.mxu0 0
      %4312 = vmatpush1.bf16.msra.mxu0 0
      %4313 = vmatprep.mubr.bf16.mxu0 0
      %4314 = vmatmul.mubr.bf16.gmra.mrb[0].mxu0 %v4279
      %v4315 = vpop.f32.mrb[0].mxu0
      %v4316 = vadd.f32 0.0, %v4315
      %v4317 = vpop.f32.mrb[0].mxu0
      %v4318 = vpop.f32.mrb[0].mxu0
      %v4319 = vpop.f32.mrb[0].mxu0
      %4320 = vdwg.mxu0
      %v4322 = vunpack.c.l.b16 %v4252
      %v4323 = vunpack.c.h.b16 %v4252
      %4324 = vset.pattern.permute.xlu0 0
      %4325 = vperm.xlu0 %4324, %v4322
      %v4326 = vpop.permute.xlu0 %4325
      %4327 = vset.pattern.permute.xlu0 0
      %4328 = vperm.xlu0 %4327, %v4323
      %v4329 = vpop.permute.xlu0 %4328
      %v4330 = vlaneseq
      %v4331 = vshrl.u32 %v4330, 7
      %v4332 = vsub.s32 %v719, %v4331
      %v4333 = vrot.slane %v4326, %v4332
      %v4334 = vlaneseq
      %v4335 = vshrl.u32 %v4334, 7
      %v4336 = vsub.s32 %v724, %v4335
      %v4337 = vrot.slane %v4329, %v4336
      %v4338 = vsel %vm729, %v4337, %v4333
      %v4339 = vpack.c.b16 %v4338, %v4338
      %v4341 = vsel %vm809, %v4339, 0
      %4343 = vmatprep.subr.bf16.mxu0 0
      %4344 = vmatpush1.bf16.msra.mxu0 %v1206
      %4345 = vmatprep.subr.bf16.mxu0 0
      %4346 = vmatpush1.bf16.msra.mxu0 0
      %4347 = vmatprep.subr.bf16.mxu0 0
      %4348 = vmatpush1.bf16.msra.mxu0 0
      %4349 = vmatprep.subr.bf16.mxu0 0
      %4350 = vmatpush1.bf16.msra.mxu0 0
      %4351 = vmatprep.subr.bf16.mxu0 0
      %4352 = vmatpush1.bf16.msra.mxu0 0
      %4353 = vmatprep.subr.bf16.mxu0 0
      %4354 = vmatpush1.bf16.msra.mxu0 0
      %4355 = vmatprep.subr.bf16.mxu0 0
      %4356 = vmatpush1.bf16.msra.mxu0 0
      %4357 = vmatprep.subr.bf16.mxu0 0
      %4358 = vmatpush1.bf16.msra.mxu0 0
      %4359 = vmatprep.subr.bf16.mxu0 0
      %4360 = vmatpush1.bf16.msra.mxu0 0
      %4361 = vmatprep.subr.bf16.mxu0 0
      %4362 = vmatpush1.bf16.msra.mxu0 0
      %4363 = vmatprep.subr.bf16.mxu0 0
      %4364 = vmatpush1.bf16.msra.mxu0 0
      %4365 = vmatprep.subr.bf16.mxu0 0
      %4366 = vmatpush1.bf16.msra.mxu0 0
      %4367 = vmatprep.subr.bf16.mxu0 0
      %4368 = vmatpush1.bf16.msra.mxu0 0
      %4369 = vmatprep.subr.bf16.mxu0 0
      %4370 = vmatpush1.bf16.msra.mxu0 0
      %4371 = vmatprep.subr.bf16.mxu0 0
      %4372 = vmatpush1.bf16.msra.mxu0 0
      %4373 = vmatprep.subr.bf16.mxu0 0
      %4374 = vmatpush1.bf16.msra.mxu0 0
      %4375 = vmatprep.mubr.bf16.mxu0 0
      %4376 = vmatmul.mubr.bf16.gmra.mrb[0].mxu0 %v4341
      %v4377 = vpop.f32.mrb[0].mxu0
      %v4378 = vadd.f32 0.0, %v4377
      %v4379 = vpop.f32.mrb[0].mxu0
      %v4380 = vpop.f32.mrb[0].mxu0
      %v4381 = vpop.f32.mrb[0].mxu0
      %4382 = vdwg.mxu0
      %v4384 = vunpack.c.l.b16 %v4253
      %v4385 = vunpack.c.h.b16 %v4253
      %4386 = vset.pattern.permute.xlu0 0
      %4387 = vperm.xlu0 %4386, %v4384
      %v4388 = vpop.permute.xlu0 %4387
      %4389 = vset.pattern.permute.xlu0 0
      %4390 = vperm.xlu0 %4389, %v4385
      %v4391 = vpop.permute.xlu0 %4390
      %v4392 = vlaneseq
      %v4393 = vshrl.u32 %v4392, 7
      %v4394 = vsub.s32 %v719, %v4393
      %v4395 = vrot.slane %v4388, %v4394
      %v4396 = vlaneseq
      %v4397 = vshrl.u32 %v4396, 7
      %v4398 = vsub.s32 %v724, %v4397
      %v4399 = vrot.slane %v4391, %v4398
      %v4400 = vsel %vm729, %v4399, %v4395
      %v4401 = vpack.c.b16 %v4400, %v4400
      %v4403 = vsel %vm809, %v4401, 0
      %4405 = vmatprep.subr.bf16.mxu0 0
      %4406 = vmatpush1.bf16.msra.mxu0 %v1274
      %4407 = vmatprep.subr.bf16.mxu0 0
      %4408 = vmatpush1.bf16.msra.mxu0 0
      %4409 = vmatprep.subr.bf16.mxu0 0
      %4410 = vmatpush1.bf16.msra.mxu0 0
      %4411 = vmatprep.subr.bf16.mxu0 0
      %4412 = vmatpush1.bf16.msra.mxu0 0
      %4413 = vmatprep.subr.bf16.mxu0 0
      %4414 = vmatpush1.bf16.msra.mxu0 0
      %4415 = vmatprep.subr.bf16.mxu0 0
      %4416 = vmatpush1.bf16.msra.mxu0 0
      %4417 = vmatprep.subr.bf16.mxu0 0
      %4418 = vmatpush1.bf16.msra.mxu0 0
      %4419 = vmatprep.subr.bf16.mxu0 0
      %4420 = vmatpush1.bf16.msra.mxu0 0
      %4421 = vmatprep.subr.bf16.mxu0 0
      %4422 = vmatpush1.bf16.msra.mxu0 0
      %4423 = vmatprep.subr.bf16.mxu0 0
      %4424 = vmatpush1.bf16.msra.mxu0 0
      %4425 = vmatprep.subr.bf16.mxu0 0
      %4426 = vmatpush1.bf16.msra.mxu0 0
      %4427 = vmatprep.subr.bf16.mxu0 0
      %4428 = vmatpush1.bf16.msra.mxu0 0
      %4429 = vmatprep.subr.bf16.mxu0 0
      %4430 = vmatpush1.bf16.msra.mxu0 0
      %4431 = vmatprep.subr.bf16.mxu0 0
      %4432 = vmatpush1.bf16.msra.mxu0 0
      %4433 = vmatprep.subr.bf16.mxu0 0
      %4434 = vmatpush1.bf16.msra.mxu0 0
      %4435 = vmatprep.subr.bf16.mxu0 0
      %4436 = vmatpush1.bf16.msra.mxu0 0
      %4437 = vmatprep.mubr.bf16.mxu0 0
      %4438 = vmatmul.mubr.bf16.gmra.mrb[0].mxu0 %v4403
      %v4439 = vpop.f32.mrb[0].mxu0
      %v4440 = vadd.f32 0.0, %v4439
      %v4441 = vpop.f32.mrb[0].mxu0
      %v4442 = vpop.f32.mrb[0].mxu0
      %v4443 = vpop.f32.mrb[0].mxu0
      %4444 = vdwg.mxu0
      %v4446 = vunpack.c.l.b16 %v4254
      %v4447 = vunpack.c.h.b16 %v4254
      %4448 = vset.pattern.permute.xlu0 0
      %4449 = vperm.xlu0 %4448, %v4446
      %v4450 = vpop.permute.xlu0 %4449
      %4451 = vset.pattern.permute.xlu0 0
      %4452 = vperm.xlu0 %4451, %v4447
      %v4453 = vpop.permute.xlu0 %4452
      %v4454 = vlaneseq
      %v4455 = vshrl.u32 %v4454, 7
      %v4456 = vsub.s32 %v719, %v4455
      %v4457 = vrot.slane %v4450, %v4456
      %v4458 = vlaneseq
      %v4459 = vshrl.u32 %v4458, 7
      %v4460 = vsub.s32 %v724, %v4459
      %v4461 = vrot.slane %v4453, %v4460
      %v4462 = vsel %vm729, %v4461, %v4457
      %v4463 = vpack.c.b16 %v4462, %v4462
      %v4465 = vsel %vm809, %v4463, 0
      %4467 = vmatprep.subr.bf16.mxu0 0
      %4468 = vmatpush1.bf16.msra.mxu0 %v1342
      %4469 = vmatprep.subr.bf16.mxu0 0
      %4470 = vmatpush1.bf16.msra.mxu0 0
      %4471 = vmatprep.subr.bf16.mxu0 0
      %4472 = vmatpush1.bf16.msra.mxu0 0
      %4473 = vmatprep.subr.bf16.mxu0 0
      %4474 = vmatpush1.bf16.msra.mxu0 0
      %4475 = vmatprep.subr.bf16.mxu0 0
      %4476 = vmatpush1.bf16.msra.mxu0 0
      %4477 = vmatprep.subr.bf16.mxu0 0
      %4478 = vmatpush1.bf16.msra.mxu0 0
      %4479 = vmatprep.subr.bf16.mxu0 0
      %4480 = vmatpush1.bf16.msra.mxu0 0
      %4481 = vmatprep.subr.bf16.mxu0 0
      %4482 = vmatpush1.bf16.msra.mxu0 0
      %4483 = vmatprep.subr.bf16.mxu0 0
      %4484 = vmatpush1.bf16.msra.mxu0 0
      %4485 = vmatprep.subr.bf16.mxu0 0
      %4486 = vmatpush1.bf16.msra.mxu0 0
      %4487 = vmatprep.subr.bf16.mxu0 0
      %4488 = vmatpush1.bf16.msra.mxu0 0
      %4489 = vmatprep.subr.bf16.mxu0 0
      %4490 = vmatpush1.bf16.msra.mxu0 0
      %4491 = vmatprep.subr.bf16.mxu0 0
      %4492 = vmatpush1.bf16.msra.mxu0 0
      %4493 = vmatprep.subr.bf16.mxu0 0
      %4494 = vmatpush1.bf16.msra.mxu0 0
      %4495 = vmatprep.subr.bf16.mxu0 0
      %4496 = vmatpush1.bf16.msra.mxu0 0
      %4497 = vmatprep.subr.bf16.mxu0 0
      %4498 = vmatpush1.bf16.msra.mxu0 0
      %4499 = vmatprep.mubr.bf16.mxu0 0
      %4500 = vmatmul.mubr.bf16.gmra.mrb[0].mxu0 %v4465
      %v4501 = vpop.f32.mrb[0].mxu0
      %v4502 = vadd.f32 0.0, %v4501
      %v4503 = vpop.f32.mrb[0].mxu0
      %v4504 = vpop.f32.mrb[0].mxu0
      %v4505 = vpop.f32.mrb[0].mxu0
      %4506 = vdwg.mxu0
      %v4508 = vunpack.c.l.b16 %v4255
      %v4509 = vunpack.c.h.b16 %v4255
      %4510 = vset.pattern.permute.xlu0 0
      %4511 = vperm.xlu0 %4510, %v4508
      %v4512 = vpop.permute.xlu0 %4511
      %4513 = vset.pattern.permute.xlu0 0
      %4514 = vperm.xlu0 %4513, %v4509
      %v4515 = vpop.permute.xlu0 %4514
      %v4516 = vlaneseq
      %v4517 = vshrl.u32 %v4516, 7
      %v4518 = vsub.s32 %v719, %v4517
      %v4519 = vrot.slane %v4512, %v4518
      %v4520 = vlaneseq
      %v4521 = vshrl.u32 %v4520, 7
      %v4522 = vsub.s32 %v724, %v4521
      %v4523 = vrot.slane %v4515, %v4522
      %v4524 = vsel %vm729, %v4523, %v4519
      %v4525 = vpack.c.b16 %v4524, %v4524
      %v4527 = vsel %vm809, %v4525, 0
      %4529 = vmatprep.subr.bf16.mxu0 0
      %4530 = vmatpush1.bf16.msra.mxu0 %v1410
      %4531 = vmatprep.subr.bf16.mxu0 0
      %4532 = vmatpush1.bf16.msra.mxu0 0
      %4533 = vmatprep.subr.bf16.mxu0 0
      %4534 = vmatpush1.bf16.msra.mxu0 0
      %4535 = vmatprep.subr.bf16.mxu0 0
      %4536 = vmatpush1.bf16.msra.mxu0 0
      %4537 = vmatprep.subr.bf16.mxu0 0
      %4538 = vmatpush1.bf16.msra.mxu0 0
      %4539 = vmatprep.subr.bf16.mxu0 0
      %4540 = vmatpush1.bf16.msra.mxu0 0
      %4541 = vmatprep.subr.bf16.mxu0 0
      %4542 = vmatpush1.bf16.msra.mxu0 0
      %4543 = vmatprep.subr.bf16.mxu0 0
      %4544 = vmatpush1.bf16.msra.mxu0 0
      %4545 = vmatprep.subr.bf16.mxu0 0
      %4546 = vmatpush1.bf16.msra.mxu0 0
      %4547 = vmatprep.subr.bf16.mxu0 0
      %4548 = vmatpush1.bf16.msra.mxu0 0
      %4549 = vmatprep.subr.bf16.mxu0 0
      %4550 = vmatpush1.bf16.msra.mxu0 0
      %4551 = vmatprep.subr.bf16.mxu0 0
      %4552 = vmatpush1.bf16.msra.mxu0 0
      %4553 = vmatprep.subr.bf16.mxu0 0
      %4554 = vmatpush1.bf16.msra.mxu0 0
      %4555 = vmatprep.subr.bf16.mxu0 0
      %4556 = vmatpush1.bf16.msra.mxu0 0
      %4557 = vmatprep.subr.bf16.mxu0 0
      %4558 = vmatpush1.bf16.msra.mxu0 0
      %4559 = vmatprep.subr.bf16.mxu0 0
      %4560 = vmatpush1.bf16.msra.mxu0 0
      %4561 = vmatprep.mubr.bf16.mxu0 0
      %4562 = vmatmul.mubr.bf16.gmra.mrb[0].mxu0 %v4527
      %v4563 = vpop.f32.mrb[0].mxu0
      %v4564 = vadd.f32 0.0, %v4563
      %v4565 = vpop.f32.mrb[0].mxu0
      %v4566 = vpop.f32.mrb[0].mxu0
      %v4567 = vpop.f32.mrb[0].mxu0
      %4568 = vdwg.mxu0
      %v4570 = vunpack.c.l.b16 %v4256
      %v4571 = vunpack.c.h.b16 %v4256
      %4572 = vset.pattern.permute.xlu0 0
      %4573 = vperm.xlu0 %4572, %v4570
      %v4574 = vpop.permute.xlu0 %4573
      %4575 = vset.pattern.permute.xlu0 0
      %4576 = vperm.xlu0 %4575, %v4571
      %v4577 = vpop.permute.xlu0 %4576
      %v4578 = vlaneseq
      %v4579 = vshrl.u32 %v4578, 7
      %v4580 = vsub.s32 %v719, %v4579
      %v4581 = vrot.slane %v4574, %v4580
      %v4582 = vlaneseq
      %v4583 = vshrl.u32 %v4582, 7
      %v4584 = vsub.s32 %v724, %v4583
      %v4585 = vrot.slane %v4577, %v4584
      %v4586 = vsel %vm729, %v4585, %v4581
      %v4587 = vpack.c.b16 %v4586, %v4586
      %v4589 = vsel %vm809, %v4587, 0
      %4591 = vmatprep.subr.bf16.mxu0 0
      %4592 = vmatpush1.bf16.msra.mxu0 %v1478
      %4593 = vmatprep.subr.bf16.mxu0 0
      %4594 = vmatpush1.bf16.msra.mxu0 0
      %4595 = vmatprep.subr.bf16.mxu0 0
      %4596 = vmatpush1.bf16.msra.mxu0 0
      %4597 = vmatprep.subr.bf16.mxu0 0
      %4598 = vmatpush1.bf16.msra.mxu0 0
      %4599 = vmatprep.subr.bf16.mxu0 0
      %4600 = vmatpush1.bf16.msra.mxu0 0
      %4601 = vmatprep.subr.bf16.mxu0 0
      %4602 = vmatpush1.bf16.msra.mxu0 0
      %4603 = vmatprep.subr.bf16.mxu0 0
      %4604 = vmatpush1.bf16.msra.mxu0 0
      %4605 = vmatprep.subr.bf16.mxu0 0
      %4606 = vmatpush1.bf16.msra.mxu0 0
      %4607 = vmatprep.subr.bf16.mxu0 0
      %4608 = vmatpush1.bf16.msra.mxu0 0
      %4609 = vmatprep.subr.bf16.mxu0 0
      %4610 = vmatpush1.bf16.msra.mxu0 0
      %4611 = vmatprep.subr.bf16.mxu0 0
      %4612 = vmatpush1.bf16.msra.mxu0 0
      %4613 = vmatprep.subr.bf16.mxu0 0
      %4614 = vmatpush1.bf16.msra.mxu0 0
      %4615 = vmatprep.subr.bf16.mxu0 0
      %4616 = vmatpush1.bf16.msra.mxu0 0
      %4617 = vmatprep.subr.bf16.mxu0 0
      %4618 = vmatpush1.bf16.msra.mxu0 0
      %4619 = vmatprep.subr.bf16.mxu0 0
      %4620 = vmatpush1.bf16.msra.mxu0 0
      %4621 = vmatprep.subr.bf16.mxu0 0
      %4622 = vmatpush1.bf16.msra.mxu0 0
      %4623 = vmatprep.mubr.bf16.mxu0 0
      %4624 = vmatmul.mubr.bf16.gmra.mrb[0].mxu0 %v4589
      %v4625 = vpop.f32.mrb[0].mxu0
      %v4626 = vadd.f32 0.0, %v4625
      %v4627 = vpop.f32.mrb[0].mxu0
      %v4628 = vpop.f32.mrb[0].mxu0
      %v4629 = vpop.f32.mrb[0].mxu0
      %4630 = vdwg.mxu0
      %v4632 = vunpack.c.l.b16 %v4257
      %v4633 = vunpack.c.h.b16 %v4257
      %4634 = vset.pattern.permute.xlu0 0
      %4635 = vperm.xlu0 %4634, %v4632
      %v4636 = vpop.permute.xlu0 %4635
      %4637 = vset.pattern.permute.xlu0 0
      %4638 = vperm.xlu0 %4637, %v4633
      %v4639 = vpop.permute.xlu0 %4638
      %v4640 = vlaneseq
      %v4641 = vshrl.u32 %v4640, 7
      %v4642 = vsub.s32 %v719, %v4641
      %v4643 = vrot.slane %v4636, %v4642
      %v4644 = vlaneseq
      %v4645 = vshrl.u32 %v4644, 7
      %v4646 = vsub.s32 %v724, %v4645
      %v4647 = vrot.slane %v4639, %v4646
      %v4648 = vsel %vm729, %v4647, %v4643
      %v4649 = vpack.c.b16 %v4648, %v4648
      %v4651 = vsel %vm809, %v4649, 0
      %4653 = vmatprep.subr.bf16.mxu0 0
      %4654 = vmatpush1.bf16.msra.mxu0 %v1546
      %4655 = vmatprep.subr.bf16.mxu0 0
      %4656 = vmatpush1.bf16.msra.mxu0 0
      %4657 = vmatprep.subr.bf16.mxu0 0
      %4658 = vmatpush1.bf16.msra.mxu0 0
      %4659 = vmatprep.subr.bf16.mxu0 0
      %4660 = vmatpush1.bf16.msra.mxu0 0
      %4661 = vmatprep.subr.bf16.mxu0 0
      %4662 = vmatpush1.bf16.msra.mxu0 0
      %4663 = vmatprep.subr.bf16.mxu0 0
      %4664 = vmatpush1.bf16.msra.mxu0 0
      %4665 = vmatprep.subr.bf16.mxu0 0
      %4666 = vmatpush1.bf16.msra.mxu0 0
      %4667 = vmatprep.subr.bf16.mxu0 0
      %4668 = vmatpush1.bf16.msra.mxu0 0
      %4669 = vmatprep.subr.bf16.mxu0 0
      %4670 = vmatpush1.bf16.msra.mxu0 0
      %4671 = vmatprep.subr.bf16.mxu0 0
      %4672 = vmatpush1.bf16.msra.mxu0 0
      %4673 = vmatprep.subr.bf16.mxu0 0
      %4674 = vmatpush1.bf16.msra.mxu0 0
      %4675 = vmatprep.subr.bf16.mxu0 0
      %4676 = vmatpush1.bf16.msra.mxu0 0
      %4677 = vmatprep.subr.bf16.mxu0 0
      %4678 = vmatpush1.bf16.msra.mxu0 0
      %4679 = vmatprep.subr.bf16.mxu0 0
      %4680 = vmatpush1.bf16.msra.mxu0 0
      %4681 = vmatprep.subr.bf16.mxu0 0
      %4682 = vmatpush1.bf16.msra.mxu0 0
      %4683 = vmatprep.subr.bf16.mxu0 0
      %4684 = vmatpush1.bf16.msra.mxu0 0
      %4685 = vmatprep.mubr.bf16.mxu0 0
      %4686 = vmatmul.mubr.bf16.gmra.mrb[0].mxu0 %v4651
      %v4687 = vpop.f32.mrb[0].mxu0
      %v4688 = vadd.f32 0.0, %v4687
      %v4689 = vpop.f32.mrb[0].mxu0
      %v4690 = vpop.f32.mrb[0].mxu0
      %v4691 = vpop.f32.mrb[0].mxu0
      %4692 = vdwg.mxu0
      %v4694 = vunpack.c.l.b16 %v4258
      %v4695 = vunpack.c.h.b16 %v4258
      %4696 = vset.pattern.permute.xlu0 0
      %4697 = vperm.xlu0 %4696, %v4694
      %v4698 = vpop.permute.xlu0 %4697
      %4699 = vset.pattern.permute.xlu0 0
      %4700 = vperm.xlu0 %4699, %v4695
      %v4701 = vpop.permute.xlu0 %4700
      %v4702 = vlaneseq
      %v4703 = vshrl.u32 %v4702, 7
      %v4704 = vsub.s32 %v719, %v4703
      %v4705 = vrot.slane %v4698, %v4704
      %v4706 = vlaneseq
      %v4707 = vshrl.u32 %v4706, 7
      %v4708 = vsub.s32 %v724, %v4707
      %v4709 = vrot.slane %v4701, %v4708
      %v4710 = vsel %vm729, %v4709, %v4705
      %v4711 = vpack.c.b16 %v4710, %v4710
      %v4713 = vsel %vm809, %v4711, 0
      %4715 = vmatprep.subr.bf16.mxu0 0
      %4716 = vmatpush1.bf16.msra.mxu0 %v1614
      %4717 = vmatprep.subr.bf16.mxu0 0
      %4718 = vmatpush1.bf16.msra.mxu0 0
      %4719 = vmatprep.subr.bf16.mxu0 0
      %4720 = vmatpush1.bf16.msra.mxu0 0
      %4721 = vmatprep.subr.bf16.mxu0 0
      %4722 = vmatpush1.bf16.msra.mxu0 0
      %4723 = vmatprep.subr.bf16.mxu0 0
      %4724 = vmatpush1.bf16.msra.mxu0 0
      %4725 = vmatprep.subr.bf16.mxu0 0
      %4726 = vmatpush1.bf16.msra.mxu0 0
      %4727 = vmatprep.subr.bf16.mxu0 0
      %4728 = vmatpush1.bf16.msra.mxu0 0
      %4729 = vmatprep.subr.bf16.mxu0 0
      %4730 = vmatpush1.bf16.msra.mxu0 0
      %4731 = vmatprep.subr.bf16.mxu0 0
      %4732 = vmatpush1.bf16.msra.mxu0 0
      %4733 = vmatprep.subr.bf16.mxu0 0
      %4734 = vmatpush1.bf16.msra.mxu0 0
      %4735 = vmatprep.subr.bf16.mxu0 0
      %4736 = vmatpush1.bf16.msra.mxu0 0
      %4737 = vmatprep.subr.bf16.mxu0 0
      %4738 = vmatpush1.bf16.msra.mxu0 0
      %4739 = vmatprep.subr.bf16.mxu0 0
      %4740 = vmatpush1.bf16.msra.mxu0 0
      %4741 = vmatprep.subr.bf16.mxu0 0
      %4742 = vmatpush1.bf16.msra.mxu0 0
      %4743 = vmatprep.subr.bf16.mxu0 0
      %4744 = vmatpush1.bf16.msra.mxu0 0
      %4745 = vmatprep.subr.bf16.mxu0 0
      %4746 = vmatpush1.bf16.msra.mxu0 0
      %4747 = vmatprep.mubr.bf16.mxu0 0
      %4748 = vmatmul.mubr.bf16.gmra.mrb[0].mxu0 %v4713
      %v4749 = vpop.f32.mrb[0].mxu0
      %v4750 = vadd.f32 0.0, %v4749
      %v4751 = vpop.f32.mrb[0].mxu0
      %v4752 = vpop.f32.mrb[0].mxu0
      %v4753 = vpop.f32.mrb[0].mxu0
      %4754 = vdwg.mxu0
      %s4755 = smul.u32 %s3608, 8
      %s4756 = scalar_lea.vmem %s0, %s4755
      %v4757 = vld [vmem:[%s4756] sm:$0xff]
      %v4758 = vpack.c.bf16 %v4316, %v4316
      %v4759 = vpack.c.bf16 %v4378, %v4378
      %v4760 = vpack.c.bf16 %v4440, %v4440
      %v4761 = vpack.c.bf16 %v4502, %v4502
      %v4762 = vpack.c.bf16 %v4564, %v4564
      %v4763 = vpack.c.bf16 %v4626, %v4626
      %v4764 = vpack.c.bf16 %v4688, %v4688
      %v4765 = vpack.c.bf16 %v4750, %v4750
      %v4766 = vld [vmem:[%s6] sm:$0xf]
      %v4767 = vld [vmem:[%s6 + $0x4] sm:$0xf]
      %v4768 = vld [vmem:[%s6 + $0x8] sm:$0xf]
      %v4769 = vld [vmem:[%s6 + $0xc] sm:$0xf]
      %v4778 = vunpack.c.l.b16 %v4758
      %v4779 = vunpack.c.l.b16 %v4759
      %v4780 = vunpack.c.l.b16 %v4760
      %v4781 = vunpack.c.l.b16 %v4761
      %v4782 = vunpack.c.l.b16 %v4762
      %v4783 = vunpack.c.l.b16 %v4763
      %v4784 = vunpack.c.l.b16 %v4764
      %v4785 = vunpack.c.l.b16 %v4765
      %v4786 = vrot.slane %v4779, 7
      %v4787 = vsel %vm794, %v4786, %v4778
      %v4788 = vrot.slane %v4780, 6
      %v4789 = vsel %vm796, %v4788, %v4787
      %v4790 = vrot.slane %v4781, 5
      %v4791 = vsel %vm798, %v4790, %v4789
      %v4792 = vrot.slane %v4782, 4
      %v4793 = vsel %vm800, %v4792, %v4791
      %v4794 = vrot.slane %v4783, 3
      %v4795 = vsel %vm802, %v4794, %v4793
      %v4796 = vrot.slane %v4784, 2
      %v4797 = vsel %vm804, %v4796, %v4795
      %v4798 = vrot.slane %v4785, 1
      %v4799 = vsel %vm806, %v4798, %v4797
      %v4800 = vpack.c.b16 %v4799, %v4799
      %v4805 = vunpack.c.l.b16 %v4766
      %v4806 = vunpack.c.l.b16 %v4767
      %v4807 = vunpack.c.l.b16 %v4768
      %v4808 = vunpack.c.l.b16 %v4769
      %v4809 = vpack.c.b16 %v4806, %v4805
      %v4810 = vpack.c.b16 %v4808, %v4807
      %v4814 = vsel %vm466, %v4800, 0
      %4816 = vmatprep.subr.bf16.mxu0 0
      %4817 = vmatpush1.bf16.msra.mxu0 %v4809
      %4818 = vmatprep.subr.bf16.mxu0 0
      %4819 = vmatpush1.bf16.msra.mxu0 %v4810
      %4820 = vmatprep.subr.bf16.mxu0 0
      %4821 = vmatpush1.bf16.msra.mxu0 0
      %4822 = vmatprep.subr.bf16.mxu0 0
      %4823 = vmatpush1.bf16.msra.mxu0 0
      %4824 = vmatprep.subr.bf16.mxu0 0
      %4825 = vmatpush1.bf16.msra.mxu0 0
      %4826 = vmatprep.subr.bf16.mxu0 0
      %4827 = vmatpush1.bf16.msra.mxu0 0
      %4828 = vmatprep.subr.bf16.mxu0 0
      %4829 = vmatpush1.bf16.msra.mxu0 0
      %4830 = vmatprep.subr.bf16.mxu0 0
      %4831 = vmatpush1.bf16.msra.mxu0 0
      %4832 = vmatprep.subr.bf16.mxu0 0
      %4833 = vmatpush1.bf16.msra.mxu0 0
      %4834 = vmatprep.subr.bf16.mxu0 0
      %4835 = vmatpush1.bf16.msra.mxu0 0
      %4836 = vmatprep.subr.bf16.mxu0 0
      %4837 = vmatpush1.bf16.msra.mxu0 0
      %4838 = vmatprep.subr.bf16.mxu0 0
      %4839 = vmatpush1.bf16.msra.mxu0 0
      %4840 = vmatprep.subr.bf16.mxu0 0
      %4841 = vmatpush1.bf16.msra.mxu0 0
      %4842 = vmatprep.subr.bf16.mxu0 0
      %4843 = vmatpush1.bf16.msra.mxu0 0
      %4844 = vmatprep.subr.bf16.mxu0 0
      %4845 = vmatpush1.bf16.msra.mxu0 0
      %4846 = vmatprep.subr.bf16.mxu0 0
      %4847 = vmatpush1.bf16.msra.mxu0 0
      %4848 = vmatprep.mubr.bf16.mxu0 0
      %4849 = vmatmul.mubr.bf16.gmra.mrb[0].mxu0 %v4814
      %v4850 = vpop.f32.mrb[0].mxu0
      %v4851 = vadd.f32 0.0, %v4850
      %v4852 = vpop.f32.mrb[0].mxu0
      %v4853 = vpop.f32.mrb[0].mxu0
      %v4854 = vpop.f32.mrb[0].mxu0
      %4855 = vdwg.mxu0
      %v4856 = vadd.f32 %v4757, %v4851
      %v4857 = vld [vmem:[%s7] sm:$0xf]
      %v4858 = vld [vmem:[%s7 + $0x4] sm:$0xf]
      %v4859 = vld [vmem:[%s7 + $0x8] sm:$0xf]
      %v4860 = vld [vmem:[%s7 + $0xc] sm:$0xf]
      %v4865 = vunpack.c.l.b16 %v4857
      %v4866 = vunpack.c.l.b16 %v4858
      %v4867 = vunpack.c.l.b16 %v4859
      %v4868 = vunpack.c.l.b16 %v4860
      %v4869 = vpack.c.b16 %v4866, %v4865
      %v4870 = vpack.c.b16 %v4868, %v4867
      %4873 = vmatprep.subr.bf16.mxu0 0
      %4874 = vmatpush1.bf16.msra.mxu0 %v4869
      %4875 = vmatprep.subr.bf16.mxu0 0
      %4876 = vmatpush1.bf16.msra.mxu0 %v4870
      %4877 = vmatprep.subr.bf16.mxu0 0
      %4878 = vmatpush1.bf16.msra.mxu0 0
      %4879 = vmatprep.subr.bf16.mxu0 0
      %4880 = vmatpush1.bf16.msra.mxu0 0
      %4881 = vmatprep.subr.bf16.mxu0 0
      %4882 = vmatpush1.bf16.msra.mxu0 0
      %4883 = vmatprep.subr.bf16.mxu0 0
      %4884 = vmatpush1.bf16.msra.mxu0 0
      %4885 = vmatprep.subr.bf16.mxu0 0
      %4886 = vmatpush1.bf16.msra.mxu0 0
      %4887 = vmatprep.subr.bf16.mxu0 0
      %4888 = vmatpush1.bf16.msra.mxu0 0
      %4889 = vmatprep.subr.bf16.mxu0 0
      %4890 = vmatpush1.bf16.msra.mxu0 0
      %4891 = vmatprep.subr.bf16.mxu0 0
      %4892 = vmatpush1.bf16.msra.mxu0 0
      %4893 = vmatprep.subr.bf16.mxu0 0
      %4894 = vmatpush1.bf16.msra.mxu0 0
      %4895 = vmatprep.subr.bf16.mxu0 0
      %4896 = vmatpush1.bf16.msra.mxu0 0
      %4897 = vmatprep.subr.bf16.mxu0 0
      %4898 = vmatpush1.bf16.msra.mxu0 0
      %4899 = vmatprep.subr.bf16.mxu0 0
      %4900 = vmatpush1.bf16.msra.mxu0 0
      %4901 = vmatprep.subr.bf16.mxu0 0
      %4902 = vmatpush1.bf16.msra.mxu0 0
      %4903 = vmatprep.subr.bf16.mxu0 0
      %4904 = vmatpush1.bf16.msra.mxu0 0
      %4905 = vmatprep.mubr.bf16.mxu0 0
      %4906 = vmatmul.mubr.bf16.gmra.mrb[0].mxu0 %v3420
      %v4907 = vpop.f32.mrb[0].mxu0
      %v4908 = vadd.f32 0.0, %v4907
      %v4909 = vpop.f32.mrb[0].mxu0
      %v4910 = vpop.f32.mrb[0].mxu0
      %v4911 = vpop.f32.mrb[0].mxu0
      %4912 = vdwg.mxu0
      %v4913 = vadd.f32 %v4856, %v4908
      %v4914 = vxor.u32 %v4913, 2147483648
      %v4915 = vmul.f32 %v4914, 1.442695
      %v4916 = vpow.pop %v4915
      %v4917 = vadd.f32 %v4916, 1.0
      %v4918 = vrcp.pop %v4917
      %v4919 = vmul.f32 1.0, %v4918
      %v4920 = vtanh.pop %v4913
      %v4921 = vmul.f32 %v4919, %v3385
      %4923 = vrot.lane.b32.xlu0 %v4920, 64
      %v4924 = vpop.permute.xlu0 %4923
      %v4926 = vmul.f32 %v4919, %v4924
      %4928 = vrot.lane.b32.xlu0 %v4926, 32
      %v4929 = vpop.permute.xlu0 %4928
      %v4931 = vadd.f32 %v4921, %v4929
      %v4932 = vtanh.pop %v4931
      %4934 = vrot.lane.b32.xlu0 %v4932, 64
      %v4935 = vpop.permute.xlu0 %4934
      %v4937 = vmul.f32 %v4919, %v4935
      %v4938 = vpack.c.bf16 %v4937, %v4937
      %v4939 = vld [vmem:[%s8] sm:$0xf]
      %v4940 = vld [vmem:[%s8 + $0x4] sm:$0xf]
      %v4941 = vld [vmem:[%s8 + $0x8] sm:$0xf]
      %v4942 = vld [vmem:[%s8 + $0xc] sm:$0xf]
      %v4943 = vld [vmem:[%s9] sm:$0x1]
      %v4945 = vlaneseq
      %v4946 = vshrl.u32 %v4945, 7
      %v4947 = vsub.s32 0, %v4946
      %v4948 = vrot.slane %v4943, %v4947
      %4951 = vrot.lane.b32.xlu0 %v4938, 32
      %v4952 = vpop.permute.xlu0 %4951
      %v4957 = vunpack.c.l.b16 %v4939
      %v4958 = vunpack.c.l.b16 %v4940
      %v4959 = vunpack.c.l.b16 %v4941
      %v4960 = vunpack.c.l.b16 %v4942
      %v4961 = vpack.c.b16 %v4958, %v4957
      %v4962 = vpack.c.b16 %v4960, %v4959
      %v4966 = vsel %vm466, %v4952, 0
      %4968 = vmatprep.subr.bf16.mxu0 0
      %4969 = vmatpush1.bf16.msra.mxu0 %v4961
      %4970 = vmatprep.subr.bf16.mxu0 0
      %4971 = vmatpush1.bf16.msra.mxu0 %v4962
      %4972 = vmatprep.subr.bf16.mxu0 0
      %4973 = vmatpush1.bf16.msra.mxu0 0
      %4974 = vmatprep.subr.bf16.mxu0 0
      %4975 = vmatpush1.bf16.msra.mxu0 0
      %4976 = vmatprep.subr.bf16.mxu0 0
      %4977 = vmatpush1.bf16.msra.mxu0 0
      %4978 = vmatprep.subr.bf16.mxu0 0
      %4979 = vmatpush1.bf16.msra.mxu0 0
      %4980 = vmatprep.subr.bf16.mxu0 0
      %4981 = vmatpush1.bf16.msra.mxu0 0
      %4982 = vmatprep.subr.bf16.mxu0 0
      %4983 = vmatpush1.bf16.msra.mxu0 0
      %4984 = vmatprep.subr.bf16.mxu0 0
      %4985 = vmatpush1.bf16.msra.mxu0 0
      %4986 = vmatprep.subr.bf16.mxu0 0
      %4987 = vmatpush1.bf16.msra.mxu0 0
      %4988 = vmatprep.subr.bf16.mxu0 0
      %4989 = vmatpush1.bf16.msra.mxu0 0
      %4990 = vmatprep.subr.bf16.mxu0 0
      %4991 = vmatpush1.bf16.msra.mxu0 0
      %4992 = vmatprep.subr.bf16.mxu0 0
      %4993 = vmatpush1.bf16.msra.mxu0 0
      %4994 = vmatprep.subr.bf16.mxu0 0
      %4995 = vmatpush1.bf16.msra.mxu0 0
      %4996 = vmatprep.subr.bf16.mxu0 0
      %4997 = vmatpush1.bf16.msra.mxu0 0
      %4998 = vmatprep.subr.bf16.mxu0 0
      %4999 = vmatpush1.bf16.msra.mxu0 0
      %5000 = vmatprep.mubr.bf16.mxu0 0
      %5001 = vmatmul.mubr.bf16.gmra.mrb[0].mxu0 %v4966
      %v5002 = vpop.f32.mrb[0].mxu0
      %v5003 = vadd.f32 %v4948, %v5002
      %v5004 = vpop.f32.mrb[0].mxu0
      %v5005 = vpop.f32.mrb[0].mxu0
      %v5006 = vpop.f32.mrb[0].mxu0
      %5007 = vdwg.mxu0
      %5008 = vst [vmem:[%s374 + $0x10] sm:$0xff] %v5003
      %5025 = vset.pattern.permute.xlu0 0
      %5026 = vperm.xlu0 %5025, %v4235
      %v5027 = vpop.permute.xlu0 %5026
      %5028 = vset.pattern.permute.xlu0 0
      %5029 = vperm.xlu0 %5028, %v4236
      %v5030 = vpop.permute.xlu0 %5029
      %5031 = vset.pattern.permute.xlu0 0
      %5032 = vperm.xlu0 %5031, %v4237
      %v5033 = vpop.permute.xlu0 %5032
      %5034 = vset.pattern.permute.xlu0 0
      %5035 = vperm.xlu0 %5034, %v4238
      %v5036 = vpop.permute.xlu0 %5035
      %5037 = vset.pattern.permute.xlu0 0
      %5038 = vperm.xlu0 %5037, %v4239
      %v5039 = vpop.permute.xlu0 %5038
      %5040 = vset.pattern.permute.xlu0 0
      %5041 = vperm.xlu0 %5040, %v4240
      %v5042 = vpop.permute.xlu0 %5041
      %5043 = vset.pattern.permute.xlu0 0
      %5044 = vperm.xlu0 %5043, %v4241
      %v5045 = vpop.permute.xlu0 %5044
      %5046 = vset.pattern.permute.xlu0 0
      %5047 = vperm.xlu0 %5046, %v4242
      %v5048 = vpop.permute.xlu0 %5047
      %5049 = vset.pattern.permute.xlu0 0
      %5050 = vperm.xlu0 %5049, %v4243
      %v5051 = vpop.permute.xlu0 %5050
      %5052 = vset.pattern.permute.xlu0 0
      %5053 = vperm.xlu0 %5052, %v4244
      %v5054 = vpop.permute.xlu0 %5053
      %5055 = vset.pattern.permute.xlu0 0
      %5056 = vperm.xlu0 %5055, %v4245
      %v5057 = vpop.permute.xlu0 %5056
      %5058 = vset.pattern.permute.xlu0 0
      %5059 = vperm.xlu0 %5058, %v4246
      %v5060 = vpop.permute.xlu0 %5059
      %5061 = vset.pattern.permute.xlu0 0
      %5062 = vperm.xlu0 %5061, %v4247
      %v5063 = vpop.permute.xlu0 %5062
      %5064 = vset.pattern.permute.xlu0 0
      %5065 = vperm.xlu0 %5064, %v4248
      %v5066 = vpop.permute.xlu0 %5065
      %5067 = vset.pattern.permute.xlu0 0
      %5068 = vperm.xlu0 %5067, %v4249
      %v5069 = vpop.permute.xlu0 %5068
      %5070 = vset.pattern.permute.xlu0 0
      %5071 = vperm.xlu0 %5070, %v4250
      %v5072 = vpop.permute.xlu0 %5071
      %v5073 = vlaneseq
      %v5074 = vshrl.u32 %v5073, 7
      %v5075 = vsub.s32 %v719, %v5074
      %v5076 = vrot.slane %v5027, %v5075
      %v5077 = vlaneseq
      %v5078 = vshrl.u32 %v5077, 7
      %v5079 = vsub.s32 %v724, %v5078
      %v5080 = vrot.slane %v5030, %v5079
      %v5081 = vsel %vm729, %v5080, %v5076
      %v5082 = vlaneseq
      %v5083 = vshrl.u32 %v5082, 7
      %v5084 = vsub.s32 %v719, %v5083
      %v5085 = vrot.slane %v5033, %v5084
      %v5086 = vlaneseq
      %v5087 = vshrl.u32 %v5086, 7
      %v5088 = vsub.s32 %v724, %v5087
      %v5089 = vrot.slane %v5036, %v5088
      %v5090 = vsel %vm729, %v5089, %v5085
      %v5091 = vlaneseq
      %v5092 = vshrl.u32 %v5091, 7
      %v5093 = vsub.s32 %v719, %v5092
      %v5094 = vrot.slane %v5039, %v5093
      %v5095 = vlaneseq
      %v5096 = vshrl.u32 %v5095, 7
      %v5097 = vsub.s32 %v724, %v5096
      %v5098 = vrot.slane %v5042, %v5097
      %v5099 = vsel %vm729, %v5098, %v5094
      %v5100 = vlaneseq
      %v5101 = vshrl.u32 %v5100, 7
      %v5102 = vsub.s32 %v719, %v5101
      %v5103 = vrot.slane %v5045, %v5102
      %v5104 = vlaneseq
      %v5105 = vshrl.u32 %v5104, 7
      %v5106 = vsub.s32 %v724, %v5105
      %v5107 = vrot.slane %v5048, %v5106
      %v5108 = vsel %vm729, %v5107, %v5103
      %v5109 = vlaneseq
      %v5110 = vshrl.u32 %v5109, 7
      %v5111 = vsub.s32 %v719, %v5110
      %v5112 = vrot.slane %v5051, %v5111
      %v5113 = vlaneseq
      %v5114 = vshrl.u32 %v5113, 7
      %v5115 = vsub.s32 %v724, %v5114
      %v5116 = vrot.slane %v5054, %v5115
      %v5117 = vsel %vm729, %v5116, %v5112
      %v5118 = vlaneseq
      %v5119 = vshrl.u32 %v5118, 7
      %v5120 = vsub.s32 %v719, %v5119
      %v5121 = vrot.slane %v5057, %v5120
      %v5122 = vlaneseq
      %v5123 = vshrl.u32 %v5122, 7
      %v5124 = vsub.s32 %v724, %v5123
      %v5125 = vrot.slane %v5060, %v5124
      %v5126 = vsel %vm729, %v5125, %v5121
      %v5127 = vlaneseq
      %v5128 = vshrl.u32 %v5127, 7
      %v5129 = vsub.s32 %v719, %v5128
      %v5130 = vrot.slane %v5063, %v5129
      %v5131 = vlaneseq
      %v5132 = vshrl.u32 %v5131, 7
      %v5133 = vsub.s32 %v724, %v5132
      %v5134 = vrot.slane %v5066, %v5133
      %v5135 = vsel %vm729, %v5134, %v5130
      %v5136 = vlaneseq
      %v5137 = vshrl.u32 %v5136, 7
      %v5138 = vsub.s32 %v719, %v5137
      %v5139 = vrot.slane %v5069, %v5138
      %v5140 = vlaneseq
      %v5141 = vshrl.u32 %v5140, 7
      %v5142 = vsub.s32 %v724, %v5141
      %v5143 = vrot.slane %v5072, %v5142
      %v5144 = vsel %vm729, %v5143, %v5139
      %v5145 = vsel %vm794, %v5090, %v5081
      %v5146 = vsel %vm796, %v5099, %v5145
      %v5147 = vsel %vm798, %v5108, %v5146
      %v5148 = vsel %vm800, %v5117, %v5147
      %v5149 = vsel %vm802, %v5126, %v5148
      %v5150 = vsel %vm804, %v5135, %v5149
      %v5151 = vsel %vm806, %v5144, %v5150
      %5153 = vst.msk [vmem:[%s380 + $0x10] sm:$0xff] %vm809, %v5151
      %s5154 = sadd.s32 %s441, 3
      %v5155 = vld [vmem:[%s3] sm:$0xf]
      %v5156 = vld [vmem:[%s3 + $0x4] sm:$0xf]
      %v5157 = vld [vmem:[%s3 + $0x8] sm:$0xf]
      %v5158 = vld [vmem:[%s3 + $0xc] sm:$0xf]
      %v5159 = vld [vmem:[%s4] sm:$0x1]
      %v5161 = vlaneseq
      %v5162 = vshrl.u32 %v5161, 7
      %v5163 = vsub.s32 0, %v5162
      %v5164 = vrot.slane %v5159, %v5163
      %v5170 = vunpack.c.l.b16 %v5155
      %v5171 = vunpack.c.l.b16 %v5156
      %v5172 = vunpack.c.l.b16 %v5157
      %v5173 = vunpack.c.l.b16 %v5158
      %v5174 = vpack.c.b16 %v5171, %v5170
      %v5175 = vpack.c.b16 %v5173, %v5172
      %5178 = vmatprep.subr.bf16.mxu0 0
      %5179 = vmatpush1.bf16.msra.mxu0 %v5174
      %5180 = vmatprep.subr.bf16.mxu0 0
      %5181 = vmatpush1.bf16.msra.mxu0 %v5175
      %5182 = vmatprep.subr.bf16.mxu0 0
      %5183 = vmatpush1.bf16.msra.mxu0 0
      %5184 = vmatprep.subr.bf16.mxu0 0
      %5185 = vmatpush1.bf16.msra.mxu0 0
      %5186 = vmatprep.subr.bf16.mxu0 0
      %5187 = vmatpush1.bf16.msra.mxu0 0
      %5188 = vmatprep.subr.bf16.mxu0 0
      %5189 = vmatpush1.bf16.msra.mxu0 0
      %5190 = vmatprep.subr.bf16.mxu0 0
      %5191 = vmatpush1.bf16.msra.mxu0 0
      %5192 = vmatprep.subr.bf16.mxu0 0
      %5193 = vmatpush1.bf16.msra.mxu0 0
      %5194 = vmatprep.subr.bf16.mxu0 0
      %5195 = vmatpush1.bf16.msra.mxu0 0
      %5196 = vmatprep.subr.bf16.mxu0 0
      %5197 = vmatpush1.bf16.msra.mxu0 0
      %5198 = vmatprep.subr.bf16.mxu0 0
      %5199 = vmatpush1.bf16.msra.mxu0 0
      %5200 = vmatprep.subr.bf16.mxu0 0
      %5201 = vmatpush1.bf16.msra.mxu0 0
      %5202 = vmatprep.subr.bf16.mxu0 0
      %5203 = vmatpush1.bf16.msra.mxu0 0
      %5204 = vmatprep.subr.bf16.mxu0 0
      %5205 = vmatpush1.bf16.msra.mxu0 0
      %5206 = vmatprep.subr.bf16.mxu0 0
      %5207 = vmatpush1.bf16.msra.mxu0 0
      %5208 = vmatprep.subr.bf16.mxu0 0
      %5209 = vmatpush1.bf16.msra.mxu0 0
      %5210 = vmatprep.mubr.bf16.mxu0 0
      %5211 = vmatmul.mubr.bf16.gmra.mrb[0].mxu0 %v4966
      %v5212 = vpop.f32.mrb[0].mxu0
      %v5213 = vadd.f32 %v5164, %v5212
      %v5214 = vpop.f32.mrb[0].mxu0
      %v5215 = vpop.f32.mrb[0].mxu0
      %v5216 = vpop.f32.mrb[0].mxu0
      %5217 = vdwg.mxu0
      %v5219 = vcombine.high %v5213, %v5213
      %v5221 = vunpack.c.l.s4 1966171168
      %v5222 = vunpack.c.0.s8 %v5221
      %v5223 = vlaneseq
      %v5224 = vshrl.u32 %v5223, 7
      %v5225 = vsub.s32 %v5222, %v5224
      %v5226 = vrot.slane %v5213, %v5225
      %v5228 = vunpack.c.l.s4 1966171168
      %v5229 = vunpack.c.0.s8 %v5228
      %v5230 = vlaneseq
      %v5231 = vshrl.u32 %v5230, 7
      %v5232 = vsub.s32 %v5229, %v5231
      %v5233 = vrot.slane %v5219, %v5232
      %v5234 = vcombine.high %v5226, %v5226
      %v5235 = vcombine.high %v5233, %v5233
      %v5237 = vunpack.c.l.s4 1966171168
      %v5238 = vunpack.c.0.s8 %v5237
      %v5239 = vlaneseq
      %v5240 = vshrl.u32 %v5239, 7
      %v5241 = vsub.s32 %v5238, %v5240
      %v5242 = vrot.slane %v5226, %v5241
      %v5244 = vunpack.c.l.s4 1966171168
      %v5245 = vunpack.c.0.s8 %v5244
      %v5246 = vlaneseq
      %v5247 = vshrl.u32 %v5246, 7
      %v5248 = vsub.s32 %v5245, %v5247
      %v5249 = vrot.slane %v5233, %v5248
      %v5251 = vunpack.c.l.s4 1966171168
      %v5252 = vunpack.c.0.s8 %v5251
      %v5253 = vlaneseq
      %v5254 = vshrl.u32 %v5253, 7
      %v5255 = vsub.s32 %v5252, %v5254
      %v5256 = vrot.slane %v5234, %v5255
      %v5258 = vunpack.c.l.s4 1966171168
      %v5259 = vunpack.c.0.s8 %v5258
      %v5260 = vlaneseq
      %v5261 = vshrl.u32 %v5260, 7
      %v5262 = vsub.s32 %v5259, %v5261
      %v5263 = vrot.slane %v5235, %v5262
      %v5264 = vcombine.high %v5242, %v5242
      %v5265 = vcombine.high %v5249, %v5249
      %v5266 = vcombine.high %v5256, %v5256
      %v5267 = vcombine.high %v5263, %v5263
      %v5268 = vlaneseq
      %v5269 = vshrl.u32 %v5268, 7
      %v5270 = vsub.s32 0, %v5269
      %v5271 = vrot.slane %v5242, %v5270
      %v5272 = vlaneseq
      %v5273 = vshrl.u32 %v5272, 7
      %v5274 = vsub.s32 0, %v5273
      %v5275 = vrot.slane %v5256, %v5274
      %v5276 = vlaneseq
      %v5277 = vshrl.u32 %v5276, 7
      %v5278 = vsub.s32 0, %v5277
      %v5279 = vrot.slane %v5264, %v5278
      %v5280 = vlaneseq
      %v5281 = vshrl.u32 %v5280, 7
      %v5282 = vsub.s32 0, %v5281
      %v5283 = vrot.slane %v5266, %v5282
      %v5284 = vlaneseq
      %v5285 = vshrl.u32 %v5284, 7
      %v5286 = vsub.s32 0, %v5285
      %v5287 = vrot.slane %v5249, %v5286
      %v5288 = vlaneseq
      %v5289 = vshrl.u32 %v5288, 7
      %v5290 = vsub.s32 0, %v5289
      %v5291 = vrot.slane %v5263, %v5290
      %v5292 = vlaneseq
      %v5293 = vshrl.u32 %v5292, 7
      %v5294 = vsub.s32 0, %v5293
      %v5295 = vrot.slane %v5265, %v5294
      %v5296 = vlaneseq
      %v5297 = vshrl.u32 %v5296, 7
      %v5298 = vsub.s32 0, %v5297
      %v5299 = vrot.slane %v5267, %v5298
      %v5308 = vadd.f32 %v408, %v5271
      %v5309 = vadd.f32 %v409, %v5271
      %v5310 = vadd.f32 %v410, %v5275
      %v5311 = vadd.f32 %v411, %v5275
      %v5312 = vadd.f32 %v412, %v5279
      %v5313 = vadd.f32 %v413, %v5279
      %v5314 = vadd.f32 %v414, %v5283
      %v5315 = vadd.f32 %v415, %v5283
      %v5316 = vadd.f32 %v416, %v5287
      %v5317 = vadd.f32 %v417, %v5287
      %v5318 = vadd.f32 %v418, %v5291
      %v5319 = vadd.f32 %v419, %v5291
      %v5320 = vadd.f32 %v420, %v5295
      %v5321 = vadd.f32 %v421, %v5295
      %v5322 = vadd.f32 %v422, %v5299
      %v5323 = vadd.f32 %v423, %v5299
      %v5324 = vtanh.pop %v5308
      %v5325 = vtanh.pop %v5309
      %v5326 = vtanh.pop %v5310
      %v5327 = vtanh.pop %v5311
      %v5328 = vtanh.pop %v5312
      %v5329 = vtanh.pop %v5313
      %v5330 = vtanh.pop %v5314
      %v5331 = vtanh.pop %v5315
      %v5332 = vtanh.pop %v5316
      %v5333 = vtanh.pop %v5317
      %v5334 = vtanh.pop %v5318
      %v5335 = vtanh.pop %v5319
      %v5336 = vtanh.pop %v5320
      %v5337 = vtanh.pop %v5321
      %v5338 = vtanh.pop %v5322
      %v5339 = vtanh.pop %v5323
      %v5340 = vmul.f32 %v5324, %v636
      %v5341 = vmul.f32 %v5325, %v636
      %v5342 = vmul.f32 %v5326, %v636
      %v5343 = vmul.f32 %v5327, %v636
      %v5344 = vmul.f32 %v5328, %v636
      %v5345 = vmul.f32 %v5329, %v636
      %v5346 = vmul.f32 %v5330, %v636
      %v5347 = vmul.f32 %v5331, %v636
      %v5348 = vmul.f32 %v5332, %v636
      %v5349 = vmul.f32 %v5333, %v636
      %v5350 = vmul.f32 %v5334, %v636
      %v5351 = vmul.f32 %v5335, %v636
      %v5352 = vmul.f32 %v5336, %v636
      %v5353 = vmul.f32 %v5337, %v636
      %v5354 = vmul.f32 %v5338, %v636
      %v5355 = vmul.f32 %v5339, %v636
      %v5356 = vsel %vm466, %v5340, 0.0
      %5357 = vadd.xlane.f32.xlu0 %v5356
      %v5358 = vpop.xlane.xlu0 %5357
      %v5359 = vsel %vm466, %v5341, 0.0
      %5360 = vadd.xlane.f32.xlu0 %v5359
      %v5361 = vpop.xlane.xlu0 %5360
      %v5362 = vsel %vm466, %v5342, 0.0
      %5363 = vadd.xlane.f32.xlu0 %v5362
      %v5364 = vpop.xlane.xlu0 %5363
      %v5365 = vsel %vm466, %v5343, 0.0
      %5366 = vadd.xlane.f32.xlu0 %v5365
      %v5367 = vpop.xlane.xlu0 %5366
      %v5368 = vsel %vm466, %v5344, 0.0
      %5369 = vadd.xlane.f32.xlu0 %v5368
      %v5370 = vpop.xlane.xlu0 %5369
      %v5371 = vsel %vm466, %v5345, 0.0
      %5372 = vadd.xlane.f32.xlu0 %v5371
      %v5373 = vpop.xlane.xlu0 %5372
      %v5374 = vsel %vm466, %v5346, 0.0
      %5375 = vadd.xlane.f32.xlu0 %v5374
      %v5376 = vpop.xlane.xlu0 %5375
      %v5377 = vsel %vm466, %v5347, 0.0
      %5378 = vadd.xlane.f32.xlu0 %v5377
      %v5379 = vpop.xlane.xlu0 %5378
      %v5380 = vsel %vm466, %v5348, 0.0
      %5381 = vadd.xlane.f32.xlu0 %v5380
      %v5382 = vpop.xlane.xlu0 %5381
      %v5383 = vsel %vm466, %v5349, 0.0
      %5384 = vadd.xlane.f32.xlu0 %v5383
      %v5385 = vpop.xlane.xlu0 %5384
      %v5386 = vsel %vm466, %v5350, 0.0
      %5387 = vadd.xlane.f32.xlu0 %v5386
      %v5388 = vpop.xlane.xlu0 %5387
      %v5389 = vsel %vm466, %v5351, 0.0
      %5390 = vadd.xlane.f32.xlu0 %v5389
      %v5391 = vpop.xlane.xlu0 %5390
      %v5392 = vsel %vm466, %v5352, 0.0
      %5393 = vadd.xlane.f32.xlu0 %v5392
      %v5394 = vpop.xlane.xlu0 %5393
      %v5395 = vsel %vm466, %v5353, 0.0
      %5396 = vadd.xlane.f32.xlu0 %v5395
      %v5397 = vpop.xlane.xlu0 %5396
      %v5398 = vsel %vm466, %v5354, 0.0
      %5399 = vadd.xlane.f32.xlu0 %v5398
      %v5400 = vpop.xlane.xlu0 %5399
      %v5401 = vsel %vm466, %v5355, 0.0
      %5402 = vadd.xlane.f32.xlu0 %v5401
      %v5403 = vpop.xlane.xlu0 %5402
      %v5420 = vlaneseq
      %v5421 = vshrl.u32 %v5420, 7
      %v5422 = vsub.s32 %v719, %v5421
      %v5423 = vrot.slane %v5358, %v5422
      %v5424 = vlaneseq
      %v5425 = vshrl.u32 %v5424, 7
      %v5426 = vsub.s32 %v724, %v5425
      %v5427 = vrot.slane %v5361, %v5426
      %v5428 = vsel %vm729, %v5427, %v5423
      %v5429 = vlaneseq
      %v5430 = vshrl.u32 %v5429, 7
      %v5431 = vsub.s32 %v719, %v5430
      %v5432 = vrot.slane %v5364, %v5431
      %v5433 = vlaneseq
      %v5434 = vshrl.u32 %v5433, 7
      %v5435 = vsub.s32 %v724, %v5434
      %v5436 = vrot.slane %v5367, %v5435
      %v5437 = vsel %vm729, %v5436, %v5432
      %v5438 = vlaneseq
      %v5439 = vshrl.u32 %v5438, 7
      %v5440 = vsub.s32 %v719, %v5439
      %v5441 = vrot.slane %v5370, %v5440
      %v5442 = vlaneseq
      %v5443 = vshrl.u32 %v5442, 7
      %v5444 = vsub.s32 %v724, %v5443
      %v5445 = vrot.slane %v5373, %v5444
      %v5446 = vsel %vm729, %v5445, %v5441
      %v5447 = vlaneseq
      %v5448 = vshrl.u32 %v5447, 7
      %v5449 = vsub.s32 %v719, %v5448
      %v5450 = vrot.slane %v5376, %v5449
      %v5451 = vlaneseq
      %v5452 = vshrl.u32 %v5451, 7
      %v5453 = vsub.s32 %v724, %v5452
      %v5454 = vrot.slane %v5379, %v5453
      %v5455 = vsel %vm729, %v5454, %v5450
      %v5456 = vlaneseq
      %v5457 = vshrl.u32 %v5456, 7
      %v5458 = vsub.s32 %v719, %v5457
      %v5459 = vrot.slane %v5382, %v5458
      %v5460 = vlaneseq
      %v5461 = vshrl.u32 %v5460, 7
      %v5462 = vsub.s32 %v724, %v5461
      %v5463 = vrot.slane %v5385, %v5462
      %v5464 = vsel %vm729, %v5463, %v5459
      %v5465 = vlaneseq
      %v5466 = vshrl.u32 %v5465, 7
      %v5467 = vsub.s32 %v719, %v5466
      %v5468 = vrot.slane %v5388, %v5467
      %v5469 = vlaneseq
      %v5470 = vshrl.u32 %v5469, 7
      %v5471 = vsub.s32 %v724, %v5470
      %v5472 = vrot.slane %v5391, %v5471
      %v5473 = vsel %vm729, %v5472, %v5468
      %v5474 = vlaneseq
      %v5475 = vshrl.u32 %v5474, 7
      %v5476 = vsub.s32 %v719, %v5475
      %v5477 = vrot.slane %v5394, %v5476
      %v5478 = vlaneseq
      %v5479 = vshrl.u32 %v5478, 7
      %v5480 = vsub.s32 %v724, %v5479
      %v5481 = vrot.slane %v5397, %v5480
      %v5482 = vsel %vm729, %v5481, %v5477
      %v5483 = vlaneseq
      %v5484 = vshrl.u32 %v5483, 7
      %v5485 = vsub.s32 %v719, %v5484
      %v5486 = vrot.slane %v5400, %v5485
      %v5487 = vlaneseq
      %v5488 = vshrl.u32 %v5487, 7
      %v5489 = vsub.s32 %v724, %v5488
      %v5490 = vrot.slane %v5403, %v5489
      %v5491 = vsel %vm729, %v5490, %v5486
      %v5492 = vsel %vm794, %v5437, %v5428
      %v5493 = vsel %vm796, %v5446, %v5492
      %v5494 = vsel %vm798, %v5455, %v5493
      %v5495 = vsel %vm800, %v5464, %v5494
      %v5496 = vsel %vm802, %v5473, %v5495
      %v5497 = vsel %vm804, %v5482, %v5496
      %v5498 = vsel %vm806, %v5491, %v5497
      %v5500 = vsel %vm809, %v5498, -inf
      %5501 = vmax.xlane.f32.xlu0 %v5500
      %v5502 = vpop.xlane.xlu0 %5501
      %v5504 = vlaneseq
      %v5505 = vshrl.u32 %v5504, 7
      %v5506 = vsub.s32 0, %v5505
      %v5507 = vrot.slane %v5502, %v5506
      %v5508 = vlaneseq
      %v5509 = vshrl.u32 %v5508, 7
      %v5510 = vsub.s32 1, %v5509
      %v5511 = vrot.slane %v5502, %v5510
      %v5512 = vlaneseq
      %v5513 = vshrl.u32 %v5512, 7
      %v5514 = vsub.s32 2, %v5513
      %v5515 = vrot.slane %v5502, %v5514
      %v5516 = vlaneseq
      %v5517 = vshrl.u32 %v5516, 7
      %v5518 = vsub.s32 3, %v5517
      %v5519 = vrot.slane %v5502, %v5518
      %v5520 = vlaneseq
      %v5521 = vshrl.u32 %v5520, 7
      %v5522 = vsub.s32 4, %v5521
      %v5523 = vrot.slane %v5502, %v5522
      %v5524 = vlaneseq
      %v5525 = vshrl.u32 %v5524, 7
      %v5526 = vsub.s32 5, %v5525
      %v5527 = vrot.slane %v5502, %v5526
      %v5528 = vlaneseq
      %v5529 = vshrl.u32 %v5528, 7
      %v5530 = vsub.s32 6, %v5529
      %v5531 = vrot.slane %v5502, %v5530
      %v5532 = vlaneseq
      %v5533 = vshrl.u32 %v5532, 7
      %v5534 = vsub.s32 7, %v5533
      %v5535 = vrot.slane %v5502, %v5534
      %v5544 = vsub.f32 %v5358, %v5507
      %v5545 = vsub.f32 %v5361, %v5507
      %v5546 = vsub.f32 %v5364, %v5511
      %v5547 = vsub.f32 %v5367, %v5511
      %v5548 = vsub.f32 %v5370, %v5515
      %v5549 = vsub.f32 %v5373, %v5515
      %v5550 = vsub.f32 %v5376, %v5519
      %v5551 = vsub.f32 %v5379, %v5519
      %v5552 = vsub.f32 %v5382, %v5523
      %v5553 = vsub.f32 %v5385, %v5523
      %v5554 = vsub.f32 %v5388, %v5527
      %v5555 = vsub.f32 %v5391, %v5527
      %v5556 = vsub.f32 %v5394, %v5531
      %v5557 = vsub.f32 %v5397, %v5531
      %v5558 = vsub.f32 %v5400, %v5535
      %v5559 = vsub.f32 %v5403, %v5535
      %v5560 = vmul.f32 %v5544, 1.442695
      %v5561 = vpow.pop %v5560
      %v5562 = vmul.f32 %v5545, 1.442695
      %v5563 = vpow.pop %v5562
      %v5564 = vmul.f32 %v5546, 1.442695
      %v5565 = vpow.pop %v5564
      %v5566 = vmul.f32 %v5547, 1.442695
      %v5567 = vpow.pop %v5566
      %v5568 = vmul.f32 %v5548, 1.442695
      %v5569 = vpow.pop %v5568
      %v5570 = vmul.f32 %v5549, 1.442695
      %v5571 = vpow.pop %v5570
      %v5572 = vmul.f32 %v5550, 1.442695
      %v5573 = vpow.pop %v5572
      %v5574 = vmul.f32 %v5551, 1.442695
      %v5575 = vpow.pop %v5574
      %v5576 = vmul.f32 %v5552, 1.442695
      %v5577 = vpow.pop %v5576
      %v5578 = vmul.f32 %v5553, 1.442695
      %v5579 = vpow.pop %v5578
      %v5580 = vmul.f32 %v5554, 1.442695
      %v5581 = vpow.pop %v5580
      %v5582 = vmul.f32 %v5555, 1.442695
      %v5583 = vpow.pop %v5582
      %v5584 = vmul.f32 %v5556, 1.442695
      %v5585 = vpow.pop %v5584
      %v5586 = vmul.f32 %v5557, 1.442695
      %v5587 = vpow.pop %v5586
      %v5588 = vmul.f32 %v5558, 1.442695
      %v5589 = vpow.pop %v5588
      %v5590 = vmul.f32 %v5559, 1.442695
      %v5591 = vpow.pop %v5590
      %5608 = vset.pattern.permute.xlu0 0
      %5609 = vperm.xlu0 %5608, %v5561
      %v5610 = vpop.permute.xlu0 %5609
      %5611 = vset.pattern.permute.xlu0 0
      %5612 = vperm.xlu0 %5611, %v5563
      %v5613 = vpop.permute.xlu0 %5612
      %5614 = vset.pattern.permute.xlu0 0
      %5615 = vperm.xlu0 %5614, %v5565
      %v5616 = vpop.permute.xlu0 %5615
      %5617 = vset.pattern.permute.xlu0 0
      %5618 = vperm.xlu0 %5617, %v5567
      %v5619 = vpop.permute.xlu0 %5618
      %5620 = vset.pattern.permute.xlu0 0
      %5621 = vperm.xlu0 %5620, %v5569
      %v5622 = vpop.permute.xlu0 %5621
      %5623 = vset.pattern.permute.xlu0 0
      %5624 = vperm.xlu0 %5623, %v5571
      %v5625 = vpop.permute.xlu0 %5624
      %5626 = vset.pattern.permute.xlu0 0
      %5627 = vperm.xlu0 %5626, %v5573
      %v5628 = vpop.permute.xlu0 %5627
      %5629 = vset.pattern.permute.xlu0 0
      %5630 = vperm.xlu0 %5629, %v5575
      %v5631 = vpop.permute.xlu0 %5630
      %5632 = vset.pattern.permute.xlu0 0
      %5633 = vperm.xlu0 %5632, %v5577
      %v5634 = vpop.permute.xlu0 %5633
      %5635 = vset.pattern.permute.xlu0 0
      %5636 = vperm.xlu0 %5635, %v5579
      %v5637 = vpop.permute.xlu0 %5636
      %5638 = vset.pattern.permute.xlu0 0
      %5639 = vperm.xlu0 %5638, %v5581
      %v5640 = vpop.permute.xlu0 %5639
      %5641 = vset.pattern.permute.xlu0 0
      %5642 = vperm.xlu0 %5641, %v5583
      %v5643 = vpop.permute.xlu0 %5642
      %5644 = vset.pattern.permute.xlu0 0
      %5645 = vperm.xlu0 %5644, %v5585
      %v5646 = vpop.permute.xlu0 %5645
      %5647 = vset.pattern.permute.xlu0 0
      %5648 = vperm.xlu0 %5647, %v5587
      %v5649 = vpop.permute.xlu0 %5648
      %5650 = vset.pattern.permute.xlu0 0
      %5651 = vperm.xlu0 %5650, %v5589
      %v5652 = vpop.permute.xlu0 %5651
      %5653 = vset.pattern.permute.xlu0 0
      %5654 = vperm.xlu0 %5653, %v5591
      %v5655 = vpop.permute.xlu0 %5654
      %v5656 = vlaneseq
      %v5657 = vshrl.u32 %v5656, 7
      %v5658 = vsub.s32 %v719, %v5657
      %v5659 = vrot.slane %v5610, %v5658
      %v5660 = vlaneseq
      %v5661 = vshrl.u32 %v5660, 7
      %v5662 = vsub.s32 %v724, %v5661
      %v5663 = vrot.slane %v5613, %v5662
      %v5664 = vsel %vm729, %v5663, %v5659
      %v5665 = vlaneseq
      %v5666 = vshrl.u32 %v5665, 7
      %v5667 = vsub.s32 %v719, %v5666
      %v5668 = vrot.slane %v5616, %v5667
      %v5669 = vlaneseq
      %v5670 = vshrl.u32 %v5669, 7
      %v5671 = vsub.s32 %v724, %v5670
      %v5672 = vrot.slane %v5619, %v5671
      %v5673 = vsel %vm729, %v5672, %v5668
      %v5674 = vlaneseq
      %v5675 = vshrl.u32 %v5674, 7
      %v5676 = vsub.s32 %v719, %v5675
      %v5677 = vrot.slane %v5622, %v5676
      %v5678 = vlaneseq
      %v5679 = vshrl.u32 %v5678, 7
      %v5680 = vsub.s32 %v724, %v5679
      %v5681 = vrot.slane %v5625, %v5680
      %v5682 = vsel %vm729, %v5681, %v5677
      %v5683 = vlaneseq
      %v5684 = vshrl.u32 %v5683, 7
      %v5685 = vsub.s32 %v719, %v5684
      %v5686 = vrot.slane %v5628, %v5685
      %v5687 = vlaneseq
      %v5688 = vshrl.u32 %v5687, 7
      %v5689 = vsub.s32 %v724, %v5688
      %v5690 = vrot.slane %v5631, %v5689
      %v5691 = vsel %vm729, %v5690, %v5686
      %v5692 = vlaneseq
      %v5693 = vshrl.u32 %v5692, 7
      %v5694 = vsub.s32 %v719, %v5693
      %v5695 = vrot.slane %v5634, %v5694
      %v5696 = vlaneseq
      %v5697 = vshrl.u32 %v5696, 7
      %v5698 = vsub.s32 %v724, %v5697
      %v5699 = vrot.slane %v5637, %v5698
      %v5700 = vsel %vm729, %v5699, %v5695
      %v5701 = vlaneseq
      %v5702 = vshrl.u32 %v5701, 7
      %v5703 = vsub.s32 %v719, %v5702
      %v5704 = vrot.slane %v5640, %v5703
      %v5705 = vlaneseq
      %v5706 = vshrl.u32 %v5705, 7
      %v5707 = vsub.s32 %v724, %v5706
      %v5708 = vrot.slane %v5643, %v5707
      %v5709 = vsel %vm729, %v5708, %v5704
      %v5710 = vlaneseq
      %v5711 = vshrl.u32 %v5710, 7
      %v5712 = vsub.s32 %v719, %v5711
      %v5713 = vrot.slane %v5646, %v5712
      %v5714 = vlaneseq
      %v5715 = vshrl.u32 %v5714, 7
      %v5716 = vsub.s32 %v724, %v5715
      %v5717 = vrot.slane %v5649, %v5716
      %v5718 = vsel %vm729, %v5717, %v5713
      %v5719 = vlaneseq
      %v5720 = vshrl.u32 %v5719, 7
      %v5721 = vsub.s32 %v719, %v5720
      %v5722 = vrot.slane %v5652, %v5721
      %v5723 = vlaneseq
      %v5724 = vshrl.u32 %v5723, 7
      %v5725 = vsub.s32 %v724, %v5724
      %v5726 = vrot.slane %v5655, %v5725
      %v5727 = vsel %vm729, %v5726, %v5722
      %v5728 = vsel %vm794, %v5673, %v5664
      %v5729 = vsel %vm796, %v5682, %v5728
      %v5730 = vsel %vm798, %v5691, %v5729
      %v5731 = vsel %vm800, %v5700, %v5730
      %v5732 = vsel %vm802, %v5709, %v5731
      %v5733 = vsel %vm804, %v5718, %v5732
      %v5734 = vsel %vm806, %v5727, %v5733
      %v5736 = vsel %vm809, %v5734, 0.0
      %5737 = vadd.xlane.f32.xlu0 %v5736
      %v5738 = vpop.xlane.xlu0 %5737
      %v5739 = vrcp.pop %v5738
      %v5741 = vlaneseq
      %v5742 = vshrl.u32 %v5741, 7
      %v5743 = vsub.s32 0, %v5742
      %v5744 = vrot.slane %v5739, %v5743
      %v5745 = vlaneseq
      %v5746 = vshrl.u32 %v5745, 7
      %v5747 = vsub.s32 1, %v5746
      %v5748 = vrot.slane %v5739, %v5747
      %v5749 = vlaneseq
      %v5750 = vshrl.u32 %v5749, 7
      %v5751 = vsub.s32 2, %v5750
      %v5752 = vrot.slane %v5739, %v5751
      %v5753 = vlaneseq
      %v5754 = vshrl.u32 %v5753, 7
      %v5755 = vsub.s32 3, %v5754
      %v5756 = vrot.slane %v5739, %v5755
      %v5757 = vlaneseq
      %v5758 = vshrl.u32 %v5757, 7
      %v5759 = vsub.s32 4, %v5758
      %v5760 = vrot.slane %v5739, %v5759
      %v5761 = vlaneseq
      %v5762 = vshrl.u32 %v5761, 7
      %v5763 = vsub.s32 5, %v5762
      %v5764 = vrot.slane %v5739, %v5763
      %v5765 = vlaneseq
      %v5766 = vshrl.u32 %v5765, 7
      %v5767 = vsub.s32 6, %v5766
      %v5768 = vrot.slane %v5739, %v5767
      %v5769 = vlaneseq
      %v5770 = vshrl.u32 %v5769, 7
      %v5771 = vsub.s32 7, %v5770
      %v5772 = vrot.slane %v5739, %v5771
      %v5781 = vmul.f32 %v5561, %v5744
      %v5782 = vmul.f32 %v5563, %v5744
      %v5783 = vmul.f32 %v5565, %v5748
      %v5784 = vmul.f32 %v5567, %v5748
      %v5785 = vmul.f32 %v5569, %v5752
      %v5786 = vmul.f32 %v5571, %v5752
      %v5787 = vmul.f32 %v5573, %v5756
      %v5788 = vmul.f32 %v5575, %v5756
      %v5789 = vmul.f32 %v5577, %v5760
      %v5790 = vmul.f32 %v5579, %v5760
      %v5791 = vmul.f32 %v5581, %v5764
      %v5792 = vmul.f32 %v5583, %v5764
      %v5793 = vmul.f32 %v5585, %v5768
      %v5794 = vmul.f32 %v5587, %v5768
      %v5795 = vmul.f32 %v5589, %v5772
      %v5796 = vmul.f32 %v5591, %v5772
      %v5797 = vpack.c.bf16 %v5782, %v5781
      %v5798 = vpack.c.bf16 %v5784, %v5783
      %v5799 = vpack.c.bf16 %v5786, %v5785
      %v5800 = vpack.c.bf16 %v5788, %v5787
      %v5801 = vpack.c.bf16 %v5790, %v5789
      %v5802 = vpack.c.bf16 %v5792, %v5791
      %v5803 = vpack.c.bf16 %v5794, %v5793
      %v5804 = vpack.c.bf16 %v5796, %v5795
      %v5806 = vunpack.c.l.b16 %v5797
      %v5807 = vunpack.c.h.b16 %v5797
      %5808 = vset.pattern.permute.xlu0 0
      %5809 = vperm.xlu0 %5808, %v5806
      %v5810 = vpop.permute.xlu0 %5809
      %5811 = vset.pattern.permute.xlu0 0
      %5812 = vperm.xlu0 %5811, %v5807
      %v5813 = vpop.permute.xlu0 %5812
      %v5814 = vlaneseq
      %v5815 = vshrl.u32 %v5814, 7
      %v5816 = vsub.s32 %v719, %v5815
      %v5817 = vrot.slane %v5810, %v5816
      %v5818 = vlaneseq
      %v5819 = vshrl.u32 %v5818, 7
      %v5820 = vsub.s32 %v724, %v5819
      %v5821 = vrot.slane %v5813, %v5820
      %v5822 = vsel %vm729, %v5821, %v5817
      %v5823 = vpack.c.b16 %v5822, %v5822
      %v5825 = vsel %vm809, %v5823, 0
      %5827 = vmatprep.subr.bf16.mxu0 0
      %5828 = vmatpush1.bf16.msra.mxu0 %v1138
      %5829 = vmatprep.subr.bf16.mxu0 0
      %5830 = vmatpush1.bf16.msra.mxu0 0
      %5831 = vmatprep.subr.bf16.mxu0 0
      %5832 = vmatpush1.bf16.msra.mxu0 0
      %5833 = vmatprep.subr.bf16.mxu0 0
      %5834 = vmatpush1.bf16.msra.mxu0 0
      %5835 = vmatprep.subr.bf16.mxu0 0
      %5836 = vmatpush1.bf16.msra.mxu0 0
      %5837 = vmatprep.subr.bf16.mxu0 0
      %5838 = vmatpush1.bf16.msra.mxu0 0
      %5839 = vmatprep.subr.bf16.mxu0 0
      %5840 = vmatpush1.bf16.msra.mxu0 0
      %5841 = vmatprep.subr.bf16.mxu0 0
      %5842 = vmatpush1.bf16.msra.mxu0 0
      %5843 = vmatprep.subr.bf16.mxu0 0
      %5844 = vmatpush1.bf16.msra.mxu0 0
      %5845 = vmatprep.subr.bf16.mxu0 0
      %5846 = vmatpush1.bf16.msra.mxu0 0
      %5847 = vmatprep.subr.bf16.mxu0 0
      %5848 = vmatpush1.bf16.msra.mxu0 0
      %5849 = vmatprep.subr.bf16.mxu0 0
      %5850 = vmatpush1.bf16.msra.mxu0 0
      %5851 = vmatprep.subr.bf16.mxu0 0
      %5852 = vmatpush1.bf16.msra.mxu0 0
      %5853 = vmatprep.subr.bf16.mxu0 0
      %5854 = vmatpush1.bf16.msra.mxu0 0
      %5855 = vmatprep.subr.bf16.mxu0 0
      %5856 = vmatpush1.bf16.msra.mxu0 0
      %5857 = vmatprep.subr.bf16.mxu0 0
      %5858 = vmatpush1.bf16.msra.mxu0 0
      %5859 = vmatprep.mubr.bf16.mxu0 0
      %5860 = vmatmul.mubr.bf16.gmra.mrb[0].mxu0 %v5825
      %v5861 = vpop.f32.mrb[0].mxu0
      %v5862 = vadd.f32 0.0, %v5861
      %v5863 = vpop.f32.mrb[0].mxu0
      %v5864 = vpop.f32.mrb[0].mxu0
      %v5865 = vpop.f32.mrb[0].mxu0
      %5866 = vdwg.mxu0
      %v5868 = vunpack.c.l.b16 %v5798
      %v5869 = vunpack.c.h.b16 %v5798
      %5870 = vset.pattern.permute.xlu0 0
      %5871 = vperm.xlu0 %5870, %v5868
      %v5872 = vpop.permute.xlu0 %5871
      %5873 = vset.pattern.permute.xlu0 0
      %5874 = vperm.xlu0 %5873, %v5869
      %v5875 = vpop.permute.xlu0 %5874
      %v5876 = vlaneseq
      %v5877 = vshrl.u32 %v5876, 7
      %v5878 = vsub.s32 %v719, %v5877
      %v5879 = vrot.slane %v5872, %v5878
      %v5880 = vlaneseq
      %v5881 = vshrl.u32 %v5880, 7
      %v5882 = vsub.s32 %v724, %v5881
      %v5883 = vrot.slane %v5875, %v5882
      %v5884 = vsel %vm729, %v5883, %v5879
      %v5885 = vpack.c.b16 %v5884, %v5884
      %v5887 = vsel %vm809, %v5885, 0
      %5889 = vmatprep.subr.bf16.mxu0 0
      %5890 = vmatpush1.bf16.msra.mxu0 %v1206
      %5891 = vmatprep.subr.bf16.mxu0 0
      %5892 = vmatpush1.bf16.msra.mxu0 0
      %5893 = vmatprep.subr.bf16.mxu0 0
      %5894 = vmatpush1.bf16.msra.mxu0 0
      %5895 = vmatprep.subr.bf16.mxu0 0
      %5896 = vmatpush1.bf16.msra.mxu0 0
      %5897 = vmatprep.subr.bf16.mxu0 0
      %5898 = vmatpush1.bf16.msra.mxu0 0
      %5899 = vmatprep.subr.bf16.mxu0 0
      %5900 = vmatpush1.bf16.msra.mxu0 0
      %5901 = vmatprep.subr.bf16.mxu0 0
      %5902 = vmatpush1.bf16.msra.mxu0 0
      %5903 = vmatprep.subr.bf16.mxu0 0
      %5904 = vmatpush1.bf16.msra.mxu0 0
      %5905 = vmatprep.subr.bf16.mxu0 0
      %5906 = vmatpush1.bf16.msra.mxu0 0
      %5907 = vmatprep.subr.bf16.mxu0 0
      %5908 = vmatpush1.bf16.msra.mxu0 0
      %5909 = vmatprep.subr.bf16.mxu0 0
      %5910 = vmatpush1.bf16.msra.mxu0 0
      %5911 = vmatprep.subr.bf16.mxu0 0
      %5912 = vmatpush1.bf16.msra.mxu0 0
      %5913 = vmatprep.subr.bf16.mxu0 0
      %5914 = vmatpush1.bf16.msra.mxu0 0
      %5915 = vmatprep.subr.bf16.mxu0 0
      %5916 = vmatpush1.bf16.msra.mxu0 0
      %5917 = vmatprep.subr.bf16.mxu0 0
      %5918 = vmatpush1.bf16.msra.mxu0 0
      %5919 = vmatprep.subr.bf16.mxu0 0
      %5920 = vmatpush1.bf16.msra.mxu0 0
      %5921 = vmatprep.mubr.bf16.mxu0 0
      %5922 = vmatmul.mubr.bf16.gmra.mrb[0].mxu0 %v5887
      %v5923 = vpop.f32.mrb[0].mxu0
      %v5924 = vadd.f32 0.0, %v5923
      %v5925 = vpop.f32.mrb[0].mxu0
      %v5926 = vpop.f32.mrb[0].mxu0
      %v5927 = vpop.f32.mrb[0].mxu0
      %5928 = vdwg.mxu0
      %v5930 = vunpack.c.l.b16 %v5799
      %v5931 = vunpack.c.h.b16 %v5799
      %5932 = vset.pattern.permute.xlu0 0
      %5933 = vperm.xlu0 %5932, %v5930
      %v5934 = vpop.permute.xlu0 %5933
      %5935 = vset.pattern.permute.xlu0 0
      %5936 = vperm.xlu0 %5935, %v5931
      %v5937 = vpop.permute.xlu0 %5936
      %v5938 = vlaneseq
      %v5939 = vshrl.u32 %v5938, 7
      %v5940 = vsub.s32 %v719, %v5939
      %v5941 = vrot.slane %v5934, %v5940
      %v5942 = vlaneseq
      %v5943 = vshrl.u32 %v5942, 7
      %v5944 = vsub.s32 %v724, %v5943
      %v5945 = vrot.slane %v5937, %v5944
      %v5946 = vsel %vm729, %v5945, %v5941
      %v5947 = vpack.c.b16 %v5946, %v5946
      %v5949 = vsel %vm809, %v5947, 0
      %5951 = vmatprep.subr.bf16.mxu0 0
      %5952 = vmatpush1.bf16.msra.mxu0 %v1274
      %5953 = vmatprep.subr.bf16.mxu0 0
      %5954 = vmatpush1.bf16.msra.mxu0 0
      %5955 = vmatprep.subr.bf16.mxu0 0
      %5956 = vmatpush1.bf16.msra.mxu0 0
      %5957 = vmatprep.subr.bf16.mxu0 0
      %5958 = vmatpush1.bf16.msra.mxu0 0
      %5959 = vmatprep.subr.bf16.mxu0 0
      %5960 = vmatpush1.bf16.msra.mxu0 0
      %5961 = vmatprep.subr.bf16.mxu0 0
      %5962 = vmatpush1.bf16.msra.mxu0 0
      %5963 = vmatprep.subr.bf16.mxu0 0
      %5964 = vmatpush1.bf16.msra.mxu0 0
      %5965 = vmatprep.subr.bf16.mxu0 0
      %5966 = vmatpush1.bf16.msra.mxu0 0
      %5967 = vmatprep.subr.bf16.mxu0 0
      %5968 = vmatpush1.bf16.msra.mxu0 0
      %5969 = vmatprep.subr.bf16.mxu0 0
      %5970 = vmatpush1.bf16.msra.mxu0 0
      %5971 = vmatprep.subr.bf16.mxu0 0
      %5972 = vmatpush1.bf16.msra.mxu0 0
      %5973 = vmatprep.subr.bf16.mxu0 0
      %5974 = vmatpush1.bf16.msra.mxu0 0
      %5975 = vmatprep.subr.bf16.mxu0 0
      %5976 = vmatpush1.bf16.msra.mxu0 0
      %5977 = vmatprep.subr.bf16.mxu0 0
      %5978 = vmatpush1.bf16.msra.mxu0 0
      %5979 = vmatprep.subr.bf16.mxu0 0
      %5980 = vmatpush1.bf16.msra.mxu0 0
      %5981 = vmatprep.subr.bf16.mxu0 0
      %5982 = vmatpush1.bf16.msra.mxu0 0
      %5983 = vmatprep.mubr.bf16.mxu0 0
      %5984 = vmatmul.mubr.bf16.gmra.mrb[0].mxu0 %v5949
      %v5985 = vpop.f32.mrb[0].mxu0
      %v5986 = vadd.f32 0.0, %v5985
      %v5987 = vpop.f32.mrb[0].mxu0
      %v5988 = vpop.f32.mrb[0].mxu0
      %v5989 = vpop.f32.mrb[0].mxu0
      %5990 = vdwg.mxu0
      %v5992 = vunpack.c.l.b16 %v5800
      %v5993 = vunpack.c.h.b16 %v5800
      %5994 = vset.pattern.permute.xlu0 0
      %5995 = vperm.xlu0 %5994, %v5992
      %v5996 = vpop.permute.xlu0 %5995
      %5997 = vset.pattern.permute.xlu0 0
      %5998 = vperm.xlu0 %5997, %v5993
      %v5999 = vpop.permute.xlu0 %5998
      %v6000 = vlaneseq
      %v6001 = vshrl.u32 %v6000, 7
      %v6002 = vsub.s32 %v719, %v6001
      %v6003 = vrot.slane %v5996, %v6002
      %v6004 = vlaneseq
      %v6005 = vshrl.u32 %v6004, 7
      %v6006 = vsub.s32 %v724, %v6005
      %v6007 = vrot.slane %v5999, %v6006
      %v6008 = vsel %vm729, %v6007, %v6003
      %v6009 = vpack.c.b16 %v6008, %v6008
      %v6011 = vsel %vm809, %v6009, 0
      %6013 = vmatprep.subr.bf16.mxu0 0
      %6014 = vmatpush1.bf16.msra.mxu0 %v1342
      %6015 = vmatprep.subr.bf16.mxu0 0
      %6016 = vmatpush1.bf16.msra.mxu0 0
      %6017 = vmatprep.subr.bf16.mxu0 0
      %6018 = vmatpush1.bf16.msra.mxu0 0
      %6019 = vmatprep.subr.bf16.mxu0 0
      %6020 = vmatpush1.bf16.msra.mxu0 0
      %6021 = vmatprep.subr.bf16.mxu0 0
      %6022 = vmatpush1.bf16.msra.mxu0 0
      %6023 = vmatprep.subr.bf16.mxu0 0
      %6024 = vmatpush1.bf16.msra.mxu0 0
      %6025 = vmatprep.subr.bf16.mxu0 0
      %6026 = vmatpush1.bf16.msra.mxu0 0
      %6027 = vmatprep.subr.bf16.mxu0 0
      %6028 = vmatpush1.bf16.msra.mxu0 0
      %6029 = vmatprep.subr.bf16.mxu0 0
      %6030 = vmatpush1.bf16.msra.mxu0 0
      %6031 = vmatprep.subr.bf16.mxu0 0
      %6032 = vmatpush1.bf16.msra.mxu0 0
      %6033 = vmatprep.subr.bf16.mxu0 0
      %6034 = vmatpush1.bf16.msra.mxu0 0
      %6035 = vmatprep.subr.bf16.mxu0 0
      %6036 = vmatpush1.bf16.msra.mxu0 0
      %6037 = vmatprep.subr.bf16.mxu0 0
      %6038 = vmatpush1.bf16.msra.mxu0 0
      %6039 = vmatprep.subr.bf16.mxu0 0
      %6040 = vmatpush1.bf16.msra.mxu0 0
      %6041 = vmatprep.subr.bf16.mxu0 0
      %6042 = vmatpush1.bf16.msra.mxu0 0
      %6043 = vmatprep.subr.bf16.mxu0 0
      %6044 = vmatpush1.bf16.msra.mxu0 0
      %6045 = vmatprep.mubr.bf16.mxu0 0
      %6046 = vmatmul.mubr.bf16.gmra.mrb[0].mxu0 %v6011
      %v6047 = vpop.f32.mrb[0].mxu0
      %v6048 = vadd.f32 0.0, %v6047
      %v6049 = vpop.f32.mrb[0].mxu0
      %v6050 = vpop.f32.mrb[0].mxu0
      %v6051 = vpop.f32.mrb[0].mxu0
      %6052 = vdwg.mxu0
      %v6054 = vunpack.c.l.b16 %v5801
      %v6055 = vunpack.c.h.b16 %v5801
      %6056 = vset.pattern.permute.xlu0 0
      %6057 = vperm.xlu0 %6056, %v6054
      %v6058 = vpop.permute.xlu0 %6057
      %6059 = vset.pattern.permute.xlu0 0
      %6060 = vperm.xlu0 %6059, %v6055
      %v6061 = vpop.permute.xlu0 %6060
      %v6062 = vlaneseq
      %v6063 = vshrl.u32 %v6062, 7
      %v6064 = vsub.s32 %v719, %v6063
      %v6065 = vrot.slane %v6058, %v6064
      %v6066 = vlaneseq
      %v6067 = vshrl.u32 %v6066, 7
      %v6068 = vsub.s32 %v724, %v6067
      %v6069 = vrot.slane %v6061, %v6068
      %v6070 = vsel %vm729, %v6069, %v6065
      %v6071 = vpack.c.b16 %v6070, %v6070
      %v6073 = vsel %vm809, %v6071, 0
      %6075 = vmatprep.subr.bf16.mxu0 0
      %6076 = vmatpush1.bf16.msra.mxu0 %v1410
      %6077 = vmatprep.subr.bf16.mxu0 0
      %6078 = vmatpush1.bf16.msra.mxu0 0
      %6079 = vmatprep.subr.bf16.mxu0 0
      %6080 = vmatpush1.bf16.msra.mxu0 0
      %6081 = vmatprep.subr.bf16.mxu0 0
      %6082 = vmatpush1.bf16.msra.mxu0 0
      %6083 = vmatprep.subr.bf16.mxu0 0
      %6084 = vmatpush1.bf16.msra.mxu0 0
      %6085 = vmatprep.subr.bf16.mxu0 0
      %6086 = vmatpush1.bf16.msra.mxu0 0
      %6087 = vmatprep.subr.bf16.mxu0 0
      %6088 = vmatpush1.bf16.msra.mxu0 0
      %6089 = vmatprep.subr.bf16.mxu0 0
      %6090 = vmatpush1.bf16.msra.mxu0 0
      %6091 = vmatprep.subr.bf16.mxu0 0
      %6092 = vmatpush1.bf16.msra.mxu0 0
      %6093 = vmatprep.subr.bf16.mxu0 0
      %6094 = vmatpush1.bf16.msra.mxu0 0
      %6095 = vmatprep.subr.bf16.mxu0 0
      %6096 = vmatpush1.bf16.msra.mxu0 0
      %6097 = vmatprep.subr.bf16.mxu0 0
      %6098 = vmatpush1.bf16.msra.mxu0 0
      %6099 = vmatprep.subr.bf16.mxu0 0
      %6100 = vmatpush1.bf16.msra.mxu0 0
      %6101 = vmatprep.subr.bf16.mxu0 0
      %6102 = vmatpush1.bf16.msra.mxu0 0
      %6103 = vmatprep.subr.bf16.mxu0 0
      %6104 = vmatpush1.bf16.msra.mxu0 0
      %6105 = vmatprep.subr.bf16.mxu0 0
      %6106 = vmatpush1.bf16.msra.mxu0 0
      %6107 = vmatprep.mubr.bf16.mxu0 0
      %6108 = vmatmul.mubr.bf16.gmra.mrb[0].mxu0 %v6073
      %v6109 = vpop.f32.mrb[0].mxu0
      %v6110 = vadd.f32 0.0, %v6109
      %v6111 = vpop.f32.mrb[0].mxu0
      %v6112 = vpop.f32.mrb[0].mxu0
      %v6113 = vpop.f32.mrb[0].mxu0
      %6114 = vdwg.mxu0
      %v6116 = vunpack.c.l.b16 %v5802
      %v6117 = vunpack.c.h.b16 %v5802
      %6118 = vset.pattern.permute.xlu0 0
      %6119 = vperm.xlu0 %6118, %v6116
      %v6120 = vpop.permute.xlu0 %6119
      %6121 = vset.pattern.permute.xlu0 0
      %6122 = vperm.xlu0 %6121, %v6117
      %v6123 = vpop.permute.xlu0 %6122
      %v6124 = vlaneseq
      %v6125 = vshrl.u32 %v6124, 7
      %v6126 = vsub.s32 %v719, %v6125
      %v6127 = vrot.slane %v6120, %v6126
      %v6128 = vlaneseq
      %v6129 = vshrl.u32 %v6128, 7
      %v6130 = vsub.s32 %v724, %v6129
      %v6131 = vrot.slane %v6123, %v6130
      %v6132 = vsel %vm729, %v6131, %v6127
      %v6133 = vpack.c.b16 %v6132, %v6132
      %v6135 = vsel %vm809, %v6133, 0
      %6137 = vmatprep.subr.bf16.mxu0 0
      %6138 = vmatpush1.bf16.msra.mxu0 %v1478
      %6139 = vmatprep.subr.bf16.mxu0 0
      %6140 = vmatpush1.bf16.msra.mxu0 0
      %6141 = vmatprep.subr.bf16.mxu0 0
      %6142 = vmatpush1.bf16.msra.mxu0 0
      %6143 = vmatprep.subr.bf16.mxu0 0
      %6144 = vmatpush1.bf16.msra.mxu0 0
      %6145 = vmatprep.subr.bf16.mxu0 0
      %6146 = vmatpush1.bf16.msra.mxu0 0
      %6147 = vmatprep.subr.bf16.mxu0 0
      %6148 = vmatpush1.bf16.msra.mxu0 0
      %6149 = vmatprep.subr.bf16.mxu0 0
      %6150 = vmatpush1.bf16.msra.mxu0 0
      %6151 = vmatprep.subr.bf16.mxu0 0
      %6152 = vmatpush1.bf16.msra.mxu0 0
      %6153 = vmatprep.subr.bf16.mxu0 0
      %6154 = vmatpush1.bf16.msra.mxu0 0
      %6155 = vmatprep.subr.bf16.mxu0 0
      %6156 = vmatpush1.bf16.msra.mxu0 0
      %6157 = vmatprep.subr.bf16.mxu0 0
      %6158 = vmatpush1.bf16.msra.mxu0 0
      %6159 = vmatprep.subr.bf16.mxu0 0
      %6160 = vmatpush1.bf16.msra.mxu0 0
      %6161 = vmatprep.subr.bf16.mxu0 0
      %6162 = vmatpush1.bf16.msra.mxu0 0
      %6163 = vmatprep.subr.bf16.mxu0 0
      %6164 = vmatpush1.bf16.msra.mxu0 0
      %6165 = vmatprep.subr.bf16.mxu0 0
      %6166 = vmatpush1.bf16.msra.mxu0 0
      %6167 = vmatprep.subr.bf16.mxu0 0
      %6168 = vmatpush1.bf16.msra.mxu0 0
      %6169 = vmatprep.mubr.bf16.mxu0 0
      %6170 = vmatmul.mubr.bf16.gmra.mrb[0].mxu0 %v6135
      %v6171 = vpop.f32.mrb[0].mxu0
      %v6172 = vadd.f32 0.0, %v6171
      %v6173 = vpop.f32.mrb[0].mxu0
      %v6174 = vpop.f32.mrb[0].mxu0
      %v6175 = vpop.f32.mrb[0].mxu0
      %6176 = vdwg.mxu0
      %v6178 = vunpack.c.l.b16 %v5803
      %v6179 = vunpack.c.h.b16 %v5803
      %6180 = vset.pattern.permute.xlu0 0
      %6181 = vperm.xlu0 %6180, %v6178
      %v6182 = vpop.permute.xlu0 %6181
      %6183 = vset.pattern.permute.xlu0 0
      %6184 = vperm.xlu0 %6183, %v6179
      %v6185 = vpop.permute.xlu0 %6184
      %v6186 = vlaneseq
      %v6187 = vshrl.u32 %v6186, 7
      %v6188 = vsub.s32 %v719, %v6187
      %v6189 = vrot.slane %v6182, %v6188
      %v6190 = vlaneseq
      %v6191 = vshrl.u32 %v6190, 7
      %v6192 = vsub.s32 %v724, %v6191
      %v6193 = vrot.slane %v6185, %v6192
      %v6194 = vsel %vm729, %v6193, %v6189
      %v6195 = vpack.c.b16 %v6194, %v6194
      %v6197 = vsel %vm809, %v6195, 0
      %6199 = vmatprep.subr.bf16.mxu0 0
      %6200 = vmatpush1.bf16.msra.mxu0 %v1546
      %6201 = vmatprep.subr.bf16.mxu0 0
      %6202 = vmatpush1.bf16.msra.mxu0 0
      %6203 = vmatprep.subr.bf16.mxu0 0
      %6204 = vmatpush1.bf16.msra.mxu0 0
      %6205 = vmatprep.subr.bf16.mxu0 0
      %6206 = vmatpush1.bf16.msra.mxu0 0
      %6207 = vmatprep.subr.bf16.mxu0 0
      %6208 = vmatpush1.bf16.msra.mxu0 0
      %6209 = vmatprep.subr.bf16.mxu0 0
      %6210 = vmatpush1.bf16.msra.mxu0 0
      %6211 = vmatprep.subr.bf16.mxu0 0
      %6212 = vmatpush1.bf16.msra.mxu0 0
      %6213 = vmatprep.subr.bf16.mxu0 0
      %6214 = vmatpush1.bf16.msra.mxu0 0
      %6215 = vmatprep.subr.bf16.mxu0 0
      %6216 = vmatpush1.bf16.msra.mxu0 0
      %6217 = vmatprep.subr.bf16.mxu0 0
      %6218 = vmatpush1.bf16.msra.mxu0 0
      %6219 = vmatprep.subr.bf16.mxu0 0
      %6220 = vmatpush1.bf16.msra.mxu0 0
      %6221 = vmatprep.subr.bf16.mxu0 0
      %6222 = vmatpush1.bf16.msra.mxu0 0
      %6223 = vmatprep.subr.bf16.mxu0 0
      %6224 = vmatpush1.bf16.msra.mxu0 0
      %6225 = vmatprep.subr.bf16.mxu0 0
      %6226 = vmatpush1.bf16.msra.mxu0 0
      %6227 = vmatprep.subr.bf16.mxu0 0
      %6228 = vmatpush1.bf16.msra.mxu0 0
      %6229 = vmatprep.subr.bf16.mxu0 0
      %6230 = vmatpush1.bf16.msra.mxu0 0
      %6231 = vmatprep.mubr.bf16.mxu0 0
      %6232 = vmatmul.mubr.bf16.gmra.mrb[0].mxu0 %v6197
      %v6233 = vpop.f32.mrb[0].mxu0
      %v6234 = vadd.f32 0.0, %v6233
      %v6235 = vpop.f32.mrb[0].mxu0
      %v6236 = vpop.f32.mrb[0].mxu0
      %v6237 = vpop.f32.mrb[0].mxu0
      %6238 = vdwg.mxu0
      %v6240 = vunpack.c.l.b16 %v5804
      %v6241 = vunpack.c.h.b16 %v5804
      %6242 = vset.pattern.permute.xlu0 0
      %6243 = vperm.xlu0 %6242, %v6240
      %v6244 = vpop.permute.xlu0 %6243
      %6245 = vset.pattern.permute.xlu0 0
      %6246 = vperm.xlu0 %6245, %v6241
      %v6247 = vpop.permute.xlu0 %6246
      %v6248 = vlaneseq
      %v6249 = vshrl.u32 %v6248, 7
      %v6250 = vsub.s32 %v719, %v6249
      %v6251 = vrot.slane %v6244, %v6250
      %v6252 = vlaneseq
      %v6253 = vshrl.u32 %v6252, 7
      %v6254 = vsub.s32 %v724, %v6253
      %v6255 = vrot.slane %v6247, %v6254
      %v6256 = vsel %vm729, %v6255, %v6251
      %v6257 = vpack.c.b16 %v6256, %v6256
      %v6259 = vsel %vm809, %v6257, 0
      %6261 = vmatprep.subr.bf16.mxu0 0
      %6262 = vmatpush1.bf16.msra.mxu0 %v1614
      %6263 = vmatprep.subr.bf16.mxu0 0
      %6264 = vmatpush1.bf16.msra.mxu0 0
      %6265 = vmatprep.subr.bf16.mxu0 0
      %6266 = vmatpush1.bf16.msra.mxu0 0
      %6267 = vmatprep.subr.bf16.mxu0 0
      %6268 = vmatpush1.bf16.msra.mxu0 0
      %6269 = vmatprep.subr.bf16.mxu0 0
      %6270 = vmatpush1.bf16.msra.mxu0 0
      %6271 = vmatprep.subr.bf16.mxu0 0
      %6272 = vmatpush1.bf16.msra.mxu0 0
      %6273 = vmatprep.subr.bf16.mxu0 0
      %6274 = vmatpush1.bf16.msra.mxu0 0
      %6275 = vmatprep.subr.bf16.mxu0 0
      %6276 = vmatpush1.bf16.msra.mxu0 0
      %6277 = vmatprep.subr.bf16.mxu0 0
      %6278 = vmatpush1.bf16.msra.mxu0 0
      %6279 = vmatprep.subr.bf16.mxu0 0
      %6280 = vmatpush1.bf16.msra.mxu0 0
      %6281 = vmatprep.subr.bf16.mxu0 0
      %6282 = vmatpush1.bf16.msra.mxu0 0
      %6283 = vmatprep.subr.bf16.mxu0 0
      %6284 = vmatpush1.bf16.msra.mxu0 0
      %6285 = vmatprep.subr.bf16.mxu0 0
      %6286 = vmatpush1.bf16.msra.mxu0 0
      %6287 = vmatprep.subr.bf16.mxu0 0
      %6288 = vmatpush1.bf16.msra.mxu0 0
      %6289 = vmatprep.subr.bf16.mxu0 0
      %6290 = vmatpush1.bf16.msra.mxu0 0
      %6291 = vmatprep.subr.bf16.mxu0 0
      %6292 = vmatpush1.bf16.msra.mxu0 0
      %6293 = vmatprep.mubr.bf16.mxu0 0
      %6294 = vmatmul.mubr.bf16.gmra.mrb[0].mxu0 %v6259
      %v6295 = vpop.f32.mrb[0].mxu0
      %v6296 = vadd.f32 0.0, %v6295
      %v6297 = vpop.f32.mrb[0].mxu0
      %v6298 = vpop.f32.mrb[0].mxu0
      %v6299 = vpop.f32.mrb[0].mxu0
      %6300 = vdwg.mxu0
      %s6301 = smul.u32 %s5154, 8
      %s6302 = scalar_lea.vmem %s0, %s6301
      %v6303 = vld [vmem:[%s6302] sm:$0xff]
      %v6304 = vpack.c.bf16 %v5862, %v5862
      %v6305 = vpack.c.bf16 %v5924, %v5924
      %v6306 = vpack.c.bf16 %v5986, %v5986
      %v6307 = vpack.c.bf16 %v6048, %v6048
      %v6308 = vpack.c.bf16 %v6110, %v6110
      %v6309 = vpack.c.bf16 %v6172, %v6172
      %v6310 = vpack.c.bf16 %v6234, %v6234
      %v6311 = vpack.c.bf16 %v6296, %v6296
      %v6312 = vld [vmem:[%s6] sm:$0xf]
      %v6313 = vld [vmem:[%s6 + $0x4] sm:$0xf]
      %v6314 = vld [vmem:[%s6 + $0x8] sm:$0xf]
      %v6315 = vld [vmem:[%s6 + $0xc] sm:$0xf]
      %v6324 = vunpack.c.l.b16 %v6304
      %v6325 = vunpack.c.l.b16 %v6305
      %v6326 = vunpack.c.l.b16 %v6306
      %v6327 = vunpack.c.l.b16 %v6307
      %v6328 = vunpack.c.l.b16 %v6308
      %v6329 = vunpack.c.l.b16 %v6309
      %v6330 = vunpack.c.l.b16 %v6310
      %v6331 = vunpack.c.l.b16 %v6311
      %v6332 = vrot.slane %v6325, 7
      %v6333 = vsel %vm794, %v6332, %v6324
      %v6334 = vrot.slane %v6326, 6
      %v6335 = vsel %vm796, %v6334, %v6333
      %v6336 = vrot.slane %v6327, 5
      %v6337 = vsel %vm798, %v6336, %v6335
      %v6338 = vrot.slane %v6328, 4
      %v6339 = vsel %vm800, %v6338, %v6337
      %v6340 = vrot.slane %v6329, 3
      %v6341 = vsel %vm802, %v6340, %v6339
      %v6342 = vrot.slane %v6330, 2
      %v6343 = vsel %vm804, %v6342, %v6341
      %v6344 = vrot.slane %v6331, 1
      %v6345 = vsel %vm806, %v6344, %v6343
      %v6346 = vpack.c.b16 %v6345, %v6345
      %v6351 = vunpack.c.l.b16 %v6312
      %v6352 = vunpack.c.l.b16 %v6313
      %v6353 = vunpack.c.l.b16 %v6314
      %v6354 = vunpack.c.l.b16 %v6315
      %v6355 = vpack.c.b16 %v6352, %v6351
      %v6356 = vpack.c.b16 %v6354, %v6353
      %v6360 = vsel %vm466, %v6346, 0
      %6362 = vmatprep.subr.bf16.mxu0 0
      %6363 = vmatpush1.bf16.msra.mxu0 %v6355
      %6364 = vmatprep.subr.bf16.mxu0 0
      %6365 = vmatpush1.bf16.msra.mxu0 %v6356
      %6366 = vmatprep.subr.bf16.mxu0 0
      %6367 = vmatpush1.bf16.msra.mxu0 0
      %6368 = vmatprep.subr.bf16.mxu0 0
      %6369 = vmatpush1.bf16.msra.mxu0 0
      %6370 = vmatprep.subr.bf16.mxu0 0
      %6371 = vmatpush1.bf16.msra.mxu0 0
      %6372 = vmatprep.subr.bf16.mxu0 0
      %6373 = vmatpush1.bf16.msra.mxu0 0
      %6374 = vmatprep.subr.bf16.mxu0 0
      %6375 = vmatpush1.bf16.msra.mxu0 0
      %6376 = vmatprep.subr.bf16.mxu0 0
      %6377 = vmatpush1.bf16.msra.mxu0 0
      %6378 = vmatprep.subr.bf16.mxu0 0
      %6379 = vmatpush1.bf16.msra.mxu0 0
      %6380 = vmatprep.subr.bf16.mxu0 0
      %6381 = vmatpush1.bf16.msra.mxu0 0
      %6382 = vmatprep.subr.bf16.mxu0 0
      %6383 = vmatpush1.bf16.msra.mxu0 0
      %6384 = vmatprep.subr.bf16.mxu0 0
      %6385 = vmatpush1.bf16.msra.mxu0 0
      %6386 = vmatprep.subr.bf16.mxu0 0
      %6387 = vmatpush1.bf16.msra.mxu0 0
      %6388 = vmatprep.subr.bf16.mxu0 0
      %6389 = vmatpush1.bf16.msra.mxu0 0
      %6390 = vmatprep.subr.bf16.mxu0 0
      %6391 = vmatpush1.bf16.msra.mxu0 0
      %6392 = vmatprep.subr.bf16.mxu0 0
      %6393 = vmatpush1.bf16.msra.mxu0 0
      %6394 = vmatprep.mubr.bf16.mxu0 0
      %6395 = vmatmul.mubr.bf16.gmra.mrb[0].mxu0 %v6360
      %v6396 = vpop.f32.mrb[0].mxu0
      %v6397 = vadd.f32 0.0, %v6396
      %v6398 = vpop.f32.mrb[0].mxu0
      %v6399 = vpop.f32.mrb[0].mxu0
      %v6400 = vpop.f32.mrb[0].mxu0
      %6401 = vdwg.mxu0
      %v6402 = vadd.f32 %v6303, %v6397
      %v6403 = vld [vmem:[%s7] sm:$0xf]
      %v6404 = vld [vmem:[%s7 + $0x4] sm:$0xf]
      %v6405 = vld [vmem:[%s7 + $0x8] sm:$0xf]
      %v6406 = vld [vmem:[%s7 + $0xc] sm:$0xf]
      %v6411 = vunpack.c.l.b16 %v6403
      %v6412 = vunpack.c.l.b16 %v6404
      %v6413 = vunpack.c.l.b16 %v6405
      %v6414 = vunpack.c.l.b16 %v6406
      %v6415 = vpack.c.b16 %v6412, %v6411
      %v6416 = vpack.c.b16 %v6414, %v6413
      %6419 = vmatprep.subr.bf16.mxu0 0
      %6420 = vmatpush1.bf16.msra.mxu0 %v6415
      %6421 = vmatprep.subr.bf16.mxu0 0
      %6422 = vmatpush1.bf16.msra.mxu0 %v6416
      %6423 = vmatprep.subr.bf16.mxu0 0
      %6424 = vmatpush1.bf16.msra.mxu0 0
      %6425 = vmatprep.subr.bf16.mxu0 0
      %6426 = vmatpush1.bf16.msra.mxu0 0
      %6427 = vmatprep.subr.bf16.mxu0 0
      %6428 = vmatpush1.bf16.msra.mxu0 0
      %6429 = vmatprep.subr.bf16.mxu0 0
      %6430 = vmatpush1.bf16.msra.mxu0 0
      %6431 = vmatprep.subr.bf16.mxu0 0
      %6432 = vmatpush1.bf16.msra.mxu0 0
      %6433 = vmatprep.subr.bf16.mxu0 0
      %6434 = vmatpush1.bf16.msra.mxu0 0
      %6435 = vmatprep.subr.bf16.mxu0 0
      %6436 = vmatpush1.bf16.msra.mxu0 0
      %6437 = vmatprep.subr.bf16.mxu0 0
      %6438 = vmatpush1.bf16.msra.mxu0 0
      %6439 = vmatprep.subr.bf16.mxu0 0
      %6440 = vmatpush1.bf16.msra.mxu0 0
      %6441 = vmatprep.subr.bf16.mxu0 0
      %6442 = vmatpush1.bf16.msra.mxu0 0
      %6443 = vmatprep.subr.bf16.mxu0 0
      %6444 = vmatpush1.bf16.msra.mxu0 0
      %6445 = vmatprep.subr.bf16.mxu0 0
      %6446 = vmatpush1.bf16.msra.mxu0 0
      %6447 = vmatprep.subr.bf16.mxu0 0
      %6448 = vmatpush1.bf16.msra.mxu0 0
      %6449 = vmatprep.subr.bf16.mxu0 0
      %6450 = vmatpush1.bf16.msra.mxu0 0
      %6451 = vmatprep.mubr.bf16.mxu0 0
      %6452 = vmatmul.mubr.bf16.gmra.mrb[0].mxu0 %v4966
      %v6453 = vpop.f32.mrb[0].mxu0
      %v6454 = vadd.f32 0.0, %v6453
      %v6455 = vpop.f32.mrb[0].mxu0
      %v6456 = vpop.f32.mrb[0].mxu0
      %v6457 = vpop.f32.mrb[0].mxu0
      %6458 = vdwg.mxu0
      %v6459 = vadd.f32 %v6402, %v6454
      %v6460 = vxor.u32 %v6459, 2147483648
      %v6461 = vmul.f32 %v6460, 1.442695
      %v6462 = vpow.pop %v6461
      %v6463 = vadd.f32 %v6462, 1.0
      %v6464 = vrcp.pop %v6463
      %v6465 = vmul.f32 1.0, %v6464
      %v6466 = vtanh.pop %v6459
      %v6467 = vmul.f32 %v6465, %v4931
      %6469 = vrot.lane.b32.xlu0 %v6466, 64
      %v6470 = vpop.permute.xlu0 %6469
      %v6472 = vmul.f32 %v6465, %v6470
      %6474 = vrot.lane.b32.xlu0 %v6472, 32
      %v6475 = vpop.permute.xlu0 %6474
      %v6477 = vadd.f32 %v6467, %v6475
      %v6478 = vtanh.pop %v6477
      %6480 = vrot.lane.b32.xlu0 %v6478, 64
      %v6481 = vpop.permute.xlu0 %6480
      %v6483 = vmul.f32 %v6465, %v6481
      %v6484 = vpack.c.bf16 %v6483, %v6483
      %v6485 = vld [vmem:[%s8] sm:$0xf]
      %v6486 = vld [vmem:[%s8 + $0x4] sm:$0xf]
      %v6487 = vld [vmem:[%s8 + $0x8] sm:$0xf]
      %v6488 = vld [vmem:[%s8 + $0xc] sm:$0xf]
      %v6489 = vld [vmem:[%s9] sm:$0x1]
      %v6491 = vlaneseq
      %v6492 = vshrl.u32 %v6491, 7
      %v6493 = vsub.s32 0, %v6492
      %v6494 = vrot.slane %v6489, %v6493
      %6497 = vrot.lane.b32.xlu0 %v6484, 32
      %v6498 = vpop.permute.xlu0 %6497
      %v6503 = vunpack.c.l.b16 %v6485
      %v6504 = vunpack.c.l.b16 %v6486
      %v6505 = vunpack.c.l.b16 %v6487
      %v6506 = vunpack.c.l.b16 %v6488
      %v6507 = vpack.c.b16 %v6504, %v6503
      %v6508 = vpack.c.b16 %v6506, %v6505
      %v6512 = vsel %vm466, %v6498, 0
      %6514 = vmatprep.subr.bf16.mxu0 0
      %6515 = vmatpush1.bf16.msra.mxu0 %v6507
      %6516 = vmatprep.subr.bf16.mxu0 0
      %6517 = vmatpush1.bf16.msra.mxu0 %v6508
      %6518 = vmatprep.subr.bf16.mxu0 0
      %6519 = vmatpush1.bf16.msra.mxu0 0
      %6520 = vmatprep.subr.bf16.mxu0 0
      %6521 = vmatpush1.bf16.msra.mxu0 0
      %6522 = vmatprep.subr.bf16.mxu0 0
      %6523 = vmatpush1.bf16.msra.mxu0 0
      %6524 = vmatprep.subr.bf16.mxu0 0
      %6525 = vmatpush1.bf16.msra.mxu0 0
      %6526 = vmatprep.subr.bf16.mxu0 0
      %6527 = vmatpush1.bf16.msra.mxu0 0
      %6528 = vmatprep.subr.bf16.mxu0 0
      %6529 = vmatpush1.bf16.msra.mxu0 0
      %6530 = vmatprep.subr.bf16.mxu0 0
      %6531 = vmatpush1.bf16.msra.mxu0 0
      %6532 = vmatprep.subr.bf16.mxu0 0
      %6533 = vmatpush1.bf16.msra.mxu0 0
      %6534 = vmatprep.subr.bf16.mxu0 0
      %6535 = vmatpush1.bf16.msra.mxu0 0
      %6536 = vmatprep.subr.bf16.mxu0 0
      %6537 = vmatpush1.bf16.msra.mxu0 0
      %6538 = vmatprep.subr.bf16.mxu0 0
      %6539 = vmatpush1.bf16.msra.mxu0 0
      %6540 = vmatprep.subr.bf16.mxu0 0
      %6541 = vmatpush1.bf16.msra.mxu0 0
      %6542 = vmatprep.subr.bf16.mxu0 0
      %6543 = vmatpush1.bf16.msra.mxu0 0
      %6544 = vmatprep.subr.bf16.mxu0 0
      %6545 = vmatpush1.bf16.msra.mxu0 0
      %6546 = vmatprep.mubr.bf16.mxu0 0
      %6547 = vmatmul.mubr.bf16.gmra.mrb[0].mxu0 %v6512
      %v6548 = vpop.f32.mrb[0].mxu0
      %v6549 = vadd.f32 %v6494, %v6548
      %v6550 = vpop.f32.mrb[0].mxu0
      %v6551 = vpop.f32.mrb[0].mxu0
      %v6552 = vpop.f32.mrb[0].mxu0
      %6553 = vdwg.mxu0
      %6554 = vst [vmem:[%s374 + $0x18] sm:$0xff] %v6549
      %6571 = vset.pattern.permute.xlu0 0
      %6572 = vperm.xlu0 %6571, %v5781
      %v6573 = vpop.permute.xlu0 %6572
      %6574 = vset.pattern.permute.xlu0 0
      %6575 = vperm.xlu0 %6574, %v5782
      %v6576 = vpop.permute.xlu0 %6575
      %6577 = vset.pattern.permute.xlu0 0
      %6578 = vperm.xlu0 %6577, %v5783
      %v6579 = vpop.permute.xlu0 %6578
      %6580 = vset.pattern.permute.xlu0 0
      %6581 = vperm.xlu0 %6580, %v5784
      %v6582 = vpop.permute.xlu0 %6581
      %6583 = vset.pattern.permute.xlu0 0
      %6584 = vperm.xlu0 %6583, %v5785
      %v6585 = vpop.permute.xlu0 %6584
      %6586 = vset.pattern.permute.xlu0 0
      %6587 = vperm.xlu0 %6586, %v5786
      %v6588 = vpop.permute.xlu0 %6587
      %6589 = vset.pattern.permute.xlu0 0
      %6590 = vperm.xlu0 %6589, %v5787
      %v6591 = vpop.permute.xlu0 %6590
      %6592 = vset.pattern.permute.xlu0 0
      %6593 = vperm.xlu0 %6592, %v5788
      %v6594 = vpop.permute.xlu0 %6593
      %6595 = vset.pattern.permute.xlu0 0
      %6596 = vperm.xlu0 %6595, %v5789
      %v6597 = vpop.permute.xlu0 %6596
      %6598 = vset.pattern.permute.xlu0 0
      %6599 = vperm.xlu0 %6598, %v5790
      %v6600 = vpop.permute.xlu0 %6599
      %6601 = vset.pattern.permute.xlu0 0
      %6602 = vperm.xlu0 %6601, %v5791
      %v6603 = vpop.permute.xlu0 %6602
      %6604 = vset.pattern.permute.xlu0 0
      %6605 = vperm.xlu0 %6604, %v5792
      %v6606 = vpop.permute.xlu0 %6605
      %6607 = vset.pattern.permute.xlu0 0
      %6608 = vperm.xlu0 %6607, %v5793
      %v6609 = vpop.permute.xlu0 %6608
      %6610 = vset.pattern.permute.xlu0 0
      %6611 = vperm.xlu0 %6610, %v5794
      %v6612 = vpop.permute.xlu0 %6611
      %6613 = vset.pattern.permute.xlu0 0
      %6614 = vperm.xlu0 %6613, %v5795
      %v6615 = vpop.permute.xlu0 %6614
      %6616 = vset.pattern.permute.xlu0 0
      %6617 = vperm.xlu0 %6616, %v5796
      %v6618 = vpop.permute.xlu0 %6617
      %v6619 = vlaneseq
      %v6620 = vshrl.u32 %v6619, 7
      %v6621 = vsub.s32 %v719, %v6620
      %v6622 = vrot.slane %v6573, %v6621
      %v6623 = vlaneseq
      %v6624 = vshrl.u32 %v6623, 7
      %v6625 = vsub.s32 %v724, %v6624
      %v6626 = vrot.slane %v6576, %v6625
      %v6627 = vsel %vm729, %v6626, %v6622
      %v6628 = vlaneseq
      %v6629 = vshrl.u32 %v6628, 7
      %v6630 = vsub.s32 %v719, %v6629
      %v6631 = vrot.slane %v6579, %v6630
      %v6632 = vlaneseq
      %v6633 = vshrl.u32 %v6632, 7
      %v6634 = vsub.s32 %v724, %v6633
      %v6635 = vrot.slane %v6582, %v6634
      %v6636 = vsel %vm729, %v6635, %v6631
      %v6637 = vlaneseq
      %v6638 = vshrl.u32 %v6637, 7
      %v6639 = vsub.s32 %v719, %v6638
      %v6640 = vrot.slane %v6585, %v6639
      %v6641 = vlaneseq
      %v6642 = vshrl.u32 %v6641, 7
      %v6643 = vsub.s32 %v724, %v6642
      %v6644 = vrot.slane %v6588, %v6643
      %v6645 = vsel %vm729, %v6644, %v6640
      %v6646 = vlaneseq
      %v6647 = vshrl.u32 %v6646, 7
      %v6648 = vsub.s32 %v719, %v6647
      %v6649 = vrot.slane %v6591, %v6648
      %v6650 = vlaneseq
      %v6651 = vshrl.u32 %v6650, 7
      %v6652 = vsub.s32 %v724, %v6651
      %v6653 = vrot.slane %v6594, %v6652
      %v6654 = vsel %vm729, %v6653, %v6649
      %v6655 = vlaneseq
      %v6656 = vshrl.u32 %v6655, 7
      %v6657 = vsub.s32 %v719, %v6656
      %v6658 = vrot.slane %v6597, %v6657
      %v6659 = vlaneseq
      %v6660 = vshrl.u32 %v6659, 7
      %v6661 = vsub.s32 %v724, %v6660
      %v6662 = vrot.slane %v6600, %v6661
      %v6663 = vsel %vm729, %v6662, %v6658
      %v6664 = vlaneseq
      %v6665 = vshrl.u32 %v6664, 7
      %v6666 = vsub.s32 %v719, %v6665
      %v6667 = vrot.slane %v6603, %v6666
      %v6668 = vlaneseq
      %v6669 = vshrl.u32 %v6668, 7
      %v6670 = vsub.s32 %v724, %v6669
      %v6671 = vrot.slane %v6606, %v6670
      %v6672 = vsel %vm729, %v6671, %v6667
      %v6673 = vlaneseq
      %v6674 = vshrl.u32 %v6673, 7
      %v6675 = vsub.s32 %v719, %v6674
      %v6676 = vrot.slane %v6609, %v6675
      %v6677 = vlaneseq
      %v6678 = vshrl.u32 %v6677, 7
      %v6679 = vsub.s32 %v724, %v6678
      %v6680 = vrot.slane %v6612, %v6679
      %v6681 = vsel %vm729, %v6680, %v6676
      %v6682 = vlaneseq
      %v6683 = vshrl.u32 %v6682, 7
      %v6684 = vsub.s32 %v719, %v6683
      %v6685 = vrot.slane %v6615, %v6684
      %v6686 = vlaneseq
      %v6687 = vshrl.u32 %v6686, 7
      %v6688 = vsub.s32 %v724, %v6687
      %v6689 = vrot.slane %v6618, %v6688
      %v6690 = vsel %vm729, %v6689, %v6685
      %v6691 = vsel %vm794, %v6636, %v6627
      %v6692 = vsel %vm796, %v6645, %v6691
      %v6693 = vsel %vm798, %v6654, %v6692
      %v6694 = vsel %vm800, %v6663, %v6693
      %v6695 = vsel %vm802, %v6672, %v6694
      %v6696 = vsel %vm804, %v6681, %v6695
      %v6697 = vsel %vm806, %v6690, %v6696
      %6699 = vst.msk [vmem:[%s380 + $0x18] sm:$0xff] %vm809, %v6697
      %6701 = vrot.lane.b32.xlu0 %v6483, 32
      %v6702 = vpop.permute.xlu0 %6701
      %6704 = vst.msk [vmem:[#allocation2] sm:$0xff] %vm466, %v6702
      %6706 = vrot.lane.b32.xlu0 %v6477, 96
      %v6707 = vpop.permute.xlu0 %6706
      %6709 = vst.msk [vmem:[#allocation3] sm:$0xff] %vm466, %v6707
      %s6710 = smul.u32 4, %s23
      %p6711 = scmp.lt.s32.totalorder %s6710, 7
      %s6712 = scalar_select %p6711, %s6710, 7
      %s6713 = smul.addr %s6712, 8
      %s6714 = scalar_lea.vmem %s10, %s6713
      %s6715 = smul.u32 4, %s23
      %p6716 = scmp.lt.s32.totalorder %s6715, 7
      %s6717 = scalar_select %p6716, %s6715, 7
      %s6718 = smul.addr %s6717, 8
      %s6719 = scalar_lea.vmem %s11, %s6718
      // Predicated region
      $region65: #{decoder_with_attention_forward.1} parent=59 // pred_check
        %p6720 = pneg %p251
      $region66: #{decoder_with_attention_forward.1} parent=59 // pred_check_branch
        %6722 = sbr.rel (%p6720) target = $region68
      $region67: #{decoder_with_attention_forward.1} parent=59 // pred_region
        %s6723 = smul.u32 4, %s23
      $region68: #{decoder_with_attention_forward.1} parent=59 // pred_fallthru
        _
      // Predicated region
      $region69: #{decoder_with_attention_forward.1} parent=59 // pred_check
        %p6724 = pneg %p277
      $region70: #{decoder_with_attention_forward.1} parent=59 // pred_check_branch
        %6726 = sbr.rel (%p6724) target = $region72
      $region71: #{decoder_with_attention_forward.1} parent=59 // pred_region
        %s6727 = smul.u32 4, %s23
      $region72: #{decoder_with_attention_forward.1} parent=59 // pred_fallthru
        _
    $region60: #{decoder_with_attention_forward.1} parent=5 // pred_fallthru
      _
    %p6728 = scmp.le.s32.totalorder 2, %s18
    // Predicated region
    $region73: #{decoder_with_attention_forward.1} parent=5 // pred_check
      %p6729 = pneg %p6728
    $region74: #{decoder_with_attention_forward.1} parent=5 // pred_check_branch
      %6731 = sbr.rel (%p6729) target = $region76
    $region75: #{decoder_with_attention_forward.1} parent=5 // pred_region
      %s6732 = ssub.s32 %s18, 2
      // Predicated region
      $region77: #{decoder_with_attention_forward.1} parent=75 // pred_check
        %p6733 = pneg %p257
      $region78: #{decoder_with_attention_forward.1} parent=75 // pred_check_branch
        %6735 = sbr.rel (%p6733) target = $region80
      $region79: #{decoder_with_attention_forward.1} parent=75 // pred_region
        %s6736 = smul.u32 4, %s24
        %p6737 = scmp.lt.s32.totalorder %s6736, 7
        %s6738 = scalar_select %p6737, %s6736, 7
        %s6739 = smul.addr %s6738, 8
        %s6740 = scalar_lea.vmem %s10, %s6739
      $region80: #{decoder_with_attention_forward.1} parent=75 // pred_fallthru
        _
      // Predicated region
      $region81: #{decoder_with_attention_forward.1} parent=75 // pred_check
        %p6741 = pneg %p283
      $region82: #{decoder_with_attention_forward.1} parent=75 // pred_check_branch
        %6743 = sbr.rel (%p6741) target = $region84
      $region83: #{decoder_with_attention_forward.1} parent=75 // pred_region
        %s6744 = smul.u32 4, %s24
        %p6745 = scmp.lt.s32.totalorder %s6744, 7
        %s6746 = scalar_select %p6745, %s6744, 7
        %s6747 = smul.addr %s6746, 8
        %s6748 = scalar_lea.vmem %s11, %s6747
      $region84: #{decoder_with_attention_forward.1} parent=75 // pred_fallthru
        _
    $region76: #{decoder_with_attention_forward.1} parent=5 // pred_fallthru
      _
  $region6: #{decoder_with_attention_forward.1} parent=0 // loop_footer
    %s22 = sadd.s32 1, %s18
  $region7: #{decoder_with_attention_forward.1} parent=0 // loop_footer_branch
    %17 = sbr.rel target = $region3
  $region8: #{decoder_with_attention_forward.1} parent=0 // loop_exit
    _

</llo_original>
